<compile_context>
chip_gen: v6e
topology: v6e:2x2x1
jax: 0.10.0
libtpu: 0.0.40
codegen_flags: <defaults>
</compile_context>

<pallas_src>
import numpy as np
import jax
import jax.numpy as jnp
from jax import lax
from jax.experimental import pallas as pl
from jax.experimental.pallas import tpu as pltpu


# ----------------------------------------------------------------------------
# Kernel
# ----------------------------------------------------------------------------
def _make_decoder_kernel(first_omega_0, hidden_omega_0, n_hidden_sine):
    """Full SIREN decoder on one (batch, row-tile) in transposed layout.

    Ref order: coords, c_contrib, Wx_t, (W1_t, b1), ..., (Wf_t, bf), out
      coords    : (1, tm, dim)       row-major coordinate tile
      c_contrib : (1, hidden, 1)     c @ W_c + b0 for this batch (precomputed)
      W*_t      : (out_f, in_f)      weights in torch (out, in) layout
      b*        : (out_f, 1)
      out       : (1, out_dim, tm)   lane-dense (points on the lane axis)
    """

    def kernel(x_ref, cc_ref, wx_ref, *refs):
        out_ref = refs[-1]
        p = refs[:-1]                       # alternating W_t, b refs

        x = x_ref[0].astype(jnp.float32)    # (tm, dim)
        cc = cc_ref[0]                      # (hidden, 1)

        # First sine layer (transposed):  Wx_t @ x^T + (c @ W_c + b0)
        pre = lax.dot_general(
            wx_ref[...], x,
            dimension_numbers=(((1,), (1,)), ((), ())),
            preferred_element_type=jnp.float32)          # (hidden, tm)
        h = jnp.sin(first_omega_0 * (pre + cc))

        # Hidden sine layers.
        for li in range(n_hidden_sine):
            w = p[2 * li][...]              # (hidden, hidden)
            b = p[2 * li + 1][...]          # (hidden, 1)
            pre = jnp.dot(w, h, preferred_element_type=jnp.float32) + b
            h = jnp.sin(hidden_omega_0 * pre)

        # Final linear layer; the (y[...,1:4]+1)/2 postprocess is already
        # folded into wf/bf by the wrapper.
        wf = p[-2][...]                     # (out_dim, hidden)
        bf = p[-1][...]                     # (out_dim, 1)
        y = jnp.dot(wf, h, preferred_element_type=jnp.float32) + bf
        out_ref[0] = y.astype(out_ref.dtype)             # lane-dense store

    return kernel


# ----------------------------------------------------------------------------
# Wrapper
# ----------------------------------------------------------------------------
def decoder_forward(coords, c, params, *, first_omega_0=30.0,
                    hidden_omega_0=30.0, tm=512):
    """Pallas implementation of Decoder.forward (default flags).

    coords: (N, *, dim) float32
    c:      (N, 1, c_dim) or None
    params: list of (W, b) with W: (in, out), b: (out,) (or (1, out)); the
            last pair is the outermost linear layer, preceding pairs are
            sine layers.
    returns (N, *, out_dim)
    """
    lead = coords.shape[:-1]
    dim = coords.shape[-1]
    N = lead[0]
    T = int(np.prod(lead[1:])) if len(lead) > 1 else 1

    coords3 = coords.reshape(N, T, dim).astype(jnp.float32)

    w0, b0 = params[0]
    w0 = w0.astype(jnp.float32)
    b0 = jnp.reshape(b0, (-1,)).astype(jnp.float32)
    hidden = w0.shape[1]
    c_dim = w0.shape[0] - dim
    assert c_dim >= 0

    # Per-batch latent contribution: c @ W_c + b0  (tiny, done once in XLA;
    # replaces the broadcast+concat of the previous version).
    if c is not None and c.size > 0 and c_dim > 0:
        c2 = c.reshape(N, c_dim).astype(jnp.float32)
        cc = c2 @ w0[:c_dim] + b0[None, :]                    # (N, hidden)
    else:
        cc = jnp.broadcast_to(b0[None, :], (N, hidden))
    cc = cc.reshape(N, hidden, 1)

    wx_t = w0[c_dim:].T                                       # (hidden, dim)

    # Final layer, with output[...,1:4] = (output[...,1:4]+1)/2 folded in.
    wf, bf = params[-1]
    wf = wf.astype(jnp.float32)
    bf = jnp.reshape(bf, (-1,)).astype(jnp.float32)
    out_dim = wf.shape[1]
    lo, hi = 1, min(4, out_dim)
    scale = jnp.ones((out_dim,), jnp.float32).at[lo:hi].set(0.5)
    shift = jnp.zeros((out_dim,), jnp.float32).at[lo:hi].set(0.5)
    wf_t = (wf * scale[None, :]).T                            # (out_dim, hidden)
    bf_c = (bf * scale + shift).reshape(out_dim, 1)

    # Flatten parameters (all in torch (out, in) layout for transposed compute).
    flat = [wx_t]
    for w, b in params[1:-1]:
        flat.append(w.astype(jnp.float32).T)                  # (hidden, hidden)
        flat.append(jnp.reshape(b, (-1, 1)).astype(jnp.float32))
    flat.append(wf_t)
    flat.append(bf_c)

    # Row tile: large (amortize ~0.35 us per grid step), lane-aligned (128).
    # Keep grid length >= 2 where possible so v7x's two TCs both get work.
    tm = max(128, min(int(tm), ((T + 127) // 128) * 128))
    assert tm % 128 == 0
    n_tiles = pl.cdiv(T, tm)
    grid = (N, n_tiles)

    in_specs = [
        pl.BlockSpec((1, tm, dim), lambda n, i: (n, i, 0)),    # coords tile
        pl.BlockSpec((1, hidden, 1), lambda n, i: (n, 0, 0)),  # per-batch c term
    ]
    for arr in flat:                                           # grid-invariant
        in_specs.append(pl.BlockSpec(arr.shape, lambda n, i: (0, 0)))

    out_spec = pl.BlockSpec((1, out_dim, tm), lambda n, i: (n, 0, i))

    kernel = _make_decoder_kernel(float(first_omega_0), float(hidden_omega_0),
                                  len(params) - 2)

    out_t = pl.pallas_call(
        kernel,
        out_shape=jax.ShapeDtypeStruct((N, out_dim, T), jnp.float32),
        grid_spec=pltpu.PrefetchScalarGridSpec(
            num_scalar_prefetch=0,
            grid=grid,
            in_specs=in_specs,
            out_specs=out_spec,
        ),
        compiler_params=pltpu.CompilerParams(
            dimension_semantics=("parallel", "parallel")),
    )(coords3, cc, *flat)

    # Lane-dense (N, out_dim, T) -> (N, *, out_dim)
    out = jnp.transpose(out_t, (0, 2, 1)).reshape(lead + (out_dim,))
    return out


# ----------------------------------------------------------------------------
# Deterministic parameter initialization (mirrors the PyTorch __init__)
# ----------------------------------------------------------------------------
def init_decoder_params(key, dim, c_dim, hidden_size, n_layers, out_dim,
                        first_omega_0=30.0, hidden_omega_0=30.0):
    params = []
    in_dim = dim + c_dim

    def uniform(k, shape, lo, hi):
        return jax.random.uniform(k, shape, jnp.float32, lo, hi)

    keys = jax.random.split(key, 2 * (n_layers + 2))
    ki = 0

    # First sine layer: weight ~ U(-1/in, 1/in), bias ~ default linear init.
    lim_w = 1.0 / in_dim
    lim_b = 1.0 / np.sqrt(in_dim)
    w = uniform(keys[ki], (in_dim, hidden_size), -lim_w, lim_w); ki += 1
    b = uniform(keys[ki], (hidden_size,), -lim_b, lim_b); ki += 1
    params.append((w, b))

    # Hidden sine layers.
    for _ in range(n_layers):
        lim_w = np.sqrt(6.0 / hidden_size) / hidden_omega_0
        lim_b = 1.0 / np.sqrt(hidden_size)
        w = uniform(keys[ki], (hidden_size, hidden_size), -lim_w, lim_w); ki += 1
        b = uniform(keys[ki], (hidden_size,), -lim_b, lim_b); ki += 1
        params.append((w, b))

    # Outermost linear layer.
    lim_w = np.sqrt(6.0 / hidden_size) / hidden_omega_0
    lim_b = 1.0 / np.sqrt(hidden_size)
    w = uniform(keys[ki], (hidden_size, out_dim), -lim_w, lim_w); ki += 1
    b = uniform(keys[ki], (out_dim,), -lim_b, lim_b); ki += 1
    params.append((w, b))
    return params


# ----------------------------------------------------------------------------
# Plain-JAX reference for verification (mirrors the PyTorch forward)
# ----------------------------------------------------------------------------
def decoder_reference(coords, c, params, first_omega_0=30.0, hidden_omega_0=30.0):
    if c is not None and c.size > 0:
        c_b = jnp.broadcast_to(c, coords.shape[:-1] + (c.shape[-1],))
        x = jnp.concatenate([c_b, coords], axis=-1)
    else:
        x = coords
    h = x
    n_sine = len(params) - 1
    for li in range(n_sine):
        w, b = params[li]
        omega = first_omega_0 if li == 0 else hidden_omega_0
        h = jnp.sin(omega * (h @ w + jnp.reshape(b, (1, -1))))
    wf, bf = params[-1]
    y = h @ wf + jnp.reshape(bf, (1, -1))
    y = y.at[..., 1:4].set((y[..., 1:4] + 1.0) / 2.0)
    return y


# ----------------------------------------------------------------------------
if __name__ == "__main__":
    # Small, module-consistent shapes (dim + c_dim = 32 = hidden_size).
    N, T = 2, 1024        # batch, points per batch
    dim = 3               # coordinate dimension
    c_dim = 29            # latent code dimension
    hidden_size = 32
    n_layers = 3
    out_dim = 4
    first_omega_0 = 30.0
    hidden_omega_0 = 30.0

    key = jax.random.PRNGKey(0)
    k_p, k_x, k_c = jax.random.split(key, 3)

    params = init_decoder_params(k_p, dim, c_dim, hidden_size, n_layers,
                                 out_dim, first_omega_0, hidden_omega_0)

    coords = jax.random.uniform(k_x, (N, T, dim), jnp.float32, -1.0, 1.0)
    c = jax.random.normal(k_c, (N, 1, c_dim), jnp.float32)

    out = decoder_forward(coords, c, params,
                          first_omega_0=first_omega_0,
                          hidden_omega_0=hidden_omega_0,
                          tm=512)
    out = jax.block_until_ready(out)

    ref = decoder_reference(coords, c, params, first_omega_0, hidden_omega_0)
    assert out.shape == (N, T, out_dim), out.shape
    # omega_0 = 30 inside sin amplifies tiny f32 reassociation differences
    # (the first layer's c / coords contributions are now summed separately),
    # so compare with a slightly relaxed tolerance.
    np.testing.assert_allclose(np.asarray(out), np.asarray(ref),
                               rtol=1e-3, atol=1e-3)

    print("KERNEL_OK")
</pallas_src>

<mosaic_0001>
module attributes {stable_mosaic.version = 11 : i64} {
  func.func @kernel(%arg0: i32, %arg1: i32, %arg2: memref<1x512x3xf32, #tpu.memory_space<vmem>>, %arg3: memref<1x32x1xf32, #tpu.memory_space<vmem>>, %arg4: memref<32x3xf32, #tpu.memory_space<vmem>>, %arg5: memref<32x32xf32, #tpu.memory_space<vmem>>, %arg6: memref<32x1xf32, #tpu.memory_space<vmem>>, %arg7: memref<32x32xf32, #tpu.memory_space<vmem>>, %arg8: memref<32x1xf32, #tpu.memory_space<vmem>>, %arg9: memref<32x32xf32, #tpu.memory_space<vmem>>, %arg10: memref<32x1xf32, #tpu.memory_space<vmem>>, %arg11: memref<4x32xf32, #tpu.memory_space<vmem>>, %arg12: memref<4x1xf32, #tpu.memory_space<vmem>>, %arg13: memref<1x4x512xf32, #tpu.memory_space<vmem>>) attributes {dimension_semantics = [#tpu.dimension_semantics<parallel>, #tpu.dimension_semantics<parallel>], iteration_bounds = array<i64: 2, 2>, scalar_prefetch = 0 : i64, scratch_operands = 0 : i64, tpu.core_type = #tpu.core_type<tc>, window_params = [{transform_indices = @transform_0, window_bounds = array<i64: 1, 512, 3>}, {transform_indices = @transform_1, window_bounds = array<i64: 1, 32, 1>}, {pipeline_mode = #tpu.pipeline_mode<synchronous>, transform_indices = @transform_2, window_bounds = array<i64: 32, 3>}, {pipeline_mode = #tpu.pipeline_mode<synchronous>, transform_indices = @transform_3, window_bounds = array<i64: 32, 32>}, {pipeline_mode = #tpu.pipeline_mode<synchronous>, transform_indices = @transform_4, window_bounds = array<i64: 32, 1>}, {pipeline_mode = #tpu.pipeline_mode<synchronous>, transform_indices = @transform_5, window_bounds = array<i64: 32, 32>}, {pipeline_mode = #tpu.pipeline_mode<synchronous>, transform_indices = @transform_6, window_bounds = array<i64: 32, 1>}, {pipeline_mode = #tpu.pipeline_mode<synchronous>, transform_indices = @transform_7, window_bounds = array<i64: 32, 32>}, {pipeline_mode = #tpu.pipeline_mode<synchronous>, transform_indices = @transform_8, window_bounds = array<i64: 32, 1>}, {pipeline_mode = #tpu.pipeline_mode<synchronous>, transform_indices = @transform_9, window_bounds = array<i64: 4, 32>}, {pipeline_mode = #tpu.pipeline_mode<synchronous>, transform_indices = @transform_10, window_bounds = array<i64: 4, 1>}, {transform_indices = @transform_11, window_bounds = array<i64: 1, 4, 512>}]} {
    %c0 = arith.constant 0 : index
    %c0_0 = arith.constant 0 : index
    %c0_1 = arith.constant 0 : index
    %0 = vector.load %arg2[%c0, %c0_0, %c0_1] : memref<1x512x3xf32, #tpu.memory_space<vmem>>, vector<1x512x3xf32>
    %1 = vector.shape_cast %0 : vector<1x512x3xf32> to vector<512x3xf32>
    %c0_2 = arith.constant 0 : index
    %c0_3 = arith.constant 0 : index
    %c0_4 = arith.constant 0 : index
    %2 = vector.load %arg3[%c0_2, %c0_3, %c0_4] : memref<1x32x1xf32, #tpu.memory_space<vmem>>, vector<1x32x1xf32>
    %3 = vector.shape_cast %2 : vector<1x32x1xf32> to vector<32x1xf32>
    %c0_5 = arith.constant 0 : index
    %c0_6 = arith.constant 0 : index
    %4 = vector.load %arg4[%c0_5, %c0_6] : memref<32x3xf32, #tpu.memory_space<vmem>>, vector<32x3xf32>
    %cst = arith.constant dense<0.000000e+00> : vector<32x512xf32>
    %5 = tpu.matmul %4, %1, %cst {dimension_numbers = #tpu.dot_dimension_numbers<[1], [1], [0], [0], [0, 0, 1, 0], [], []>} : vector<32x3xf32>, vector<512x3xf32>, vector<32x512xf32> -> vector<32x512xf32>
    %6 = vector.broadcast %3 : vector<32x1xf32> to vector<32x512xf32>
    %7 = arith.addf %5, %6 : vector<32x512xf32>
    %cst_7 = arith.constant 3.000000e+01 : f32
    %8 = vector.broadcast %cst_7 : f32 to vector<32x512xf32>
    %9 = arith.mulf %8, %7 : vector<32x512xf32>
    %10 = math.sin %9 : vector<32x512xf32>
    %c0_8 = arith.constant 0 : index
    %c0_9 = arith.constant 0 : index
    %11 = vector.load %arg5[%c0_8, %c0_9] : memref<32x32xf32, #tpu.memory_space<vmem>>, vector<32x32xf32>
    %c0_10 = arith.constant 0 : index
    %c0_11 = arith.constant 0 : index
    %12 = vector.load %arg6[%c0_10, %c0_11] : memref<32x1xf32, #tpu.memory_space<vmem>>, vector<32x1xf32>
    %cst_12 = arith.constant dense<0.000000e+00> : vector<32x512xf32>
    %13 = tpu.matmul %11, %10, %cst_12 {dimension_numbers = #tpu.dot_dimension_numbers<[1], [0], [0], [1], [0, 0, 1, 1], [], []>} : vector<32x32xf32>, vector<32x512xf32>, vector<32x512xf32> -> vector<32x512xf32>
    %14 = vector.broadcast %12 : vector<32x1xf32> to vector<32x512xf32>
    %15 = arith.addf %13, %14 : vector<32x512xf32>
    %cst_13 = arith.constant 3.000000e+01 : f32
    %16 = vector.broadcast %cst_13 : f32 to vector<32x512xf32>
    %17 = arith.mulf %16, %15 : vector<32x512xf32>
    %18 = math.sin %17 : vector<32x512xf32>
    %c0_14 = arith.constant 0 : index
    %c0_15 = arith.constant 0 : index
    %19 = vector.load %arg7[%c0_14, %c0_15] : memref<32x32xf32, #tpu.memory_space<vmem>>, vector<32x32xf32>
    %c0_16 = arith.constant 0 : index
    %c0_17 = arith.constant 0 : index
    %20 = vector.load %arg8[%c0_16, %c0_17] : memref<32x1xf32, #tpu.memory_space<vmem>>, vector<32x1xf32>
    %cst_18 = arith.constant dense<0.000000e+00> : vector<32x512xf32>
    %21 = tpu.matmul %19, %18, %cst_18 {dimension_numbers = #tpu.dot_dimension_numbers<[1], [0], [0], [1], [0, 0, 1, 1], [], []>} : vector<32x32xf32>, vector<32x512xf32>, vector<32x512xf32> -> vector<32x512xf32>
    %22 = vector.broadcast %20 : vector<32x1xf32> to vector<32x512xf32>
    %23 = arith.addf %21, %22 : vector<32x512xf32>
    %cst_19 = arith.constant 3.000000e+01 : f32
    %24 = vector.broadcast %cst_19 : f32 to vector<32x512xf32>
    %25 = arith.mulf %24, %23 : vector<32x512xf32>
    %26 = math.sin %25 : vector<32x512xf32>
    %c0_20 = arith.constant 0 : index
    %c0_21 = arith.constant 0 : index
    %27 = vector.load %arg9[%c0_20, %c0_21] : memref<32x32xf32, #tpu.memory_space<vmem>>, vector<32x32xf32>
    %c0_22 = arith.constant 0 : index
    %c0_23 = arith.constant 0 : index
    %28 = vector.load %arg10[%c0_22, %c0_23] : memref<32x1xf32, #tpu.memory_space<vmem>>, vector<32x1xf32>
    %cst_24 = arith.constant dense<0.000000e+00> : vector<32x512xf32>
    %29 = tpu.matmul %27, %26, %cst_24 {dimension_numbers = #tpu.dot_dimension_numbers<[1], [0], [0], [1], [0, 0, 1, 1], [], []>} : vector<32x32xf32>, vector<32x512xf32>, vector<32x512xf32> -> vector<32x512xf32>
    %30 = vector.broadcast %28 : vector<32x1xf32> to vector<32x512xf32>
    %31 = arith.addf %29, %30 : vector<32x512xf32>
    %cst_25 = arith.constant 3.000000e+01 : f32
    %32 = vector.broadcast %cst_25 : f32 to vector<32x512xf32>
    %33 = arith.mulf %32, %31 : vector<32x512xf32>
    %34 = math.sin %33 : vector<32x512xf32>
    %c0_26 = arith.constant 0 : index
    %c0_27 = arith.constant 0 : index
    %35 = vector.load %arg11[%c0_26, %c0_27] : memref<4x32xf32, #tpu.memory_space<vmem>>, vector<4x32xf32>
    %c0_28 = arith.constant 0 : index
    %c0_29 = arith.constant 0 : index
    %36 = vector.load %arg12[%c0_28, %c0_29] : memref<4x1xf32, #tpu.memory_space<vmem>>, vector<4x1xf32>
    %cst_30 = arith.constant dense<0.000000e+00> : vector<4x512xf32>
    %37 = tpu.matmul %35, %34, %cst_30 {dimension_numbers = #tpu.dot_dimension_numbers<[1], [0], [0], [1], [0, 0, 1, 1], [], []>} : vector<4x32xf32>, vector<32x512xf32>, vector<4x512xf32> -> vector<4x512xf32>
    %38 = vector.broadcast %36 : vector<4x1xf32> to vector<4x512xf32>
    %39 = arith.addf %37, %38 : vector<4x512xf32>
    %c0_31 = arith.constant 0 : index
    %c0_32 = arith.constant 0 : index
    %c0_33 = arith.constant 0 : index
    %40 = vector.load %arg13[%c0_31, %c0_32, %c0_33] : memref<1x4x512xf32, #tpu.memory_space<vmem>>, vector<1x4x512xf32>
    %41 = vector.shape_cast %40 : vector<1x4x512xf32> to vector<4x512xf32>
    %42 = vector.shape_cast %39 : vector<4x512xf32> to vector<1x4x512xf32>
    tpu.vector_store %arg13[%c0_31, %c0_32, %c0_33], %42 {strides = array<i32>} : memref<1x4x512xf32, #tpu.memory_space<vmem>>, vector<1x4x512xf32>,
    return
  }
  func.func @transform_0(%arg0: i32, %arg1: i32) -> (i32, i32, i32) {
    %c0_i32 = arith.constant 0 : i32
    %c0_i32_0 = arith.constant 0 : i32
    return %arg0, %arg1, %c0_i32 : i32, i32, i32
  }
  func.func @transform_1(%arg0: i32, %arg1: i32) -> (i32, i32, i32) {
    %c0_i32 = arith.constant 0 : i32
    %c0_i32_0 = arith.constant 0 : i32
    %c0_i32_1 = arith.constant 0 : i32
    return %arg0, %c0_i32, %c0_i32_0 : i32, i32, i32
  }
  func.func @transform_2(%arg0: i32, %arg1: i32) -> (i32, i32) {
    %c0_i32 = arith.constant 0 : i32
    %c0_i32_0 = arith.constant 0 : i32
    %c0_i32_1 = arith.constant 0 : i32
    return %c0_i32, %c0_i32_0 : i32, i32
  }
  func.func @transform_3(%arg0: i32, %arg1: i32) -> (i32, i32) {
    %c0_i32 = arith.constant 0 : i32
    %c0_i32_0 = arith.constant 0 : i32
    %c0_i32_1 = arith.constant 0 : i32
    return %c0_i32, %c0_i32_0 : i32, i32
  }
  func.func @transform_4(%arg0: i32, %arg1: i32) -> (i32, i32) {
    %c0_i32 = arith.constant 0 : i32
    %c0_i32_0 = arith.constant 0 : i32
    %c0_i32_1 = arith.constant 0 : i32
    return %c0_i32, %c0_i32_0 : i32, i32
  }
  func.func @transform_5(%arg0: i32, %arg1: i32) -> (i32, i32) {
    %c0_i32 = arith.constant 0 : i32
    %c0_i32_0 = arith.constant 0 : i32
    %c0_i32_1 = arith.constant 0 : i32
    return %c0_i32, %c0_i32_0 : i32, i32
  }
  func.func @transform_6(%arg0: i32, %arg1: i32) -> (i32, i32) {
    %c0_i32 = arith.constant 0 : i32
    %c0_i32_0 = arith.constant 0 : i32
    %c0_i32_1 = arith.constant 0 : i32
    return %c0_i32, %c0_i32_0 : i32, i32
  }
  func.func @transform_7(%arg0: i32, %arg1: i32) -> (i32, i32) {
    %c0_i32 = arith.constant 0 : i32
    %c0_i32_0 = arith.constant 0 : i32
    %c0_i32_1 = arith.constant 0 : i32
    return %c0_i32, %c0_i32_0 : i32, i32
  }
  func.func @transform_8(%arg0: i32, %arg1: i32) -> (i32, i32) {
    %c0_i32 = arith.constant 0 : i32
    %c0_i32_0 = arith.constant 0 : i32
    %c0_i32_1 = arith.constant 0 : i32
    return %c0_i32, %c0_i32_0 : i32, i32
  }
  func.func @transform_9(%arg0: i32, %arg1: i32) -> (i32, i32) {
    %c0_i32 = arith.constant 0 : i32
    %c0_i32_0 = arith.constant 0 : i32
    %c0_i32_1 = arith.constant 0 : i32
    return %c0_i32, %c0_i32_0 : i32, i32
  }
  func.func @transform_10(%arg0: i32, %arg1: i32) -> (i32, i32) {
    %c0_i32 = arith.constant 0 : i32
    %c0_i32_0 = arith.constant 0 : i32
    %c0_i32_1 = arith.constant 0 : i32
    return %c0_i32, %c0_i32_0 : i32, i32
  }
  func.func @transform_11(%arg0: i32, %arg1: i32) -> (i32, i32, i32) {
    %c0_i32 = arith.constant 0 : i32
    %c0_i32_0 = arith.constant 0 : i32
    return %arg0, %c0_i32, %arg1 : i32, i32, i32
  }
}

</mosaic_0001>

<llo_original>
// kernel: tpu_custom_call.1
$region0: #{tpu_custom_call.1}
  #allocation0 [shape = 'u32[]', space=smem, size = 0x4, offset = 0x4, fixed_abs, tag = 'smem constant byte address 0x4 - core index']
  #allocation1 [shape = 'u32[144,128]{1,0:T(1,128)}', space=vmem, size = 0x12000, scoped, tag = 'internal scratch']
  %s0 = inlined_call_operand.vmem [shape: f32[2,1024,3], index: 0, kind: input, shape index: {}]
  %s1 = inlined_call_operand.vmem [shape: f32[2,32,1], index: 1, kind: input, shape index: {}]
  %s2 = inlined_call_operand.vmem [shape: f32[32,3], index: 2, kind: input, shape index: {}]
  %s3 = inlined_call_operand.vmem [shape: f32[32,32], index: 3, kind: input, shape index: {}]
  %s4 = inlined_call_operand.vmem [shape: f32[32,1], index: 4, kind: input, shape index: {}]
  %s5 = inlined_call_operand.vmem [shape: f32[32,32], index: 5, kind: input, shape index: {}]
  %s6 = inlined_call_operand.vmem [shape: f32[32,1], index: 6, kind: input, shape index: {}]
  %s7 = inlined_call_operand.vmem [shape: f32[32,32], index: 7, kind: input, shape index: {}]
  %s8 = inlined_call_operand.vmem [shape: f32[32,1], index: 8, kind: input, shape index: {}]
  %s9 = inlined_call_operand.vmem [shape: f32[4,32], index: 9, kind: input, shape index: {}]
  %s10 = inlined_call_operand.vmem [shape: f32[4,1], index: 10, kind: input, shape index: {}]
  %s11 = inlined_call_operand.hbm [shape: f32[2,4,1024], index: 11, kind: output, shape index: {}]
  %s12 = sld [smem:[#allocation0]]
  $region77: #{tpu_custom_call.1} parent=0
    _
  %s14 = ssub.s32 1, %s12
  %s15 = scalar_select 0, %s14, %s12
  $region1: #{tpu_custom_call.1} parent=0
    #allocation2 [shape = 'u8[16384]{0}', space=vmem, size = 0x4000, scoped, tag = 'output window, operand 0']
    #allocation3 [shape = 's32[2]{0}', space=sflag, size = 0x8, scoped, tag = 'scoped memory for tpu_custom_call.1']
    %16 = vsyncpa [#allocation3], 0
    %s17 = scalar_lea.sflag [#allocation3], 1
    %18 = vsyncpa %s17, 0
    loop: start=0, step=1, limit=6
    $region2: #{tpu_custom_call.1} parent=1 // loop_pre_header
      _
    $region3: #{tpu_custom_call.1} parent=1 // loop_header
      %s20 = sphi 0, %s24
      %p21 = scmp.ge.s32.totalorder %s20, 6
      %s27 = sphi 0, %s39
      %s28 = sphi 0, %s35
      %s29 = sphi 0, %s27
      %s30 = sphi 0, %s28
      %s31 = sphi 0, %s29
      %s32 = sphi 0, %s30
      %s44 = sphi 0, %s46
      %s47 = sphi 0, %s44
      %s48 = sphi 0, %s47
      %s64 = sphi 0, %s48
      %s70 = sphi 0, %s72
      %s73 = sphi 0, %s70
      %s74 = sphi 0, %s73
      %s90 = sphi 0, %s74
      %s94 = sphi 0, %s94
      %s96 = sphi 0, %s94
      %s97 = sphi 0, %s96
      %s111 = sphi 0, %s97
      %s115 = sphi 0, %s115
      %s117 = sphi 0, %s115
      %s118 = sphi 0, %s117
      %s132 = sphi 0, %s118
      %s136 = sphi 0, %s136
      %s138 = sphi 0, %s136
      %s139 = sphi 0, %s138
      %s153 = sphi 0, %s139
      %s157 = sphi 0, %s157
      %s159 = sphi 0, %s157
      %s160 = sphi 0, %s159
      %s174 = sphi 0, %s160
      %s178 = sphi 0, %s178
      %s180 = sphi 0, %s178
      %s181 = sphi 0, %s180
      %s195 = sphi 0, %s181
      %s199 = sphi 0, %s199
      %s201 = sphi 0, %s199
      %s202 = sphi 0, %s201
      %s216 = sphi 0, %s202
      %s220 = sphi 0, %s220
      %s222 = sphi 0, %s220
      %s223 = sphi 0, %s222
      %s237 = sphi 0, %s223
      %s241 = sphi 0, %s241
      %s243 = sphi 0, %s241
      %s244 = sphi 0, %s243
      %s258 = sphi 0, %s244
      %s262 = sphi 0, %s262
      %s264 = sphi 0, %s262
      %s265 = sphi 0, %s264
      %s279 = sphi 0, %s265
      %s287 = sphi 0, %s289
      %s290 = sphi 0, %s287
      %s291 = sphi 0, %s290
      %s307 = sphi 0, %s291
    $region4: #{tpu_custom_call.1} parent=1 // loop_header_branch
      %23 = sbr.rel (%p21) target = $region8
    $region5: #{tpu_custom_call.1} parent=1 // loop_body
      %s25 = ssub.s32 %s20, 1
      %s26 = ssub.s32 %s20, 2
      %s33 = sadd.s32 1, %s28
      %p34 = scmp.ge.s32.totalorder %s33, 2
      %s35 = scalar_select %p34, 0, %s33
      %s36 = sadd.s32 1, %s27
      %s37 = scalar_select %p34, %s36, %s27
      %p38 = scmp.ge.s32.totalorder %s37, 2
      %s39 = scalar_select %p38, 0, %s37
      %s40 = ssub.s32 %s27, %s39
      %s41 = ssub.s32 %s28, %s35
      %s42 = sor.u32 %s40, %s41
      %p43 = scmp.eq.s32.totalorder %s42, 0
      %s45 = sadd.s32 %s44, 1
      %s46 = scalar_select %p43, %s44, %s45
      %p49 = pneg %p43
      %p50 = scmp.eq.s32.totalorder %s20, 3
      %p51 = por %p49, %p50
      %p52 = scmp.ne.s32.totalorder %s44, %s47
      %p53 = scmp.eq.s32.totalorder %s20, 0
      %p54 = por %p52, %p53
      %p55 = scmp.ne.s32.totalorder %s44, %s47
      %p56 = scmp.eq.s32.totalorder %s25, 3
      %p57 = por %p55, %p56
      %p58 = scmp.ne.s32.totalorder %s47, %s48
      %p59 = scmp.eq.s32.totalorder %s25, 0
      %p60 = por %p58, %p59
      %p61 = scmp.ne.s32.totalorder %s47, %s48
      %p62 = scmp.eq.s32.totalorder %s26, 3
      %p63 = por %p61, %p62
      %p65 = scmp.ne.s32.totalorder %s48, %s64
      %p66 = scmp.eq.s32.totalorder %s26, 0
      %p67 = por %p65, %p66
      %s68 = ssub.s32 %s27, %s39
      %p69 = scmp.eq.s32.totalorder %s68, 0
      %s71 = sadd.s32 %s70, 1
      %s72 = scalar_select %p69, %s70, %s71
      %p75 = pneg %p69
      %p76 = scmp.eq.s32.totalorder %s20, 3
      %p77 = por %p75, %p76
      %p78 = scmp.ne.s32.totalorder %s70, %s73
      %p79 = scmp.eq.s32.totalorder %s20, 0
      %p80 = por %p78, %p79
      %p81 = scmp.ne.s32.totalorder %s70, %s73
      %p82 = scmp.eq.s32.totalorder %s25, 3
      %p83 = por %p81, %p82
      %p84 = scmp.ne.s32.totalorder %s73, %s74
      %p85 = scmp.eq.s32.totalorder %s25, 0
      %p86 = por %p84, %p85
      %p87 = scmp.ne.s32.totalorder %s73, %s74
      %p88 = scmp.eq.s32.totalorder %s26, 3
      %p89 = por %p87, %p88
      %p91 = scmp.ne.s32.totalorder %s74, %s90
      %p92 = scmp.eq.s32.totalorder %s26, 0
      %p93 = por %p91, %p92
      %s95 = sadd.s32 %s94, 1
      %p98 = scmp.eq.s32.totalorder %s20, 3
      %p99 = scmp.ne.s32.totalorder %s94, %s96
      %p100 = scmp.eq.s32.totalorder %s20, 0
      %p101 = por %p99, %p100
      %p102 = scmp.ne.s32.totalorder %s94, %s96
      %p103 = scmp.eq.s32.totalorder %s25, 3
      %p104 = por %p102, %p103
      %p105 = scmp.ne.s32.totalorder %s96, %s97
      %p106 = scmp.eq.s32.totalorder %s25, 0
      %p107 = por %p105, %p106
      %p108 = scmp.ne.s32.totalorder %s96, %s97
      %p109 = scmp.eq.s32.totalorder %s26, 3
      %p110 = por %p108, %p109
      %p112 = scmp.ne.s32.totalorder %s97, %s111
      %p113 = scmp.eq.s32.totalorder %s26, 0
      %p114 = por %p112, %p113
      %s116 = sadd.s32 %s115, 1
      %p119 = scmp.eq.s32.totalorder %s20, 3
      %p120 = scmp.ne.s32.totalorder %s115, %s117
      %p121 = scmp.eq.s32.totalorder %s20, 0
      %p122 = por %p120, %p121
      %p123 = scmp.ne.s32.totalorder %s115, %s117
      %p124 = scmp.eq.s32.totalorder %s25, 3
      %p125 = por %p123, %p124
      %p126 = scmp.ne.s32.totalorder %s117, %s118
      %p127 = scmp.eq.s32.totalorder %s25, 0
      %p128 = por %p126, %p127
      %p129 = scmp.ne.s32.totalorder %s117, %s118
      %p130 = scmp.eq.s32.totalorder %s26, 3
      %p131 = por %p129, %p130
      %p133 = scmp.ne.s32.totalorder %s118, %s132
      %p134 = scmp.eq.s32.totalorder %s26, 0
      %p135 = por %p133, %p134
      %s137 = sadd.s32 %s136, 1
      %p140 = scmp.eq.s32.totalorder %s20, 3
      %p141 = scmp.ne.s32.totalorder %s136, %s138
      %p142 = scmp.eq.s32.totalorder %s20, 0
      %p143 = por %p141, %p142
      %p144 = scmp.ne.s32.totalorder %s136, %s138
      %p145 = scmp.eq.s32.totalorder %s25, 3
      %p146 = por %p144, %p145
      %p147 = scmp.ne.s32.totalorder %s138, %s139
      %p148 = scmp.eq.s32.totalorder %s25, 0
      %p149 = por %p147, %p148
      %p150 = scmp.ne.s32.totalorder %s138, %s139
      %p151 = scmp.eq.s32.totalorder %s26, 3
      %p152 = por %p150, %p151
      %p154 = scmp.ne.s32.totalorder %s139, %s153
      %p155 = scmp.eq.s32.totalorder %s26, 0
      %p156 = por %p154, %p155
      %s158 = sadd.s32 %s157, 1
      %p161 = scmp.eq.s32.totalorder %s20, 3
      %p162 = scmp.ne.s32.totalorder %s157, %s159
      %p163 = scmp.eq.s32.totalorder %s20, 0
      %p164 = por %p162, %p163
      %p165 = scmp.ne.s32.totalorder %s157, %s159
      %p166 = scmp.eq.s32.totalorder %s25, 3
      %p167 = por %p165, %p166
      %p168 = scmp.ne.s32.totalorder %s159, %s160
      %p169 = scmp.eq.s32.totalorder %s25, 0
      %p170 = por %p168, %p169
      %p171 = scmp.ne.s32.totalorder %s159, %s160
      %p172 = scmp.eq.s32.totalorder %s26, 3
      %p173 = por %p171, %p172
      %p175 = scmp.ne.s32.totalorder %s160, %s174
      %p176 = scmp.eq.s32.totalorder %s26, 0
      %p177 = por %p175, %p176
      %s179 = sadd.s32 %s178, 1
      %p182 = scmp.eq.s32.totalorder %s20, 3
      %p183 = scmp.ne.s32.totalorder %s178, %s180
      %p184 = scmp.eq.s32.totalorder %s20, 0
      %p185 = por %p183, %p184
      %p186 = scmp.ne.s32.totalorder %s178, %s180
      %p187 = scmp.eq.s32.totalorder %s25, 3
      %p188 = por %p186, %p187
      %p189 = scmp.ne.s32.totalorder %s180, %s181
      %p190 = scmp.eq.s32.totalorder %s25, 0
      %p191 = por %p189, %p190
      %p192 = scmp.ne.s32.totalorder %s180, %s181
      %p193 = scmp.eq.s32.totalorder %s26, 3
      %p194 = por %p192, %p193
      %p196 = scmp.ne.s32.totalorder %s181, %s195
      %p197 = scmp.eq.s32.totalorder %s26, 0
      %p198 = por %p196, %p197
      %s200 = sadd.s32 %s199, 1
      %p203 = scmp.eq.s32.totalorder %s20, 3
      %p204 = scmp.ne.s32.totalorder %s199, %s201
      %p205 = scmp.eq.s32.totalorder %s20, 0
      %p206 = por %p204, %p205
      %p207 = scmp.ne.s32.totalorder %s199, %s201
      %p208 = scmp.eq.s32.totalorder %s25, 3
      %p209 = por %p207, %p208
      %p210 = scmp.ne.s32.totalorder %s201, %s202
      %p211 = scmp.eq.s32.totalorder %s25, 0
      %p212 = por %p210, %p211
      %p213 = scmp.ne.s32.totalorder %s201, %s202
      %p214 = scmp.eq.s32.totalorder %s26, 3
      %p215 = por %p213, %p214
      %p217 = scmp.ne.s32.totalorder %s202, %s216
      %p218 = scmp.eq.s32.totalorder %s26, 0
      %p219 = por %p217, %p218
      %s221 = sadd.s32 %s220, 1
      %p224 = scmp.eq.s32.totalorder %s20, 3
      %p225 = scmp.ne.s32.totalorder %s220, %s222
      %p226 = scmp.eq.s32.totalorder %s20, 0
      %p227 = por %p225, %p226
      %p228 = scmp.ne.s32.totalorder %s220, %s222
      %p229 = scmp.eq.s32.totalorder %s25, 3
      %p230 = por %p228, %p229
      %p231 = scmp.ne.s32.totalorder %s222, %s223
      %p232 = scmp.eq.s32.totalorder %s25, 0
      %p233 = por %p231, %p232
      %p234 = scmp.ne.s32.totalorder %s222, %s223
      %p235 = scmp.eq.s32.totalorder %s26, 3
      %p236 = por %p234, %p235
      %p238 = scmp.ne.s32.totalorder %s223, %s237
      %p239 = scmp.eq.s32.totalorder %s26, 0
      %p240 = por %p238, %p239
      %s242 = sadd.s32 %s241, 1
      %p245 = scmp.eq.s32.totalorder %s20, 3
      %p246 = scmp.ne.s32.totalorder %s241, %s243
      %p247 = scmp.eq.s32.totalorder %s20, 0
      %p248 = por %p246, %p247
      %p249 = scmp.ne.s32.totalorder %s241, %s243
      %p250 = scmp.eq.s32.totalorder %s25, 3
      %p251 = por %p249, %p250
      %p252 = scmp.ne.s32.totalorder %s243, %s244
      %p253 = scmp.eq.s32.totalorder %s25, 0
      %p254 = por %p252, %p253
      %p255 = scmp.ne.s32.totalorder %s243, %s244
      %p256 = scmp.eq.s32.totalorder %s26, 3
      %p257 = por %p255, %p256
      %p259 = scmp.ne.s32.totalorder %s244, %s258
      %p260 = scmp.eq.s32.totalorder %s26, 0
      %p261 = por %p259, %p260
      %s263 = sadd.s32 %s262, 1
      %p266 = scmp.eq.s32.totalorder %s20, 3
      %p267 = scmp.ne.s32.totalorder %s262, %s264
      %p268 = scmp.eq.s32.totalorder %s20, 0
      %p269 = por %p267, %p268
      %p270 = scmp.ne.s32.totalorder %s262, %s264
      %p271 = scmp.eq.s32.totalorder %s25, 3
      %p272 = por %p270, %p271
      %p273 = scmp.ne.s32.totalorder %s264, %s265
      %p274 = scmp.eq.s32.totalorder %s25, 0
      %p275 = por %p273, %p274
      %p276 = scmp.ne.s32.totalorder %s264, %s265
      %p277 = scmp.eq.s32.totalorder %s26, 3
      %p278 = por %p276, %p277
      %p280 = scmp.ne.s32.totalorder %s265, %s279
      %p281 = scmp.eq.s32.totalorder %s26, 0
      %p282 = por %p280, %p281
      %s283 = ssub.s32 %s27, %s39
      %s284 = ssub.s32 %s28, %s35
      %s285 = sor.u32 %s283, %s284
      %p286 = scmp.eq.s32.totalorder %s285, 0
      %s288 = sadd.s32 %s287, 1
      %s289 = scalar_select %p286, %s287, %s288
      %p292 = pneg %p286
      %p293 = scmp.eq.s32.totalorder %s20, 3
      %p294 = por %p292, %p293
      %p295 = scmp.ne.s32.totalorder %s287, %s290
      %p296 = scmp.eq.s32.totalorder %s20, 0
      %p297 = por %p295, %p296
      %p298 = scmp.ne.s32.totalorder %s287, %s290
      %p299 = scmp.eq.s32.totalorder %s25, 3
      %p300 = por %p298, %p299
      %p301 = scmp.ne.s32.totalorder %s290, %s291
      %p302 = scmp.eq.s32.totalorder %s25, 0
      %p303 = por %p301, %p302
      %p304 = scmp.ne.s32.totalorder %s290, %s291
      %p305 = scmp.eq.s32.totalorder %s26, 3
      %p306 = por %p304, %p305
      %p308 = scmp.ne.s32.totalorder %s291, %s307
      %p309 = scmp.eq.s32.totalorder %s26, 0
      %p310 = por %p308, %p309
      %p311 = scmp.le.s32.totalorder 1, %s20
      %p312 = scmp.lt.s32.totalorder %s20, 5
      %p313 = pnand %p311, %p312
      %p314 = pneg %p313
      // Predicated region
      $region9: #{tpu_custom_call.1} parent=5 // pred_check
        _
      $region10: #{tpu_custom_call.1} parent=5 // pred_check_branch
        %316 = sbr.rel (%p313) target = $region12
      $region11: #{tpu_custom_call.1} parent=5 // pred_region
        %s317 = ssub.s32 %s20, 1
        // Predicated region
        $region13: #{tpu_custom_call.1} parent=11 // pred_check
          %p318 = pneg %p107
        $region14: #{tpu_custom_call.1} parent=11 // pred_check_branch
          %320 = sbr.rel (%p318) target = $region16
        $region15: #{tpu_custom_call.1} parent=11 // pred_region
          _
        $region16: #{tpu_custom_call.1} parent=11 // pred_fallthru
          _
        // Predicated region
        $region17: #{tpu_custom_call.1} parent=11 // pred_check
          %p321 = pneg %p128
        $region18: #{tpu_custom_call.1} parent=11 // pred_check_branch
          %323 = sbr.rel (%p321) target = $region20
        $region19: #{tpu_custom_call.1} parent=11 // pred_region
          _
        $region20: #{tpu_custom_call.1} parent=11 // pred_fallthru
          _
        // Predicated region
        $region21: #{tpu_custom_call.1} parent=11 // pred_check
          %p324 = pneg %p149
        $region22: #{tpu_custom_call.1} parent=11 // pred_check_branch
          %326 = sbr.rel (%p324) target = $region24
        $region23: #{tpu_custom_call.1} parent=11 // pred_region
          _
        $region24: #{tpu_custom_call.1} parent=11 // pred_fallthru
          _
        // Predicated region
        $region25: #{tpu_custom_call.1} parent=11 // pred_check
          %p327 = pneg %p170
        $region26: #{tpu_custom_call.1} parent=11 // pred_check_branch
          %329 = sbr.rel (%p327) target = $region28
        $region27: #{tpu_custom_call.1} parent=11 // pred_region
          _
        $region28: #{tpu_custom_call.1} parent=11 // pred_fallthru
          _
        // Predicated region
        $region29: #{tpu_custom_call.1} parent=11 // pred_check
          %p330 = pneg %p191
        $region30: #{tpu_custom_call.1} parent=11 // pred_check_branch
          %332 = sbr.rel (%p330) target = $region32
        $region31: #{tpu_custom_call.1} parent=11 // pred_region
          _
        $region32: #{tpu_custom_call.1} parent=11 // pred_fallthru
          _
        // Predicated region
        $region33: #{tpu_custom_call.1} parent=11 // pred_check
          %p333 = pneg %p212
        $region34: #{tpu_custom_call.1} parent=11 // pred_check_branch
          %335 = sbr.rel (%p333) target = $region36
        $region35: #{tpu_custom_call.1} parent=11 // pred_region
          _
        $region36: #{tpu_custom_call.1} parent=11 // pred_fallthru
          _
        // Predicated region
        $region37: #{tpu_custom_call.1} parent=11 // pred_check
          %p336 = pneg %p233
        $region38: #{tpu_custom_call.1} parent=11 // pred_check_branch
          %338 = sbr.rel (%p336) target = $region40
        $region39: #{tpu_custom_call.1} parent=11 // pred_region
          _
        $region40: #{tpu_custom_call.1} parent=11 // pred_fallthru
          _
        // Predicated region
        $region41: #{tpu_custom_call.1} parent=11 // pred_check
          %p339 = pneg %p254
        $region42: #{tpu_custom_call.1} parent=11 // pred_check_branch
          %341 = sbr.rel (%p339) target = $region44
        $region43: #{tpu_custom_call.1} parent=11 // pred_region
          _
        $region44: #{tpu_custom_call.1} parent=11 // pred_fallthru
          _
        // Predicated region
        $region45: #{tpu_custom_call.1} parent=11 // pred_check
          %p342 = pneg %p275
        $region46: #{tpu_custom_call.1} parent=11 // pred_check_branch
          %344 = sbr.rel (%p342) target = $region48
        $region47: #{tpu_custom_call.1} parent=11 // pred_region
          _
        $region48: #{tpu_custom_call.1} parent=11 // pred_fallthru
          _
      $region12: #{tpu_custom_call.1} parent=5 // pred_fallthru
        _
      %p345 = scmp.lt.s32.totalorder %s20, 4
      // Predicated region
      $region49: #{tpu_custom_call.1} parent=5 // pred_check
        %p346 = pneg %p345
      $region50: #{tpu_custom_call.1} parent=5 // pred_check_branch
        %348 = sbr.rel (%p346) target = $region52
      $region51: #{tpu_custom_call.1} parent=5 // pred_region
        // Predicated region
        $region53: #{tpu_custom_call.1} parent=51 // pred_check
          %p349 = pneg %p54
        $region54: #{tpu_custom_call.1} parent=51 // pred_check_branch
          %351 = sbr.rel (%p349) target = $region56
        $region55: #{tpu_custom_call.1} parent=51 // pred_region
          %s352 = smul.u32 64, %s28
          %p353 = scmp.lt.s32.totalorder %s27, 1
          %s354 = scalar_select %p353, %s27, 1
          %p355 = scmp.lt.s32.totalorder %s352, 127
          %s356 = scalar_select %p355, %s352, 127
          %s357 = smul.addr %s354, 128
          %s358 = sadd.s32 %s356, %s357
          %s359 = smul.addr %s358, 8
          %s360 = scalar_lea.vmem %s0, %s359
          %s361 = smul.u32 64, %s28
        $region56: #{tpu_custom_call.1} parent=51 // pred_fallthru
          _
        // Predicated region
        $region57: #{tpu_custom_call.1} parent=51 // pred_check
          %p362 = pneg %p80
        $region58: #{tpu_custom_call.1} parent=51 // pred_check_branch
          %364 = sbr.rel (%p362) target = $region60
        $region59: #{tpu_custom_call.1} parent=51 // pred_region
          %p365 = scmp.lt.s32.totalorder %s27, 1
          %s366 = scalar_select %p365, %s27, 1
          %s367 = smul.addr %s366, 4
          %s368 = smul.addr %s367, 8
          %s369 = scalar_lea.vmem %s1, %s368
        $region60: #{tpu_custom_call.1} parent=51 // pred_fallthru
          _
      $region52: #{tpu_custom_call.1} parent=5 // pred_fallthru
        _
      %p370 = scmp.le.s32.totalorder 1, %s20
      %p371 = scmp.lt.s32.totalorder %s20, 5
      %p372 = pnand %p370, %p371
      %p373 = pneg %p372
      // Predicated region
      $region61: #{tpu_custom_call.1} parent=5 // pred_check
        _
      $region62: #{tpu_custom_call.1} parent=5 // pred_check_branch
        %375 = sbr.rel (%p372) target = $region64
      $region63: #{tpu_custom_call.1} parent=5 // pred_region
        %s376 = ssub.s32 %s20, 1
        %s377 = smul.u32 64, %s30
        %p378 = scmp.lt.s32.totalorder %s29, 1
        %s379 = scalar_select %p378, %s29, 1
        %p380 = scmp.lt.s32.totalorder %s377, 127
        %s381 = scalar_select %p380, %s377, 127
        %s382 = smul.addr %s379, 128
        %s383 = sadd.s32 %s381, %s382
        %s384 = smul.addr %s383, 8
        %s385 = scalar_lea.vmem %s0, %s384
        %p386 = pneg %p60
        %p387 = pneg %p57
        %p388 = scmp.lt.s32.totalorder %s29, 1
        %s389 = scalar_select %p388, %s29, 1
        %s390 = smul.addr %s389, 4
        %s391 = smul.addr %s390, 8
        %s392 = scalar_lea.vmem %s1, %s391
        %p393 = pneg %p86
        %p394 = pneg %p83
        %p395 = pneg %p107
        %p396 = pneg %p104
        %p397 = pneg %p128
        %p398 = pneg %p125
        %p399 = pneg %p149
        %p400 = pneg %p146
        %p401 = pneg %p170
        %p402 = pneg %p167
        %p403 = pneg %p191
        %p404 = pneg %p188
        %p405 = pneg %p212
        %p406 = pneg %p209
        %p407 = pneg %p233
        %p408 = pneg %p230
        %p409 = pneg %p254
        %p410 = pneg %p251
        %p411 = pneg %p275
        %p412 = pneg %p272
        %p413 = pneg %p303
        %p414 = pneg %p300
        %s415 = sand.u32 %s290, 1
        %s416 = scalar_lea.sflag [#allocation3], %s415
        %s417 = sand.u32 %s290, 1
        %s418 = smul.addr %s417, 16
        %s419 = scalar_lea.vmem [#allocation2], %s418
        %s420 = smul.u32 64, %s30
        %p421 = scmp.lt.s32.totalorder %s29, 1
        %s422 = scalar_select %p421, %s29, 1
        %p423 = scmp.lt.s32.totalorder %s420, 127
        %s424 = scalar_select %p423, %s420, 127
        %s425 = smul.addr %s422, 128
        %s426 = sadd.s32 %s424, %s425
        %s427 = smul.addr %s426, 8
        %s428 = scalar_lea.vmem %s0, %s427
        %s429 = smul.u32 64, %s30
        %p430 = scmp.lt.s32.totalorder %s29, 1
        %s431 = scalar_select %p430, %s29, 1
        %s432 = smul.addr %s431, 4
        %s433 = smul.addr %s432, 8
        %s434 = scalar_lea.vmem %s1, %s433
        %s435 = smul.u32 4, %s30
        %v436 = vld [vmem:[%s428] sm:$0xff]
        %v437 = vld [vmem:[%s428 + $0x8] sm:$0xff]
        %v438 = vld [vmem:[%s428 + $0x10] sm:$0xff]
        %v439 = vld [vmem:[%s428 + $0x18] sm:$0xff]
        %v440 = vld [vmem:[%s428 + $0x20] sm:$0xff]
        %v441 = vld [vmem:[%s428 + $0x28] sm:$0xff]
        %v442 = vld [vmem:[%s428 + $0x30] sm:$0xff]
        %v443 = vld [vmem:[%s428 + $0x38] sm:$0xff]
        %v444 = vld [vmem:[%s428 + $0x40] sm:$0xff]
        %v445 = vld [vmem:[%s428 + $0x48] sm:$0xff]
        %v446 = vld [vmem:[%s428 + $0x50] sm:$0xff]
        %v447 = vld [vmem:[%s428 + $0x58] sm:$0xff]
        %v448 = vld [vmem:[%s428 + $0x60] sm:$0xff]
        %v449 = vld [vmem:[%s428 + $0x68] sm:$0xff]
        %v450 = vld [vmem:[%s428 + $0x70] sm:$0xff]
        %v451 = vld [vmem:[%s428 + $0x78] sm:$0xff]
        %v452 = vld [vmem:[%s428 + $0x80] sm:$0xff]
        %v453 = vld [vmem:[%s428 + $0x88] sm:$0xff]
        %v454 = vld [vmem:[%s428 + $0x90] sm:$0xff]
        %v455 = vld [vmem:[%s428 + $0x98] sm:$0xff]
        %v456 = vld [vmem:[%s428 + $0xa0] sm:$0xff]
        %v457 = vld [vmem:[%s428 + $0xa8] sm:$0xff]
        %v458 = vld [vmem:[%s428 + $0xb0] sm:$0xff]
        %v459 = vld [vmem:[%s428 + $0xb8] sm:$0xff]
        %v460 = vld [vmem:[%s428 + $0xc0] sm:$0xff]
        %v461 = vld [vmem:[%s428 + $0xc8] sm:$0xff]
        %v462 = vld [vmem:[%s428 + $0xd0] sm:$0xff]
        %v463 = vld [vmem:[%s428 + $0xd8] sm:$0xff]
        %v464 = vld [vmem:[%s428 + $0xe0] sm:$0xff]
        %v465 = vld [vmem:[%s428 + $0xe8] sm:$0xff]
        %v466 = vld [vmem:[%s428 + $0xf0] sm:$0xff]
        %v467 = vld [vmem:[%s428 + $0xf8] sm:$0xff]
        %v468 = vld [vmem:[%s428 + $0x100] sm:$0xff]
        %v469 = vld [vmem:[%s428 + $0x108] sm:$0xff]
        %v470 = vld [vmem:[%s428 + $0x110] sm:$0xff]
        %v471 = vld [vmem:[%s428 + $0x118] sm:$0xff]
        %v472 = vld [vmem:[%s428 + $0x120] sm:$0xff]
        %v473 = vld [vmem:[%s428 + $0x128] sm:$0xff]
        %v474 = vld [vmem:[%s428 + $0x130] sm:$0xff]
        %v475 = vld [vmem:[%s428 + $0x138] sm:$0xff]
        %v476 = vld [vmem:[%s428 + $0x140] sm:$0xff]
        %v477 = vld [vmem:[%s428 + $0x148] sm:$0xff]
        %v478 = vld [vmem:[%s428 + $0x150] sm:$0xff]
        %v479 = vld [vmem:[%s428 + $0x158] sm:$0xff]
        %v480 = vld [vmem:[%s428 + $0x160] sm:$0xff]
        %v481 = vld [vmem:[%s428 + $0x168] sm:$0xff]
        %v482 = vld [vmem:[%s428 + $0x170] sm:$0xff]
        %v483 = vld [vmem:[%s428 + $0x178] sm:$0xff]
        %v484 = vld [vmem:[%s428 + $0x180] sm:$0xff]
        %v485 = vld [vmem:[%s428 + $0x188] sm:$0xff]
        %v486 = vld [vmem:[%s428 + $0x190] sm:$0xff]
        %v487 = vld [vmem:[%s428 + $0x198] sm:$0xff]
        %v488 = vld [vmem:[%s428 + $0x1a0] sm:$0xff]
        %v489 = vld [vmem:[%s428 + $0x1a8] sm:$0xff]
        %v490 = vld [vmem:[%s428 + $0x1b0] sm:$0xff]
        %v491 = vld [vmem:[%s428 + $0x1b8] sm:$0xff]
        %v492 = vld [vmem:[%s428 + $0x1c0] sm:$0xff]
        %v493 = vld [vmem:[%s428 + $0x1c8] sm:$0xff]
        %v494 = vld [vmem:[%s428 + $0x1d0] sm:$0xff]
        %v495 = vld [vmem:[%s428 + $0x1d8] sm:$0xff]
        %v496 = vld [vmem:[%s428 + $0x1e0] sm:$0xff]
        %v497 = vld [vmem:[%s428 + $0x1e8] sm:$0xff]
        %v498 = vld [vmem:[%s428 + $0x1f0] sm:$0xff]
        %v499 = vld [vmem:[%s428 + $0x1f8] sm:$0xff]
        %v500 = vld [vmem:[%s434] sm:$0xff]
        %v501 = vld [vmem:[%s434 + $0x8] sm:$0xff]
        %v502 = vld [vmem:[%s434 + $0x10] sm:$0xff]
        %v503 = vld [vmem:[%s434 + $0x18] sm:$0xff]
        %v504 = vld [vmem:[%s2] sm:$0xff]
        %v505 = vld [vmem:[%s2 + $0x8] sm:$0xff]
        %v506 = vld [vmem:[%s2 + $0x10] sm:$0xff]
        %v507 = vld [vmem:[%s2 + $0x18] sm:$0xff]
        %509 = vset.pattern.permute.xlu0 0
        %510 = vperm.xlu0 %509, %v500
        %v511 = vpop.permute.xlu0 %510
        %514 = vset.pattern.permute.xlu0 0
        %515 = vperm.xlu0 %514, %v501
        %v516 = vpop.permute.xlu0 %515
        %519 = vset.pattern.permute.xlu0 0
        %520 = vperm.xlu0 %519, %v502
        %v521 = vpop.permute.xlu0 %520
        %524 = vset.pattern.permute.xlu0 0
        %525 = vperm.xlu0 %524, %v503
        %v526 = vpop.permute.xlu0 %525
        %vm528 = vcmask 23552
        %v530 = vsel %vm528, %v504, 0
        %v533 = vsel %vm528, %v505, 0
        %v536 = vsel %vm528, %v506, 0
        %v539 = vsel %vm528, %v507, 0
        %v542 = vsel %vm528, %v436, 0
        %v545 = vsel %vm528, %v437, 0
        %v548 = vsel %vm528, %v438, 0
        %v551 = vsel %vm528, %v439, 0
        %v554 = vsel %vm528, %v440, 0
        %v557 = vsel %vm528, %v441, 0
        %v560 = vsel %vm528, %v442, 0
        %v563 = vsel %vm528, %v443, 0
        %v566 = vsel %vm528, %v444, 0
        %v569 = vsel %vm528, %v445, 0
        %v572 = vsel %vm528, %v446, 0
        %v575 = vsel %vm528, %v447, 0
        %v578 = vsel %vm528, %v448, 0
        %v581 = vsel %vm528, %v449, 0
        %v584 = vsel %vm528, %v450, 0
        %v587 = vsel %vm528, %v451, 0
        %v590 = vsel %vm528, %v452, 0
        %v593 = vsel %vm528, %v453, 0
        %v596 = vsel %vm528, %v454, 0
        %v599 = vsel %vm528, %v455, 0
        %v602 = vsel %vm528, %v456, 0
        %v605 = vsel %vm528, %v457, 0
        %v608 = vsel %vm528, %v458, 0
        %v611 = vsel %vm528, %v459, 0
        %v614 = vsel %vm528, %v460, 0
        %v617 = vsel %vm528, %v461, 0
        %v620 = vsel %vm528, %v462, 0
        %v623 = vsel %vm528, %v463, 0
        %v626 = vsel %vm528, %v464, 0
        %v629 = vsel %vm528, %v465, 0
        %v632 = vsel %vm528, %v466, 0
        %v635 = vsel %vm528, %v467, 0
        %v638 = vsel %vm528, %v468, 0
        %v641 = vsel %vm528, %v469, 0
        %v644 = vsel %vm528, %v470, 0
        %v647 = vsel %vm528, %v471, 0
        %v650 = vsel %vm528, %v472, 0
        %v653 = vsel %vm528, %v473, 0
        %v656 = vsel %vm528, %v474, 0
        %v659 = vsel %vm528, %v475, 0
        %v662 = vsel %vm528, %v476, 0
        %v665 = vsel %vm528, %v477, 0
        %v668 = vsel %vm528, %v478, 0
        %v671 = vsel %vm528, %v479, 0
        %v674 = vsel %vm528, %v480, 0
        %v677 = vsel %vm528, %v481, 0
        %v680 = vsel %vm528, %v482, 0
        %v683 = vsel %vm528, %v483, 0
        %v686 = vsel %vm528, %v484, 0
        %v689 = vsel %vm528, %v485, 0
        %v692 = vsel %vm528, %v486, 0
        %v695 = vsel %vm528, %v487, 0
        %v698 = vsel %vm528, %v488, 0
        %v701 = vsel %vm528, %v489, 0
        %v704 = vsel %vm528, %v490, 0
        %v707 = vsel %vm528, %v491, 0
        %v710 = vsel %vm528, %v492, 0
        %v713 = vsel %vm528, %v493, 0
        %v716 = vsel %vm528, %v494, 0
        %v719 = vsel %vm528, %v495, 0
        %v722 = vsel %vm528, %v496, 0
        %v725 = vsel %vm528, %v497, 0
        %v728 = vsel %vm528, %v498, 0
        %v731 = vsel %vm528, %v499, 0
        %733 = vmatprep.subr.mxu0 0.0
        %734 = vmatpush1.xpose.msra.mxu0 %v587
        %735 = vmatprep.subr.mxu0 0.0
        %736 = vmatpush1.xpose.msra.mxu0 %v584
        %737 = vmatprep.subr.mxu0 0.0
        %738 = vmatpush1.xpose.msra.mxu0 %v581
        %739 = vmatprep.subr.mxu0 0.0
        %740 = vmatpush1.xpose.msra.mxu0 %v578
        %741 = vmatprep.subr.mxu0 0.0
        %742 = vmatpush1.xpose.msra.mxu0 %v575
        %743 = vmatprep.subr.mxu0 0.0
        %744 = vmatpush1.xpose.msra.mxu0 %v572
        %745 = vmatprep.subr.mxu0 0.0
        %746 = vmatpush1.xpose.msra.mxu0 %v569
        %747 = vmatprep.subr.mxu0 0.0
        %748 = vmatpush1.xpose.msra.mxu0 %v566
        %749 = vmatprep.subr.mxu0 0.0
        %750 = vmatpush1.xpose.msra.mxu0 %v563
        %751 = vmatprep.subr.mxu0 0.0
        %752 = vmatpush1.xpose.msra.mxu0 %v560
        %753 = vmatprep.subr.mxu0 0.0
        %754 = vmatpush1.xpose.msra.mxu0 %v557
        %755 = vmatprep.subr.mxu0 0.0
        %756 = vmatpush1.xpose.msra.mxu0 %v554
        %757 = vmatprep.subr.mxu0 0.0
        %758 = vmatpush1.xpose.msra.mxu0 %v551
        %759 = vmatprep.subr.mxu0 0.0
        %760 = vmatpush1.xpose.msra.mxu0 %v548
        %761 = vmatprep.subr.mxu0 0.0
        %762 = vmatpush1.xpose.msra.mxu0 %v545
        %763 = vmatprep.subr.mxu0 0.0
        %764 = vmatpush1.xpose.msra.mxu0 %v542
        %765 = vmatprep.subr.mxu0 0.0
        %766 = vmatpush2.xpose.msra.mxu0 %v635
        %767 = vmatprep.subr.mxu0 0.0
        %768 = vmatpush2.xpose.msra.mxu0 %v632
        %769 = vmatprep.subr.mxu0 0.0
        %770 = vmatpush2.xpose.msra.mxu0 %v629
        %771 = vmatprep.subr.mxu0 0.0
        %772 = vmatpush2.xpose.msra.mxu0 %v626
        %773 = vmatprep.subr.mxu0 0.0
        %774 = vmatpush2.xpose.msra.mxu0 %v623
        %775 = vmatprep.subr.mxu0 0.0
        %776 = vmatpush2.xpose.msra.mxu0 %v620
        %777 = vmatprep.subr.mxu0 0.0
        %778 = vmatpush2.xpose.msra.mxu0 %v617
        %779 = vmatprep.subr.mxu0 0.0
        %780 = vmatpush2.xpose.msra.mxu0 %v614
        %781 = vmatprep.subr.mxu0 0.0
        %782 = vmatpush2.xpose.msra.mxu0 %v611
        %783 = vmatprep.subr.mxu0 0.0
        %784 = vmatpush2.xpose.msra.mxu0 %v608
        %785 = vmatprep.subr.mxu0 0.0
        %786 = vmatpush2.xpose.msra.mxu0 %v605
        %787 = vmatprep.subr.mxu0 0.0
        %788 = vmatpush2.xpose.msra.mxu0 %v602
        %789 = vmatprep.subr.mxu0 0.0
        %790 = vmatpush2.xpose.msra.mxu0 %v599
        %791 = vmatprep.subr.mxu0 0.0
        %792 = vmatpush2.xpose.msra.mxu0 %v596
        %793 = vmatprep.subr.mxu0 0.0
        %794 = vmatpush2.xpose.msra.mxu0 %v593
        %795 = vmatprep.subr.mxu0 0.0
        %796 = vmatpush2.xpose.msra.mxu0 %v590
        %797 = vmatprep.mubr.f32.mxu0 0.0
        %798 = vmatmul.mubr.f32.gmra.mxu0 %v530
        %v799 = vpop.f32.mrf.mxu0
        %v800 = vadd.f32 %v511, %v799
        %v801 = vpop.f32.mrf.mxu0
        %v802 = vadd.f32 %v511, %v801
        %803 = vmatprep.mubr.f32.mxu0 0.0
        %804 = vmatmul.mubr.f32.gmra.mxu0 %v533
        %v805 = vpop.f32.mrf.mxu0
        %v806 = vadd.f32 %v516, %v805
        %v807 = vpop.f32.mrf.mxu0
        %v808 = vadd.f32 %v516, %v807
        %809 = vmatprep.mubr.f32.mxu0 0.0
        %810 = vmatmul.mubr.f32.gmra.mxu0 %v536
        %v811 = vpop.f32.mrf.mxu0
        %v812 = vadd.f32 %v521, %v811
        %v813 = vpop.f32.mrf.mxu0
        %v814 = vadd.f32 %v521, %v813
        %815 = vmatprep.mubr.f32.mxu0 0.0
        %816 = vmatmul.mubr.f32.gmra.mxu0 %v539
        %v817 = vpop.f32.mrf.mxu0
        %v818 = vadd.f32 %v526, %v817
        %v819 = vpop.f32.mrf.mxu0
        %v820 = vadd.f32 %v526, %v819
        %821 = vdwg.mxu0
        %822 = vmatprep.subr.mxu0 0.0
        %823 = vmatpush1.xpose.msra.mxu0 %v683
        %824 = vmatprep.subr.mxu0 0.0
        %825 = vmatpush1.xpose.msra.mxu0 %v680
        %826 = vmatprep.subr.mxu0 0.0
        %827 = vmatpush1.xpose.msra.mxu0 %v677
        %828 = vmatprep.subr.mxu0 0.0
        %829 = vmatpush1.xpose.msra.mxu0 %v674
        %830 = vmatprep.subr.mxu0 0.0
        %831 = vmatpush1.xpose.msra.mxu0 %v671
        %832 = vmatprep.subr.mxu0 0.0
        %833 = vmatpush1.xpose.msra.mxu0 %v668
        %834 = vmatprep.subr.mxu0 0.0
        %835 = vmatpush1.xpose.msra.mxu0 %v665
        %836 = vmatprep.subr.mxu0 0.0
        %837 = vmatpush1.xpose.msra.mxu0 %v662
        %838 = vmatprep.subr.mxu0 0.0
        %839 = vmatpush1.xpose.msra.mxu0 %v659
        %840 = vmatprep.subr.mxu0 0.0
        %841 = vmatpush1.xpose.msra.mxu0 %v656
        %842 = vmatprep.subr.mxu0 0.0
        %843 = vmatpush1.xpose.msra.mxu0 %v653
        %844 = vmatprep.subr.mxu0 0.0
        %845 = vmatpush1.xpose.msra.mxu0 %v650
        %846 = vmatprep.subr.mxu0 0.0
        %847 = vmatpush1.xpose.msra.mxu0 %v647
        %848 = vmatprep.subr.mxu0 0.0
        %849 = vmatpush1.xpose.msra.mxu0 %v644
        %850 = vmatprep.subr.mxu0 0.0
        %851 = vmatpush1.xpose.msra.mxu0 %v641
        %852 = vmatprep.subr.mxu0 0.0
        %853 = vmatpush1.xpose.msra.mxu0 %v638
        %854 = vmatprep.subr.mxu0 0.0
        %855 = vmatpush2.xpose.msra.mxu0 %v731
        %856 = vmatprep.subr.mxu0 0.0
        %857 = vmatpush2.xpose.msra.mxu0 %v728
        %858 = vmatprep.subr.mxu0 0.0
        %859 = vmatpush2.xpose.msra.mxu0 %v725
        %860 = vmatprep.subr.mxu0 0.0
        %861 = vmatpush2.xpose.msra.mxu0 %v722
        %862 = vmatprep.subr.mxu0 0.0
        %863 = vmatpush2.xpose.msra.mxu0 %v719
        %864 = vmatprep.subr.mxu0 0.0
        %865 = vmatpush2.xpose.msra.mxu0 %v716
        %866 = vmatprep.subr.mxu0 0.0
        %867 = vmatpush2.xpose.msra.mxu0 %v713
        %868 = vmatprep.subr.mxu0 0.0
        %869 = vmatpush2.xpose.msra.mxu0 %v710
        %870 = vmatprep.subr.mxu0 0.0
        %871 = vmatpush2.xpose.msra.mxu0 %v707
        %872 = vmatprep.subr.mxu0 0.0
        %873 = vmatpush2.xpose.msra.mxu0 %v704
        %874 = vmatprep.subr.mxu0 0.0
        %875 = vmatpush2.xpose.msra.mxu0 %v701
        %876 = vmatprep.subr.mxu0 0.0
        %877 = vmatpush2.xpose.msra.mxu0 %v698
        %878 = vmatprep.subr.mxu0 0.0
        %879 = vmatpush2.xpose.msra.mxu0 %v695
        %880 = vmatprep.subr.mxu0 0.0
        %881 = vmatpush2.xpose.msra.mxu0 %v692
        %882 = vmatprep.subr.mxu0 0.0
        %883 = vmatpush2.xpose.msra.mxu0 %v689
        %884 = vmatprep.subr.mxu0 0.0
        %885 = vmatpush2.xpose.msra.mxu0 %v686
        %886 = vmatprep.mubr.f32.mxu0 0.0
        %887 = vmatmul.mubr.f32.gmra.mxu0 %v530
        %v888 = vpop.f32.mrf.mxu0
        %v889 = vadd.f32 %v511, %v888
        %v890 = vpop.f32.mrf.mxu0
        %v891 = vadd.f32 %v511, %v890
        %892 = vmatprep.mubr.f32.mxu0 0.0
        %893 = vmatmul.mubr.f32.gmra.mxu0 %v533
        %v894 = vpop.f32.mrf.mxu0
        %v895 = vadd.f32 %v516, %v894
        %v896 = vpop.f32.mrf.mxu0
        %v897 = vadd.f32 %v516, %v896
        %898 = vmatprep.mubr.f32.mxu0 0.0
        %899 = vmatmul.mubr.f32.gmra.mxu0 %v536
        %v900 = vpop.f32.mrf.mxu0
        %v901 = vadd.f32 %v521, %v900
        %v902 = vpop.f32.mrf.mxu0
        %v903 = vadd.f32 %v521, %v902
        %904 = vmatprep.mubr.f32.mxu0 0.0
        %905 = vmatmul.mubr.f32.gmra.mxu0 %v539
        %v906 = vpop.f32.mrf.mxu0
        %v907 = vadd.f32 %v526, %v906
        %v908 = vpop.f32.mrf.mxu0
        %v909 = vadd.f32 %v526, %v908
        %910 = vdwg.mxu0
        %v911 = vmul.f32 %v800, 30.0
        %v912 = vmul.f32 %v802, 30.0
        %v913 = vmul.f32 %v889, 30.0
        %v914 = vmul.f32 %v891, 30.0
        %v915 = vmul.f32 %v806, 30.0
        %v916 = vmul.f32 %v808, 30.0
        %v917 = vmul.f32 %v895, 30.0
        %v918 = vmul.f32 %v897, 30.0
        %v919 = vmul.f32 %v812, 30.0
        %v920 = vmul.f32 %v814, 30.0
        %v921 = vmul.f32 %v901, 30.0
        %v922 = vmul.f32 %v903, 30.0
        %v923 = vmul.f32 %v818, 30.0
        %v924 = vmul.f32 %v820, 30.0
        %v925 = vmul.f32 %v907, 30.0
        %v926 = vmul.f32 %v909, 30.0
        %v927 = vand.u32 2147483647, %v911
        %vm928 = vcmp.le.f32.partialorder %v927, 0.7853982
        %vm929 = vcmp.lt.s32.totalorder %v911, 0
        %v930 = vand.u32 %v911, 2139095040
        %v931 = vshrl.u32 %v930, 23
        %v932 = vsub.s32 %v931, 127
        %v933 = vand.u32 2147483647, %v911
        %v934 = vand.u32 %v933, 8388607
        %v935 = vor.u32 %v934, 8388608
        %v936 = vsub.s32 0, %v935
        %v937 = vadd.s32 %v932, 1
        %vm938 = vcmp.gt.s32.totalorder %v937, 0
        %v939 = vsel %vm938, %v937, 0
        %v940 = vshrl.u32 %v939, 5
        %v941 = vand.u32 %v939, 31
        %v942 = vsub.s32 32, %v941
        %v943 = vshrl.u32 683565275, %v942
        %v944 = vshll.u32 683565275, %v941
        %v945 = vshrl.u32 2475754826, %v942
        %v946 = vor.u32 %v944, %v945
        %v947 = vshll.u32 2475754826, %v941
        %v948 = vshrl.u32 2131351028, %v942
        %v949 = vor.u32 %v947, %v948
        %v950 = vshll.u32 2131351028, %v941
        %v951 = vshrl.u32 2102212464, %v942
        %v952 = vor.u32 %v950, %v951
        %v953 = vshll.u32 2102212464, %v941
        %v954 = vshrl.u32 920167782, %v942
        %v955 = vor.u32 %v953, %v954
        %v956 = vshll.u32 920167782, %v941
        %v957 = vshrl.u32 1326507024, %v942
        %v958 = vor.u32 %v956, %v957
        %vm959 = vcmp.lt.s32.totalorder %v940, 1
        %vm960 = vcmp.lt.s32.totalorder %v940, 2
        %vm961 = vcmp.lt.s32.totalorder %v940, 3
        %vm962 = vcmp.lt.s32.totalorder %v940, 4
        %v963 = vsel %vm959, %v943, %v946
        %v964 = vsel %vm962, %v952, 2102212464
        %v965 = vsel %vm961, %v949, %v964
        %v966 = vsel %vm960, %v963, %v965
        %v967 = vsel %vm959, %v946, %v949
        %v968 = vsel %vm962, %v955, 920167782
        %v969 = vsel %vm961, %v952, %v968
        %v970 = vsel %vm960, %v967, %v969
        %v971 = vsel %vm959, %v949, %v952
        %v972 = vsel %vm962, %v958, 1326507024
        %v973 = vsel %vm961, %v955, %v972
        %v974 = vsel %vm960, %v971, %v973
        %v975 = vshll.u32 %v935, 8
        %v976 = vmul.u32.u64.compose %v975, %v974
        %v977 = vextract.low.u32 %v976
        %v978 = vextract.high.u32 %v976
        %v979 = vmul.u32.u64.compose %v975, %v970
        %v980 = vextract.low.u32 %v979
        %v981 = vextract.high.u32 %v979
        %v982 = vmul.u32 %v975, %v966
        %v983 = vadd.s32 %v978, %v980
        %vm984 = vc.u32 %v978, %v980
        %v985 = vadd.s32 %v981, 1
        %v986 = vsel %vm984, %v985, %v981
        %v987 = vadd.s32 %v982, %v986
        %v988 = vadd.s32 %v987, 536870912
        %v989 = vshrl.u32 %v988, 30
        %v990 = vshll.u32 %v989, 30
        %v991 = vsub.s32 %v987, %v990
        %vm992 = vcmp.lt.s32.totalorder %v991, 0
        %v993 = vsub.s32 0, %v991
        %v994 = vsel %vm992, %v993, %v991
        %v995 = vclz %v994
        %v996 = vsub.s32 %v995, 2
        %vm997 = vcmp.gt.s32.totalorder 0, %v996
        %v998 = vsel %vm997, 0, %v996
        %v999 = vsub.s32 32, %v998
        %v1000 = vshll.u32 %v991, %v998
        %v1001 = vshrl.u32 %v983, %v999
        %v1002 = vor.u32 %v1000, %v1001
        %v1003 = vsub.s32 4294967266, %v998
        %v1004 = vadd.s32 %v1003, 127
        %v1005 = vshll.u32 %v1004, 23
        %v1006 = vor.u32 4788187, %v1005
        %v1007 = vand.u32 2147483647, %v1006
        %v1009 = vcvt.s32.f32 %v1002
        %v1010 = vmul.f32 %v1009, %v1007
        %v1011 = vxor.u32 %v1010, 2147483648
        %v1012 = vsel %vm929, %v1011, %v1010
        %v1013 = vsub.s32 4, %v989
        %v1014 = vsel %vm929, %v1013, %v989
        %v1015 = vsel %vm928, %v911, %v1012
        %v1016 = vsel %vm928, 0, %v1014
        %v1017 = vcosq.f32.pop %v1015
        %v1018 = vsinq.f32.pop %v1015
        %vm1019 = vweird.f32 %v911
        %v1020 = vadd.s32 %v1016, 3
        %v1021 = vand.u32 %v1020, 3
        %vm1022 = vcmp.lt.s32.totalorder %v1021, 2
        %vm1023 = vcmp.eq.s32.totalorder %v1021, 0
        %v1024 = vxor.u32 %v1018, 2147483648
        %v1025 = vsel %vm1023, %v1017, %v1024
        %vm1026 = vcmp.eq.s32.totalorder %v1021, 2
        %v1027 = vxor.u32 %v1017, 2147483648
        %v1028 = vsel %vm1026, %v1027, %v1018
        %v1029 = vsel %vm1022, %v1025, %v1028
        %v1030 = vsel %vm1019, nan, %v1029
        %v1031 = vand.u32 2147483647, %v912
        %vm1032 = vcmp.le.f32.partialorder %v1031, 0.7853982
        %vm1033 = vcmp.lt.s32.totalorder %v912, 0
        %v1034 = vand.u32 %v912, 2139095040
        %v1035 = vshrl.u32 %v1034, 23
        %v1036 = vsub.s32 %v1035, 127
        %v1037 = vand.u32 2147483647, %v912
        %v1038 = vand.u32 %v1037, 8388607
        %v1039 = vor.u32 %v1038, 8388608
        %v1040 = vsub.s32 0, %v1039
        %v1041 = vadd.s32 %v1036, 1
        %vm1042 = vcmp.gt.s32.totalorder %v1041, 0
        %v1043 = vsel %vm1042, %v1041, 0
        %v1044 = vshrl.u32 %v1043, 5
        %v1045 = vand.u32 %v1043, 31
        %v1046 = vsub.s32 32, %v1045
        %v1047 = vshrl.u32 683565275, %v1046
        %v1048 = vshll.u32 683565275, %v1045
        %v1049 = vshrl.u32 2475754826, %v1046
        %v1050 = vor.u32 %v1048, %v1049
        %v1051 = vshll.u32 2475754826, %v1045
        %v1052 = vshrl.u32 2131351028, %v1046
        %v1053 = vor.u32 %v1051, %v1052
        %v1054 = vshll.u32 2131351028, %v1045
        %v1055 = vshrl.u32 2102212464, %v1046
        %v1056 = vor.u32 %v1054, %v1055
        %v1057 = vshll.u32 2102212464, %v1045
        %v1058 = vshrl.u32 920167782, %v1046
        %v1059 = vor.u32 %v1057, %v1058
        %v1060 = vshll.u32 920167782, %v1045
        %v1061 = vshrl.u32 1326507024, %v1046
        %v1062 = vor.u32 %v1060, %v1061
        %vm1063 = vcmp.lt.s32.totalorder %v1044, 1
        %vm1064 = vcmp.lt.s32.totalorder %v1044, 2
        %vm1065 = vcmp.lt.s32.totalorder %v1044, 3
        %vm1066 = vcmp.lt.s32.totalorder %v1044, 4
        %v1067 = vsel %vm1063, %v1047, %v1050
        %v1068 = vsel %vm1066, %v1056, 2102212464
        %v1069 = vsel %vm1065, %v1053, %v1068
        %v1070 = vsel %vm1064, %v1067, %v1069
        %v1071 = vsel %vm1063, %v1050, %v1053
        %v1072 = vsel %vm1066, %v1059, 920167782
        %v1073 = vsel %vm1065, %v1056, %v1072
        %v1074 = vsel %vm1064, %v1071, %v1073
        %v1075 = vsel %vm1063, %v1053, %v1056
        %v1076 = vsel %vm1066, %v1062, 1326507024
        %v1077 = vsel %vm1065, %v1059, %v1076
        %v1078 = vsel %vm1064, %v1075, %v1077
        %v1079 = vshll.u32 %v1039, 8
        %v1080 = vmul.u32.u64.compose %v1079, %v1078
        %v1081 = vextract.low.u32 %v1080
        %v1082 = vextract.high.u32 %v1080
        %v1083 = vmul.u32.u64.compose %v1079, %v1074
        %v1084 = vextract.low.u32 %v1083
        %v1085 = vextract.high.u32 %v1083
        %v1086 = vmul.u32 %v1079, %v1070
        %v1087 = vadd.s32 %v1082, %v1084
        %vm1088 = vc.u32 %v1082, %v1084
        %v1089 = vadd.s32 %v1085, 1
        %v1090 = vsel %vm1088, %v1089, %v1085
        %v1091 = vadd.s32 %v1086, %v1090
        %v1092 = vadd.s32 %v1091, 536870912
        %v1093 = vshrl.u32 %v1092, 30
        %v1094 = vshll.u32 %v1093, 30
        %v1095 = vsub.s32 %v1091, %v1094
        %vm1096 = vcmp.lt.s32.totalorder %v1095, 0
        %v1097 = vsub.s32 0, %v1095
        %v1098 = vsel %vm1096, %v1097, %v1095
        %v1099 = vclz %v1098
        %v1100 = vsub.s32 %v1099, 2
        %vm1101 = vcmp.gt.s32.totalorder 0, %v1100
        %v1102 = vsel %vm1101, 0, %v1100
        %v1103 = vsub.s32 32, %v1102
        %v1104 = vshll.u32 %v1095, %v1102
        %v1105 = vshrl.u32 %v1087, %v1103
        %v1106 = vor.u32 %v1104, %v1105
        %v1107 = vsub.s32 4294967266, %v1102
        %v1108 = vadd.s32 %v1107, 127
        %v1109 = vshll.u32 %v1108, 23
        %v1110 = vor.u32 4788187, %v1109
        %v1111 = vand.u32 2147483647, %v1110
        %v1113 = vcvt.s32.f32 %v1106
        %v1114 = vmul.f32 %v1113, %v1111
        %v1115 = vxor.u32 %v1114, 2147483648
        %v1116 = vsel %vm1033, %v1115, %v1114
        %v1117 = vsub.s32 4, %v1093
        %v1118 = vsel %vm1033, %v1117, %v1093
        %v1119 = vsel %vm1032, %v912, %v1116
        %v1120 = vsel %vm1032, 0, %v1118
        %v1121 = vcosq.f32.pop %v1119
        %v1122 = vsinq.f32.pop %v1119
        %vm1123 = vweird.f32 %v912
        %v1124 = vadd.s32 %v1120, 3
        %v1125 = vand.u32 %v1124, 3
        %vm1126 = vcmp.lt.s32.totalorder %v1125, 2
        %vm1127 = vcmp.eq.s32.totalorder %v1125, 0
        %v1128 = vxor.u32 %v1122, 2147483648
        %v1129 = vsel %vm1127, %v1121, %v1128
        %vm1130 = vcmp.eq.s32.totalorder %v1125, 2
        %v1131 = vxor.u32 %v1121, 2147483648
        %v1132 = vsel %vm1130, %v1131, %v1122
        %v1133 = vsel %vm1126, %v1129, %v1132
        %v1134 = vsel %vm1123, nan, %v1133
        %v1135 = vand.u32 2147483647, %v913
        %vm1136 = vcmp.le.f32.partialorder %v1135, 0.7853982
        %vm1137 = vcmp.lt.s32.totalorder %v913, 0
        %v1138 = vand.u32 %v913, 2139095040
        %v1139 = vshrl.u32 %v1138, 23
        %v1140 = vsub.s32 %v1139, 127
        %v1141 = vand.u32 2147483647, %v913
        %v1142 = vand.u32 %v1141, 8388607
        %v1143 = vor.u32 %v1142, 8388608
        %v1144 = vsub.s32 0, %v1143
        %v1145 = vadd.s32 %v1140, 1
        %vm1146 = vcmp.gt.s32.totalorder %v1145, 0
        %v1147 = vsel %vm1146, %v1145, 0
        %v1148 = vshrl.u32 %v1147, 5
        %v1149 = vand.u32 %v1147, 31
        %v1150 = vsub.s32 32, %v1149
        %v1151 = vshrl.u32 683565275, %v1150
        %v1152 = vshll.u32 683565275, %v1149
        %v1153 = vshrl.u32 2475754826, %v1150
        %v1154 = vor.u32 %v1152, %v1153
        %v1155 = vshll.u32 2475754826, %v1149
        %v1156 = vshrl.u32 2131351028, %v1150
        %v1157 = vor.u32 %v1155, %v1156
        %v1158 = vshll.u32 2131351028, %v1149
        %v1159 = vshrl.u32 2102212464, %v1150
        %v1160 = vor.u32 %v1158, %v1159
        %v1161 = vshll.u32 2102212464, %v1149
        %v1162 = vshrl.u32 920167782, %v1150
        %v1163 = vor.u32 %v1161, %v1162
        %v1164 = vshll.u32 920167782, %v1149
        %v1165 = vshrl.u32 1326507024, %v1150
        %v1166 = vor.u32 %v1164, %v1165
        %vm1167 = vcmp.lt.s32.totalorder %v1148, 1
        %vm1168 = vcmp.lt.s32.totalorder %v1148, 2
        %vm1169 = vcmp.lt.s32.totalorder %v1148, 3
        %vm1170 = vcmp.lt.s32.totalorder %v1148, 4
        %v1171 = vsel %vm1167, %v1151, %v1154
        %v1172 = vsel %vm1170, %v1160, 2102212464
        %v1173 = vsel %vm1169, %v1157, %v1172
        %v1174 = vsel %vm1168, %v1171, %v1173
        %v1175 = vsel %vm1167, %v1154, %v1157
        %v1176 = vsel %vm1170, %v1163, 920167782
        %v1177 = vsel %vm1169, %v1160, %v1176
        %v1178 = vsel %vm1168, %v1175, %v1177
        %v1179 = vsel %vm1167, %v1157, %v1160
        %v1180 = vsel %vm1170, %v1166, 1326507024
        %v1181 = vsel %vm1169, %v1163, %v1180
        %v1182 = vsel %vm1168, %v1179, %v1181
        %v1183 = vshll.u32 %v1143, 8
        %v1184 = vmul.u32.u64.compose %v1183, %v1182
        %v1185 = vextract.low.u32 %v1184
        %v1186 = vextract.high.u32 %v1184
        %v1187 = vmul.u32.u64.compose %v1183, %v1178
        %v1188 = vextract.low.u32 %v1187
        %v1189 = vextract.high.u32 %v1187
        %v1190 = vmul.u32 %v1183, %v1174
        %v1191 = vadd.s32 %v1186, %v1188
        %vm1192 = vc.u32 %v1186, %v1188
        %v1193 = vadd.s32 %v1189, 1
        %v1194 = vsel %vm1192, %v1193, %v1189
        %v1195 = vadd.s32 %v1190, %v1194
        %v1196 = vadd.s32 %v1195, 536870912
        %v1197 = vshrl.u32 %v1196, 30
        %v1198 = vshll.u32 %v1197, 30
        %v1199 = vsub.s32 %v1195, %v1198
        %vm1200 = vcmp.lt.s32.totalorder %v1199, 0
        %v1201 = vsub.s32 0, %v1199
        %v1202 = vsel %vm1200, %v1201, %v1199
        %v1203 = vclz %v1202
        %v1204 = vsub.s32 %v1203, 2
        %vm1205 = vcmp.gt.s32.totalorder 0, %v1204
        %v1206 = vsel %vm1205, 0, %v1204
        %v1207 = vsub.s32 32, %v1206
        %v1208 = vshll.u32 %v1199, %v1206
        %v1209 = vshrl.u32 %v1191, %v1207
        %v1210 = vor.u32 %v1208, %v1209
        %v1211 = vsub.s32 4294967266, %v1206
        %v1212 = vadd.s32 %v1211, 127
        %v1213 = vshll.u32 %v1212, 23
        %v1214 = vor.u32 4788187, %v1213
        %v1215 = vand.u32 2147483647, %v1214
        %v1217 = vcvt.s32.f32 %v1210
        %v1218 = vmul.f32 %v1217, %v1215
        %v1219 = vxor.u32 %v1218, 2147483648
        %v1220 = vsel %vm1137, %v1219, %v1218
        %v1221 = vsub.s32 4, %v1197
        %v1222 = vsel %vm1137, %v1221, %v1197
        %v1223 = vsel %vm1136, %v913, %v1220
        %v1224 = vsel %vm1136, 0, %v1222
        %v1225 = vcosq.f32.pop %v1223
        %v1226 = vsinq.f32.pop %v1223
        %vm1227 = vweird.f32 %v913
        %v1228 = vadd.s32 %v1224, 3
        %v1229 = vand.u32 %v1228, 3
        %vm1230 = vcmp.lt.s32.totalorder %v1229, 2
        %vm1231 = vcmp.eq.s32.totalorder %v1229, 0
        %v1232 = vxor.u32 %v1226, 2147483648
        %v1233 = vsel %vm1231, %v1225, %v1232
        %vm1234 = vcmp.eq.s32.totalorder %v1229, 2
        %v1235 = vxor.u32 %v1225, 2147483648
        %v1236 = vsel %vm1234, %v1235, %v1226
        %v1237 = vsel %vm1230, %v1233, %v1236
        %v1238 = vsel %vm1227, nan, %v1237
        %v1239 = vand.u32 2147483647, %v914
        %vm1240 = vcmp.le.f32.partialorder %v1239, 0.7853982
        %vm1241 = vcmp.lt.s32.totalorder %v914, 0
        %v1242 = vand.u32 %v914, 2139095040
        %v1243 = vshrl.u32 %v1242, 23
        %v1244 = vsub.s32 %v1243, 127
        %v1245 = vand.u32 2147483647, %v914
        %v1246 = vand.u32 %v1245, 8388607
        %v1247 = vor.u32 %v1246, 8388608
        %v1248 = vsub.s32 0, %v1247
        %v1249 = vadd.s32 %v1244, 1
        %vm1250 = vcmp.gt.s32.totalorder %v1249, 0
        %v1251 = vsel %vm1250, %v1249, 0
        %v1252 = vshrl.u32 %v1251, 5
        %v1253 = vand.u32 %v1251, 31
        %v1254 = vsub.s32 32, %v1253
        %v1255 = vshrl.u32 683565275, %v1254
        %v1256 = vshll.u32 683565275, %v1253
        %v1257 = vshrl.u32 2475754826, %v1254
        %v1258 = vor.u32 %v1256, %v1257
        %v1259 = vshll.u32 2475754826, %v1253
        %v1260 = vshrl.u32 2131351028, %v1254
        %v1261 = vor.u32 %v1259, %v1260
        %v1262 = vshll.u32 2131351028, %v1253
        %v1263 = vshrl.u32 2102212464, %v1254
        %v1264 = vor.u32 %v1262, %v1263
        %v1265 = vshll.u32 2102212464, %v1253
        %v1266 = vshrl.u32 920167782, %v1254
        %v1267 = vor.u32 %v1265, %v1266
        %v1268 = vshll.u32 920167782, %v1253
        %v1269 = vshrl.u32 1326507024, %v1254
        %v1270 = vor.u32 %v1268, %v1269
        %vm1271 = vcmp.lt.s32.totalorder %v1252, 1
        %vm1272 = vcmp.lt.s32.totalorder %v1252, 2
        %vm1273 = vcmp.lt.s32.totalorder %v1252, 3
        %vm1274 = vcmp.lt.s32.totalorder %v1252, 4
        %v1275 = vsel %vm1271, %v1255, %v1258
        %v1276 = vsel %vm1274, %v1264, 2102212464
        %v1277 = vsel %vm1273, %v1261, %v1276
        %v1278 = vsel %vm1272, %v1275, %v1277
        %v1279 = vsel %vm1271, %v1258, %v1261
        %v1280 = vsel %vm1274, %v1267, 920167782
        %v1281 = vsel %vm1273, %v1264, %v1280
        %v1282 = vsel %vm1272, %v1279, %v1281
        %v1283 = vsel %vm1271, %v1261, %v1264
        %v1284 = vsel %vm1274, %v1270, 1326507024
        %v1285 = vsel %vm1273, %v1267, %v1284
        %v1286 = vsel %vm1272, %v1283, %v1285
        %v1287 = vshll.u32 %v1247, 8
        %v1288 = vmul.u32.u64.compose %v1287, %v1286
        %v1289 = vextract.low.u32 %v1288
        %v1290 = vextract.high.u32 %v1288
        %v1291 = vmul.u32.u64.compose %v1287, %v1282
        %v1292 = vextract.low.u32 %v1291
        %v1293 = vextract.high.u32 %v1291
        %v1294 = vmul.u32 %v1287, %v1278
        %v1295 = vadd.s32 %v1290, %v1292
        %vm1296 = vc.u32 %v1290, %v1292
        %v1297 = vadd.s32 %v1293, 1
        %v1298 = vsel %vm1296, %v1297, %v1293
        %v1299 = vadd.s32 %v1294, %v1298
        %v1300 = vadd.s32 %v1299, 536870912
        %v1301 = vshrl.u32 %v1300, 30
        %v1302 = vshll.u32 %v1301, 30
        %v1303 = vsub.s32 %v1299, %v1302
        %vm1304 = vcmp.lt.s32.totalorder %v1303, 0
        %v1305 = vsub.s32 0, %v1303
        %v1306 = vsel %vm1304, %v1305, %v1303
        %v1307 = vclz %v1306
        %v1308 = vsub.s32 %v1307, 2
        %vm1309 = vcmp.gt.s32.totalorder 0, %v1308
        %v1310 = vsel %vm1309, 0, %v1308
        %v1311 = vsub.s32 32, %v1310
        %v1312 = vshll.u32 %v1303, %v1310
        %v1313 = vshrl.u32 %v1295, %v1311
        %v1314 = vor.u32 %v1312, %v1313
        %v1315 = vsub.s32 4294967266, %v1310
        %v1316 = vadd.s32 %v1315, 127
        %v1317 = vshll.u32 %v1316, 23
        %v1318 = vor.u32 4788187, %v1317
        %v1319 = vand.u32 2147483647, %v1318
        %v1321 = vcvt.s32.f32 %v1314
        %v1322 = vmul.f32 %v1321, %v1319
        %v1323 = vxor.u32 %v1322, 2147483648
        %v1324 = vsel %vm1241, %v1323, %v1322
        %v1325 = vsub.s32 4, %v1301
        %v1326 = vsel %vm1241, %v1325, %v1301
        %v1327 = vsel %vm1240, %v914, %v1324
        %v1328 = vsel %vm1240, 0, %v1326
        %v1329 = vcosq.f32.pop %v1327
        %v1330 = vsinq.f32.pop %v1327
        %vm1331 = vweird.f32 %v914
        %v1332 = vadd.s32 %v1328, 3
        %v1333 = vand.u32 %v1332, 3
        %vm1334 = vcmp.lt.s32.totalorder %v1333, 2
        %vm1335 = vcmp.eq.s32.totalorder %v1333, 0
        %v1336 = vxor.u32 %v1330, 2147483648
        %v1337 = vsel %vm1335, %v1329, %v1336
        %vm1338 = vcmp.eq.s32.totalorder %v1333, 2
        %v1339 = vxor.u32 %v1329, 2147483648
        %v1340 = vsel %vm1338, %v1339, %v1330
        %v1341 = vsel %vm1334, %v1337, %v1340
        %v1342 = vsel %vm1331, nan, %v1341
        %v1343 = vand.u32 2147483647, %v915
        %vm1344 = vcmp.le.f32.partialorder %v1343, 0.7853982
        %vm1345 = vcmp.lt.s32.totalorder %v915, 0
        %v1346 = vand.u32 %v915, 2139095040
        %v1347 = vshrl.u32 %v1346, 23
        %v1348 = vsub.s32 %v1347, 127
        %v1349 = vand.u32 2147483647, %v915
        %v1350 = vand.u32 %v1349, 8388607
        %v1351 = vor.u32 %v1350, 8388608
        %v1352 = vsub.s32 0, %v1351
        %v1353 = vadd.s32 %v1348, 1
        %vm1354 = vcmp.gt.s32.totalorder %v1353, 0
        %v1355 = vsel %vm1354, %v1353, 0
        %v1356 = vshrl.u32 %v1355, 5
        %v1357 = vand.u32 %v1355, 31
        %v1358 = vsub.s32 32, %v1357
        %v1359 = vshrl.u32 683565275, %v1358
        %v1360 = vshll.u32 683565275, %v1357
        %v1361 = vshrl.u32 2475754826, %v1358
        %v1362 = vor.u32 %v1360, %v1361
        %v1363 = vshll.u32 2475754826, %v1357
        %v1364 = vshrl.u32 2131351028, %v1358
        %v1365 = vor.u32 %v1363, %v1364
        %v1366 = vshll.u32 2131351028, %v1357
        %v1367 = vshrl.u32 2102212464, %v1358
        %v1368 = vor.u32 %v1366, %v1367
        %v1369 = vshll.u32 2102212464, %v1357
        %v1370 = vshrl.u32 920167782, %v1358
        %v1371 = vor.u32 %v1369, %v1370
        %v1372 = vshll.u32 920167782, %v1357
        %v1373 = vshrl.u32 1326507024, %v1358
        %v1374 = vor.u32 %v1372, %v1373
        %vm1375 = vcmp.lt.s32.totalorder %v1356, 1
        %vm1376 = vcmp.lt.s32.totalorder %v1356, 2
        %vm1377 = vcmp.lt.s32.totalorder %v1356, 3
        %vm1378 = vcmp.lt.s32.totalorder %v1356, 4
        %v1379 = vsel %vm1375, %v1359, %v1362
        %v1380 = vsel %vm1378, %v1368, 2102212464
        %v1381 = vsel %vm1377, %v1365, %v1380
        %v1382 = vsel %vm1376, %v1379, %v1381
        %v1383 = vsel %vm1375, %v1362, %v1365
        %v1384 = vsel %vm1378, %v1371, 920167782
        %v1385 = vsel %vm1377, %v1368, %v1384
        %v1386 = vsel %vm1376, %v1383, %v1385
        %v1387 = vsel %vm1375, %v1365, %v1368
        %v1388 = vsel %vm1378, %v1374, 1326507024
        %v1389 = vsel %vm1377, %v1371, %v1388
        %v1390 = vsel %vm1376, %v1387, %v1389
        %v1391 = vshll.u32 %v1351, 8
        %v1392 = vmul.u32.u64.compose %v1391, %v1390
        %v1393 = vextract.low.u32 %v1392
        %v1394 = vextract.high.u32 %v1392
        %v1395 = vmul.u32.u64.compose %v1391, %v1386
        %v1396 = vextract.low.u32 %v1395
        %v1397 = vextract.high.u32 %v1395
        %v1398 = vmul.u32 %v1391, %v1382
        %v1399 = vadd.s32 %v1394, %v1396
        %vm1400 = vc.u32 %v1394, %v1396
        %v1401 = vadd.s32 %v1397, 1
        %v1402 = vsel %vm1400, %v1401, %v1397
        %v1403 = vadd.s32 %v1398, %v1402
        %v1404 = vadd.s32 %v1403, 536870912
        %v1405 = vshrl.u32 %v1404, 30
        %v1406 = vshll.u32 %v1405, 30
        %v1407 = vsub.s32 %v1403, %v1406
        %vm1408 = vcmp.lt.s32.totalorder %v1407, 0
        %v1409 = vsub.s32 0, %v1407
        %v1410 = vsel %vm1408, %v1409, %v1407
        %v1411 = vclz %v1410
        %v1412 = vsub.s32 %v1411, 2
        %vm1413 = vcmp.gt.s32.totalorder 0, %v1412
        %v1414 = vsel %vm1413, 0, %v1412
        %v1415 = vsub.s32 32, %v1414
        %v1416 = vshll.u32 %v1407, %v1414
        %v1417 = vshrl.u32 %v1399, %v1415
        %v1418 = vor.u32 %v1416, %v1417
        %v1419 = vsub.s32 4294967266, %v1414
        %v1420 = vadd.s32 %v1419, 127
        %v1421 = vshll.u32 %v1420, 23
        %v1422 = vor.u32 4788187, %v1421
        %v1423 = vand.u32 2147483647, %v1422
        %v1425 = vcvt.s32.f32 %v1418
        %v1426 = vmul.f32 %v1425, %v1423
        %v1427 = vxor.u32 %v1426, 2147483648
        %v1428 = vsel %vm1345, %v1427, %v1426
        %v1429 = vsub.s32 4, %v1405
        %v1430 = vsel %vm1345, %v1429, %v1405
        %v1431 = vsel %vm1344, %v915, %v1428
        %v1432 = vsel %vm1344, 0, %v1430
        %v1433 = vcosq.f32.pop %v1431
        %v1434 = vsinq.f32.pop %v1431
        %vm1435 = vweird.f32 %v915
        %v1436 = vadd.s32 %v1432, 3
        %v1437 = vand.u32 %v1436, 3
        %vm1438 = vcmp.lt.s32.totalorder %v1437, 2
        %vm1439 = vcmp.eq.s32.totalorder %v1437, 0
        %v1440 = vxor.u32 %v1434, 2147483648
        %v1441 = vsel %vm1439, %v1433, %v1440
        %vm1442 = vcmp.eq.s32.totalorder %v1437, 2
        %v1443 = vxor.u32 %v1433, 2147483648
        %v1444 = vsel %vm1442, %v1443, %v1434
        %v1445 = vsel %vm1438, %v1441, %v1444
        %v1446 = vsel %vm1435, nan, %v1445
        %v1447 = vand.u32 2147483647, %v916
        %vm1448 = vcmp.le.f32.partialorder %v1447, 0.7853982
        %vm1449 = vcmp.lt.s32.totalorder %v916, 0
        %v1450 = vand.u32 %v916, 2139095040
        %v1451 = vshrl.u32 %v1450, 23
        %v1452 = vsub.s32 %v1451, 127
        %v1453 = vand.u32 2147483647, %v916
        %v1454 = vand.u32 %v1453, 8388607
        %v1455 = vor.u32 %v1454, 8388608
        %v1456 = vsub.s32 0, %v1455
        %v1457 = vadd.s32 %v1452, 1
        %vm1458 = vcmp.gt.s32.totalorder %v1457, 0
        %v1459 = vsel %vm1458, %v1457, 0
        %v1460 = vshrl.u32 %v1459, 5
        %v1461 = vand.u32 %v1459, 31
        %v1462 = vsub.s32 32, %v1461
        %v1463 = vshrl.u32 683565275, %v1462
        %v1464 = vshll.u32 683565275, %v1461
        %v1465 = vshrl.u32 2475754826, %v1462
        %v1466 = vor.u32 %v1464, %v1465
        %v1467 = vshll.u32 2475754826, %v1461
        %v1468 = vshrl.u32 2131351028, %v1462
        %v1469 = vor.u32 %v1467, %v1468
        %v1470 = vshll.u32 2131351028, %v1461
        %v1471 = vshrl.u32 2102212464, %v1462
        %v1472 = vor.u32 %v1470, %v1471
        %v1473 = vshll.u32 2102212464, %v1461
        %v1474 = vshrl.u32 920167782, %v1462
        %v1475 = vor.u32 %v1473, %v1474
        %v1476 = vshll.u32 920167782, %v1461
        %v1477 = vshrl.u32 1326507024, %v1462
        %v1478 = vor.u32 %v1476, %v1477
        %vm1479 = vcmp.lt.s32.totalorder %v1460, 1
        %vm1480 = vcmp.lt.s32.totalorder %v1460, 2
        %vm1481 = vcmp.lt.s32.totalorder %v1460, 3
        %vm1482 = vcmp.lt.s32.totalorder %v1460, 4
        %v1483 = vsel %vm1479, %v1463, %v1466
        %v1484 = vsel %vm1482, %v1472, 2102212464
        %v1485 = vsel %vm1481, %v1469, %v1484
        %v1486 = vsel %vm1480, %v1483, %v1485
        %v1487 = vsel %vm1479, %v1466, %v1469
        %v1488 = vsel %vm1482, %v1475, 920167782
        %v1489 = vsel %vm1481, %v1472, %v1488
        %v1490 = vsel %vm1480, %v1487, %v1489
        %v1491 = vsel %vm1479, %v1469, %v1472
        %v1492 = vsel %vm1482, %v1478, 1326507024
        %v1493 = vsel %vm1481, %v1475, %v1492
        %v1494 = vsel %vm1480, %v1491, %v1493
        %v1495 = vshll.u32 %v1455, 8
        %v1496 = vmul.u32.u64.compose %v1495, %v1494
        %v1497 = vextract.low.u32 %v1496
        %v1498 = vextract.high.u32 %v1496
        %v1499 = vmul.u32.u64.compose %v1495, %v1490
        %v1500 = vextract.low.u32 %v1499
        %v1501 = vextract.high.u32 %v1499
        %v1502 = vmul.u32 %v1495, %v1486
        %v1503 = vadd.s32 %v1498, %v1500
        %vm1504 = vc.u32 %v1498, %v1500
        %v1505 = vadd.s32 %v1501, 1
        %v1506 = vsel %vm1504, %v1505, %v1501
        %v1507 = vadd.s32 %v1502, %v1506
        %v1508 = vadd.s32 %v1507, 536870912
        %v1509 = vshrl.u32 %v1508, 30
        %v1510 = vshll.u32 %v1509, 30
        %v1511 = vsub.s32 %v1507, %v1510
        %vm1512 = vcmp.lt.s32.totalorder %v1511, 0
        %v1513 = vsub.s32 0, %v1511
        %v1514 = vsel %vm1512, %v1513, %v1511
        %v1515 = vclz %v1514
        %v1516 = vsub.s32 %v1515, 2
        %vm1517 = vcmp.gt.s32.totalorder 0, %v1516
        %v1518 = vsel %vm1517, 0, %v1516
        %v1519 = vsub.s32 32, %v1518
        %v1520 = vshll.u32 %v1511, %v1518
        %v1521 = vshrl.u32 %v1503, %v1519
        %v1522 = vor.u32 %v1520, %v1521
        %v1523 = vsub.s32 4294967266, %v1518
        %v1524 = vadd.s32 %v1523, 127
        %v1525 = vshll.u32 %v1524, 23
        %v1526 = vor.u32 4788187, %v1525
        %v1527 = vand.u32 2147483647, %v1526
        %v1529 = vcvt.s32.f32 %v1522
        %v1530 = vmul.f32 %v1529, %v1527
        %v1531 = vxor.u32 %v1530, 2147483648
        %v1532 = vsel %vm1449, %v1531, %v1530
        %v1533 = vsub.s32 4, %v1509
        %v1534 = vsel %vm1449, %v1533, %v1509
        %v1535 = vsel %vm1448, %v916, %v1532
        %v1536 = vsel %vm1448, 0, %v1534
        %v1537 = vcosq.f32.pop %v1535
        %v1538 = vsinq.f32.pop %v1535
        %vm1539 = vweird.f32 %v916
        %v1540 = vadd.s32 %v1536, 3
        %v1541 = vand.u32 %v1540, 3
        %vm1542 = vcmp.lt.s32.totalorder %v1541, 2
        %vm1543 = vcmp.eq.s32.totalorder %v1541, 0
        %v1544 = vxor.u32 %v1538, 2147483648
        %v1545 = vsel %vm1543, %v1537, %v1544
        %vm1546 = vcmp.eq.s32.totalorder %v1541, 2
        %v1547 = vxor.u32 %v1537, 2147483648
        %v1548 = vsel %vm1546, %v1547, %v1538
        %v1549 = vsel %vm1542, %v1545, %v1548
        %v1550 = vsel %vm1539, nan, %v1549
        %v1551 = vand.u32 2147483647, %v917
        %vm1552 = vcmp.le.f32.partialorder %v1551, 0.7853982
        %vm1553 = vcmp.lt.s32.totalorder %v917, 0
        %v1554 = vand.u32 %v917, 2139095040
        %v1555 = vshrl.u32 %v1554, 23
        %v1556 = vsub.s32 %v1555, 127
        %v1557 = vand.u32 2147483647, %v917
        %v1558 = vand.u32 %v1557, 8388607
        %v1559 = vor.u32 %v1558, 8388608
        %v1560 = vsub.s32 0, %v1559
        %v1561 = vadd.s32 %v1556, 1
        %vm1562 = vcmp.gt.s32.totalorder %v1561, 0
        %v1563 = vsel %vm1562, %v1561, 0
        %v1564 = vshrl.u32 %v1563, 5
        %v1565 = vand.u32 %v1563, 31
        %v1566 = vsub.s32 32, %v1565
        %v1567 = vshrl.u32 683565275, %v1566
        %v1568 = vshll.u32 683565275, %v1565
        %v1569 = vshrl.u32 2475754826, %v1566
        %v1570 = vor.u32 %v1568, %v1569
        %v1571 = vshll.u32 2475754826, %v1565
        %v1572 = vshrl.u32 2131351028, %v1566
        %v1573 = vor.u32 %v1571, %v1572
        %v1574 = vshll.u32 2131351028, %v1565
        %v1575 = vshrl.u32 2102212464, %v1566
        %v1576 = vor.u32 %v1574, %v1575
        %v1577 = vshll.u32 2102212464, %v1565
        %v1578 = vshrl.u32 920167782, %v1566
        %v1579 = vor.u32 %v1577, %v1578
        %v1580 = vshll.u32 920167782, %v1565
        %v1581 = vshrl.u32 1326507024, %v1566
        %v1582 = vor.u32 %v1580, %v1581
        %vm1583 = vcmp.lt.s32.totalorder %v1564, 1
        %vm1584 = vcmp.lt.s32.totalorder %v1564, 2
        %vm1585 = vcmp.lt.s32.totalorder %v1564, 3
        %vm1586 = vcmp.lt.s32.totalorder %v1564, 4
        %v1587 = vsel %vm1583, %v1567, %v1570
        %v1588 = vsel %vm1586, %v1576, 2102212464
        %v1589 = vsel %vm1585, %v1573, %v1588
        %v1590 = vsel %vm1584, %v1587, %v1589
        %v1591 = vsel %vm1583, %v1570, %v1573
        %v1592 = vsel %vm1586, %v1579, 920167782
        %v1593 = vsel %vm1585, %v1576, %v1592
        %v1594 = vsel %vm1584, %v1591, %v1593
        %v1595 = vsel %vm1583, %v1573, %v1576
        %v1596 = vsel %vm1586, %v1582, 1326507024
        %v1597 = vsel %vm1585, %v1579, %v1596
        %v1598 = vsel %vm1584, %v1595, %v1597
        %v1599 = vshll.u32 %v1559, 8
        %v1600 = vmul.u32.u64.compose %v1599, %v1598
        %v1601 = vextract.low.u32 %v1600
        %v1602 = vextract.high.u32 %v1600
        %v1603 = vmul.u32.u64.compose %v1599, %v1594
        %v1604 = vextract.low.u32 %v1603
        %v1605 = vextract.high.u32 %v1603
        %v1606 = vmul.u32 %v1599, %v1590
        %v1607 = vadd.s32 %v1602, %v1604
        %vm1608 = vc.u32 %v1602, %v1604
        %v1609 = vadd.s32 %v1605, 1
        %v1610 = vsel %vm1608, %v1609, %v1605
        %v1611 = vadd.s32 %v1606, %v1610
        %v1612 = vadd.s32 %v1611, 536870912
        %v1613 = vshrl.u32 %v1612, 30
        %v1614 = vshll.u32 %v1613, 30
        %v1615 = vsub.s32 %v1611, %v1614
        %vm1616 = vcmp.lt.s32.totalorder %v1615, 0
        %v1617 = vsub.s32 0, %v1615
        %v1618 = vsel %vm1616, %v1617, %v1615
        %v1619 = vclz %v1618
        %v1620 = vsub.s32 %v1619, 2
        %vm1621 = vcmp.gt.s32.totalorder 0, %v1620
        %v1622 = vsel %vm1621, 0, %v1620
        %v1623 = vsub.s32 32, %v1622
        %v1624 = vshll.u32 %v1615, %v1622
        %v1625 = vshrl.u32 %v1607, %v1623
        %v1626 = vor.u32 %v1624, %v1625
        %v1627 = vsub.s32 4294967266, %v1622
        %v1628 = vadd.s32 %v1627, 127
        %v1629 = vshll.u32 %v1628, 23
        %v1630 = vor.u32 4788187, %v1629
        %v1631 = vand.u32 2147483647, %v1630
        %v1633 = vcvt.s32.f32 %v1626
        %v1634 = vmul.f32 %v1633, %v1631
        %v1635 = vxor.u32 %v1634, 2147483648
        %v1636 = vsel %vm1553, %v1635, %v1634
        %v1637 = vsub.s32 4, %v1613
        %v1638 = vsel %vm1553, %v1637, %v1613
        %v1639 = vsel %vm1552, %v917, %v1636
        %v1640 = vsel %vm1552, 0, %v1638
        %v1641 = vcosq.f32.pop %v1639
        %v1642 = vsinq.f32.pop %v1639
        %vm1643 = vweird.f32 %v917
        %v1644 = vadd.s32 %v1640, 3
        %v1645 = vand.u32 %v1644, 3
        %vm1646 = vcmp.lt.s32.totalorder %v1645, 2
        %vm1647 = vcmp.eq.s32.totalorder %v1645, 0
        %v1648 = vxor.u32 %v1642, 2147483648
        %v1649 = vsel %vm1647, %v1641, %v1648
        %vm1650 = vcmp.eq.s32.totalorder %v1645, 2
        %v1651 = vxor.u32 %v1641, 2147483648
        %v1652 = vsel %vm1650, %v1651, %v1642
        %v1653 = vsel %vm1646, %v1649, %v1652
        %v1654 = vsel %vm1643, nan, %v1653
        %v1655 = vand.u32 2147483647, %v918
        %vm1656 = vcmp.le.f32.partialorder %v1655, 0.7853982
        %vm1657 = vcmp.lt.s32.totalorder %v918, 0
        %v1658 = vand.u32 %v918, 2139095040
        %v1659 = vshrl.u32 %v1658, 23
        %v1660 = vsub.s32 %v1659, 127
        %v1661 = vand.u32 2147483647, %v918
        %v1662 = vand.u32 %v1661, 8388607
        %v1663 = vor.u32 %v1662, 8388608
        %v1664 = vsub.s32 0, %v1663
        %v1665 = vadd.s32 %v1660, 1
        %vm1666 = vcmp.gt.s32.totalorder %v1665, 0
        %v1667 = vsel %vm1666, %v1665, 0
        %v1668 = vshrl.u32 %v1667, 5
        %v1669 = vand.u32 %v1667, 31
        %v1670 = vsub.s32 32, %v1669
        %v1671 = vshrl.u32 683565275, %v1670
        %v1672 = vshll.u32 683565275, %v1669
        %v1673 = vshrl.u32 2475754826, %v1670
        %v1674 = vor.u32 %v1672, %v1673
        %v1675 = vshll.u32 2475754826, %v1669
        %v1676 = vshrl.u32 2131351028, %v1670
        %v1677 = vor.u32 %v1675, %v1676
        %v1678 = vshll.u32 2131351028, %v1669
        %v1679 = vshrl.u32 2102212464, %v1670
        %v1680 = vor.u32 %v1678, %v1679
        %v1681 = vshll.u32 2102212464, %v1669
        %v1682 = vshrl.u32 920167782, %v1670
        %v1683 = vor.u32 %v1681, %v1682
        %v1684 = vshll.u32 920167782, %v1669
        %v1685 = vshrl.u32 1326507024, %v1670
        %v1686 = vor.u32 %v1684, %v1685
        %vm1687 = vcmp.lt.s32.totalorder %v1668, 1
        %vm1688 = vcmp.lt.s32.totalorder %v1668, 2
        %vm1689 = vcmp.lt.s32.totalorder %v1668, 3
        %vm1690 = vcmp.lt.s32.totalorder %v1668, 4
        %v1691 = vsel %vm1687, %v1671, %v1674
        %v1692 = vsel %vm1690, %v1680, 2102212464
        %v1693 = vsel %vm1689, %v1677, %v1692
        %v1694 = vsel %vm1688, %v1691, %v1693
        %v1695 = vsel %vm1687, %v1674, %v1677
        %v1696 = vsel %vm1690, %v1683, 920167782
        %v1697 = vsel %vm1689, %v1680, %v1696
        %v1698 = vsel %vm1688, %v1695, %v1697
        %v1699 = vsel %vm1687, %v1677, %v1680
        %v1700 = vsel %vm1690, %v1686, 1326507024
        %v1701 = vsel %vm1689, %v1683, %v1700
        %v1702 = vsel %vm1688, %v1699, %v1701
        %v1703 = vshll.u32 %v1663, 8
        %v1704 = vmul.u32.u64.compose %v1703, %v1702
        %v1705 = vextract.low.u32 %v1704
        %v1706 = vextract.high.u32 %v1704
        %v1707 = vmul.u32.u64.compose %v1703, %v1698
        %v1708 = vextract.low.u32 %v1707
        %v1709 = vextract.high.u32 %v1707
        %v1710 = vmul.u32 %v1703, %v1694
        %v1711 = vadd.s32 %v1706, %v1708
        %vm1712 = vc.u32 %v1706, %v1708
        %v1713 = vadd.s32 %v1709, 1
        %v1714 = vsel %vm1712, %v1713, %v1709
        %v1715 = vadd.s32 %v1710, %v1714
        %v1716 = vadd.s32 %v1715, 536870912
        %v1717 = vshrl.u32 %v1716, 30
        %v1718 = vshll.u32 %v1717, 30
        %v1719 = vsub.s32 %v1715, %v1718
        %vm1720 = vcmp.lt.s32.totalorder %v1719, 0
        %v1721 = vsub.s32 0, %v1719
        %v1722 = vsel %vm1720, %v1721, %v1719
        %v1723 = vclz %v1722
        %v1724 = vsub.s32 %v1723, 2
        %vm1725 = vcmp.gt.s32.totalorder 0, %v1724
        %v1726 = vsel %vm1725, 0, %v1724
        %v1727 = vsub.s32 32, %v1726
        %v1728 = vshll.u32 %v1719, %v1726
        %v1729 = vshrl.u32 %v1711, %v1727
        %v1730 = vor.u32 %v1728, %v1729
        %v1731 = vsub.s32 4294967266, %v1726
        %v1732 = vadd.s32 %v1731, 127
        %v1733 = vshll.u32 %v1732, 23
        %v1734 = vor.u32 4788187, %v1733
        %v1735 = vand.u32 2147483647, %v1734
        %v1737 = vcvt.s32.f32 %v1730
        %v1738 = vmul.f32 %v1737, %v1735
        %v1739 = vxor.u32 %v1738, 2147483648
        %v1740 = vsel %vm1657, %v1739, %v1738
        %v1741 = vsub.s32 4, %v1717
        %v1742 = vsel %vm1657, %v1741, %v1717
        %v1743 = vsel %vm1656, %v918, %v1740
        %v1744 = vsel %vm1656, 0, %v1742
        %v1745 = vcosq.f32.pop %v1743
        %v1746 = vsinq.f32.pop %v1743
        %vm1747 = vweird.f32 %v918
        %v1748 = vadd.s32 %v1744, 3
        %v1749 = vand.u32 %v1748, 3
        %vm1750 = vcmp.lt.s32.totalorder %v1749, 2
        %vm1751 = vcmp.eq.s32.totalorder %v1749, 0
        %v1752 = vxor.u32 %v1746, 2147483648
        %v1753 = vsel %vm1751, %v1745, %v1752
        %vm1754 = vcmp.eq.s32.totalorder %v1749, 2
        %v1755 = vxor.u32 %v1745, 2147483648
        %v1756 = vsel %vm1754, %v1755, %v1746
        %v1757 = vsel %vm1750, %v1753, %v1756
        %v1758 = vsel %vm1747, nan, %v1757
        %v1759 = vand.u32 2147483647, %v919
        %vm1760 = vcmp.le.f32.partialorder %v1759, 0.7853982
        %vm1761 = vcmp.lt.s32.totalorder %v919, 0
        %v1762 = vand.u32 %v919, 2139095040
        %v1763 = vshrl.u32 %v1762, 23
        %v1764 = vsub.s32 %v1763, 127
        %v1765 = vand.u32 2147483647, %v919
        %v1766 = vand.u32 %v1765, 8388607
        %v1767 = vor.u32 %v1766, 8388608
        %v1768 = vsub.s32 0, %v1767
        %v1769 = vadd.s32 %v1764, 1
        %vm1770 = vcmp.gt.s32.totalorder %v1769, 0
        %v1771 = vsel %vm1770, %v1769, 0
        %v1772 = vshrl.u32 %v1771, 5
        %v1773 = vand.u32 %v1771, 31
        %v1774 = vsub.s32 32, %v1773
        %v1775 = vshrl.u32 683565275, %v1774
        %v1776 = vshll.u32 683565275, %v1773
        %v1777 = vshrl.u32 2475754826, %v1774
        %v1778 = vor.u32 %v1776, %v1777
        %v1779 = vshll.u32 2475754826, %v1773
        %v1780 = vshrl.u32 2131351028, %v1774
        %v1781 = vor.u32 %v1779, %v1780
        %v1782 = vshll.u32 2131351028, %v1773
        %v1783 = vshrl.u32 2102212464, %v1774
        %v1784 = vor.u32 %v1782, %v1783
        %v1785 = vshll.u32 2102212464, %v1773
        %v1786 = vshrl.u32 920167782, %v1774
        %v1787 = vor.u32 %v1785, %v1786
        %v1788 = vshll.u32 920167782, %v1773
        %v1789 = vshrl.u32 1326507024, %v1774
        %v1790 = vor.u32 %v1788, %v1789
        %vm1791 = vcmp.lt.s32.totalorder %v1772, 1
        %vm1792 = vcmp.lt.s32.totalorder %v1772, 2
        %vm1793 = vcmp.lt.s32.totalorder %v1772, 3
        %vm1794 = vcmp.lt.s32.totalorder %v1772, 4
        %v1795 = vsel %vm1791, %v1775, %v1778
        %v1796 = vsel %vm1794, %v1784, 2102212464
        %v1797 = vsel %vm1793, %v1781, %v1796
        %v1798 = vsel %vm1792, %v1795, %v1797
        %v1799 = vsel %vm1791, %v1778, %v1781
        %v1800 = vsel %vm1794, %v1787, 920167782
        %v1801 = vsel %vm1793, %v1784, %v1800
        %v1802 = vsel %vm1792, %v1799, %v1801
        %v1803 = vsel %vm1791, %v1781, %v1784
        %v1804 = vsel %vm1794, %v1790, 1326507024
        %v1805 = vsel %vm1793, %v1787, %v1804
        %v1806 = vsel %vm1792, %v1803, %v1805
        %v1807 = vshll.u32 %v1767, 8
        %v1808 = vmul.u32.u64.compose %v1807, %v1806
        %v1809 = vextract.low.u32 %v1808
        %v1810 = vextract.high.u32 %v1808
        %v1811 = vmul.u32.u64.compose %v1807, %v1802
        %v1812 = vextract.low.u32 %v1811
        %v1813 = vextract.high.u32 %v1811
        %v1814 = vmul.u32 %v1807, %v1798
        %v1815 = vadd.s32 %v1810, %v1812
        %vm1816 = vc.u32 %v1810, %v1812
        %v1817 = vadd.s32 %v1813, 1
        %v1818 = vsel %vm1816, %v1817, %v1813
        %v1819 = vadd.s32 %v1814, %v1818
        %v1820 = vadd.s32 %v1819, 536870912
        %v1821 = vshrl.u32 %v1820, 30
        %v1822 = vshll.u32 %v1821, 30
        %v1823 = vsub.s32 %v1819, %v1822
        %vm1824 = vcmp.lt.s32.totalorder %v1823, 0
        %v1825 = vsub.s32 0, %v1823
        %v1826 = vsel %vm1824, %v1825, %v1823
        %v1827 = vclz %v1826
        %v1828 = vsub.s32 %v1827, 2
        %vm1829 = vcmp.gt.s32.totalorder 0, %v1828
        %v1830 = vsel %vm1829, 0, %v1828
        %v1831 = vsub.s32 32, %v1830
        %v1832 = vshll.u32 %v1823, %v1830
        %v1833 = vshrl.u32 %v1815, %v1831
        %v1834 = vor.u32 %v1832, %v1833
        %v1835 = vsub.s32 4294967266, %v1830
        %v1836 = vadd.s32 %v1835, 127
        %v1837 = vshll.u32 %v1836, 23
        %v1838 = vor.u32 4788187, %v1837
        %v1839 = vand.u32 2147483647, %v1838
        %v1841 = vcvt.s32.f32 %v1834
        %v1842 = vmul.f32 %v1841, %v1839
        %v1843 = vxor.u32 %v1842, 2147483648
        %v1844 = vsel %vm1761, %v1843, %v1842
        %v1845 = vsub.s32 4, %v1821
        %v1846 = vsel %vm1761, %v1845, %v1821
        %v1847 = vsel %vm1760, %v919, %v1844
        %v1848 = vsel %vm1760, 0, %v1846
        %v1849 = vcosq.f32.pop %v1847
        %v1850 = vsinq.f32.pop %v1847
        %vm1851 = vweird.f32 %v919
        %v1852 = vadd.s32 %v1848, 3
        %v1853 = vand.u32 %v1852, 3
        %vm1854 = vcmp.lt.s32.totalorder %v1853, 2
        %vm1855 = vcmp.eq.s32.totalorder %v1853, 0
        %v1856 = vxor.u32 %v1850, 2147483648
        %v1857 = vsel %vm1855, %v1849, %v1856
        %vm1858 = vcmp.eq.s32.totalorder %v1853, 2
        %v1859 = vxor.u32 %v1849, 2147483648
        %v1860 = vsel %vm1858, %v1859, %v1850
        %v1861 = vsel %vm1854, %v1857, %v1860
        %v1862 = vsel %vm1851, nan, %v1861
        %v1863 = vand.u32 2147483647, %v920
        %vm1864 = vcmp.le.f32.partialorder %v1863, 0.7853982
        %vm1865 = vcmp.lt.s32.totalorder %v920, 0
        %v1866 = vand.u32 %v920, 2139095040
        %v1867 = vshrl.u32 %v1866, 23
        %v1868 = vsub.s32 %v1867, 127
        %v1869 = vand.u32 2147483647, %v920
        %v1870 = vand.u32 %v1869, 8388607
        %v1871 = vor.u32 %v1870, 8388608
        %v1872 = vsub.s32 0, %v1871
        %v1873 = vadd.s32 %v1868, 1
        %vm1874 = vcmp.gt.s32.totalorder %v1873, 0
        %v1875 = vsel %vm1874, %v1873, 0
        %v1876 = vshrl.u32 %v1875, 5
        %v1877 = vand.u32 %v1875, 31
        %v1878 = vsub.s32 32, %v1877
        %v1879 = vshrl.u32 683565275, %v1878
        %v1880 = vshll.u32 683565275, %v1877
        %v1881 = vshrl.u32 2475754826, %v1878
        %v1882 = vor.u32 %v1880, %v1881
        %v1883 = vshll.u32 2475754826, %v1877
        %v1884 = vshrl.u32 2131351028, %v1878
        %v1885 = vor.u32 %v1883, %v1884
        %v1886 = vshll.u32 2131351028, %v1877
        %v1887 = vshrl.u32 2102212464, %v1878
        %v1888 = vor.u32 %v1886, %v1887
        %v1889 = vshll.u32 2102212464, %v1877
        %v1890 = vshrl.u32 920167782, %v1878
        %v1891 = vor.u32 %v1889, %v1890
        %v1892 = vshll.u32 920167782, %v1877
        %v1893 = vshrl.u32 1326507024, %v1878
        %v1894 = vor.u32 %v1892, %v1893
        %vm1895 = vcmp.lt.s32.totalorder %v1876, 1
        %vm1896 = vcmp.lt.s32.totalorder %v1876, 2
        %vm1897 = vcmp.lt.s32.totalorder %v1876, 3
        %vm1898 = vcmp.lt.s32.totalorder %v1876, 4
        %v1899 = vsel %vm1895, %v1879, %v1882
        %v1900 = vsel %vm1898, %v1888, 2102212464
        %v1901 = vsel %vm1897, %v1885, %v1900
        %v1902 = vsel %vm1896, %v1899, %v1901
        %v1903 = vsel %vm1895, %v1882, %v1885
        %v1904 = vsel %vm1898, %v1891, 920167782
        %v1905 = vsel %vm1897, %v1888, %v1904
        %v1906 = vsel %vm1896, %v1903, %v1905
        %v1907 = vsel %vm1895, %v1885, %v1888
        %v1908 = vsel %vm1898, %v1894, 1326507024
        %v1909 = vsel %vm1897, %v1891, %v1908
        %v1910 = vsel %vm1896, %v1907, %v1909
        %v1911 = vshll.u32 %v1871, 8
        %v1912 = vmul.u32.u64.compose %v1911, %v1910
        %v1913 = vextract.low.u32 %v1912
        %v1914 = vextract.high.u32 %v1912
        %v1915 = vmul.u32.u64.compose %v1911, %v1906
        %v1916 = vextract.low.u32 %v1915
        %v1917 = vextract.high.u32 %v1915
        %v1918 = vmul.u32 %v1911, %v1902
        %v1919 = vadd.s32 %v1914, %v1916
        %vm1920 = vc.u32 %v1914, %v1916
        %v1921 = vadd.s32 %v1917, 1
        %v1922 = vsel %vm1920, %v1921, %v1917
        %v1923 = vadd.s32 %v1918, %v1922
        %v1924 = vadd.s32 %v1923, 536870912
        %v1925 = vshrl.u32 %v1924, 30
        %v1926 = vshll.u32 %v1925, 30
        %v1927 = vsub.s32 %v1923, %v1926
        %vm1928 = vcmp.lt.s32.totalorder %v1927, 0
        %v1929 = vsub.s32 0, %v1927
        %v1930 = vsel %vm1928, %v1929, %v1927
        %v1931 = vclz %v1930
        %v1932 = vsub.s32 %v1931, 2
        %vm1933 = vcmp.gt.s32.totalorder 0, %v1932
        %v1934 = vsel %vm1933, 0, %v1932
        %v1935 = vsub.s32 32, %v1934
        %v1936 = vshll.u32 %v1927, %v1934
        %v1937 = vshrl.u32 %v1919, %v1935
        %v1938 = vor.u32 %v1936, %v1937
        %v1939 = vsub.s32 4294967266, %v1934
        %v1940 = vadd.s32 %v1939, 127
        %v1941 = vshll.u32 %v1940, 23
        %v1942 = vor.u32 4788187, %v1941
        %v1943 = vand.u32 2147483647, %v1942
        %v1945 = vcvt.s32.f32 %v1938
        %v1946 = vmul.f32 %v1945, %v1943
        %v1947 = vxor.u32 %v1946, 2147483648
        %v1948 = vsel %vm1865, %v1947, %v1946
        %v1949 = vsub.s32 4, %v1925
        %v1950 = vsel %vm1865, %v1949, %v1925
        %v1951 = vsel %vm1864, %v920, %v1948
        %v1952 = vsel %vm1864, 0, %v1950
        %v1953 = vcosq.f32.pop %v1951
        %v1954 = vsinq.f32.pop %v1951
        %vm1955 = vweird.f32 %v920
        %v1956 = vadd.s32 %v1952, 3
        %v1957 = vand.u32 %v1956, 3
        %vm1958 = vcmp.lt.s32.totalorder %v1957, 2
        %vm1959 = vcmp.eq.s32.totalorder %v1957, 0
        %v1960 = vxor.u32 %v1954, 2147483648
        %v1961 = vsel %vm1959, %v1953, %v1960
        %vm1962 = vcmp.eq.s32.totalorder %v1957, 2
        %v1963 = vxor.u32 %v1953, 2147483648
        %v1964 = vsel %vm1962, %v1963, %v1954
        %v1965 = vsel %vm1958, %v1961, %v1964
        %v1966 = vsel %vm1955, nan, %v1965
        %v1967 = vand.u32 2147483647, %v921
        %vm1968 = vcmp.le.f32.partialorder %v1967, 0.7853982
        %vm1969 = vcmp.lt.s32.totalorder %v921, 0
        %v1970 = vand.u32 %v921, 2139095040
        %v1971 = vshrl.u32 %v1970, 23
        %v1972 = vsub.s32 %v1971, 127
        %v1973 = vand.u32 2147483647, %v921
        %v1974 = vand.u32 %v1973, 8388607
        %v1975 = vor.u32 %v1974, 8388608
        %v1976 = vsub.s32 0, %v1975
        %v1977 = vadd.s32 %v1972, 1
        %vm1978 = vcmp.gt.s32.totalorder %v1977, 0
        %v1979 = vsel %vm1978, %v1977, 0
        %v1980 = vshrl.u32 %v1979, 5
        %v1981 = vand.u32 %v1979, 31
        %v1982 = vsub.s32 32, %v1981
        %v1983 = vshrl.u32 683565275, %v1982
        %v1984 = vshll.u32 683565275, %v1981
        %v1985 = vshrl.u32 2475754826, %v1982
        %v1986 = vor.u32 %v1984, %v1985
        %v1987 = vshll.u32 2475754826, %v1981
        %v1988 = vshrl.u32 2131351028, %v1982
        %v1989 = vor.u32 %v1987, %v1988
        %v1990 = vshll.u32 2131351028, %v1981
        %v1991 = vshrl.u32 2102212464, %v1982
        %v1992 = vor.u32 %v1990, %v1991
        %v1993 = vshll.u32 2102212464, %v1981
        %v1994 = vshrl.u32 920167782, %v1982
        %v1995 = vor.u32 %v1993, %v1994
        %v1996 = vshll.u32 920167782, %v1981
        %v1997 = vshrl.u32 1326507024, %v1982
        %v1998 = vor.u32 %v1996, %v1997
        %vm1999 = vcmp.lt.s32.totalorder %v1980, 1
        %vm2000 = vcmp.lt.s32.totalorder %v1980, 2
        %vm2001 = vcmp.lt.s32.totalorder %v1980, 3
        %vm2002 = vcmp.lt.s32.totalorder %v1980, 4
        %v2003 = vsel %vm1999, %v1983, %v1986
        %v2004 = vsel %vm2002, %v1992, 2102212464
        %v2005 = vsel %vm2001, %v1989, %v2004
        %v2006 = vsel %vm2000, %v2003, %v2005
        %v2007 = vsel %vm1999, %v1986, %v1989
        %v2008 = vsel %vm2002, %v1995, 920167782
        %v2009 = vsel %vm2001, %v1992, %v2008
        %v2010 = vsel %vm2000, %v2007, %v2009
        %v2011 = vsel %vm1999, %v1989, %v1992
        %v2012 = vsel %vm2002, %v1998, 1326507024
        %v2013 = vsel %vm2001, %v1995, %v2012
        %v2014 = vsel %vm2000, %v2011, %v2013
        %v2015 = vshll.u32 %v1975, 8
        %v2016 = vmul.u32.u64.compose %v2015, %v2014
        %v2017 = vextract.low.u32 %v2016
        %v2018 = vextract.high.u32 %v2016
        %v2019 = vmul.u32.u64.compose %v2015, %v2010
        %v2020 = vextract.low.u32 %v2019
        %v2021 = vextract.high.u32 %v2019
        %v2022 = vmul.u32 %v2015, %v2006
        %v2023 = vadd.s32 %v2018, %v2020
        %vm2024 = vc.u32 %v2018, %v2020
        %v2025 = vadd.s32 %v2021, 1
        %v2026 = vsel %vm2024, %v2025, %v2021
        %v2027 = vadd.s32 %v2022, %v2026
        %v2028 = vadd.s32 %v2027, 536870912
        %v2029 = vshrl.u32 %v2028, 30
        %v2030 = vshll.u32 %v2029, 30
        %v2031 = vsub.s32 %v2027, %v2030
        %vm2032 = vcmp.lt.s32.totalorder %v2031, 0
        %v2033 = vsub.s32 0, %v2031
        %v2034 = vsel %vm2032, %v2033, %v2031
        %v2035 = vclz %v2034
        %v2036 = vsub.s32 %v2035, 2
        %vm2037 = vcmp.gt.s32.totalorder 0, %v2036
        %v2038 = vsel %vm2037, 0, %v2036
        %v2039 = vsub.s32 32, %v2038
        %v2040 = vshll.u32 %v2031, %v2038
        %v2041 = vshrl.u32 %v2023, %v2039
        %v2042 = vor.u32 %v2040, %v2041
        %v2043 = vsub.s32 4294967266, %v2038
        %v2044 = vadd.s32 %v2043, 127
        %v2045 = vshll.u32 %v2044, 23
        %v2046 = vor.u32 4788187, %v2045
        %v2047 = vand.u32 2147483647, %v2046
        %v2049 = vcvt.s32.f32 %v2042
        %v2050 = vmul.f32 %v2049, %v2047
        %v2051 = vxor.u32 %v2050, 2147483648
        %v2052 = vsel %vm1969, %v2051, %v2050
        %v2053 = vsub.s32 4, %v2029
        %v2054 = vsel %vm1969, %v2053, %v2029
        %v2055 = vsel %vm1968, %v921, %v2052
        %v2056 = vsel %vm1968, 0, %v2054
        %v2057 = vcosq.f32.pop %v2055
        %v2058 = vsinq.f32.pop %v2055
        %vm2059 = vweird.f32 %v921
        %v2060 = vadd.s32 %v2056, 3
        %v2061 = vand.u32 %v2060, 3
        %vm2062 = vcmp.lt.s32.totalorder %v2061, 2
        %vm2063 = vcmp.eq.s32.totalorder %v2061, 0
        %v2064 = vxor.u32 %v2058, 2147483648
        %v2065 = vsel %vm2063, %v2057, %v2064
        %vm2066 = vcmp.eq.s32.totalorder %v2061, 2
        %v2067 = vxor.u32 %v2057, 2147483648
        %v2068 = vsel %vm2066, %v2067, %v2058
        %v2069 = vsel %vm2062, %v2065, %v2068
        %v2070 = vsel %vm2059, nan, %v2069
        %v2071 = vand.u32 2147483647, %v922
        %vm2072 = vcmp.le.f32.partialorder %v2071, 0.7853982
        %vm2073 = vcmp.lt.s32.totalorder %v922, 0
        %v2074 = vand.u32 %v922, 2139095040
        %v2075 = vshrl.u32 %v2074, 23
        %v2076 = vsub.s32 %v2075, 127
        %v2077 = vand.u32 2147483647, %v922
        %v2078 = vand.u32 %v2077, 8388607
        %v2079 = vor.u32 %v2078, 8388608
        %v2080 = vsub.s32 0, %v2079
        %v2081 = vadd.s32 %v2076, 1
        %vm2082 = vcmp.gt.s32.totalorder %v2081, 0
        %v2083 = vsel %vm2082, %v2081, 0
        %v2084 = vshrl.u32 %v2083, 5
        %v2085 = vand.u32 %v2083, 31
        %v2086 = vsub.s32 32, %v2085
        %v2087 = vshrl.u32 683565275, %v2086
        %v2088 = vshll.u32 683565275, %v2085
        %v2089 = vshrl.u32 2475754826, %v2086
        %v2090 = vor.u32 %v2088, %v2089
        %v2091 = vshll.u32 2475754826, %v2085
        %v2092 = vshrl.u32 2131351028, %v2086
        %v2093 = vor.u32 %v2091, %v2092
        %v2094 = vshll.u32 2131351028, %v2085
        %v2095 = vshrl.u32 2102212464, %v2086
        %v2096 = vor.u32 %v2094, %v2095
        %v2097 = vshll.u32 2102212464, %v2085
        %v2098 = vshrl.u32 920167782, %v2086
        %v2099 = vor.u32 %v2097, %v2098
        %v2100 = vshll.u32 920167782, %v2085
        %v2101 = vshrl.u32 1326507024, %v2086
        %v2102 = vor.u32 %v2100, %v2101
        %vm2103 = vcmp.lt.s32.totalorder %v2084, 1
        %vm2104 = vcmp.lt.s32.totalorder %v2084, 2
        %vm2105 = vcmp.lt.s32.totalorder %v2084, 3
        %vm2106 = vcmp.lt.s32.totalorder %v2084, 4
        %v2107 = vsel %vm2103, %v2087, %v2090
        %v2108 = vsel %vm2106, %v2096, 2102212464
        %v2109 = vsel %vm2105, %v2093, %v2108
        %v2110 = vsel %vm2104, %v2107, %v2109
        %v2111 = vsel %vm2103, %v2090, %v2093
        %v2112 = vsel %vm2106, %v2099, 920167782
        %v2113 = vsel %vm2105, %v2096, %v2112
        %v2114 = vsel %vm2104, %v2111, %v2113
        %v2115 = vsel %vm2103, %v2093, %v2096
        %v2116 = vsel %vm2106, %v2102, 1326507024
        %v2117 = vsel %vm2105, %v2099, %v2116
        %v2118 = vsel %vm2104, %v2115, %v2117
        %v2119 = vshll.u32 %v2079, 8
        %v2120 = vmul.u32.u64.compose %v2119, %v2118
        %v2121 = vextract.low.u32 %v2120
        %v2122 = vextract.high.u32 %v2120
        %v2123 = vmul.u32.u64.compose %v2119, %v2114
        %v2124 = vextract.low.u32 %v2123
        %v2125 = vextract.high.u32 %v2123
        %v2126 = vmul.u32 %v2119, %v2110
        %v2127 = vadd.s32 %v2122, %v2124
        %vm2128 = vc.u32 %v2122, %v2124
        %v2129 = vadd.s32 %v2125, 1
        %v2130 = vsel %vm2128, %v2129, %v2125
        %v2131 = vadd.s32 %v2126, %v2130
        %v2132 = vadd.s32 %v2131, 536870912
        %v2133 = vshrl.u32 %v2132, 30
        %v2134 = vshll.u32 %v2133, 30
        %v2135 = vsub.s32 %v2131, %v2134
        %vm2136 = vcmp.lt.s32.totalorder %v2135, 0
        %v2137 = vsub.s32 0, %v2135
        %v2138 = vsel %vm2136, %v2137, %v2135
        %v2139 = vclz %v2138
        %v2140 = vsub.s32 %v2139, 2
        %vm2141 = vcmp.gt.s32.totalorder 0, %v2140
        %v2142 = vsel %vm2141, 0, %v2140
        %v2143 = vsub.s32 32, %v2142
        %v2144 = vshll.u32 %v2135, %v2142
        %v2145 = vshrl.u32 %v2127, %v2143
        %v2146 = vor.u32 %v2144, %v2145
        %v2147 = vsub.s32 4294967266, %v2142
        %v2148 = vadd.s32 %v2147, 127
        %v2149 = vshll.u32 %v2148, 23
        %v2150 = vor.u32 4788187, %v2149
        %v2151 = vand.u32 2147483647, %v2150
        %v2153 = vcvt.s32.f32 %v2146
        %v2154 = vmul.f32 %v2153, %v2151
        %v2155 = vxor.u32 %v2154, 2147483648
        %v2156 = vsel %vm2073, %v2155, %v2154
        %v2157 = vsub.s32 4, %v2133
        %v2158 = vsel %vm2073, %v2157, %v2133
        %v2159 = vsel %vm2072, %v922, %v2156
        %v2160 = vsel %vm2072, 0, %v2158
        %v2161 = vcosq.f32.pop %v2159
        %v2162 = vsinq.f32.pop %v2159
        %vm2163 = vweird.f32 %v922
        %v2164 = vadd.s32 %v2160, 3
        %v2165 = vand.u32 %v2164, 3
        %vm2166 = vcmp.lt.s32.totalorder %v2165, 2
        %vm2167 = vcmp.eq.s32.totalorder %v2165, 0
        %v2168 = vxor.u32 %v2162, 2147483648
        %v2169 = vsel %vm2167, %v2161, %v2168
        %vm2170 = vcmp.eq.s32.totalorder %v2165, 2
        %v2171 = vxor.u32 %v2161, 2147483648
        %v2172 = vsel %vm2170, %v2171, %v2162
        %v2173 = vsel %vm2166, %v2169, %v2172
        %v2174 = vsel %vm2163, nan, %v2173
        %v2175 = vand.u32 2147483647, %v923
        %vm2176 = vcmp.le.f32.partialorder %v2175, 0.7853982
        %vm2177 = vcmp.lt.s32.totalorder %v923, 0
        %v2178 = vand.u32 %v923, 2139095040
        %v2179 = vshrl.u32 %v2178, 23
        %v2180 = vsub.s32 %v2179, 127
        %v2181 = vand.u32 2147483647, %v923
        %v2182 = vand.u32 %v2181, 8388607
        %v2183 = vor.u32 %v2182, 8388608
        %v2184 = vsub.s32 0, %v2183
        %v2185 = vadd.s32 %v2180, 1
        %vm2186 = vcmp.gt.s32.totalorder %v2185, 0
        %v2187 = vsel %vm2186, %v2185, 0
        %v2188 = vshrl.u32 %v2187, 5
        %v2189 = vand.u32 %v2187, 31
        %v2190 = vsub.s32 32, %v2189
        %v2191 = vshrl.u32 683565275, %v2190
        %v2192 = vshll.u32 683565275, %v2189
        %v2193 = vshrl.u32 2475754826, %v2190
        %v2194 = vor.u32 %v2192, %v2193
        %v2195 = vshll.u32 2475754826, %v2189
        %v2196 = vshrl.u32 2131351028, %v2190
        %v2197 = vor.u32 %v2195, %v2196
        %v2198 = vshll.u32 2131351028, %v2189
        %v2199 = vshrl.u32 2102212464, %v2190
        %v2200 = vor.u32 %v2198, %v2199
        %v2201 = vshll.u32 2102212464, %v2189
        %v2202 = vshrl.u32 920167782, %v2190
        %v2203 = vor.u32 %v2201, %v2202
        %v2204 = vshll.u32 920167782, %v2189
        %v2205 = vshrl.u32 1326507024, %v2190
        %v2206 = vor.u32 %v2204, %v2205
        %vm2207 = vcmp.lt.s32.totalorder %v2188, 1
        %vm2208 = vcmp.lt.s32.totalorder %v2188, 2
        %vm2209 = vcmp.lt.s32.totalorder %v2188, 3
        %vm2210 = vcmp.lt.s32.totalorder %v2188, 4
        %v2211 = vsel %vm2207, %v2191, %v2194
        %v2212 = vsel %vm2210, %v2200, 2102212464
        %v2213 = vsel %vm2209, %v2197, %v2212
        %v2214 = vsel %vm2208, %v2211, %v2213
        %v2215 = vsel %vm2207, %v2194, %v2197
        %v2216 = vsel %vm2210, %v2203, 920167782
        %v2217 = vsel %vm2209, %v2200, %v2216
        %v2218 = vsel %vm2208, %v2215, %v2217
        %v2219 = vsel %vm2207, %v2197, %v2200
        %v2220 = vsel %vm2210, %v2206, 1326507024
        %v2221 = vsel %vm2209, %v2203, %v2220
        %v2222 = vsel %vm2208, %v2219, %v2221
        %v2223 = vshll.u32 %v2183, 8
        %v2224 = vmul.u32.u64.compose %v2223, %v2222
        %v2225 = vextract.low.u32 %v2224
        %v2226 = vextract.high.u32 %v2224
        %v2227 = vmul.u32.u64.compose %v2223, %v2218
        %v2228 = vextract.low.u32 %v2227
        %v2229 = vextract.high.u32 %v2227
        %v2230 = vmul.u32 %v2223, %v2214
        %v2231 = vadd.s32 %v2226, %v2228
        %vm2232 = vc.u32 %v2226, %v2228
        %v2233 = vadd.s32 %v2229, 1
        %v2234 = vsel %vm2232, %v2233, %v2229
        %v2235 = vadd.s32 %v2230, %v2234
        %v2236 = vadd.s32 %v2235, 536870912
        %v2237 = vshrl.u32 %v2236, 30
        %v2238 = vshll.u32 %v2237, 30
        %v2239 = vsub.s32 %v2235, %v2238
        %vm2240 = vcmp.lt.s32.totalorder %v2239, 0
        %v2241 = vsub.s32 0, %v2239
        %v2242 = vsel %vm2240, %v2241, %v2239
        %v2243 = vclz %v2242
        %v2244 = vsub.s32 %v2243, 2
        %vm2245 = vcmp.gt.s32.totalorder 0, %v2244
        %v2246 = vsel %vm2245, 0, %v2244
        %v2247 = vsub.s32 32, %v2246
        %v2248 = vshll.u32 %v2239, %v2246
        %v2249 = vshrl.u32 %v2231, %v2247
        %v2250 = vor.u32 %v2248, %v2249
        %v2251 = vsub.s32 4294967266, %v2246
        %v2252 = vadd.s32 %v2251, 127
        %v2253 = vshll.u32 %v2252, 23
        %v2254 = vor.u32 4788187, %v2253
        %v2255 = vand.u32 2147483647, %v2254
        %v2257 = vcvt.s32.f32 %v2250
        %v2258 = vmul.f32 %v2257, %v2255
        %v2259 = vxor.u32 %v2258, 2147483648
        %v2260 = vsel %vm2177, %v2259, %v2258
        %v2261 = vsub.s32 4, %v2237
        %v2262 = vsel %vm2177, %v2261, %v2237
        %v2263 = vsel %vm2176, %v923, %v2260
        %v2264 = vsel %vm2176, 0, %v2262
        %v2265 = vcosq.f32.pop %v2263
        %v2266 = vsinq.f32.pop %v2263
        %vm2267 = vweird.f32 %v923
        %v2268 = vadd.s32 %v2264, 3
        %v2269 = vand.u32 %v2268, 3
        %vm2270 = vcmp.lt.s32.totalorder %v2269, 2
        %vm2271 = vcmp.eq.s32.totalorder %v2269, 0
        %v2272 = vxor.u32 %v2266, 2147483648
        %v2273 = vsel %vm2271, %v2265, %v2272
        %vm2274 = vcmp.eq.s32.totalorder %v2269, 2
        %v2275 = vxor.u32 %v2265, 2147483648
        %v2276 = vsel %vm2274, %v2275, %v2266
        %v2277 = vsel %vm2270, %v2273, %v2276
        %v2278 = vsel %vm2267, nan, %v2277
        %v2279 = vand.u32 2147483647, %v924
        %vm2280 = vcmp.le.f32.partialorder %v2279, 0.7853982
        %vm2281 = vcmp.lt.s32.totalorder %v924, 0
        %v2282 = vand.u32 %v924, 2139095040
        %v2283 = vshrl.u32 %v2282, 23
        %v2284 = vsub.s32 %v2283, 127
        %v2285 = vand.u32 2147483647, %v924
        %v2286 = vand.u32 %v2285, 8388607
        %v2287 = vor.u32 %v2286, 8388608
        %v2288 = vsub.s32 0, %v2287
        %v2289 = vadd.s32 %v2284, 1
        %vm2290 = vcmp.gt.s32.totalorder %v2289, 0
        %v2291 = vsel %vm2290, %v2289, 0
        %v2292 = vshrl.u32 %v2291, 5
        %v2293 = vand.u32 %v2291, 31
        %v2294 = vsub.s32 32, %v2293
        %v2295 = vshrl.u32 683565275, %v2294
        %v2296 = vshll.u32 683565275, %v2293
        %v2297 = vshrl.u32 2475754826, %v2294
        %v2298 = vor.u32 %v2296, %v2297
        %v2299 = vshll.u32 2475754826, %v2293
        %v2300 = vshrl.u32 2131351028, %v2294
        %v2301 = vor.u32 %v2299, %v2300
        %v2302 = vshll.u32 2131351028, %v2293
        %v2303 = vshrl.u32 2102212464, %v2294
        %v2304 = vor.u32 %v2302, %v2303
        %v2305 = vshll.u32 2102212464, %v2293
        %v2306 = vshrl.u32 920167782, %v2294
        %v2307 = vor.u32 %v2305, %v2306
        %v2308 = vshll.u32 920167782, %v2293
        %v2309 = vshrl.u32 1326507024, %v2294
        %v2310 = vor.u32 %v2308, %v2309
        %vm2311 = vcmp.lt.s32.totalorder %v2292, 1
        %vm2312 = vcmp.lt.s32.totalorder %v2292, 2
        %vm2313 = vcmp.lt.s32.totalorder %v2292, 3
        %vm2314 = vcmp.lt.s32.totalorder %v2292, 4
        %v2315 = vsel %vm2311, %v2295, %v2298
        %v2316 = vsel %vm2314, %v2304, 2102212464
        %v2317 = vsel %vm2313, %v2301, %v2316
        %v2318 = vsel %vm2312, %v2315, %v2317
        %v2319 = vsel %vm2311, %v2298, %v2301
        %v2320 = vsel %vm2314, %v2307, 920167782
        %v2321 = vsel %vm2313, %v2304, %v2320
        %v2322 = vsel %vm2312, %v2319, %v2321
        %v2323 = vsel %vm2311, %v2301, %v2304
        %v2324 = vsel %vm2314, %v2310, 1326507024
        %v2325 = vsel %vm2313, %v2307, %v2324
        %v2326 = vsel %vm2312, %v2323, %v2325
        %v2327 = vshll.u32 %v2287, 8
        %v2328 = vmul.u32.u64.compose %v2327, %v2326
        %v2329 = vextract.low.u32 %v2328
        %v2330 = vextract.high.u32 %v2328
        %v2331 = vmul.u32.u64.compose %v2327, %v2322
        %v2332 = vextract.low.u32 %v2331
        %v2333 = vextract.high.u32 %v2331
        %v2334 = vmul.u32 %v2327, %v2318
        %v2335 = vadd.s32 %v2330, %v2332
        %vm2336 = vc.u32 %v2330, %v2332
        %v2337 = vadd.s32 %v2333, 1
        %v2338 = vsel %vm2336, %v2337, %v2333
        %v2339 = vadd.s32 %v2334, %v2338
        %v2340 = vadd.s32 %v2339, 536870912
        %v2341 = vshrl.u32 %v2340, 30
        %v2342 = vshll.u32 %v2341, 30
        %v2343 = vsub.s32 %v2339, %v2342
        %vm2344 = vcmp.lt.s32.totalorder %v2343, 0
        %v2345 = vsub.s32 0, %v2343
        %v2346 = vsel %vm2344, %v2345, %v2343
        %v2347 = vclz %v2346
        %v2348 = vsub.s32 %v2347, 2
        %vm2349 = vcmp.gt.s32.totalorder 0, %v2348
        %v2350 = vsel %vm2349, 0, %v2348
        %v2351 = vsub.s32 32, %v2350
        %v2352 = vshll.u32 %v2343, %v2350
        %v2353 = vshrl.u32 %v2335, %v2351
        %v2354 = vor.u32 %v2352, %v2353
        %v2355 = vsub.s32 4294967266, %v2350
        %v2356 = vadd.s32 %v2355, 127
        %v2357 = vshll.u32 %v2356, 23
        %v2358 = vor.u32 4788187, %v2357
        %v2359 = vand.u32 2147483647, %v2358
        %v2361 = vcvt.s32.f32 %v2354
        %v2362 = vmul.f32 %v2361, %v2359
        %v2363 = vxor.u32 %v2362, 2147483648
        %v2364 = vsel %vm2281, %v2363, %v2362
        %v2365 = vsub.s32 4, %v2341
        %v2366 = vsel %vm2281, %v2365, %v2341
        %v2367 = vsel %vm2280, %v924, %v2364
        %v2368 = vsel %vm2280, 0, %v2366
        %v2369 = vcosq.f32.pop %v2367
        %v2370 = vsinq.f32.pop %v2367
        %vm2371 = vweird.f32 %v924
        %v2372 = vadd.s32 %v2368, 3
        %v2373 = vand.u32 %v2372, 3
        %vm2374 = vcmp.lt.s32.totalorder %v2373, 2
        %vm2375 = vcmp.eq.s32.totalorder %v2373, 0
        %v2376 = vxor.u32 %v2370, 2147483648
        %v2377 = vsel %vm2375, %v2369, %v2376
        %vm2378 = vcmp.eq.s32.totalorder %v2373, 2
        %v2379 = vxor.u32 %v2369, 2147483648
        %v2380 = vsel %vm2378, %v2379, %v2370
        %v2381 = vsel %vm2374, %v2377, %v2380
        %v2382 = vsel %vm2371, nan, %v2381
        %v2383 = vand.u32 2147483647, %v925
        %vm2384 = vcmp.le.f32.partialorder %v2383, 0.7853982
        %vm2385 = vcmp.lt.s32.totalorder %v925, 0
        %v2386 = vand.u32 %v925, 2139095040
        %v2387 = vshrl.u32 %v2386, 23
        %v2388 = vsub.s32 %v2387, 127
        %v2389 = vand.u32 2147483647, %v925
        %v2390 = vand.u32 %v2389, 8388607
        %v2391 = vor.u32 %v2390, 8388608
        %v2392 = vsub.s32 0, %v2391
        %v2393 = vadd.s32 %v2388, 1
        %vm2394 = vcmp.gt.s32.totalorder %v2393, 0
        %v2395 = vsel %vm2394, %v2393, 0
        %v2396 = vshrl.u32 %v2395, 5
        %v2397 = vand.u32 %v2395, 31
        %v2398 = vsub.s32 32, %v2397
        %v2399 = vshrl.u32 683565275, %v2398
        %v2400 = vshll.u32 683565275, %v2397
        %v2401 = vshrl.u32 2475754826, %v2398
        %v2402 = vor.u32 %v2400, %v2401
        %v2403 = vshll.u32 2475754826, %v2397
        %v2404 = vshrl.u32 2131351028, %v2398
        %v2405 = vor.u32 %v2403, %v2404
        %v2406 = vshll.u32 2131351028, %v2397
        %v2407 = vshrl.u32 2102212464, %v2398
        %v2408 = vor.u32 %v2406, %v2407
        %v2409 = vshll.u32 2102212464, %v2397
        %v2410 = vshrl.u32 920167782, %v2398
        %v2411 = vor.u32 %v2409, %v2410
        %v2412 = vshll.u32 920167782, %v2397
        %v2413 = vshrl.u32 1326507024, %v2398
        %v2414 = vor.u32 %v2412, %v2413
        %vm2415 = vcmp.lt.s32.totalorder %v2396, 1
        %vm2416 = vcmp.lt.s32.totalorder %v2396, 2
        %vm2417 = vcmp.lt.s32.totalorder %v2396, 3
        %vm2418 = vcmp.lt.s32.totalorder %v2396, 4
        %v2419 = vsel %vm2415, %v2399, %v2402
        %v2420 = vsel %vm2418, %v2408, 2102212464
        %v2421 = vsel %vm2417, %v2405, %v2420
        %v2422 = vsel %vm2416, %v2419, %v2421
        %v2423 = vsel %vm2415, %v2402, %v2405
        %v2424 = vsel %vm2418, %v2411, 920167782
        %v2425 = vsel %vm2417, %v2408, %v2424
        %v2426 = vsel %vm2416, %v2423, %v2425
        %v2427 = vsel %vm2415, %v2405, %v2408
        %v2428 = vsel %vm2418, %v2414, 1326507024
        %v2429 = vsel %vm2417, %v2411, %v2428
        %v2430 = vsel %vm2416, %v2427, %v2429
        %v2431 = vshll.u32 %v2391, 8
        %v2432 = vmul.u32.u64.compose %v2431, %v2430
        %v2433 = vextract.low.u32 %v2432
        %v2434 = vextract.high.u32 %v2432
        %v2435 = vmul.u32.u64.compose %v2431, %v2426
        %v2436 = vextract.low.u32 %v2435
        %v2437 = vextract.high.u32 %v2435
        %v2438 = vmul.u32 %v2431, %v2422
        %v2439 = vadd.s32 %v2434, %v2436
        %vm2440 = vc.u32 %v2434, %v2436
        %v2441 = vadd.s32 %v2437, 1
        %v2442 = vsel %vm2440, %v2441, %v2437
        %v2443 = vadd.s32 %v2438, %v2442
        %v2444 = vadd.s32 %v2443, 536870912
        %v2445 = vshrl.u32 %v2444, 30
        %v2446 = vshll.u32 %v2445, 30
        %v2447 = vsub.s32 %v2443, %v2446
        %vm2448 = vcmp.lt.s32.totalorder %v2447, 0
        %v2449 = vsub.s32 0, %v2447
        %v2450 = vsel %vm2448, %v2449, %v2447
        %v2451 = vclz %v2450
        %v2452 = vsub.s32 %v2451, 2
        %vm2453 = vcmp.gt.s32.totalorder 0, %v2452
        %v2454 = vsel %vm2453, 0, %v2452
        %v2455 = vsub.s32 32, %v2454
        %v2456 = vshll.u32 %v2447, %v2454
        %v2457 = vshrl.u32 %v2439, %v2455
        %v2458 = vor.u32 %v2456, %v2457
        %v2459 = vsub.s32 4294967266, %v2454
        %v2460 = vadd.s32 %v2459, 127
        %v2461 = vshll.u32 %v2460, 23
        %v2462 = vor.u32 4788187, %v2461
        %v2463 = vand.u32 2147483647, %v2462
        %v2465 = vcvt.s32.f32 %v2458
        %v2466 = vmul.f32 %v2465, %v2463
        %v2467 = vxor.u32 %v2466, 2147483648
        %v2468 = vsel %vm2385, %v2467, %v2466
        %v2469 = vsub.s32 4, %v2445
        %v2470 = vsel %vm2385, %v2469, %v2445
        %v2471 = vsel %vm2384, %v925, %v2468
        %v2472 = vsel %vm2384, 0, %v2470
        %v2473 = vcosq.f32.pop %v2471
        %v2474 = vsinq.f32.pop %v2471
        %vm2475 = vweird.f32 %v925
        %v2476 = vadd.s32 %v2472, 3
        %v2477 = vand.u32 %v2476, 3
        %vm2478 = vcmp.lt.s32.totalorder %v2477, 2
        %vm2479 = vcmp.eq.s32.totalorder %v2477, 0
        %v2480 = vxor.u32 %v2474, 2147483648
        %v2481 = vsel %vm2479, %v2473, %v2480
        %vm2482 = vcmp.eq.s32.totalorder %v2477, 2
        %v2483 = vxor.u32 %v2473, 2147483648
        %v2484 = vsel %vm2482, %v2483, %v2474
        %v2485 = vsel %vm2478, %v2481, %v2484
        %v2486 = vsel %vm2475, nan, %v2485
        %v2487 = vand.u32 2147483647, %v926
        %vm2488 = vcmp.le.f32.partialorder %v2487, 0.7853982
        %vm2489 = vcmp.lt.s32.totalorder %v926, 0
        %v2490 = vand.u32 %v926, 2139095040
        %v2491 = vshrl.u32 %v2490, 23
        %v2492 = vsub.s32 %v2491, 127
        %v2493 = vand.u32 2147483647, %v926
        %v2494 = vand.u32 %v2493, 8388607
        %v2495 = vor.u32 %v2494, 8388608
        %v2496 = vsub.s32 0, %v2495
        %v2497 = vadd.s32 %v2492, 1
        %vm2498 = vcmp.gt.s32.totalorder %v2497, 0
        %v2499 = vsel %vm2498, %v2497, 0
        %v2500 = vshrl.u32 %v2499, 5
        %v2501 = vand.u32 %v2499, 31
        %v2502 = vsub.s32 32, %v2501
        %v2503 = vshrl.u32 683565275, %v2502
        %v2504 = vshll.u32 683565275, %v2501
        %v2505 = vshrl.u32 2475754826, %v2502
        %v2506 = vor.u32 %v2504, %v2505
        %v2507 = vshll.u32 2475754826, %v2501
        %v2508 = vshrl.u32 2131351028, %v2502
        %v2509 = vor.u32 %v2507, %v2508
        %v2510 = vshll.u32 2131351028, %v2501
        %v2511 = vshrl.u32 2102212464, %v2502
        %v2512 = vor.u32 %v2510, %v2511
        %v2513 = vshll.u32 2102212464, %v2501
        %v2514 = vshrl.u32 920167782, %v2502
        %v2515 = vor.u32 %v2513, %v2514
        %v2516 = vshll.u32 920167782, %v2501
        %v2517 = vshrl.u32 1326507024, %v2502
        %v2518 = vor.u32 %v2516, %v2517
        %vm2519 = vcmp.lt.s32.totalorder %v2500, 1
        %vm2520 = vcmp.lt.s32.totalorder %v2500, 2
        %vm2521 = vcmp.lt.s32.totalorder %v2500, 3
        %vm2522 = vcmp.lt.s32.totalorder %v2500, 4
        %v2523 = vsel %vm2519, %v2503, %v2506
        %v2524 = vsel %vm2522, %v2512, 2102212464
        %v2525 = vsel %vm2521, %v2509, %v2524
        %v2526 = vsel %vm2520, %v2523, %v2525
        %v2527 = vsel %vm2519, %v2506, %v2509
        %v2528 = vsel %vm2522, %v2515, 920167782
        %v2529 = vsel %vm2521, %v2512, %v2528
        %v2530 = vsel %vm2520, %v2527, %v2529
        %v2531 = vsel %vm2519, %v2509, %v2512
        %v2532 = vsel %vm2522, %v2518, 1326507024
        %v2533 = vsel %vm2521, %v2515, %v2532
        %v2534 = vsel %vm2520, %v2531, %v2533
        %v2535 = vshll.u32 %v2495, 8
        %v2536 = vmul.u32.u64.compose %v2535, %v2534
        %v2537 = vextract.low.u32 %v2536
        %v2538 = vextract.high.u32 %v2536
        %v2539 = vmul.u32.u64.compose %v2535, %v2530
        %v2540 = vextract.low.u32 %v2539
        %v2541 = vextract.high.u32 %v2539
        %v2542 = vmul.u32 %v2535, %v2526
        %v2543 = vadd.s32 %v2538, %v2540
        %vm2544 = vc.u32 %v2538, %v2540
        %v2545 = vadd.s32 %v2541, 1
        %v2546 = vsel %vm2544, %v2545, %v2541
        %v2547 = vadd.s32 %v2542, %v2546
        %v2548 = vadd.s32 %v2547, 536870912
        %v2549 = vshrl.u32 %v2548, 30
        %v2550 = vshll.u32 %v2549, 30
        %v2551 = vsub.s32 %v2547, %v2550
        %vm2552 = vcmp.lt.s32.totalorder %v2551, 0
        %v2553 = vsub.s32 0, %v2551
        %v2554 = vsel %vm2552, %v2553, %v2551
        %v2555 = vclz %v2554
        %v2556 = vsub.s32 %v2555, 2
        %vm2557 = vcmp.gt.s32.totalorder 0, %v2556
        %v2558 = vsel %vm2557, 0, %v2556
        %v2559 = vsub.s32 32, %v2558
        %v2560 = vshll.u32 %v2551, %v2558
        %v2561 = vshrl.u32 %v2543, %v2559
        %v2562 = vor.u32 %v2560, %v2561
        %v2563 = vsub.s32 4294967266, %v2558
        %v2564 = vadd.s32 %v2563, 127
        %v2565 = vshll.u32 %v2564, 23
        %v2566 = vor.u32 4788187, %v2565
        %v2567 = vand.u32 2147483647, %v2566
        %v2569 = vcvt.s32.f32 %v2562
        %v2570 = vmul.f32 %v2569, %v2567
        %v2571 = vxor.u32 %v2570, 2147483648
        %v2572 = vsel %vm2489, %v2571, %v2570
        %v2573 = vsub.s32 4, %v2549
        %v2574 = vsel %vm2489, %v2573, %v2549
        %v2575 = vsel %vm2488, %v926, %v2572
        %v2576 = vsel %vm2488, 0, %v2574
        %v2577 = vcosq.f32.pop %v2575
        %v2578 = vsinq.f32.pop %v2575
        %vm2579 = vweird.f32 %v926
        %v2580 = vadd.s32 %v2576, 3
        %v2581 = vand.u32 %v2580, 3
        %vm2582 = vcmp.lt.s32.totalorder %v2581, 2
        %vm2583 = vcmp.eq.s32.totalorder %v2581, 0
        %v2584 = vxor.u32 %v2578, 2147483648
        %v2585 = vsel %vm2583, %v2577, %v2584
        %vm2586 = vcmp.eq.s32.totalorder %v2581, 2
        %v2587 = vxor.u32 %v2577, 2147483648
        %v2588 = vsel %vm2586, %v2587, %v2578
        %v2589 = vsel %vm2582, %v2585, %v2588
        %v2590 = vsel %vm2579, nan, %v2589
        %v2591 = vld [vmem:[%s3] sm:$0xff]
        %v2592 = vld [vmem:[%s3 + $0x8] sm:$0xff]
        %v2593 = vld [vmem:[%s3 + $0x10] sm:$0xff]
        %v2594 = vld [vmem:[%s3 + $0x18] sm:$0xff]
        %v2595 = vld [vmem:[%s4] sm:$0xff]
        %v2596 = vld [vmem:[%s4 + $0x8] sm:$0xff]
        %v2597 = vld [vmem:[%s4 + $0x10] sm:$0xff]
        %v2598 = vld [vmem:[%s4 + $0x18] sm:$0xff]
        %2600 = vset.pattern.permute.xlu0 0
        %2601 = vperm.xlu0 %2600, %v2595
        %v2602 = vpop.permute.xlu0 %2601
        %2605 = vset.pattern.permute.xlu0 0
        %2606 = vperm.xlu0 %2605, %v2596
        %v2607 = vpop.permute.xlu0 %2606
        %2610 = vset.pattern.permute.xlu0 0
        %2611 = vperm.xlu0 %2610, %v2597
        %v2612 = vpop.permute.xlu0 %2611
        %2615 = vset.pattern.permute.xlu0 0
        %2616 = vperm.xlu0 %2615, %v2598
        %v2617 = vpop.permute.xlu0 %2616
        %vm2619 = vcmask 261120
        %v2621 = vsel %vm2619, %v2591, 0
        %v2624 = vsel %vm2619, %v2592, 0
        %v2627 = vsel %vm2619, %v2593, 0
        %v2630 = vsel %vm2619, %v2594, 0
        %2632 = vmatprep.subr.mxu0 0.0
        %2633 = vmatpush1.msra.mxu0 0.0
        %2634 = vmatprep.subr.mxu0 0.0
        %2635 = vmatpush1.msra.mxu0 0.0
        %2636 = vmatprep.subr.mxu0 0.0
        %2637 = vmatpush1.msra.mxu0 0.0
        %2638 = vmatprep.subr.mxu0 0.0
        %2639 = vmatpush1.msra.mxu0 0.0
        %2640 = vmatprep.subr.mxu0 0.0
        %2641 = vmatpush1.msra.mxu0 0.0
        %2642 = vmatprep.subr.mxu0 0.0
        %2643 = vmatpush1.msra.mxu0 0.0
        %2644 = vmatprep.subr.mxu0 0.0
        %2645 = vmatpush1.msra.mxu0 0.0
        %2646 = vmatprep.subr.mxu0 0.0
        %2647 = vmatpush1.msra.mxu0 0.0
        %2648 = vmatprep.subr.mxu0 0.0
        %2649 = vmatpush1.msra.mxu0 0.0
        %2650 = vmatprep.subr.mxu0 0.0
        %2651 = vmatpush1.msra.mxu0 0.0
        %2652 = vmatprep.subr.mxu0 0.0
        %2653 = vmatpush1.msra.mxu0 0.0
        %2654 = vmatprep.subr.mxu0 0.0
        %2655 = vmatpush1.msra.mxu0 0.0
        %2656 = vmatprep.subr.mxu0 %v2382
        %2657 = vmatpush1.msra.mxu0 %v2278
        %2658 = vmatprep.subr.mxu0 %v1966
        %2659 = vmatpush1.msra.mxu0 %v1862
        %2660 = vmatprep.subr.mxu0 %v1550
        %2661 = vmatpush1.msra.mxu0 %v1446
        %2662 = vmatprep.subr.mxu0 %v1134
        %2663 = vmatpush1.msra.mxu0 %v1030
        %2664 = vmatprep.subr.mxu0 0.0
        %2665 = vmatpush2.msra.mxu0 0.0
        %2666 = vmatprep.subr.mxu0 0.0
        %2667 = vmatpush2.msra.mxu0 0.0
        %2668 = vmatprep.subr.mxu0 0.0
        %2669 = vmatpush2.msra.mxu0 0.0
        %2670 = vmatprep.subr.mxu0 0.0
        %2671 = vmatpush2.msra.mxu0 0.0
        %2672 = vmatprep.subr.mxu0 0.0
        %2673 = vmatpush2.msra.mxu0 0.0
        %2674 = vmatprep.subr.mxu0 0.0
        %2675 = vmatpush2.msra.mxu0 0.0
        %2676 = vmatprep.subr.mxu0 0.0
        %2677 = vmatpush2.msra.mxu0 0.0
        %2678 = vmatprep.subr.mxu0 0.0
        %2679 = vmatpush2.msra.mxu0 0.0
        %2680 = vmatprep.subr.mxu0 0.0
        %2681 = vmatpush2.msra.mxu0 0.0
        %2682 = vmatprep.subr.mxu0 0.0
        %2683 = vmatpush2.msra.mxu0 0.0
        %2684 = vmatprep.subr.mxu0 0.0
        %2685 = vmatpush2.msra.mxu0 0.0
        %2686 = vmatprep.subr.mxu0 0.0
        %2687 = vmatpush2.msra.mxu0 0.0
        %2688 = vmatprep.subr.mxu0 0.0
        %2689 = vmatpush2.msra.mxu0 0.0
        %2690 = vmatprep.subr.mxu0 0.0
        %2691 = vmatpush2.msra.mxu0 0.0
        %2692 = vmatprep.subr.mxu0 0.0
        %2693 = vmatpush2.msra.mxu0 0.0
        %2694 = vmatprep.subr.mxu0 0.0
        %2695 = vmatpush2.msra.mxu0 0.0
        %2696 = vmatprep.mubr.f32.mxu0 0.0
        %2697 = vmatmul.mubr.f32.gmra.mxu0 %v2621
        %v2698 = vpop.f32.mrf.mxu0
        %v2699 = vadd.f32 %v2602, %v2698
        %v2700 = vpop.f32.mrf.mxu0
        %v2701 = vadd.f32 %v2602, %v2700
        %2702 = vmatprep.mubr.f32.mxu0 0.0
        %2703 = vmatmul.mubr.f32.gmra.mxu0 %v2624
        %v2704 = vpop.f32.mrf.mxu0
        %v2705 = vadd.f32 %v2607, %v2704
        %v2706 = vpop.f32.mrf.mxu0
        %v2707 = vadd.f32 %v2607, %v2706
        %2708 = vmatprep.mubr.f32.mxu0 0.0
        %2709 = vmatmul.mubr.f32.gmra.mxu0 %v2627
        %v2710 = vpop.f32.mrf.mxu0
        %v2711 = vadd.f32 %v2612, %v2710
        %v2712 = vpop.f32.mrf.mxu0
        %v2713 = vadd.f32 %v2612, %v2712
        %2714 = vmatprep.mubr.f32.mxu0 0.0
        %2715 = vmatmul.mubr.f32.gmra.mxu0 %v2630
        %v2716 = vpop.f32.mrf.mxu0
        %v2717 = vadd.f32 %v2617, %v2716
        %v2718 = vpop.f32.mrf.mxu0
        %v2719 = vadd.f32 %v2617, %v2718
        %2720 = vdwg.mxu0
        %2721 = vmatprep.subr.mxu0 0.0
        %2722 = vmatpush1.msra.mxu0 0.0
        %2723 = vmatprep.subr.mxu0 0.0
        %2724 = vmatpush1.msra.mxu0 0.0
        %2725 = vmatprep.subr.mxu0 0.0
        %2726 = vmatpush1.msra.mxu0 0.0
        %2727 = vmatprep.subr.mxu0 0.0
        %2728 = vmatpush1.msra.mxu0 0.0
        %2729 = vmatprep.subr.mxu0 0.0
        %2730 = vmatpush1.msra.mxu0 0.0
        %2731 = vmatprep.subr.mxu0 0.0
        %2732 = vmatpush1.msra.mxu0 0.0
        %2733 = vmatprep.subr.mxu0 0.0
        %2734 = vmatpush1.msra.mxu0 0.0
        %2735 = vmatprep.subr.mxu0 0.0
        %2736 = vmatpush1.msra.mxu0 0.0
        %2737 = vmatprep.subr.mxu0 0.0
        %2738 = vmatpush1.msra.mxu0 0.0
        %2739 = vmatprep.subr.mxu0 0.0
        %2740 = vmatpush1.msra.mxu0 0.0
        %2741 = vmatprep.subr.mxu0 0.0
        %2742 = vmatpush1.msra.mxu0 0.0
        %2743 = vmatprep.subr.mxu0 0.0
        %2744 = vmatpush1.msra.mxu0 0.0
        %2745 = vmatprep.subr.mxu0 %v2590
        %2746 = vmatpush1.msra.mxu0 %v2486
        %2747 = vmatprep.subr.mxu0 %v2174
        %2748 = vmatpush1.msra.mxu0 %v2070
        %2749 = vmatprep.subr.mxu0 %v1758
        %2750 = vmatpush1.msra.mxu0 %v1654
        %2751 = vmatprep.subr.mxu0 %v1342
        %2752 = vmatpush1.msra.mxu0 %v1238
        %2753 = vmatprep.subr.mxu0 0.0
        %2754 = vmatpush2.msra.mxu0 0.0
        %2755 = vmatprep.subr.mxu0 0.0
        %2756 = vmatpush2.msra.mxu0 0.0
        %2757 = vmatprep.subr.mxu0 0.0
        %2758 = vmatpush2.msra.mxu0 0.0
        %2759 = vmatprep.subr.mxu0 0.0
        %2760 = vmatpush2.msra.mxu0 0.0
        %2761 = vmatprep.subr.mxu0 0.0
        %2762 = vmatpush2.msra.mxu0 0.0
        %2763 = vmatprep.subr.mxu0 0.0
        %2764 = vmatpush2.msra.mxu0 0.0
        %2765 = vmatprep.subr.mxu0 0.0
        %2766 = vmatpush2.msra.mxu0 0.0
        %2767 = vmatprep.subr.mxu0 0.0
        %2768 = vmatpush2.msra.mxu0 0.0
        %2769 = vmatprep.subr.mxu0 0.0
        %2770 = vmatpush2.msra.mxu0 0.0
        %2771 = vmatprep.subr.mxu0 0.0
        %2772 = vmatpush2.msra.mxu0 0.0
        %2773 = vmatprep.subr.mxu0 0.0
        %2774 = vmatpush2.msra.mxu0 0.0
        %2775 = vmatprep.subr.mxu0 0.0
        %2776 = vmatpush2.msra.mxu0 0.0
        %2777 = vmatprep.subr.mxu0 0.0
        %2778 = vmatpush2.msra.mxu0 0.0
        %2779 = vmatprep.subr.mxu0 0.0
        %2780 = vmatpush2.msra.mxu0 0.0
        %2781 = vmatprep.subr.mxu0 0.0
        %2782 = vmatpush2.msra.mxu0 0.0
        %2783 = vmatprep.subr.mxu0 0.0
        %2784 = vmatpush2.msra.mxu0 0.0
        %2785 = vmatprep.mubr.f32.mxu0 0.0
        %2786 = vmatmul.mubr.f32.gmra.mxu0 %v2621
        %v2787 = vpop.f32.mrf.mxu0
        %v2788 = vadd.f32 %v2602, %v2787
        %v2789 = vpop.f32.mrf.mxu0
        %v2790 = vadd.f32 %v2602, %v2789
        %2791 = vmatprep.mubr.f32.mxu0 0.0
        %2792 = vmatmul.mubr.f32.gmra.mxu0 %v2624
        %v2793 = vpop.f32.mrf.mxu0
        %v2794 = vadd.f32 %v2607, %v2793
        %v2795 = vpop.f32.mrf.mxu0
        %v2796 = vadd.f32 %v2607, %v2795
        %2797 = vmatprep.mubr.f32.mxu0 0.0
        %2798 = vmatmul.mubr.f32.gmra.mxu0 %v2627
        %v2799 = vpop.f32.mrf.mxu0
        %v2800 = vadd.f32 %v2612, %v2799
        %v2801 = vpop.f32.mrf.mxu0
        %v2802 = vadd.f32 %v2612, %v2801
        %2803 = vmatprep.mubr.f32.mxu0 0.0
        %2804 = vmatmul.mubr.f32.gmra.mxu0 %v2630
        %v2805 = vpop.f32.mrf.mxu0
        %v2806 = vadd.f32 %v2617, %v2805
        %v2807 = vpop.f32.mrf.mxu0
        %v2808 = vadd.f32 %v2617, %v2807
        %2809 = vdwg.mxu0
        %v2810 = vmul.f32 %v2699, 30.0
        %v2811 = vmul.f32 %v2701, 30.0
        %v2812 = vmul.f32 %v2788, 30.0
        %v2813 = vmul.f32 %v2790, 30.0
        %v2814 = vmul.f32 %v2705, 30.0
        %v2815 = vmul.f32 %v2707, 30.0
        %v2816 = vmul.f32 %v2794, 30.0
        %v2817 = vmul.f32 %v2796, 30.0
        %v2818 = vmul.f32 %v2711, 30.0
        %v2819 = vmul.f32 %v2713, 30.0
        %v2820 = vmul.f32 %v2800, 30.0
        %v2821 = vmul.f32 %v2802, 30.0
        %v2822 = vmul.f32 %v2717, 30.0
        %v2823 = vmul.f32 %v2719, 30.0
        %v2824 = vmul.f32 %v2806, 30.0
        %v2825 = vmul.f32 %v2808, 30.0
        %v2826 = vand.u32 2147483647, %v2810
        %vm2827 = vcmp.le.f32.partialorder %v2826, 0.7853982
        %vm2828 = vcmp.lt.s32.totalorder %v2810, 0
        %v2829 = vand.u32 %v2810, 2139095040
        %v2830 = vshrl.u32 %v2829, 23
        %v2831 = vsub.s32 %v2830, 127
        %v2832 = vand.u32 2147483647, %v2810
        %v2833 = vand.u32 %v2832, 8388607
        %v2834 = vor.u32 %v2833, 8388608
        %v2835 = vsub.s32 0, %v2834
        %v2836 = vadd.s32 %v2831, 1
        %vm2837 = vcmp.gt.s32.totalorder %v2836, 0
        %v2838 = vsel %vm2837, %v2836, 0
        %v2839 = vshrl.u32 %v2838, 5
        %v2840 = vand.u32 %v2838, 31
        %v2841 = vsub.s32 32, %v2840
        %v2842 = vshrl.u32 683565275, %v2841
        %v2843 = vshll.u32 683565275, %v2840
        %v2844 = vshrl.u32 2475754826, %v2841
        %v2845 = vor.u32 %v2843, %v2844
        %v2846 = vshll.u32 2475754826, %v2840
        %v2847 = vshrl.u32 2131351028, %v2841
        %v2848 = vor.u32 %v2846, %v2847
        %v2849 = vshll.u32 2131351028, %v2840
        %v2850 = vshrl.u32 2102212464, %v2841
        %v2851 = vor.u32 %v2849, %v2850
        %v2852 = vshll.u32 2102212464, %v2840
        %v2853 = vshrl.u32 920167782, %v2841
        %v2854 = vor.u32 %v2852, %v2853
        %v2855 = vshll.u32 920167782, %v2840
        %v2856 = vshrl.u32 1326507024, %v2841
        %v2857 = vor.u32 %v2855, %v2856
        %vm2858 = vcmp.lt.s32.totalorder %v2839, 1
        %vm2859 = vcmp.lt.s32.totalorder %v2839, 2
        %vm2860 = vcmp.lt.s32.totalorder %v2839, 3
        %vm2861 = vcmp.lt.s32.totalorder %v2839, 4
        %v2862 = vsel %vm2858, %v2842, %v2845
        %v2863 = vsel %vm2861, %v2851, 2102212464
        %v2864 = vsel %vm2860, %v2848, %v2863
        %v2865 = vsel %vm2859, %v2862, %v2864
        %v2866 = vsel %vm2858, %v2845, %v2848
        %v2867 = vsel %vm2861, %v2854, 920167782
        %v2868 = vsel %vm2860, %v2851, %v2867
        %v2869 = vsel %vm2859, %v2866, %v2868
        %v2870 = vsel %vm2858, %v2848, %v2851
        %v2871 = vsel %vm2861, %v2857, 1326507024
        %v2872 = vsel %vm2860, %v2854, %v2871
        %v2873 = vsel %vm2859, %v2870, %v2872
        %v2874 = vshll.u32 %v2834, 8
        %v2875 = vmul.u32.u64.compose %v2874, %v2873
        %v2876 = vextract.low.u32 %v2875
        %v2877 = vextract.high.u32 %v2875
        %v2878 = vmul.u32.u64.compose %v2874, %v2869
        %v2879 = vextract.low.u32 %v2878
        %v2880 = vextract.high.u32 %v2878
        %v2881 = vmul.u32 %v2874, %v2865
        %v2882 = vadd.s32 %v2877, %v2879
        %vm2883 = vc.u32 %v2877, %v2879
        %v2884 = vadd.s32 %v2880, 1
        %v2885 = vsel %vm2883, %v2884, %v2880
        %v2886 = vadd.s32 %v2881, %v2885
        %v2887 = vadd.s32 %v2886, 536870912
        %v2888 = vshrl.u32 %v2887, 30
        %v2889 = vshll.u32 %v2888, 30
        %v2890 = vsub.s32 %v2886, %v2889
        %vm2891 = vcmp.lt.s32.totalorder %v2890, 0
        %v2892 = vsub.s32 0, %v2890
        %v2893 = vsel %vm2891, %v2892, %v2890
        %v2894 = vclz %v2893
        %v2895 = vsub.s32 %v2894, 2
        %vm2896 = vcmp.gt.s32.totalorder 0, %v2895
        %v2897 = vsel %vm2896, 0, %v2895
        %v2898 = vsub.s32 32, %v2897
        %v2899 = vshll.u32 %v2890, %v2897
        %v2900 = vshrl.u32 %v2882, %v2898
        %v2901 = vor.u32 %v2899, %v2900
        %v2902 = vsub.s32 4294967266, %v2897
        %v2903 = vadd.s32 %v2902, 127
        %v2904 = vshll.u32 %v2903, 23
        %v2905 = vor.u32 4788187, %v2904
        %v2906 = vand.u32 2147483647, %v2905
        %v2908 = vcvt.s32.f32 %v2901
        %v2909 = vmul.f32 %v2908, %v2906
        %v2910 = vxor.u32 %v2909, 2147483648
        %v2911 = vsel %vm2828, %v2910, %v2909
        %v2912 = vsub.s32 4, %v2888
        %v2913 = vsel %vm2828, %v2912, %v2888
        %v2914 = vsel %vm2827, %v2810, %v2911
        %v2915 = vsel %vm2827, 0, %v2913
        %v2916 = vcosq.f32.pop %v2914
        %v2917 = vsinq.f32.pop %v2914
        %vm2918 = vweird.f32 %v2810
        %v2919 = vadd.s32 %v2915, 3
        %v2920 = vand.u32 %v2919, 3
        %vm2921 = vcmp.lt.s32.totalorder %v2920, 2
        %vm2922 = vcmp.eq.s32.totalorder %v2920, 0
        %v2923 = vxor.u32 %v2917, 2147483648
        %v2924 = vsel %vm2922, %v2916, %v2923
        %vm2925 = vcmp.eq.s32.totalorder %v2920, 2
        %v2926 = vxor.u32 %v2916, 2147483648
        %v2927 = vsel %vm2925, %v2926, %v2917
        %v2928 = vsel %vm2921, %v2924, %v2927
        %v2929 = vsel %vm2918, nan, %v2928
        %v2930 = vand.u32 2147483647, %v2811
        %vm2931 = vcmp.le.f32.partialorder %v2930, 0.7853982
        %vm2932 = vcmp.lt.s32.totalorder %v2811, 0
        %v2933 = vand.u32 %v2811, 2139095040
        %v2934 = vshrl.u32 %v2933, 23
        %v2935 = vsub.s32 %v2934, 127
        %v2936 = vand.u32 2147483647, %v2811
        %v2937 = vand.u32 %v2936, 8388607
        %v2938 = vor.u32 %v2937, 8388608
        %v2939 = vsub.s32 0, %v2938
        %v2940 = vadd.s32 %v2935, 1
        %vm2941 = vcmp.gt.s32.totalorder %v2940, 0
        %v2942 = vsel %vm2941, %v2940, 0
        %v2943 = vshrl.u32 %v2942, 5
        %v2944 = vand.u32 %v2942, 31
        %v2945 = vsub.s32 32, %v2944
        %v2946 = vshrl.u32 683565275, %v2945
        %v2947 = vshll.u32 683565275, %v2944
        %v2948 = vshrl.u32 2475754826, %v2945
        %v2949 = vor.u32 %v2947, %v2948
        %v2950 = vshll.u32 2475754826, %v2944
        %v2951 = vshrl.u32 2131351028, %v2945
        %v2952 = vor.u32 %v2950, %v2951
        %v2953 = vshll.u32 2131351028, %v2944
        %v2954 = vshrl.u32 2102212464, %v2945
        %v2955 = vor.u32 %v2953, %v2954
        %v2956 = vshll.u32 2102212464, %v2944
        %v2957 = vshrl.u32 920167782, %v2945
        %v2958 = vor.u32 %v2956, %v2957
        %v2959 = vshll.u32 920167782, %v2944
        %v2960 = vshrl.u32 1326507024, %v2945
        %v2961 = vor.u32 %v2959, %v2960
        %vm2962 = vcmp.lt.s32.totalorder %v2943, 1
        %vm2963 = vcmp.lt.s32.totalorder %v2943, 2
        %vm2964 = vcmp.lt.s32.totalorder %v2943, 3
        %vm2965 = vcmp.lt.s32.totalorder %v2943, 4
        %v2966 = vsel %vm2962, %v2946, %v2949
        %v2967 = vsel %vm2965, %v2955, 2102212464
        %v2968 = vsel %vm2964, %v2952, %v2967
        %v2969 = vsel %vm2963, %v2966, %v2968
        %v2970 = vsel %vm2962, %v2949, %v2952
        %v2971 = vsel %vm2965, %v2958, 920167782
        %v2972 = vsel %vm2964, %v2955, %v2971
        %v2973 = vsel %vm2963, %v2970, %v2972
        %v2974 = vsel %vm2962, %v2952, %v2955
        %v2975 = vsel %vm2965, %v2961, 1326507024
        %v2976 = vsel %vm2964, %v2958, %v2975
        %v2977 = vsel %vm2963, %v2974, %v2976
        %v2978 = vshll.u32 %v2938, 8
        %v2979 = vmul.u32.u64.compose %v2978, %v2977
        %v2980 = vextract.low.u32 %v2979
        %v2981 = vextract.high.u32 %v2979
        %v2982 = vmul.u32.u64.compose %v2978, %v2973
        %v2983 = vextract.low.u32 %v2982
        %v2984 = vextract.high.u32 %v2982
        %v2985 = vmul.u32 %v2978, %v2969
        %v2986 = vadd.s32 %v2981, %v2983
        %vm2987 = vc.u32 %v2981, %v2983
        %v2988 = vadd.s32 %v2984, 1
        %v2989 = vsel %vm2987, %v2988, %v2984
        %v2990 = vadd.s32 %v2985, %v2989
        %v2991 = vadd.s32 %v2990, 536870912
        %v2992 = vshrl.u32 %v2991, 30
        %v2993 = vshll.u32 %v2992, 30
        %v2994 = vsub.s32 %v2990, %v2993
        %vm2995 = vcmp.lt.s32.totalorder %v2994, 0
        %v2996 = vsub.s32 0, %v2994
        %v2997 = vsel %vm2995, %v2996, %v2994
        %v2998 = vclz %v2997
        %v2999 = vsub.s32 %v2998, 2
        %vm3000 = vcmp.gt.s32.totalorder 0, %v2999
        %v3001 = vsel %vm3000, 0, %v2999
        %v3002 = vsub.s32 32, %v3001
        %v3003 = vshll.u32 %v2994, %v3001
        %v3004 = vshrl.u32 %v2986, %v3002
        %v3005 = vor.u32 %v3003, %v3004
        %v3006 = vsub.s32 4294967266, %v3001
        %v3007 = vadd.s32 %v3006, 127
        %v3008 = vshll.u32 %v3007, 23
        %v3009 = vor.u32 4788187, %v3008
        %v3010 = vand.u32 2147483647, %v3009
        %v3012 = vcvt.s32.f32 %v3005
        %v3013 = vmul.f32 %v3012, %v3010
        %v3014 = vxor.u32 %v3013, 2147483648
        %v3015 = vsel %vm2932, %v3014, %v3013
        %v3016 = vsub.s32 4, %v2992
        %v3017 = vsel %vm2932, %v3016, %v2992
        %v3018 = vsel %vm2931, %v2811, %v3015
        %v3019 = vsel %vm2931, 0, %v3017
        %v3020 = vcosq.f32.pop %v3018
        %v3021 = vsinq.f32.pop %v3018
        %vm3022 = vweird.f32 %v2811
        %v3023 = vadd.s32 %v3019, 3
        %v3024 = vand.u32 %v3023, 3
        %vm3025 = vcmp.lt.s32.totalorder %v3024, 2
        %vm3026 = vcmp.eq.s32.totalorder %v3024, 0
        %v3027 = vxor.u32 %v3021, 2147483648
        %v3028 = vsel %vm3026, %v3020, %v3027
        %vm3029 = vcmp.eq.s32.totalorder %v3024, 2
        %v3030 = vxor.u32 %v3020, 2147483648
        %v3031 = vsel %vm3029, %v3030, %v3021
        %v3032 = vsel %vm3025, %v3028, %v3031
        %v3033 = vsel %vm3022, nan, %v3032
        %v3034 = vand.u32 2147483647, %v2812
        %vm3035 = vcmp.le.f32.partialorder %v3034, 0.7853982
        %vm3036 = vcmp.lt.s32.totalorder %v2812, 0
        %v3037 = vand.u32 %v2812, 2139095040
        %v3038 = vshrl.u32 %v3037, 23
        %v3039 = vsub.s32 %v3038, 127
        %v3040 = vand.u32 2147483647, %v2812
        %v3041 = vand.u32 %v3040, 8388607
        %v3042 = vor.u32 %v3041, 8388608
        %v3043 = vsub.s32 0, %v3042
        %v3044 = vadd.s32 %v3039, 1
        %vm3045 = vcmp.gt.s32.totalorder %v3044, 0
        %v3046 = vsel %vm3045, %v3044, 0
        %v3047 = vshrl.u32 %v3046, 5
        %v3048 = vand.u32 %v3046, 31
        %v3049 = vsub.s32 32, %v3048
        %v3050 = vshrl.u32 683565275, %v3049
        %v3051 = vshll.u32 683565275, %v3048
        %v3052 = vshrl.u32 2475754826, %v3049
        %v3053 = vor.u32 %v3051, %v3052
        %v3054 = vshll.u32 2475754826, %v3048
        %v3055 = vshrl.u32 2131351028, %v3049
        %v3056 = vor.u32 %v3054, %v3055
        %v3057 = vshll.u32 2131351028, %v3048
        %v3058 = vshrl.u32 2102212464, %v3049
        %v3059 = vor.u32 %v3057, %v3058
        %v3060 = vshll.u32 2102212464, %v3048
        %v3061 = vshrl.u32 920167782, %v3049
        %v3062 = vor.u32 %v3060, %v3061
        %v3063 = vshll.u32 920167782, %v3048
        %v3064 = vshrl.u32 1326507024, %v3049
        %v3065 = vor.u32 %v3063, %v3064
        %vm3066 = vcmp.lt.s32.totalorder %v3047, 1
        %vm3067 = vcmp.lt.s32.totalorder %v3047, 2
        %vm3068 = vcmp.lt.s32.totalorder %v3047, 3
        %vm3069 = vcmp.lt.s32.totalorder %v3047, 4
        %v3070 = vsel %vm3066, %v3050, %v3053
        %v3071 = vsel %vm3069, %v3059, 2102212464
        %v3072 = vsel %vm3068, %v3056, %v3071
        %v3073 = vsel %vm3067, %v3070, %v3072
        %v3074 = vsel %vm3066, %v3053, %v3056
        %v3075 = vsel %vm3069, %v3062, 920167782
        %v3076 = vsel %vm3068, %v3059, %v3075
        %v3077 = vsel %vm3067, %v3074, %v3076
        %v3078 = vsel %vm3066, %v3056, %v3059
        %v3079 = vsel %vm3069, %v3065, 1326507024
        %v3080 = vsel %vm3068, %v3062, %v3079
        %v3081 = vsel %vm3067, %v3078, %v3080
        %v3082 = vshll.u32 %v3042, 8
        %v3083 = vmul.u32.u64.compose %v3082, %v3081
        %v3084 = vextract.low.u32 %v3083
        %v3085 = vextract.high.u32 %v3083
        %v3086 = vmul.u32.u64.compose %v3082, %v3077
        %v3087 = vextract.low.u32 %v3086
        %v3088 = vextract.high.u32 %v3086
        %v3089 = vmul.u32 %v3082, %v3073
        %v3090 = vadd.s32 %v3085, %v3087
        %vm3091 = vc.u32 %v3085, %v3087
        %v3092 = vadd.s32 %v3088, 1
        %v3093 = vsel %vm3091, %v3092, %v3088
        %v3094 = vadd.s32 %v3089, %v3093
        %v3095 = vadd.s32 %v3094, 536870912
        %v3096 = vshrl.u32 %v3095, 30
        %v3097 = vshll.u32 %v3096, 30
        %v3098 = vsub.s32 %v3094, %v3097
        %vm3099 = vcmp.lt.s32.totalorder %v3098, 0
        %v3100 = vsub.s32 0, %v3098
        %v3101 = vsel %vm3099, %v3100, %v3098
        %v3102 = vclz %v3101
        %v3103 = vsub.s32 %v3102, 2
        %vm3104 = vcmp.gt.s32.totalorder 0, %v3103
        %v3105 = vsel %vm3104, 0, %v3103
        %v3106 = vsub.s32 32, %v3105
        %v3107 = vshll.u32 %v3098, %v3105
        %v3108 = vshrl.u32 %v3090, %v3106
        %v3109 = vor.u32 %v3107, %v3108
        %v3110 = vsub.s32 4294967266, %v3105
        %v3111 = vadd.s32 %v3110, 127
        %v3112 = vshll.u32 %v3111, 23
        %v3113 = vor.u32 4788187, %v3112
        %v3114 = vand.u32 2147483647, %v3113
        %v3116 = vcvt.s32.f32 %v3109
        %v3117 = vmul.f32 %v3116, %v3114
        %v3118 = vxor.u32 %v3117, 2147483648
        %v3119 = vsel %vm3036, %v3118, %v3117
        %v3120 = vsub.s32 4, %v3096
        %v3121 = vsel %vm3036, %v3120, %v3096
        %v3122 = vsel %vm3035, %v2812, %v3119
        %v3123 = vsel %vm3035, 0, %v3121
        %v3124 = vcosq.f32.pop %v3122
        %v3125 = vsinq.f32.pop %v3122
        %vm3126 = vweird.f32 %v2812
        %v3127 = vadd.s32 %v3123, 3
        %v3128 = vand.u32 %v3127, 3
        %vm3129 = vcmp.lt.s32.totalorder %v3128, 2
        %vm3130 = vcmp.eq.s32.totalorder %v3128, 0
        %v3131 = vxor.u32 %v3125, 2147483648
        %v3132 = vsel %vm3130, %v3124, %v3131
        %vm3133 = vcmp.eq.s32.totalorder %v3128, 2
        %v3134 = vxor.u32 %v3124, 2147483648
        %v3135 = vsel %vm3133, %v3134, %v3125
        %v3136 = vsel %vm3129, %v3132, %v3135
        %v3137 = vsel %vm3126, nan, %v3136
        %v3138 = vand.u32 2147483647, %v2813
        %vm3139 = vcmp.le.f32.partialorder %v3138, 0.7853982
        %vm3140 = vcmp.lt.s32.totalorder %v2813, 0
        %v3141 = vand.u32 %v2813, 2139095040
        %v3142 = vshrl.u32 %v3141, 23
        %v3143 = vsub.s32 %v3142, 127
        %v3144 = vand.u32 2147483647, %v2813
        %v3145 = vand.u32 %v3144, 8388607
        %v3146 = vor.u32 %v3145, 8388608
        %v3147 = vsub.s32 0, %v3146
        %v3148 = vadd.s32 %v3143, 1
        %vm3149 = vcmp.gt.s32.totalorder %v3148, 0
        %v3150 = vsel %vm3149, %v3148, 0
        %v3151 = vshrl.u32 %v3150, 5
        %v3152 = vand.u32 %v3150, 31
        %v3153 = vsub.s32 32, %v3152
        %v3154 = vshrl.u32 683565275, %v3153
        %v3155 = vshll.u32 683565275, %v3152
        %v3156 = vshrl.u32 2475754826, %v3153
        %v3157 = vor.u32 %v3155, %v3156
        %v3158 = vshll.u32 2475754826, %v3152
        %v3159 = vshrl.u32 2131351028, %v3153
        %v3160 = vor.u32 %v3158, %v3159
        %v3161 = vshll.u32 2131351028, %v3152
        %v3162 = vshrl.u32 2102212464, %v3153
        %v3163 = vor.u32 %v3161, %v3162
        %v3164 = vshll.u32 2102212464, %v3152
        %v3165 = vshrl.u32 920167782, %v3153
        %v3166 = vor.u32 %v3164, %v3165
        %v3167 = vshll.u32 920167782, %v3152
        %v3168 = vshrl.u32 1326507024, %v3153
        %v3169 = vor.u32 %v3167, %v3168
        %vm3170 = vcmp.lt.s32.totalorder %v3151, 1
        %vm3171 = vcmp.lt.s32.totalorder %v3151, 2
        %vm3172 = vcmp.lt.s32.totalorder %v3151, 3
        %vm3173 = vcmp.lt.s32.totalorder %v3151, 4
        %v3174 = vsel %vm3170, %v3154, %v3157
        %v3175 = vsel %vm3173, %v3163, 2102212464
        %v3176 = vsel %vm3172, %v3160, %v3175
        %v3177 = vsel %vm3171, %v3174, %v3176
        %v3178 = vsel %vm3170, %v3157, %v3160
        %v3179 = vsel %vm3173, %v3166, 920167782
        %v3180 = vsel %vm3172, %v3163, %v3179
        %v3181 = vsel %vm3171, %v3178, %v3180
        %v3182 = vsel %vm3170, %v3160, %v3163
        %v3183 = vsel %vm3173, %v3169, 1326507024
        %v3184 = vsel %vm3172, %v3166, %v3183
        %v3185 = vsel %vm3171, %v3182, %v3184
        %v3186 = vshll.u32 %v3146, 8
        %v3187 = vmul.u32.u64.compose %v3186, %v3185
        %v3188 = vextract.low.u32 %v3187
        %v3189 = vextract.high.u32 %v3187
        %v3190 = vmul.u32.u64.compose %v3186, %v3181
        %v3191 = vextract.low.u32 %v3190
        %v3192 = vextract.high.u32 %v3190
        %v3193 = vmul.u32 %v3186, %v3177
        %v3194 = vadd.s32 %v3189, %v3191
        %vm3195 = vc.u32 %v3189, %v3191
        %v3196 = vadd.s32 %v3192, 1
        %v3197 = vsel %vm3195, %v3196, %v3192
        %v3198 = vadd.s32 %v3193, %v3197
        %v3199 = vadd.s32 %v3198, 536870912
        %v3200 = vshrl.u32 %v3199, 30
        %v3201 = vshll.u32 %v3200, 30
        %v3202 = vsub.s32 %v3198, %v3201
        %vm3203 = vcmp.lt.s32.totalorder %v3202, 0
        %v3204 = vsub.s32 0, %v3202
        %v3205 = vsel %vm3203, %v3204, %v3202
        %v3206 = vclz %v3205
        %v3207 = vsub.s32 %v3206, 2
        %vm3208 = vcmp.gt.s32.totalorder 0, %v3207
        %v3209 = vsel %vm3208, 0, %v3207
        %v3210 = vsub.s32 32, %v3209
        %v3211 = vshll.u32 %v3202, %v3209
        %v3212 = vshrl.u32 %v3194, %v3210
        %v3213 = vor.u32 %v3211, %v3212
        %v3214 = vsub.s32 4294967266, %v3209
        %v3215 = vadd.s32 %v3214, 127
        %v3216 = vshll.u32 %v3215, 23
        %v3217 = vor.u32 4788187, %v3216
        %v3218 = vand.u32 2147483647, %v3217
        %v3220 = vcvt.s32.f32 %v3213
        %v3221 = vmul.f32 %v3220, %v3218
        %v3222 = vxor.u32 %v3221, 2147483648
        %v3223 = vsel %vm3140, %v3222, %v3221
        %v3224 = vsub.s32 4, %v3200
        %v3225 = vsel %vm3140, %v3224, %v3200
        %v3226 = vsel %vm3139, %v2813, %v3223
        %v3227 = vsel %vm3139, 0, %v3225
        %v3228 = vcosq.f32.pop %v3226
        %v3229 = vsinq.f32.pop %v3226
        %vm3230 = vweird.f32 %v2813
        %v3231 = vadd.s32 %v3227, 3
        %v3232 = vand.u32 %v3231, 3
        %vm3233 = vcmp.lt.s32.totalorder %v3232, 2
        %vm3234 = vcmp.eq.s32.totalorder %v3232, 0
        %v3235 = vxor.u32 %v3229, 2147483648
        %v3236 = vsel %vm3234, %v3228, %v3235
        %vm3237 = vcmp.eq.s32.totalorder %v3232, 2
        %v3238 = vxor.u32 %v3228, 2147483648
        %v3239 = vsel %vm3237, %v3238, %v3229
        %v3240 = vsel %vm3233, %v3236, %v3239
        %v3241 = vsel %vm3230, nan, %v3240
        %v3242 = vand.u32 2147483647, %v2814
        %vm3243 = vcmp.le.f32.partialorder %v3242, 0.7853982
        %vm3244 = vcmp.lt.s32.totalorder %v2814, 0
        %v3245 = vand.u32 %v2814, 2139095040
        %v3246 = vshrl.u32 %v3245, 23
        %v3247 = vsub.s32 %v3246, 127
        %v3248 = vand.u32 2147483647, %v2814
        %v3249 = vand.u32 %v3248, 8388607
        %v3250 = vor.u32 %v3249, 8388608
        %v3251 = vsub.s32 0, %v3250
        %v3252 = vadd.s32 %v3247, 1
        %vm3253 = vcmp.gt.s32.totalorder %v3252, 0
        %v3254 = vsel %vm3253, %v3252, 0
        %v3255 = vshrl.u32 %v3254, 5
        %v3256 = vand.u32 %v3254, 31
        %v3257 = vsub.s32 32, %v3256
        %v3258 = vshrl.u32 683565275, %v3257
        %v3259 = vshll.u32 683565275, %v3256
        %v3260 = vshrl.u32 2475754826, %v3257
        %v3261 = vor.u32 %v3259, %v3260
        %v3262 = vshll.u32 2475754826, %v3256
        %v3263 = vshrl.u32 2131351028, %v3257
        %v3264 = vor.u32 %v3262, %v3263
        %v3265 = vshll.u32 2131351028, %v3256
        %v3266 = vshrl.u32 2102212464, %v3257
        %v3267 = vor.u32 %v3265, %v3266
        %v3268 = vshll.u32 2102212464, %v3256
        %v3269 = vshrl.u32 920167782, %v3257
        %v3270 = vor.u32 %v3268, %v3269
        %v3271 = vshll.u32 920167782, %v3256
        %v3272 = vshrl.u32 1326507024, %v3257
        %v3273 = vor.u32 %v3271, %v3272
        %vm3274 = vcmp.lt.s32.totalorder %v3255, 1
        %vm3275 = vcmp.lt.s32.totalorder %v3255, 2
        %vm3276 = vcmp.lt.s32.totalorder %v3255, 3
        %vm3277 = vcmp.lt.s32.totalorder %v3255, 4
        %v3278 = vsel %vm3274, %v3258, %v3261
        %v3279 = vsel %vm3277, %v3267, 2102212464
        %v3280 = vsel %vm3276, %v3264, %v3279
        %v3281 = vsel %vm3275, %v3278, %v3280
        %v3282 = vsel %vm3274, %v3261, %v3264
        %v3283 = vsel %vm3277, %v3270, 920167782
        %v3284 = vsel %vm3276, %v3267, %v3283
        %v3285 = vsel %vm3275, %v3282, %v3284
        %v3286 = vsel %vm3274, %v3264, %v3267
        %v3287 = vsel %vm3277, %v3273, 1326507024
        %v3288 = vsel %vm3276, %v3270, %v3287
        %v3289 = vsel %vm3275, %v3286, %v3288
        %v3290 = vshll.u32 %v3250, 8
        %v3291 = vmul.u32.u64.compose %v3290, %v3289
        %v3292 = vextract.low.u32 %v3291
        %v3293 = vextract.high.u32 %v3291
        %v3294 = vmul.u32.u64.compose %v3290, %v3285
        %v3295 = vextract.low.u32 %v3294
        %v3296 = vextract.high.u32 %v3294
        %v3297 = vmul.u32 %v3290, %v3281
        %v3298 = vadd.s32 %v3293, %v3295
        %vm3299 = vc.u32 %v3293, %v3295
        %v3300 = vadd.s32 %v3296, 1
        %v3301 = vsel %vm3299, %v3300, %v3296
        %v3302 = vadd.s32 %v3297, %v3301
        %v3303 = vadd.s32 %v3302, 536870912
        %v3304 = vshrl.u32 %v3303, 30
        %v3305 = vshll.u32 %v3304, 30
        %v3306 = vsub.s32 %v3302, %v3305
        %vm3307 = vcmp.lt.s32.totalorder %v3306, 0
        %v3308 = vsub.s32 0, %v3306
        %v3309 = vsel %vm3307, %v3308, %v3306
        %v3310 = vclz %v3309
        %v3311 = vsub.s32 %v3310, 2
        %vm3312 = vcmp.gt.s32.totalorder 0, %v3311
        %v3313 = vsel %vm3312, 0, %v3311
        %v3314 = vsub.s32 32, %v3313
        %v3315 = vshll.u32 %v3306, %v3313
        %v3316 = vshrl.u32 %v3298, %v3314
        %v3317 = vor.u32 %v3315, %v3316
        %v3318 = vsub.s32 4294967266, %v3313
        %v3319 = vadd.s32 %v3318, 127
        %v3320 = vshll.u32 %v3319, 23
        %v3321 = vor.u32 4788187, %v3320
        %v3322 = vand.u32 2147483647, %v3321
        %v3324 = vcvt.s32.f32 %v3317
        %v3325 = vmul.f32 %v3324, %v3322
        %v3326 = vxor.u32 %v3325, 2147483648
        %v3327 = vsel %vm3244, %v3326, %v3325
        %v3328 = vsub.s32 4, %v3304
        %v3329 = vsel %vm3244, %v3328, %v3304
        %v3330 = vsel %vm3243, %v2814, %v3327
        %v3331 = vsel %vm3243, 0, %v3329
        %v3332 = vcosq.f32.pop %v3330
        %v3333 = vsinq.f32.pop %v3330
        %vm3334 = vweird.f32 %v2814
        %v3335 = vadd.s32 %v3331, 3
        %v3336 = vand.u32 %v3335, 3
        %vm3337 = vcmp.lt.s32.totalorder %v3336, 2
        %vm3338 = vcmp.eq.s32.totalorder %v3336, 0
        %v3339 = vxor.u32 %v3333, 2147483648
        %v3340 = vsel %vm3338, %v3332, %v3339
        %vm3341 = vcmp.eq.s32.totalorder %v3336, 2
        %v3342 = vxor.u32 %v3332, 2147483648
        %v3343 = vsel %vm3341, %v3342, %v3333
        %v3344 = vsel %vm3337, %v3340, %v3343
        %v3345 = vsel %vm3334, nan, %v3344
        %v3346 = vand.u32 2147483647, %v2815
        %vm3347 = vcmp.le.f32.partialorder %v3346, 0.7853982
        %vm3348 = vcmp.lt.s32.totalorder %v2815, 0
        %v3349 = vand.u32 %v2815, 2139095040
        %v3350 = vshrl.u32 %v3349, 23
        %v3351 = vsub.s32 %v3350, 127
        %v3352 = vand.u32 2147483647, %v2815
        %v3353 = vand.u32 %v3352, 8388607
        %v3354 = vor.u32 %v3353, 8388608
        %v3355 = vsub.s32 0, %v3354
        %v3356 = vadd.s32 %v3351, 1
        %vm3357 = vcmp.gt.s32.totalorder %v3356, 0
        %v3358 = vsel %vm3357, %v3356, 0
        %v3359 = vshrl.u32 %v3358, 5
        %v3360 = vand.u32 %v3358, 31
        %v3361 = vsub.s32 32, %v3360
        %v3362 = vshrl.u32 683565275, %v3361
        %v3363 = vshll.u32 683565275, %v3360
        %v3364 = vshrl.u32 2475754826, %v3361
        %v3365 = vor.u32 %v3363, %v3364
        %v3366 = vshll.u32 2475754826, %v3360
        %v3367 = vshrl.u32 2131351028, %v3361
        %v3368 = vor.u32 %v3366, %v3367
        %v3369 = vshll.u32 2131351028, %v3360
        %v3370 = vshrl.u32 2102212464, %v3361
        %v3371 = vor.u32 %v3369, %v3370
        %v3372 = vshll.u32 2102212464, %v3360
        %v3373 = vshrl.u32 920167782, %v3361
        %v3374 = vor.u32 %v3372, %v3373
        %v3375 = vshll.u32 920167782, %v3360
        %v3376 = vshrl.u32 1326507024, %v3361
        %v3377 = vor.u32 %v3375, %v3376
        %vm3378 = vcmp.lt.s32.totalorder %v3359, 1
        %vm3379 = vcmp.lt.s32.totalorder %v3359, 2
        %vm3380 = vcmp.lt.s32.totalorder %v3359, 3
        %vm3381 = vcmp.lt.s32.totalorder %v3359, 4
        %v3382 = vsel %vm3378, %v3362, %v3365
        %v3383 = vsel %vm3381, %v3371, 2102212464
        %v3384 = vsel %vm3380, %v3368, %v3383
        %v3385 = vsel %vm3379, %v3382, %v3384
        %v3386 = vsel %vm3378, %v3365, %v3368
        %v3387 = vsel %vm3381, %v3374, 920167782
        %v3388 = vsel %vm3380, %v3371, %v3387
        %v3389 = vsel %vm3379, %v3386, %v3388
        %v3390 = vsel %vm3378, %v3368, %v3371
        %v3391 = vsel %vm3381, %v3377, 1326507024
        %v3392 = vsel %vm3380, %v3374, %v3391
        %v3393 = vsel %vm3379, %v3390, %v3392
        %v3394 = vshll.u32 %v3354, 8
        %v3395 = vmul.u32.u64.compose %v3394, %v3393
        %v3396 = vextract.low.u32 %v3395
        %v3397 = vextract.high.u32 %v3395
        %v3398 = vmul.u32.u64.compose %v3394, %v3389
        %v3399 = vextract.low.u32 %v3398
        %v3400 = vextract.high.u32 %v3398
        %v3401 = vmul.u32 %v3394, %v3385
        %v3402 = vadd.s32 %v3397, %v3399
        %vm3403 = vc.u32 %v3397, %v3399
        %v3404 = vadd.s32 %v3400, 1
        %v3405 = vsel %vm3403, %v3404, %v3400
        %v3406 = vadd.s32 %v3401, %v3405
        %v3407 = vadd.s32 %v3406, 536870912
        %v3408 = vshrl.u32 %v3407, 30
        %v3409 = vshll.u32 %v3408, 30
        %v3410 = vsub.s32 %v3406, %v3409
        %vm3411 = vcmp.lt.s32.totalorder %v3410, 0
        %v3412 = vsub.s32 0, %v3410
        %v3413 = vsel %vm3411, %v3412, %v3410
        %v3414 = vclz %v3413
        %v3415 = vsub.s32 %v3414, 2
        %vm3416 = vcmp.gt.s32.totalorder 0, %v3415
        %v3417 = vsel %vm3416, 0, %v3415
        %v3418 = vsub.s32 32, %v3417
        %v3419 = vshll.u32 %v3410, %v3417
        %v3420 = vshrl.u32 %v3402, %v3418
        %v3421 = vor.u32 %v3419, %v3420
        %v3422 = vsub.s32 4294967266, %v3417
        %v3423 = vadd.s32 %v3422, 127
        %v3424 = vshll.u32 %v3423, 23
        %v3425 = vor.u32 4788187, %v3424
        %v3426 = vand.u32 2147483647, %v3425
        %v3428 = vcvt.s32.f32 %v3421
        %v3429 = vmul.f32 %v3428, %v3426
        %v3430 = vxor.u32 %v3429, 2147483648
        %v3431 = vsel %vm3348, %v3430, %v3429
        %v3432 = vsub.s32 4, %v3408
        %v3433 = vsel %vm3348, %v3432, %v3408
        %v3434 = vsel %vm3347, %v2815, %v3431
        %v3435 = vsel %vm3347, 0, %v3433
        %v3436 = vcosq.f32.pop %v3434
        %v3437 = vsinq.f32.pop %v3434
        %vm3438 = vweird.f32 %v2815
        %v3439 = vadd.s32 %v3435, 3
        %v3440 = vand.u32 %v3439, 3
        %vm3441 = vcmp.lt.s32.totalorder %v3440, 2
        %vm3442 = vcmp.eq.s32.totalorder %v3440, 0
        %v3443 = vxor.u32 %v3437, 2147483648
        %v3444 = vsel %vm3442, %v3436, %v3443
        %vm3445 = vcmp.eq.s32.totalorder %v3440, 2
        %v3446 = vxor.u32 %v3436, 2147483648
        %v3447 = vsel %vm3445, %v3446, %v3437
        %v3448 = vsel %vm3441, %v3444, %v3447
        %v3449 = vsel %vm3438, nan, %v3448
        %v3450 = vand.u32 2147483647, %v2816
        %vm3451 = vcmp.le.f32.partialorder %v3450, 0.7853982
        %vm3452 = vcmp.lt.s32.totalorder %v2816, 0
        %v3453 = vand.u32 %v2816, 2139095040
        %v3454 = vshrl.u32 %v3453, 23
        %v3455 = vsub.s32 %v3454, 127
        %v3456 = vand.u32 2147483647, %v2816
        %v3457 = vand.u32 %v3456, 8388607
        %v3458 = vor.u32 %v3457, 8388608
        %v3459 = vsub.s32 0, %v3458
        %v3460 = vadd.s32 %v3455, 1
        %vm3461 = vcmp.gt.s32.totalorder %v3460, 0
        %v3462 = vsel %vm3461, %v3460, 0
        %v3463 = vshrl.u32 %v3462, 5
        %v3464 = vand.u32 %v3462, 31
        %v3465 = vsub.s32 32, %v3464
        %v3466 = vshrl.u32 683565275, %v3465
        %v3467 = vshll.u32 683565275, %v3464
        %v3468 = vshrl.u32 2475754826, %v3465
        %v3469 = vor.u32 %v3467, %v3468
        %v3470 = vshll.u32 2475754826, %v3464
        %v3471 = vshrl.u32 2131351028, %v3465
        %v3472 = vor.u32 %v3470, %v3471
        %v3473 = vshll.u32 2131351028, %v3464
        %v3474 = vshrl.u32 2102212464, %v3465
        %v3475 = vor.u32 %v3473, %v3474
        %v3476 = vshll.u32 2102212464, %v3464
        %v3477 = vshrl.u32 920167782, %v3465
        %v3478 = vor.u32 %v3476, %v3477
        %v3479 = vshll.u32 920167782, %v3464
        %v3480 = vshrl.u32 1326507024, %v3465
        %v3481 = vor.u32 %v3479, %v3480
        %vm3482 = vcmp.lt.s32.totalorder %v3463, 1
        %vm3483 = vcmp.lt.s32.totalorder %v3463, 2
        %vm3484 = vcmp.lt.s32.totalorder %v3463, 3
        %vm3485 = vcmp.lt.s32.totalorder %v3463, 4
        %v3486 = vsel %vm3482, %v3466, %v3469
        %v3487 = vsel %vm3485, %v3475, 2102212464
        %v3488 = vsel %vm3484, %v3472, %v3487
        %v3489 = vsel %vm3483, %v3486, %v3488
        %v3490 = vsel %vm3482, %v3469, %v3472
        %v3491 = vsel %vm3485, %v3478, 920167782
        %v3492 = vsel %vm3484, %v3475, %v3491
        %v3493 = vsel %vm3483, %v3490, %v3492
        %v3494 = vsel %vm3482, %v3472, %v3475
        %v3495 = vsel %vm3485, %v3481, 1326507024
        %v3496 = vsel %vm3484, %v3478, %v3495
        %v3497 = vsel %vm3483, %v3494, %v3496
        %v3498 = vshll.u32 %v3458, 8
        %v3499 = vmul.u32.u64.compose %v3498, %v3497
        %v3500 = vextract.low.u32 %v3499
        %v3501 = vextract.high.u32 %v3499
        %v3502 = vmul.u32.u64.compose %v3498, %v3493
        %v3503 = vextract.low.u32 %v3502
        %v3504 = vextract.high.u32 %v3502
        %v3505 = vmul.u32 %v3498, %v3489
        %v3506 = vadd.s32 %v3501, %v3503
        %vm3507 = vc.u32 %v3501, %v3503
        %v3508 = vadd.s32 %v3504, 1
        %v3509 = vsel %vm3507, %v3508, %v3504
        %v3510 = vadd.s32 %v3505, %v3509
        %v3511 = vadd.s32 %v3510, 536870912
        %v3512 = vshrl.u32 %v3511, 30
        %v3513 = vshll.u32 %v3512, 30
        %v3514 = vsub.s32 %v3510, %v3513
        %vm3515 = vcmp.lt.s32.totalorder %v3514, 0
        %v3516 = vsub.s32 0, %v3514
        %v3517 = vsel %vm3515, %v3516, %v3514
        %v3518 = vclz %v3517
        %v3519 = vsub.s32 %v3518, 2
        %vm3520 = vcmp.gt.s32.totalorder 0, %v3519
        %v3521 = vsel %vm3520, 0, %v3519
        %v3522 = vsub.s32 32, %v3521
        %v3523 = vshll.u32 %v3514, %v3521
        %v3524 = vshrl.u32 %v3506, %v3522
        %v3525 = vor.u32 %v3523, %v3524
        %v3526 = vsub.s32 4294967266, %v3521
        %v3527 = vadd.s32 %v3526, 127
        %v3528 = vshll.u32 %v3527, 23
        %v3529 = vor.u32 4788187, %v3528
        %v3530 = vand.u32 2147483647, %v3529
        %v3532 = vcvt.s32.f32 %v3525
        %v3533 = vmul.f32 %v3532, %v3530
        %v3534 = vxor.u32 %v3533, 2147483648
        %v3535 = vsel %vm3452, %v3534, %v3533
        %v3536 = vsub.s32 4, %v3512
        %v3537 = vsel %vm3452, %v3536, %v3512
        %v3538 = vsel %vm3451, %v2816, %v3535
        %v3539 = vsel %vm3451, 0, %v3537
        %v3540 = vcosq.f32.pop %v3538
        %v3541 = vsinq.f32.pop %v3538
        %vm3542 = vweird.f32 %v2816
        %v3543 = vadd.s32 %v3539, 3
        %v3544 = vand.u32 %v3543, 3
        %vm3545 = vcmp.lt.s32.totalorder %v3544, 2
        %vm3546 = vcmp.eq.s32.totalorder %v3544, 0
        %v3547 = vxor.u32 %v3541, 2147483648
        %v3548 = vsel %vm3546, %v3540, %v3547
        %vm3549 = vcmp.eq.s32.totalorder %v3544, 2
        %v3550 = vxor.u32 %v3540, 2147483648
        %v3551 = vsel %vm3549, %v3550, %v3541
        %v3552 = vsel %vm3545, %v3548, %v3551
        %v3553 = vsel %vm3542, nan, %v3552
        %v3554 = vand.u32 2147483647, %v2817
        %vm3555 = vcmp.le.f32.partialorder %v3554, 0.7853982
        %vm3556 = vcmp.lt.s32.totalorder %v2817, 0
        %v3557 = vand.u32 %v2817, 2139095040
        %v3558 = vshrl.u32 %v3557, 23
        %v3559 = vsub.s32 %v3558, 127
        %v3560 = vand.u32 2147483647, %v2817
        %v3561 = vand.u32 %v3560, 8388607
        %v3562 = vor.u32 %v3561, 8388608
        %v3563 = vsub.s32 0, %v3562
        %v3564 = vadd.s32 %v3559, 1
        %vm3565 = vcmp.gt.s32.totalorder %v3564, 0
        %v3566 = vsel %vm3565, %v3564, 0
        %v3567 = vshrl.u32 %v3566, 5
        %v3568 = vand.u32 %v3566, 31
        %v3569 = vsub.s32 32, %v3568
        %v3570 = vshrl.u32 683565275, %v3569
        %v3571 = vshll.u32 683565275, %v3568
        %v3572 = vshrl.u32 2475754826, %v3569
        %v3573 = vor.u32 %v3571, %v3572
        %v3574 = vshll.u32 2475754826, %v3568
        %v3575 = vshrl.u32 2131351028, %v3569
        %v3576 = vor.u32 %v3574, %v3575
        %v3577 = vshll.u32 2131351028, %v3568
        %v3578 = vshrl.u32 2102212464, %v3569
        %v3579 = vor.u32 %v3577, %v3578
        %v3580 = vshll.u32 2102212464, %v3568
        %v3581 = vshrl.u32 920167782, %v3569
        %v3582 = vor.u32 %v3580, %v3581
        %v3583 = vshll.u32 920167782, %v3568
        %v3584 = vshrl.u32 1326507024, %v3569
        %v3585 = vor.u32 %v3583, %v3584
        %vm3586 = vcmp.lt.s32.totalorder %v3567, 1
        %vm3587 = vcmp.lt.s32.totalorder %v3567, 2
        %vm3588 = vcmp.lt.s32.totalorder %v3567, 3
        %vm3589 = vcmp.lt.s32.totalorder %v3567, 4
        %v3590 = vsel %vm3586, %v3570, %v3573
        %v3591 = vsel %vm3589, %v3579, 2102212464
        %v3592 = vsel %vm3588, %v3576, %v3591
        %v3593 = vsel %vm3587, %v3590, %v3592
        %v3594 = vsel %vm3586, %v3573, %v3576
        %v3595 = vsel %vm3589, %v3582, 920167782
        %v3596 = vsel %vm3588, %v3579, %v3595
        %v3597 = vsel %vm3587, %v3594, %v3596
        %v3598 = vsel %vm3586, %v3576, %v3579
        %v3599 = vsel %vm3589, %v3585, 1326507024
        %v3600 = vsel %vm3588, %v3582, %v3599
        %v3601 = vsel %vm3587, %v3598, %v3600
        %v3602 = vshll.u32 %v3562, 8
        %v3603 = vmul.u32.u64.compose %v3602, %v3601
        %v3604 = vextract.low.u32 %v3603
        %v3605 = vextract.high.u32 %v3603
        %v3606 = vmul.u32.u64.compose %v3602, %v3597
        %v3607 = vextract.low.u32 %v3606
        %v3608 = vextract.high.u32 %v3606
        %v3609 = vmul.u32 %v3602, %v3593
        %v3610 = vadd.s32 %v3605, %v3607
        %vm3611 = vc.u32 %v3605, %v3607
        %v3612 = vadd.s32 %v3608, 1
        %v3613 = vsel %vm3611, %v3612, %v3608
        %v3614 = vadd.s32 %v3609, %v3613
        %v3615 = vadd.s32 %v3614, 536870912
        %v3616 = vshrl.u32 %v3615, 30
        %v3617 = vshll.u32 %v3616, 30
        %v3618 = vsub.s32 %v3614, %v3617
        %vm3619 = vcmp.lt.s32.totalorder %v3618, 0
        %v3620 = vsub.s32 0, %v3618
        %v3621 = vsel %vm3619, %v3620, %v3618
        %v3622 = vclz %v3621
        %v3623 = vsub.s32 %v3622, 2
        %vm3624 = vcmp.gt.s32.totalorder 0, %v3623
        %v3625 = vsel %vm3624, 0, %v3623
        %v3626 = vsub.s32 32, %v3625
        %v3627 = vshll.u32 %v3618, %v3625
        %v3628 = vshrl.u32 %v3610, %v3626
        %v3629 = vor.u32 %v3627, %v3628
        %v3630 = vsub.s32 4294967266, %v3625
        %v3631 = vadd.s32 %v3630, 127
        %v3632 = vshll.u32 %v3631, 23
        %v3633 = vor.u32 4788187, %v3632
        %v3634 = vand.u32 2147483647, %v3633
        %v3636 = vcvt.s32.f32 %v3629
        %v3637 = vmul.f32 %v3636, %v3634
        %v3638 = vxor.u32 %v3637, 2147483648
        %v3639 = vsel %vm3556, %v3638, %v3637
        %v3640 = vsub.s32 4, %v3616
        %v3641 = vsel %vm3556, %v3640, %v3616
        %v3642 = vsel %vm3555, %v2817, %v3639
        %v3643 = vsel %vm3555, 0, %v3641
        %v3644 = vcosq.f32.pop %v3642
        %v3645 = vsinq.f32.pop %v3642
        %vm3646 = vweird.f32 %v2817
        %v3647 = vadd.s32 %v3643, 3
        %v3648 = vand.u32 %v3647, 3
        %vm3649 = vcmp.lt.s32.totalorder %v3648, 2
        %vm3650 = vcmp.eq.s32.totalorder %v3648, 0
        %v3651 = vxor.u32 %v3645, 2147483648
        %v3652 = vsel %vm3650, %v3644, %v3651
        %vm3653 = vcmp.eq.s32.totalorder %v3648, 2
        %v3654 = vxor.u32 %v3644, 2147483648
        %v3655 = vsel %vm3653, %v3654, %v3645
        %v3656 = vsel %vm3649, %v3652, %v3655
        %v3657 = vsel %vm3646, nan, %v3656
        %v3658 = vand.u32 2147483647, %v2818
        %vm3659 = vcmp.le.f32.partialorder %v3658, 0.7853982
        %vm3660 = vcmp.lt.s32.totalorder %v2818, 0
        %v3661 = vand.u32 %v2818, 2139095040
        %v3662 = vshrl.u32 %v3661, 23
        %v3663 = vsub.s32 %v3662, 127
        %v3664 = vand.u32 2147483647, %v2818
        %v3665 = vand.u32 %v3664, 8388607
        %v3666 = vor.u32 %v3665, 8388608
        %v3667 = vsub.s32 0, %v3666
        %v3668 = vadd.s32 %v3663, 1
        %vm3669 = vcmp.gt.s32.totalorder %v3668, 0
        %v3670 = vsel %vm3669, %v3668, 0
        %v3671 = vshrl.u32 %v3670, 5
        %v3672 = vand.u32 %v3670, 31
        %v3673 = vsub.s32 32, %v3672
        %v3674 = vshrl.u32 683565275, %v3673
        %v3675 = vshll.u32 683565275, %v3672
        %v3676 = vshrl.u32 2475754826, %v3673
        %v3677 = vor.u32 %v3675, %v3676
        %v3678 = vshll.u32 2475754826, %v3672
        %v3679 = vshrl.u32 2131351028, %v3673
        %v3680 = vor.u32 %v3678, %v3679
        %v3681 = vshll.u32 2131351028, %v3672
        %v3682 = vshrl.u32 2102212464, %v3673
        %v3683 = vor.u32 %v3681, %v3682
        %v3684 = vshll.u32 2102212464, %v3672
        %v3685 = vshrl.u32 920167782, %v3673
        %v3686 = vor.u32 %v3684, %v3685
        %v3687 = vshll.u32 920167782, %v3672
        %v3688 = vshrl.u32 1326507024, %v3673
        %v3689 = vor.u32 %v3687, %v3688
        %vm3690 = vcmp.lt.s32.totalorder %v3671, 1
        %vm3691 = vcmp.lt.s32.totalorder %v3671, 2
        %vm3692 = vcmp.lt.s32.totalorder %v3671, 3
        %vm3693 = vcmp.lt.s32.totalorder %v3671, 4
        %v3694 = vsel %vm3690, %v3674, %v3677
        %v3695 = vsel %vm3693, %v3683, 2102212464
        %v3696 = vsel %vm3692, %v3680, %v3695
        %v3697 = vsel %vm3691, %v3694, %v3696
        %v3698 = vsel %vm3690, %v3677, %v3680
        %v3699 = vsel %vm3693, %v3686, 920167782
        %v3700 = vsel %vm3692, %v3683, %v3699
        %v3701 = vsel %vm3691, %v3698, %v3700
        %v3702 = vsel %vm3690, %v3680, %v3683
        %v3703 = vsel %vm3693, %v3689, 1326507024
        %v3704 = vsel %vm3692, %v3686, %v3703
        %v3705 = vsel %vm3691, %v3702, %v3704
        %v3706 = vshll.u32 %v3666, 8
        %v3707 = vmul.u32.u64.compose %v3706, %v3705
        %v3708 = vextract.low.u32 %v3707
        %v3709 = vextract.high.u32 %v3707
        %v3710 = vmul.u32.u64.compose %v3706, %v3701
        %v3711 = vextract.low.u32 %v3710
        %v3712 = vextract.high.u32 %v3710
        %v3713 = vmul.u32 %v3706, %v3697
        %v3714 = vadd.s32 %v3709, %v3711
        %vm3715 = vc.u32 %v3709, %v3711
        %v3716 = vadd.s32 %v3712, 1
        %v3717 = vsel %vm3715, %v3716, %v3712
        %v3718 = vadd.s32 %v3713, %v3717
        %v3719 = vadd.s32 %v3718, 536870912
        %v3720 = vshrl.u32 %v3719, 30
        %v3721 = vshll.u32 %v3720, 30
        %v3722 = vsub.s32 %v3718, %v3721
        %vm3723 = vcmp.lt.s32.totalorder %v3722, 0
        %v3724 = vsub.s32 0, %v3722
        %v3725 = vsel %vm3723, %v3724, %v3722
        %v3726 = vclz %v3725
        %v3727 = vsub.s32 %v3726, 2
        %vm3728 = vcmp.gt.s32.totalorder 0, %v3727
        %v3729 = vsel %vm3728, 0, %v3727
        %v3730 = vsub.s32 32, %v3729
        %v3731 = vshll.u32 %v3722, %v3729
        %v3732 = vshrl.u32 %v3714, %v3730
        %v3733 = vor.u32 %v3731, %v3732
        %v3734 = vsub.s32 4294967266, %v3729
        %v3735 = vadd.s32 %v3734, 127
        %v3736 = vshll.u32 %v3735, 23
        %v3737 = vor.u32 4788187, %v3736
        %v3738 = vand.u32 2147483647, %v3737
        %v3740 = vcvt.s32.f32 %v3733
        %v3741 = vmul.f32 %v3740, %v3738
        %v3742 = vxor.u32 %v3741, 2147483648
        %v3743 = vsel %vm3660, %v3742, %v3741
        %v3744 = vsub.s32 4, %v3720
        %v3745 = vsel %vm3660, %v3744, %v3720
        %v3746 = vsel %vm3659, %v2818, %v3743
        %v3747 = vsel %vm3659, 0, %v3745
        %v3748 = vcosq.f32.pop %v3746
        %v3749 = vsinq.f32.pop %v3746
        %vm3750 = vweird.f32 %v2818
        %v3751 = vadd.s32 %v3747, 3
        %v3752 = vand.u32 %v3751, 3
        %vm3753 = vcmp.lt.s32.totalorder %v3752, 2
        %vm3754 = vcmp.eq.s32.totalorder %v3752, 0
        %v3755 = vxor.u32 %v3749, 2147483648
        %v3756 = vsel %vm3754, %v3748, %v3755
        %vm3757 = vcmp.eq.s32.totalorder %v3752, 2
        %v3758 = vxor.u32 %v3748, 2147483648
        %v3759 = vsel %vm3757, %v3758, %v3749
        %v3760 = vsel %vm3753, %v3756, %v3759
        %v3761 = vsel %vm3750, nan, %v3760
        %v3762 = vand.u32 2147483647, %v2819
        %vm3763 = vcmp.le.f32.partialorder %v3762, 0.7853982
        %vm3764 = vcmp.lt.s32.totalorder %v2819, 0
        %v3765 = vand.u32 %v2819, 2139095040
        %v3766 = vshrl.u32 %v3765, 23
        %v3767 = vsub.s32 %v3766, 127
        %v3768 = vand.u32 2147483647, %v2819
        %v3769 = vand.u32 %v3768, 8388607
        %v3770 = vor.u32 %v3769, 8388608
        %v3771 = vsub.s32 0, %v3770
        %v3772 = vadd.s32 %v3767, 1
        %vm3773 = vcmp.gt.s32.totalorder %v3772, 0
        %v3774 = vsel %vm3773, %v3772, 0
        %v3775 = vshrl.u32 %v3774, 5
        %v3776 = vand.u32 %v3774, 31
        %v3777 = vsub.s32 32, %v3776
        %v3778 = vshrl.u32 683565275, %v3777
        %v3779 = vshll.u32 683565275, %v3776
        %v3780 = vshrl.u32 2475754826, %v3777
        %v3781 = vor.u32 %v3779, %v3780
        %v3782 = vshll.u32 2475754826, %v3776
        %v3783 = vshrl.u32 2131351028, %v3777
        %v3784 = vor.u32 %v3782, %v3783
        %v3785 = vshll.u32 2131351028, %v3776
        %v3786 = vshrl.u32 2102212464, %v3777
        %v3787 = vor.u32 %v3785, %v3786
        %v3788 = vshll.u32 2102212464, %v3776
        %v3789 = vshrl.u32 920167782, %v3777
        %v3790 = vor.u32 %v3788, %v3789
        %v3791 = vshll.u32 920167782, %v3776
        %v3792 = vshrl.u32 1326507024, %v3777
        %v3793 = vor.u32 %v3791, %v3792
        %vm3794 = vcmp.lt.s32.totalorder %v3775, 1
        %vm3795 = vcmp.lt.s32.totalorder %v3775, 2
        %vm3796 = vcmp.lt.s32.totalorder %v3775, 3
        %vm3797 = vcmp.lt.s32.totalorder %v3775, 4
        %v3798 = vsel %vm3794, %v3778, %v3781
        %v3799 = vsel %vm3797, %v3787, 2102212464
        %v3800 = vsel %vm3796, %v3784, %v3799
        %v3801 = vsel %vm3795, %v3798, %v3800
        %v3802 = vsel %vm3794, %v3781, %v3784
        %v3803 = vsel %vm3797, %v3790, 920167782
        %v3804 = vsel %vm3796, %v3787, %v3803
        %v3805 = vsel %vm3795, %v3802, %v3804
        %v3806 = vsel %vm3794, %v3784, %v3787
        %v3807 = vsel %vm3797, %v3793, 1326507024
        %v3808 = vsel %vm3796, %v3790, %v3807
        %v3809 = vsel %vm3795, %v3806, %v3808
        %v3810 = vshll.u32 %v3770, 8
        %v3811 = vmul.u32.u64.compose %v3810, %v3809
        %v3812 = vextract.low.u32 %v3811
        %v3813 = vextract.high.u32 %v3811
        %v3814 = vmul.u32.u64.compose %v3810, %v3805
        %v3815 = vextract.low.u32 %v3814
        %v3816 = vextract.high.u32 %v3814
        %v3817 = vmul.u32 %v3810, %v3801
        %v3818 = vadd.s32 %v3813, %v3815
        %vm3819 = vc.u32 %v3813, %v3815
        %v3820 = vadd.s32 %v3816, 1
        %v3821 = vsel %vm3819, %v3820, %v3816
        %v3822 = vadd.s32 %v3817, %v3821
        %v3823 = vadd.s32 %v3822, 536870912
        %v3824 = vshrl.u32 %v3823, 30
        %v3825 = vshll.u32 %v3824, 30
        %v3826 = vsub.s32 %v3822, %v3825
        %vm3827 = vcmp.lt.s32.totalorder %v3826, 0
        %v3828 = vsub.s32 0, %v3826
        %v3829 = vsel %vm3827, %v3828, %v3826
        %v3830 = vclz %v3829
        %v3831 = vsub.s32 %v3830, 2
        %vm3832 = vcmp.gt.s32.totalorder 0, %v3831
        %v3833 = vsel %vm3832, 0, %v3831
        %v3834 = vsub.s32 32, %v3833
        %v3835 = vshll.u32 %v3826, %v3833
        %v3836 = vshrl.u32 %v3818, %v3834
        %v3837 = vor.u32 %v3835, %v3836
        %v3838 = vsub.s32 4294967266, %v3833
        %v3839 = vadd.s32 %v3838, 127
        %v3840 = vshll.u32 %v3839, 23
        %v3841 = vor.u32 4788187, %v3840
        %v3842 = vand.u32 2147483647, %v3841
        %v3844 = vcvt.s32.f32 %v3837
        %v3845 = vmul.f32 %v3844, %v3842
        %v3846 = vxor.u32 %v3845, 2147483648
        %v3847 = vsel %vm3764, %v3846, %v3845
        %v3848 = vsub.s32 4, %v3824
        %v3849 = vsel %vm3764, %v3848, %v3824
        %v3850 = vsel %vm3763, %v2819, %v3847
        %v3851 = vsel %vm3763, 0, %v3849
        %v3852 = vcosq.f32.pop %v3850
        %v3853 = vsinq.f32.pop %v3850
        %vm3854 = vweird.f32 %v2819
        %v3855 = vadd.s32 %v3851, 3
        %v3856 = vand.u32 %v3855, 3
        %vm3857 = vcmp.lt.s32.totalorder %v3856, 2
        %vm3858 = vcmp.eq.s32.totalorder %v3856, 0
        %v3859 = vxor.u32 %v3853, 2147483648
        %v3860 = vsel %vm3858, %v3852, %v3859
        %vm3861 = vcmp.eq.s32.totalorder %v3856, 2
        %v3862 = vxor.u32 %v3852, 2147483648
        %v3863 = vsel %vm3861, %v3862, %v3853
        %v3864 = vsel %vm3857, %v3860, %v3863
        %v3865 = vsel %vm3854, nan, %v3864
        %v3866 = vand.u32 2147483647, %v2820
        %vm3867 = vcmp.le.f32.partialorder %v3866, 0.7853982
        %vm3868 = vcmp.lt.s32.totalorder %v2820, 0
        %v3869 = vand.u32 %v2820, 2139095040
        %v3870 = vshrl.u32 %v3869, 23
        %v3871 = vsub.s32 %v3870, 127
        %v3872 = vand.u32 2147483647, %v2820
        %v3873 = vand.u32 %v3872, 8388607
        %v3874 = vor.u32 %v3873, 8388608
        %v3875 = vsub.s32 0, %v3874
        %v3876 = vadd.s32 %v3871, 1
        %vm3877 = vcmp.gt.s32.totalorder %v3876, 0
        %v3878 = vsel %vm3877, %v3876, 0
        %v3879 = vshrl.u32 %v3878, 5
        %v3880 = vand.u32 %v3878, 31
        %v3881 = vsub.s32 32, %v3880
        %v3882 = vshrl.u32 683565275, %v3881
        %v3883 = vshll.u32 683565275, %v3880
        %v3884 = vshrl.u32 2475754826, %v3881
        %v3885 = vor.u32 %v3883, %v3884
        %v3886 = vshll.u32 2475754826, %v3880
        %v3887 = vshrl.u32 2131351028, %v3881
        %v3888 = vor.u32 %v3886, %v3887
        %v3889 = vshll.u32 2131351028, %v3880
        %v3890 = vshrl.u32 2102212464, %v3881
        %v3891 = vor.u32 %v3889, %v3890
        %v3892 = vshll.u32 2102212464, %v3880
        %v3893 = vshrl.u32 920167782, %v3881
        %v3894 = vor.u32 %v3892, %v3893
        %v3895 = vshll.u32 920167782, %v3880
        %v3896 = vshrl.u32 1326507024, %v3881
        %v3897 = vor.u32 %v3895, %v3896
        %vm3898 = vcmp.lt.s32.totalorder %v3879, 1
        %vm3899 = vcmp.lt.s32.totalorder %v3879, 2
        %vm3900 = vcmp.lt.s32.totalorder %v3879, 3
        %vm3901 = vcmp.lt.s32.totalorder %v3879, 4
        %v3902 = vsel %vm3898, %v3882, %v3885
        %v3903 = vsel %vm3901, %v3891, 2102212464
        %v3904 = vsel %vm3900, %v3888, %v3903
        %v3905 = vsel %vm3899, %v3902, %v3904
        %v3906 = vsel %vm3898, %v3885, %v3888
        %v3907 = vsel %vm3901, %v3894, 920167782
        %v3908 = vsel %vm3900, %v3891, %v3907
        %v3909 = vsel %vm3899, %v3906, %v3908
        %v3910 = vsel %vm3898, %v3888, %v3891
        %v3911 = vsel %vm3901, %v3897, 1326507024
        %v3912 = vsel %vm3900, %v3894, %v3911
        %v3913 = vsel %vm3899, %v3910, %v3912
        %v3914 = vshll.u32 %v3874, 8
        %v3915 = vmul.u32.u64.compose %v3914, %v3913
        %v3916 = vextract.low.u32 %v3915
        %v3917 = vextract.high.u32 %v3915
        %v3918 = vmul.u32.u64.compose %v3914, %v3909
        %v3919 = vextract.low.u32 %v3918
        %v3920 = vextract.high.u32 %v3918
        %v3921 = vmul.u32 %v3914, %v3905
        %v3922 = vadd.s32 %v3917, %v3919
        %vm3923 = vc.u32 %v3917, %v3919
        %v3924 = vadd.s32 %v3920, 1
        %v3925 = vsel %vm3923, %v3924, %v3920
        %v3926 = vadd.s32 %v3921, %v3925
        %v3927 = vadd.s32 %v3926, 536870912
        %v3928 = vshrl.u32 %v3927, 30
        %v3929 = vshll.u32 %v3928, 30
        %v3930 = vsub.s32 %v3926, %v3929
        %vm3931 = vcmp.lt.s32.totalorder %v3930, 0
        %v3932 = vsub.s32 0, %v3930
        %v3933 = vsel %vm3931, %v3932, %v3930
        %v3934 = vclz %v3933
        %v3935 = vsub.s32 %v3934, 2
        %vm3936 = vcmp.gt.s32.totalorder 0, %v3935
        %v3937 = vsel %vm3936, 0, %v3935
        %v3938 = vsub.s32 32, %v3937
        %v3939 = vshll.u32 %v3930, %v3937
        %v3940 = vshrl.u32 %v3922, %v3938
        %v3941 = vor.u32 %v3939, %v3940
        %v3942 = vsub.s32 4294967266, %v3937
        %v3943 = vadd.s32 %v3942, 127
        %v3944 = vshll.u32 %v3943, 23
        %v3945 = vor.u32 4788187, %v3944
        %v3946 = vand.u32 2147483647, %v3945
        %v3948 = vcvt.s32.f32 %v3941
        %v3949 = vmul.f32 %v3948, %v3946
        %v3950 = vxor.u32 %v3949, 2147483648
        %v3951 = vsel %vm3868, %v3950, %v3949
        %v3952 = vsub.s32 4, %v3928
        %v3953 = vsel %vm3868, %v3952, %v3928
        %v3954 = vsel %vm3867, %v2820, %v3951
        %v3955 = vsel %vm3867, 0, %v3953
        %v3956 = vcosq.f32.pop %v3954
        %v3957 = vsinq.f32.pop %v3954
        %vm3958 = vweird.f32 %v2820
        %v3959 = vadd.s32 %v3955, 3
        %v3960 = vand.u32 %v3959, 3
        %vm3961 = vcmp.lt.s32.totalorder %v3960, 2
        %vm3962 = vcmp.eq.s32.totalorder %v3960, 0
        %v3963 = vxor.u32 %v3957, 2147483648
        %v3964 = vsel %vm3962, %v3956, %v3963
        %vm3965 = vcmp.eq.s32.totalorder %v3960, 2
        %v3966 = vxor.u32 %v3956, 2147483648
        %v3967 = vsel %vm3965, %v3966, %v3957
        %v3968 = vsel %vm3961, %v3964, %v3967
        %v3969 = vsel %vm3958, nan, %v3968
        %v3970 = vand.u32 2147483647, %v2821
        %vm3971 = vcmp.le.f32.partialorder %v3970, 0.7853982
        %vm3972 = vcmp.lt.s32.totalorder %v2821, 0
        %v3973 = vand.u32 %v2821, 2139095040
        %v3974 = vshrl.u32 %v3973, 23
        %v3975 = vsub.s32 %v3974, 127
        %v3976 = vand.u32 2147483647, %v2821
        %v3977 = vand.u32 %v3976, 8388607
        %v3978 = vor.u32 %v3977, 8388608
        %v3979 = vsub.s32 0, %v3978
        %v3980 = vadd.s32 %v3975, 1
        %vm3981 = vcmp.gt.s32.totalorder %v3980, 0
        %v3982 = vsel %vm3981, %v3980, 0
        %v3983 = vshrl.u32 %v3982, 5
        %v3984 = vand.u32 %v3982, 31
        %v3985 = vsub.s32 32, %v3984
        %v3986 = vshrl.u32 683565275, %v3985
        %v3987 = vshll.u32 683565275, %v3984
        %v3988 = vshrl.u32 2475754826, %v3985
        %v3989 = vor.u32 %v3987, %v3988
        %v3990 = vshll.u32 2475754826, %v3984
        %v3991 = vshrl.u32 2131351028, %v3985
        %v3992 = vor.u32 %v3990, %v3991
        %v3993 = vshll.u32 2131351028, %v3984
        %v3994 = vshrl.u32 2102212464, %v3985
        %v3995 = vor.u32 %v3993, %v3994
        %v3996 = vshll.u32 2102212464, %v3984
        %v3997 = vshrl.u32 920167782, %v3985
        %v3998 = vor.u32 %v3996, %v3997
        %v3999 = vshll.u32 920167782, %v3984
        %v4000 = vshrl.u32 1326507024, %v3985
        %v4001 = vor.u32 %v3999, %v4000
        %vm4002 = vcmp.lt.s32.totalorder %v3983, 1
        %vm4003 = vcmp.lt.s32.totalorder %v3983, 2
        %vm4004 = vcmp.lt.s32.totalorder %v3983, 3
        %vm4005 = vcmp.lt.s32.totalorder %v3983, 4
        %v4006 = vsel %vm4002, %v3986, %v3989
        %v4007 = vsel %vm4005, %v3995, 2102212464
        %v4008 = vsel %vm4004, %v3992, %v4007
        %v4009 = vsel %vm4003, %v4006, %v4008
        %v4010 = vsel %vm4002, %v3989, %v3992
        %v4011 = vsel %vm4005, %v3998, 920167782
        %v4012 = vsel %vm4004, %v3995, %v4011
        %v4013 = vsel %vm4003, %v4010, %v4012
        %v4014 = vsel %vm4002, %v3992, %v3995
        %v4015 = vsel %vm4005, %v4001, 1326507024
        %v4016 = vsel %vm4004, %v3998, %v4015
        %v4017 = vsel %vm4003, %v4014, %v4016
        %v4018 = vshll.u32 %v3978, 8
        %v4019 = vmul.u32.u64.compose %v4018, %v4017
        %v4020 = vextract.low.u32 %v4019
        %v4021 = vextract.high.u32 %v4019
        %v4022 = vmul.u32.u64.compose %v4018, %v4013
        %v4023 = vextract.low.u32 %v4022
        %v4024 = vextract.high.u32 %v4022
        %v4025 = vmul.u32 %v4018, %v4009
        %v4026 = vadd.s32 %v4021, %v4023
        %vm4027 = vc.u32 %v4021, %v4023
        %v4028 = vadd.s32 %v4024, 1
        %v4029 = vsel %vm4027, %v4028, %v4024
        %v4030 = vadd.s32 %v4025, %v4029
        %v4031 = vadd.s32 %v4030, 536870912
        %v4032 = vshrl.u32 %v4031, 30
        %v4033 = vshll.u32 %v4032, 30
        %v4034 = vsub.s32 %v4030, %v4033
        %vm4035 = vcmp.lt.s32.totalorder %v4034, 0
        %v4036 = vsub.s32 0, %v4034
        %v4037 = vsel %vm4035, %v4036, %v4034
        %v4038 = vclz %v4037
        %v4039 = vsub.s32 %v4038, 2
        %vm4040 = vcmp.gt.s32.totalorder 0, %v4039
        %v4041 = vsel %vm4040, 0, %v4039
        %v4042 = vsub.s32 32, %v4041
        %v4043 = vshll.u32 %v4034, %v4041
        %v4044 = vshrl.u32 %v4026, %v4042
        %v4045 = vor.u32 %v4043, %v4044
        %v4046 = vsub.s32 4294967266, %v4041
        %v4047 = vadd.s32 %v4046, 127
        %v4048 = vshll.u32 %v4047, 23
        %v4049 = vor.u32 4788187, %v4048
        %v4050 = vand.u32 2147483647, %v4049
        %v4052 = vcvt.s32.f32 %v4045
        %v4053 = vmul.f32 %v4052, %v4050
        %v4054 = vxor.u32 %v4053, 2147483648
        %v4055 = vsel %vm3972, %v4054, %v4053
        %v4056 = vsub.s32 4, %v4032
        %v4057 = vsel %vm3972, %v4056, %v4032
        %v4058 = vsel %vm3971, %v2821, %v4055
        %v4059 = vsel %vm3971, 0, %v4057
        %v4060 = vcosq.f32.pop %v4058
        %v4061 = vsinq.f32.pop %v4058
        %vm4062 = vweird.f32 %v2821
        %v4063 = vadd.s32 %v4059, 3
        %v4064 = vand.u32 %v4063, 3
        %vm4065 = vcmp.lt.s32.totalorder %v4064, 2
        %vm4066 = vcmp.eq.s32.totalorder %v4064, 0
        %v4067 = vxor.u32 %v4061, 2147483648
        %v4068 = vsel %vm4066, %v4060, %v4067
        %vm4069 = vcmp.eq.s32.totalorder %v4064, 2
        %v4070 = vxor.u32 %v4060, 2147483648
        %v4071 = vsel %vm4069, %v4070, %v4061
        %v4072 = vsel %vm4065, %v4068, %v4071
        %v4073 = vsel %vm4062, nan, %v4072
        %v4074 = vand.u32 2147483647, %v2822
        %vm4075 = vcmp.le.f32.partialorder %v4074, 0.7853982
        %vm4076 = vcmp.lt.s32.totalorder %v2822, 0
        %v4077 = vand.u32 %v2822, 2139095040
        %v4078 = vshrl.u32 %v4077, 23
        %v4079 = vsub.s32 %v4078, 127
        %v4080 = vand.u32 2147483647, %v2822
        %v4081 = vand.u32 %v4080, 8388607
        %v4082 = vor.u32 %v4081, 8388608
        %v4083 = vsub.s32 0, %v4082
        %v4084 = vadd.s32 %v4079, 1
        %vm4085 = vcmp.gt.s32.totalorder %v4084, 0
        %v4086 = vsel %vm4085, %v4084, 0
        %v4087 = vshrl.u32 %v4086, 5
        %v4088 = vand.u32 %v4086, 31
        %v4089 = vsub.s32 32, %v4088
        %v4090 = vshrl.u32 683565275, %v4089
        %v4091 = vshll.u32 683565275, %v4088
        %v4092 = vshrl.u32 2475754826, %v4089
        %v4093 = vor.u32 %v4091, %v4092
        %v4094 = vshll.u32 2475754826, %v4088
        %v4095 = vshrl.u32 2131351028, %v4089
        %v4096 = vor.u32 %v4094, %v4095
        %v4097 = vshll.u32 2131351028, %v4088
        %v4098 = vshrl.u32 2102212464, %v4089
        %v4099 = vor.u32 %v4097, %v4098
        %v4100 = vshll.u32 2102212464, %v4088
        %v4101 = vshrl.u32 920167782, %v4089
        %v4102 = vor.u32 %v4100, %v4101
        %v4103 = vshll.u32 920167782, %v4088
        %v4104 = vshrl.u32 1326507024, %v4089
        %v4105 = vor.u32 %v4103, %v4104
        %vm4106 = vcmp.lt.s32.totalorder %v4087, 1
        %vm4107 = vcmp.lt.s32.totalorder %v4087, 2
        %vm4108 = vcmp.lt.s32.totalorder %v4087, 3
        %vm4109 = vcmp.lt.s32.totalorder %v4087, 4
        %v4110 = vsel %vm4106, %v4090, %v4093
        %v4111 = vsel %vm4109, %v4099, 2102212464
        %v4112 = vsel %vm4108, %v4096, %v4111
        %v4113 = vsel %vm4107, %v4110, %v4112
        %v4114 = vsel %vm4106, %v4093, %v4096
        %v4115 = vsel %vm4109, %v4102, 920167782
        %v4116 = vsel %vm4108, %v4099, %v4115
        %v4117 = vsel %vm4107, %v4114, %v4116
        %v4118 = vsel %vm4106, %v4096, %v4099
        %v4119 = vsel %vm4109, %v4105, 1326507024
        %v4120 = vsel %vm4108, %v4102, %v4119
        %v4121 = vsel %vm4107, %v4118, %v4120
        %v4122 = vshll.u32 %v4082, 8
        %v4123 = vmul.u32.u64.compose %v4122, %v4121
        %v4124 = vextract.low.u32 %v4123
        %v4125 = vextract.high.u32 %v4123
        %v4126 = vmul.u32.u64.compose %v4122, %v4117
        %v4127 = vextract.low.u32 %v4126
        %v4128 = vextract.high.u32 %v4126
        %v4129 = vmul.u32 %v4122, %v4113
        %v4130 = vadd.s32 %v4125, %v4127
        %vm4131 = vc.u32 %v4125, %v4127
        %v4132 = vadd.s32 %v4128, 1
        %v4133 = vsel %vm4131, %v4132, %v4128
        %v4134 = vadd.s32 %v4129, %v4133
        %v4135 = vadd.s32 %v4134, 536870912
        %v4136 = vshrl.u32 %v4135, 30
        %v4137 = vshll.u32 %v4136, 30
        %v4138 = vsub.s32 %v4134, %v4137
        %vm4139 = vcmp.lt.s32.totalorder %v4138, 0
        %v4140 = vsub.s32 0, %v4138
        %v4141 = vsel %vm4139, %v4140, %v4138
        %v4142 = vclz %v4141
        %v4143 = vsub.s32 %v4142, 2
        %vm4144 = vcmp.gt.s32.totalorder 0, %v4143
        %v4145 = vsel %vm4144, 0, %v4143
        %v4146 = vsub.s32 32, %v4145
        %v4147 = vshll.u32 %v4138, %v4145
        %v4148 = vshrl.u32 %v4130, %v4146
        %v4149 = vor.u32 %v4147, %v4148
        %v4150 = vsub.s32 4294967266, %v4145
        %v4151 = vadd.s32 %v4150, 127
        %v4152 = vshll.u32 %v4151, 23
        %v4153 = vor.u32 4788187, %v4152
        %v4154 = vand.u32 2147483647, %v4153
        %v4156 = vcvt.s32.f32 %v4149
        %v4157 = vmul.f32 %v4156, %v4154
        %v4158 = vxor.u32 %v4157, 2147483648
        %v4159 = vsel %vm4076, %v4158, %v4157
        %v4160 = vsub.s32 4, %v4136
        %v4161 = vsel %vm4076, %v4160, %v4136
        %v4162 = vsel %vm4075, %v2822, %v4159
        %v4163 = vsel %vm4075, 0, %v4161
        %v4164 = vcosq.f32.pop %v4162
        %v4165 = vsinq.f32.pop %v4162
        %vm4166 = vweird.f32 %v2822
        %v4167 = vadd.s32 %v4163, 3
        %v4168 = vand.u32 %v4167, 3
        %vm4169 = vcmp.lt.s32.totalorder %v4168, 2
        %vm4170 = vcmp.eq.s32.totalorder %v4168, 0
        %v4171 = vxor.u32 %v4165, 2147483648
        %v4172 = vsel %vm4170, %v4164, %v4171
        %vm4173 = vcmp.eq.s32.totalorder %v4168, 2
        %v4174 = vxor.u32 %v4164, 2147483648
        %v4175 = vsel %vm4173, %v4174, %v4165
        %v4176 = vsel %vm4169, %v4172, %v4175
        %v4177 = vsel %vm4166, nan, %v4176
        %v4178 = vand.u32 2147483647, %v2823
        %vm4179 = vcmp.le.f32.partialorder %v4178, 0.7853982
        %vm4180 = vcmp.lt.s32.totalorder %v2823, 0
        %v4181 = vand.u32 %v2823, 2139095040
        %v4182 = vshrl.u32 %v4181, 23
        %v4183 = vsub.s32 %v4182, 127
        %v4184 = vand.u32 2147483647, %v2823
        %v4185 = vand.u32 %v4184, 8388607
        %v4186 = vor.u32 %v4185, 8388608
        %v4187 = vsub.s32 0, %v4186
        %v4188 = vadd.s32 %v4183, 1
        %vm4189 = vcmp.gt.s32.totalorder %v4188, 0
        %v4190 = vsel %vm4189, %v4188, 0
        %v4191 = vshrl.u32 %v4190, 5
        %v4192 = vand.u32 %v4190, 31
        %v4193 = vsub.s32 32, %v4192
        %v4194 = vshrl.u32 683565275, %v4193
        %v4195 = vshll.u32 683565275, %v4192
        %v4196 = vshrl.u32 2475754826, %v4193
        %v4197 = vor.u32 %v4195, %v4196
        %v4198 = vshll.u32 2475754826, %v4192
        %v4199 = vshrl.u32 2131351028, %v4193
        %v4200 = vor.u32 %v4198, %v4199
        %v4201 = vshll.u32 2131351028, %v4192
        %v4202 = vshrl.u32 2102212464, %v4193
        %v4203 = vor.u32 %v4201, %v4202
        %v4204 = vshll.u32 2102212464, %v4192
        %v4205 = vshrl.u32 920167782, %v4193
        %v4206 = vor.u32 %v4204, %v4205
        %v4207 = vshll.u32 920167782, %v4192
        %v4208 = vshrl.u32 1326507024, %v4193
        %v4209 = vor.u32 %v4207, %v4208
        %vm4210 = vcmp.lt.s32.totalorder %v4191, 1
        %vm4211 = vcmp.lt.s32.totalorder %v4191, 2
        %vm4212 = vcmp.lt.s32.totalorder %v4191, 3
        %vm4213 = vcmp.lt.s32.totalorder %v4191, 4
        %v4214 = vsel %vm4210, %v4194, %v4197
        %v4215 = vsel %vm4213, %v4203, 2102212464
        %v4216 = vsel %vm4212, %v4200, %v4215
        %v4217 = vsel %vm4211, %v4214, %v4216
        %v4218 = vsel %vm4210, %v4197, %v4200
        %v4219 = vsel %vm4213, %v4206, 920167782
        %v4220 = vsel %vm4212, %v4203, %v4219
        %v4221 = vsel %vm4211, %v4218, %v4220
        %v4222 = vsel %vm4210, %v4200, %v4203
        %v4223 = vsel %vm4213, %v4209, 1326507024
        %v4224 = vsel %vm4212, %v4206, %v4223
        %v4225 = vsel %vm4211, %v4222, %v4224
        %v4226 = vshll.u32 %v4186, 8
        %v4227 = vmul.u32.u64.compose %v4226, %v4225
        %v4228 = vextract.low.u32 %v4227
        %v4229 = vextract.high.u32 %v4227
        %v4230 = vmul.u32.u64.compose %v4226, %v4221
        %v4231 = vextract.low.u32 %v4230
        %v4232 = vextract.high.u32 %v4230
        %v4233 = vmul.u32 %v4226, %v4217
        %v4234 = vadd.s32 %v4229, %v4231
        %vm4235 = vc.u32 %v4229, %v4231
        %v4236 = vadd.s32 %v4232, 1
        %v4237 = vsel %vm4235, %v4236, %v4232
        %v4238 = vadd.s32 %v4233, %v4237
        %v4239 = vadd.s32 %v4238, 536870912
        %v4240 = vshrl.u32 %v4239, 30
        %v4241 = vshll.u32 %v4240, 30
        %v4242 = vsub.s32 %v4238, %v4241
        %vm4243 = vcmp.lt.s32.totalorder %v4242, 0
        %v4244 = vsub.s32 0, %v4242
        %v4245 = vsel %vm4243, %v4244, %v4242
        %v4246 = vclz %v4245
        %v4247 = vsub.s32 %v4246, 2
        %vm4248 = vcmp.gt.s32.totalorder 0, %v4247
        %v4249 = vsel %vm4248, 0, %v4247
        %v4250 = vsub.s32 32, %v4249
        %v4251 = vshll.u32 %v4242, %v4249
        %v4252 = vshrl.u32 %v4234, %v4250
        %v4253 = vor.u32 %v4251, %v4252
        %v4254 = vsub.s32 4294967266, %v4249
        %v4255 = vadd.s32 %v4254, 127
        %v4256 = vshll.u32 %v4255, 23
        %v4257 = vor.u32 4788187, %v4256
        %v4258 = vand.u32 2147483647, %v4257
        %v4260 = vcvt.s32.f32 %v4253
        %v4261 = vmul.f32 %v4260, %v4258
        %v4262 = vxor.u32 %v4261, 2147483648
        %v4263 = vsel %vm4180, %v4262, %v4261
        %v4264 = vsub.s32 4, %v4240
        %v4265 = vsel %vm4180, %v4264, %v4240
        %v4266 = vsel %vm4179, %v2823, %v4263
        %v4267 = vsel %vm4179, 0, %v4265
        %v4268 = vcosq.f32.pop %v4266
        %v4269 = vsinq.f32.pop %v4266
        %vm4270 = vweird.f32 %v2823
        %v4271 = vadd.s32 %v4267, 3
        %v4272 = vand.u32 %v4271, 3
        %vm4273 = vcmp.lt.s32.totalorder %v4272, 2
        %vm4274 = vcmp.eq.s32.totalorder %v4272, 0
        %v4275 = vxor.u32 %v4269, 2147483648
        %v4276 = vsel %vm4274, %v4268, %v4275
        %vm4277 = vcmp.eq.s32.totalorder %v4272, 2
        %v4278 = vxor.u32 %v4268, 2147483648
        %v4279 = vsel %vm4277, %v4278, %v4269
        %v4280 = vsel %vm4273, %v4276, %v4279
        %v4281 = vsel %vm4270, nan, %v4280
        %v4282 = vand.u32 2147483647, %v2824
        %vm4283 = vcmp.le.f32.partialorder %v4282, 0.7853982
        %vm4284 = vcmp.lt.s32.totalorder %v2824, 0
        %v4285 = vand.u32 %v2824, 2139095040
        %v4286 = vshrl.u32 %v4285, 23
        %v4287 = vsub.s32 %v4286, 127
        %v4288 = vand.u32 2147483647, %v2824
        %v4289 = vand.u32 %v4288, 8388607
        %v4290 = vor.u32 %v4289, 8388608
        %v4291 = vsub.s32 0, %v4290
        %v4292 = vadd.s32 %v4287, 1
        %vm4293 = vcmp.gt.s32.totalorder %v4292, 0
        %v4294 = vsel %vm4293, %v4292, 0
        %v4295 = vshrl.u32 %v4294, 5
        %v4296 = vand.u32 %v4294, 31
        %v4297 = vsub.s32 32, %v4296
        %v4298 = vshrl.u32 683565275, %v4297
        %v4299 = vshll.u32 683565275, %v4296
        %v4300 = vshrl.u32 2475754826, %v4297
        %v4301 = vor.u32 %v4299, %v4300
        %v4302 = vshll.u32 2475754826, %v4296
        %v4303 = vshrl.u32 2131351028, %v4297
        %v4304 = vor.u32 %v4302, %v4303
        %v4305 = vshll.u32 2131351028, %v4296
        %v4306 = vshrl.u32 2102212464, %v4297
        %v4307 = vor.u32 %v4305, %v4306
        %v4308 = vshll.u32 2102212464, %v4296
        %v4309 = vshrl.u32 920167782, %v4297
        %v4310 = vor.u32 %v4308, %v4309
        %v4311 = vshll.u32 920167782, %v4296
        %v4312 = vshrl.u32 1326507024, %v4297
        %v4313 = vor.u32 %v4311, %v4312
        %vm4314 = vcmp.lt.s32.totalorder %v4295, 1
        %vm4315 = vcmp.lt.s32.totalorder %v4295, 2
        %vm4316 = vcmp.lt.s32.totalorder %v4295, 3
        %vm4317 = vcmp.lt.s32.totalorder %v4295, 4
        %v4318 = vsel %vm4314, %v4298, %v4301
        %v4319 = vsel %vm4317, %v4307, 2102212464
        %v4320 = vsel %vm4316, %v4304, %v4319
        %v4321 = vsel %vm4315, %v4318, %v4320
        %v4322 = vsel %vm4314, %v4301, %v4304
        %v4323 = vsel %vm4317, %v4310, 920167782
        %v4324 = vsel %vm4316, %v4307, %v4323
        %v4325 = vsel %vm4315, %v4322, %v4324
        %v4326 = vsel %vm4314, %v4304, %v4307
        %v4327 = vsel %vm4317, %v4313, 1326507024
        %v4328 = vsel %vm4316, %v4310, %v4327
        %v4329 = vsel %vm4315, %v4326, %v4328
        %v4330 = vshll.u32 %v4290, 8
        %v4331 = vmul.u32.u64.compose %v4330, %v4329
        %v4332 = vextract.low.u32 %v4331
        %v4333 = vextract.high.u32 %v4331
        %v4334 = vmul.u32.u64.compose %v4330, %v4325
        %v4335 = vextract.low.u32 %v4334
        %v4336 = vextract.high.u32 %v4334
        %v4337 = vmul.u32 %v4330, %v4321
        %v4338 = vadd.s32 %v4333, %v4335
        %vm4339 = vc.u32 %v4333, %v4335
        %v4340 = vadd.s32 %v4336, 1
        %v4341 = vsel %vm4339, %v4340, %v4336
        %v4342 = vadd.s32 %v4337, %v4341
        %v4343 = vadd.s32 %v4342, 536870912
        %v4344 = vshrl.u32 %v4343, 30
        %v4345 = vshll.u32 %v4344, 30
        %v4346 = vsub.s32 %v4342, %v4345
        %vm4347 = vcmp.lt.s32.totalorder %v4346, 0
        %v4348 = vsub.s32 0, %v4346
        %v4349 = vsel %vm4347, %v4348, %v4346
        %v4350 = vclz %v4349
        %v4351 = vsub.s32 %v4350, 2
        %vm4352 = vcmp.gt.s32.totalorder 0, %v4351
        %v4353 = vsel %vm4352, 0, %v4351
        %v4354 = vsub.s32 32, %v4353
        %v4355 = vshll.u32 %v4346, %v4353
        %v4356 = vshrl.u32 %v4338, %v4354
        %v4357 = vor.u32 %v4355, %v4356
        %v4358 = vsub.s32 4294967266, %v4353
        %v4359 = vadd.s32 %v4358, 127
        %v4360 = vshll.u32 %v4359, 23
        %v4361 = vor.u32 4788187, %v4360
        %v4362 = vand.u32 2147483647, %v4361
        %v4364 = vcvt.s32.f32 %v4357
        %v4365 = vmul.f32 %v4364, %v4362
        %v4366 = vxor.u32 %v4365, 2147483648
        %v4367 = vsel %vm4284, %v4366, %v4365
        %v4368 = vsub.s32 4, %v4344
        %v4369 = vsel %vm4284, %v4368, %v4344
        %v4370 = vsel %vm4283, %v2824, %v4367
        %v4371 = vsel %vm4283, 0, %v4369
        %v4372 = vcosq.f32.pop %v4370
        %v4373 = vsinq.f32.pop %v4370
        %vm4374 = vweird.f32 %v2824
        %v4375 = vadd.s32 %v4371, 3
        %v4376 = vand.u32 %v4375, 3
        %vm4377 = vcmp.lt.s32.totalorder %v4376, 2
        %vm4378 = vcmp.eq.s32.totalorder %v4376, 0
        %v4379 = vxor.u32 %v4373, 2147483648
        %v4380 = vsel %vm4378, %v4372, %v4379
        %vm4381 = vcmp.eq.s32.totalorder %v4376, 2
        %v4382 = vxor.u32 %v4372, 2147483648
        %v4383 = vsel %vm4381, %v4382, %v4373
        %v4384 = vsel %vm4377, %v4380, %v4383
        %v4385 = vsel %vm4374, nan, %v4384
        %v4386 = vand.u32 2147483647, %v2825
        %vm4387 = vcmp.le.f32.partialorder %v4386, 0.7853982
        %vm4388 = vcmp.lt.s32.totalorder %v2825, 0
        %v4389 = vand.u32 %v2825, 2139095040
        %v4390 = vshrl.u32 %v4389, 23
        %v4391 = vsub.s32 %v4390, 127
        %v4392 = vand.u32 2147483647, %v2825
        %v4393 = vand.u32 %v4392, 8388607
        %v4394 = vor.u32 %v4393, 8388608
        %v4395 = vsub.s32 0, %v4394
        %v4396 = vadd.s32 %v4391, 1
        %vm4397 = vcmp.gt.s32.totalorder %v4396, 0
        %v4398 = vsel %vm4397, %v4396, 0
        %v4399 = vshrl.u32 %v4398, 5
        %v4400 = vand.u32 %v4398, 31
        %v4401 = vsub.s32 32, %v4400
        %v4402 = vshrl.u32 683565275, %v4401
        %v4403 = vshll.u32 683565275, %v4400
        %v4404 = vshrl.u32 2475754826, %v4401
        %v4405 = vor.u32 %v4403, %v4404
        %v4406 = vshll.u32 2475754826, %v4400
        %v4407 = vshrl.u32 2131351028, %v4401
        %v4408 = vor.u32 %v4406, %v4407
        %v4409 = vshll.u32 2131351028, %v4400
        %v4410 = vshrl.u32 2102212464, %v4401
        %v4411 = vor.u32 %v4409, %v4410
        %v4412 = vshll.u32 2102212464, %v4400
        %v4413 = vshrl.u32 920167782, %v4401
        %v4414 = vor.u32 %v4412, %v4413
        %v4415 = vshll.u32 920167782, %v4400
        %v4416 = vshrl.u32 1326507024, %v4401
        %v4417 = vor.u32 %v4415, %v4416
        %vm4418 = vcmp.lt.s32.totalorder %v4399, 1
        %vm4419 = vcmp.lt.s32.totalorder %v4399, 2
        %vm4420 = vcmp.lt.s32.totalorder %v4399, 3
        %vm4421 = vcmp.lt.s32.totalorder %v4399, 4
        %v4422 = vsel %vm4418, %v4402, %v4405
        %v4423 = vsel %vm4421, %v4411, 2102212464
        %v4424 = vsel %vm4420, %v4408, %v4423
        %v4425 = vsel %vm4419, %v4422, %v4424
        %v4426 = vsel %vm4418, %v4405, %v4408
        %v4427 = vsel %vm4421, %v4414, 920167782
        %v4428 = vsel %vm4420, %v4411, %v4427
        %v4429 = vsel %vm4419, %v4426, %v4428
        %v4430 = vsel %vm4418, %v4408, %v4411
        %v4431 = vsel %vm4421, %v4417, 1326507024
        %v4432 = vsel %vm4420, %v4414, %v4431
        %v4433 = vsel %vm4419, %v4430, %v4432
        %v4434 = vshll.u32 %v4394, 8
        %v4435 = vmul.u32.u64.compose %v4434, %v4433
        %v4436 = vextract.low.u32 %v4435
        %v4437 = vextract.high.u32 %v4435
        %v4438 = vmul.u32.u64.compose %v4434, %v4429
        %v4439 = vextract.low.u32 %v4438
        %v4440 = vextract.high.u32 %v4438
        %v4441 = vmul.u32 %v4434, %v4425
        %v4442 = vadd.s32 %v4437, %v4439
        %vm4443 = vc.u32 %v4437, %v4439
        %v4444 = vadd.s32 %v4440, 1
        %v4445 = vsel %vm4443, %v4444, %v4440
        %v4446 = vadd.s32 %v4441, %v4445
        %v4447 = vadd.s32 %v4446, 536870912
        %v4448 = vshrl.u32 %v4447, 30
        %v4449 = vshll.u32 %v4448, 30
        %v4450 = vsub.s32 %v4446, %v4449
        %vm4451 = vcmp.lt.s32.totalorder %v4450, 0
        %v4452 = vsub.s32 0, %v4450
        %v4453 = vsel %vm4451, %v4452, %v4450
        %v4454 = vclz %v4453
        %v4455 = vsub.s32 %v4454, 2
        %vm4456 = vcmp.gt.s32.totalorder 0, %v4455
        %v4457 = vsel %vm4456, 0, %v4455
        %v4458 = vsub.s32 32, %v4457
        %v4459 = vshll.u32 %v4450, %v4457
        %v4460 = vshrl.u32 %v4442, %v4458
        %v4461 = vor.u32 %v4459, %v4460
        %v4462 = vsub.s32 4294967266, %v4457
        %v4463 = vadd.s32 %v4462, 127
        %v4464 = vshll.u32 %v4463, 23
        %v4465 = vor.u32 4788187, %v4464
        %v4466 = vand.u32 2147483647, %v4465
        %v4468 = vcvt.s32.f32 %v4461
        %v4469 = vmul.f32 %v4468, %v4466
        %v4470 = vxor.u32 %v4469, 2147483648
        %v4471 = vsel %vm4388, %v4470, %v4469
        %v4472 = vsub.s32 4, %v4448
        %v4473 = vsel %vm4388, %v4472, %v4448
        %v4474 = vsel %vm4387, %v2825, %v4471
        %v4475 = vsel %vm4387, 0, %v4473
        %v4476 = vcosq.f32.pop %v4474
        %v4477 = vsinq.f32.pop %v4474
        %vm4478 = vweird.f32 %v2825
        %v4479 = vadd.s32 %v4475, 3
        %v4480 = vand.u32 %v4479, 3
        %vm4481 = vcmp.lt.s32.totalorder %v4480, 2
        %vm4482 = vcmp.eq.s32.totalorder %v4480, 0
        %v4483 = vxor.u32 %v4477, 2147483648
        %v4484 = vsel %vm4482, %v4476, %v4483
        %vm4485 = vcmp.eq.s32.totalorder %v4480, 2
        %v4486 = vxor.u32 %v4476, 2147483648
        %v4487 = vsel %vm4485, %v4486, %v4477
        %v4488 = vsel %vm4481, %v4484, %v4487
        %v4489 = vsel %vm4478, nan, %v4488
        %v4490 = vld [vmem:[%s5] sm:$0xff]
        %v4491 = vld [vmem:[%s5 + $0x8] sm:$0xff]
        %v4492 = vld [vmem:[%s5 + $0x10] sm:$0xff]
        %v4493 = vld [vmem:[%s5 + $0x18] sm:$0xff]
        %v4494 = vld [vmem:[%s6] sm:$0xff]
        %v4495 = vld [vmem:[%s6 + $0x8] sm:$0xff]
        %v4496 = vld [vmem:[%s6 + $0x10] sm:$0xff]
        %v4497 = vld [vmem:[%s6 + $0x18] sm:$0xff]
        %4499 = vset.pattern.permute.xlu0 0
        %4500 = vperm.xlu0 %4499, %v4494
        %v4501 = vpop.permute.xlu0 %4500
        %4504 = vset.pattern.permute.xlu0 0
        %4505 = vperm.xlu0 %4504, %v4495
        %v4506 = vpop.permute.xlu0 %4505
        %4509 = vset.pattern.permute.xlu0 0
        %4510 = vperm.xlu0 %4509, %v4496
        %v4511 = vpop.permute.xlu0 %4510
        %4514 = vset.pattern.permute.xlu0 0
        %4515 = vperm.xlu0 %4514, %v4497
        %v4516 = vpop.permute.xlu0 %4515
        %v4519 = vsel %vm2619, %v4490, 0
        %v4522 = vsel %vm2619, %v4491, 0
        %v4525 = vsel %vm2619, %v4492, 0
        %v4528 = vsel %vm2619, %v4493, 0
        %4530 = vmatprep.subr.mxu0 0.0
        %4531 = vmatpush1.msra.mxu0 0.0
        %4532 = vmatprep.subr.mxu0 0.0
        %4533 = vmatpush1.msra.mxu0 0.0
        %4534 = vmatprep.subr.mxu0 0.0
        %4535 = vmatpush1.msra.mxu0 0.0
        %4536 = vmatprep.subr.mxu0 0.0
        %4537 = vmatpush1.msra.mxu0 0.0
        %4538 = vmatprep.subr.mxu0 0.0
        %4539 = vmatpush1.msra.mxu0 0.0
        %4540 = vmatprep.subr.mxu0 0.0
        %4541 = vmatpush1.msra.mxu0 0.0
        %4542 = vmatprep.subr.mxu0 0.0
        %4543 = vmatpush1.msra.mxu0 0.0
        %4544 = vmatprep.subr.mxu0 0.0
        %4545 = vmatpush1.msra.mxu0 0.0
        %4546 = vmatprep.subr.mxu0 0.0
        %4547 = vmatpush1.msra.mxu0 0.0
        %4548 = vmatprep.subr.mxu0 0.0
        %4549 = vmatpush1.msra.mxu0 0.0
        %4550 = vmatprep.subr.mxu0 0.0
        %4551 = vmatpush1.msra.mxu0 0.0
        %4552 = vmatprep.subr.mxu0 0.0
        %4553 = vmatpush1.msra.mxu0 0.0
        %4554 = vmatprep.subr.mxu0 %v4281
        %4555 = vmatpush1.msra.mxu0 %v4177
        %4556 = vmatprep.subr.mxu0 %v3865
        %4557 = vmatpush1.msra.mxu0 %v3761
        %4558 = vmatprep.subr.mxu0 %v3449
        %4559 = vmatpush1.msra.mxu0 %v3345
        %4560 = vmatprep.subr.mxu0 %v3033
        %4561 = vmatpush1.msra.mxu0 %v2929
        %4562 = vmatprep.subr.mxu0 0.0
        %4563 = vmatpush2.msra.mxu0 0.0
        %4564 = vmatprep.subr.mxu0 0.0
        %4565 = vmatpush2.msra.mxu0 0.0
        %4566 = vmatprep.subr.mxu0 0.0
        %4567 = vmatpush2.msra.mxu0 0.0
        %4568 = vmatprep.subr.mxu0 0.0
        %4569 = vmatpush2.msra.mxu0 0.0
        %4570 = vmatprep.subr.mxu0 0.0
        %4571 = vmatpush2.msra.mxu0 0.0
        %4572 = vmatprep.subr.mxu0 0.0
        %4573 = vmatpush2.msra.mxu0 0.0
        %4574 = vmatprep.subr.mxu0 0.0
        %4575 = vmatpush2.msra.mxu0 0.0
        %4576 = vmatprep.subr.mxu0 0.0
        %4577 = vmatpush2.msra.mxu0 0.0
        %4578 = vmatprep.subr.mxu0 0.0
        %4579 = vmatpush2.msra.mxu0 0.0
        %4580 = vmatprep.subr.mxu0 0.0
        %4581 = vmatpush2.msra.mxu0 0.0
        %4582 = vmatprep.subr.mxu0 0.0
        %4583 = vmatpush2.msra.mxu0 0.0
        %4584 = vmatprep.subr.mxu0 0.0
        %4585 = vmatpush2.msra.mxu0 0.0
        %4586 = vmatprep.subr.mxu0 0.0
        %4587 = vmatpush2.msra.mxu0 0.0
        %4588 = vmatprep.subr.mxu0 0.0
        %4589 = vmatpush2.msra.mxu0 0.0
        %4590 = vmatprep.subr.mxu0 0.0
        %4591 = vmatpush2.msra.mxu0 0.0
        %4592 = vmatprep.subr.mxu0 0.0
        %4593 = vmatpush2.msra.mxu0 0.0
        %4594 = vmatprep.mubr.f32.mxu0 0.0
        %4595 = vmatmul.mubr.f32.gmra.mxu0 %v4519
        %v4596 = vpop.f32.mrf.mxu0
        %v4597 = vadd.f32 %v4501, %v4596
        %v4598 = vpop.f32.mrf.mxu0
        %v4599 = vadd.f32 %v4501, %v4598
        %4600 = vmatprep.mubr.f32.mxu0 0.0
        %4601 = vmatmul.mubr.f32.gmra.mxu0 %v4522
        %v4602 = vpop.f32.mrf.mxu0
        %v4603 = vadd.f32 %v4506, %v4602
        %v4604 = vpop.f32.mrf.mxu0
        %v4605 = vadd.f32 %v4506, %v4604
        %4606 = vmatprep.mubr.f32.mxu0 0.0
        %4607 = vmatmul.mubr.f32.gmra.mxu0 %v4525
        %v4608 = vpop.f32.mrf.mxu0
        %v4609 = vadd.f32 %v4511, %v4608
        %v4610 = vpop.f32.mrf.mxu0
        %v4611 = vadd.f32 %v4511, %v4610
        %4612 = vmatprep.mubr.f32.mxu0 0.0
        %4613 = vmatmul.mubr.f32.gmra.mxu0 %v4528
        %v4614 = vpop.f32.mrf.mxu0
        %v4615 = vadd.f32 %v4516, %v4614
        %v4616 = vpop.f32.mrf.mxu0
        %v4617 = vadd.f32 %v4516, %v4616
        %4618 = vdwg.mxu0
        %4619 = vmatprep.subr.mxu0 0.0
        %4620 = vmatpush1.msra.mxu0 0.0
        %4621 = vmatprep.subr.mxu0 0.0
        %4622 = vmatpush1.msra.mxu0 0.0
        %4623 = vmatprep.subr.mxu0 0.0
        %4624 = vmatpush1.msra.mxu0 0.0
        %4625 = vmatprep.subr.mxu0 0.0
        %4626 = vmatpush1.msra.mxu0 0.0
        %4627 = vmatprep.subr.mxu0 0.0
        %4628 = vmatpush1.msra.mxu0 0.0
        %4629 = vmatprep.subr.mxu0 0.0
        %4630 = vmatpush1.msra.mxu0 0.0
        %4631 = vmatprep.subr.mxu0 0.0
        %4632 = vmatpush1.msra.mxu0 0.0
        %4633 = vmatprep.subr.mxu0 0.0
        %4634 = vmatpush1.msra.mxu0 0.0
        %4635 = vmatprep.subr.mxu0 0.0
        %4636 = vmatpush1.msra.mxu0 0.0
        %4637 = vmatprep.subr.mxu0 0.0
        %4638 = vmatpush1.msra.mxu0 0.0
        %4639 = vmatprep.subr.mxu0 0.0
        %4640 = vmatpush1.msra.mxu0 0.0
        %4641 = vmatprep.subr.mxu0 0.0
        %4642 = vmatpush1.msra.mxu0 0.0
        %4643 = vmatprep.subr.mxu0 %v4489
        %4644 = vmatpush1.msra.mxu0 %v4385
        %4645 = vmatprep.subr.mxu0 %v4073
        %4646 = vmatpush1.msra.mxu0 %v3969
        %4647 = vmatprep.subr.mxu0 %v3657
        %4648 = vmatpush1.msra.mxu0 %v3553
        %4649 = vmatprep.subr.mxu0 %v3241
        %4650 = vmatpush1.msra.mxu0 %v3137
        %4651 = vmatprep.subr.mxu0 0.0
        %4652 = vmatpush2.msra.mxu0 0.0
        %4653 = vmatprep.subr.mxu0 0.0
        %4654 = vmatpush2.msra.mxu0 0.0
        %4655 = vmatprep.subr.mxu0 0.0
        %4656 = vmatpush2.msra.mxu0 0.0
        %4657 = vmatprep.subr.mxu0 0.0
        %4658 = vmatpush2.msra.mxu0 0.0
        %4659 = vmatprep.subr.mxu0 0.0
        %4660 = vmatpush2.msra.mxu0 0.0
        %4661 = vmatprep.subr.mxu0 0.0
        %4662 = vmatpush2.msra.mxu0 0.0
        %4663 = vmatprep.subr.mxu0 0.0
        %4664 = vmatpush2.msra.mxu0 0.0
        %4665 = vmatprep.subr.mxu0 0.0
        %4666 = vmatpush2.msra.mxu0 0.0
        %4667 = vmatprep.subr.mxu0 0.0
        %4668 = vmatpush2.msra.mxu0 0.0
        %4669 = vmatprep.subr.mxu0 0.0
        %4670 = vmatpush2.msra.mxu0 0.0
        %4671 = vmatprep.subr.mxu0 0.0
        %4672 = vmatpush2.msra.mxu0 0.0
        %4673 = vmatprep.subr.mxu0 0.0
        %4674 = vmatpush2.msra.mxu0 0.0
        %4675 = vmatprep.subr.mxu0 0.0
        %4676 = vmatpush2.msra.mxu0 0.0
        %4677 = vmatprep.subr.mxu0 0.0
        %4678 = vmatpush2.msra.mxu0 0.0
        %4679 = vmatprep.subr.mxu0 0.0
        %4680 = vmatpush2.msra.mxu0 0.0
        %4681 = vmatprep.subr.mxu0 0.0
        %4682 = vmatpush2.msra.mxu0 0.0
        %4683 = vmatprep.mubr.f32.mxu0 0.0
        %4684 = vmatmul.mubr.f32.gmra.mxu0 %v4519
        %v4685 = vpop.f32.mrf.mxu0
        %v4686 = vadd.f32 %v4501, %v4685
        %v4687 = vpop.f32.mrf.mxu0
        %v4688 = vadd.f32 %v4501, %v4687
        %4689 = vmatprep.mubr.f32.mxu0 0.0
        %4690 = vmatmul.mubr.f32.gmra.mxu0 %v4522
        %v4691 = vpop.f32.mrf.mxu0
        %v4692 = vadd.f32 %v4506, %v4691
        %v4693 = vpop.f32.mrf.mxu0
        %v4694 = vadd.f32 %v4506, %v4693
        %4695 = vmatprep.mubr.f32.mxu0 0.0
        %4696 = vmatmul.mubr.f32.gmra.mxu0 %v4525
        %v4697 = vpop.f32.mrf.mxu0
        %v4698 = vadd.f32 %v4511, %v4697
        %v4699 = vpop.f32.mrf.mxu0
        %v4700 = vadd.f32 %v4511, %v4699
        %4701 = vmatprep.mubr.f32.mxu0 0.0
        %4702 = vmatmul.mubr.f32.gmra.mxu0 %v4528
        %v4703 = vpop.f32.mrf.mxu0
        %v4704 = vadd.f32 %v4516, %v4703
        %v4705 = vpop.f32.mrf.mxu0
        %v4706 = vadd.f32 %v4516, %v4705
        %4707 = vdwg.mxu0
        %v4708 = vmul.f32 %v4597, 30.0
        %v4709 = vmul.f32 %v4599, 30.0
        %v4710 = vmul.f32 %v4686, 30.0
        %v4711 = vmul.f32 %v4688, 30.0
        %v4712 = vmul.f32 %v4603, 30.0
        %v4713 = vmul.f32 %v4605, 30.0
        %v4714 = vmul.f32 %v4692, 30.0
        %v4715 = vmul.f32 %v4694, 30.0
        %v4716 = vmul.f32 %v4609, 30.0
        %v4717 = vmul.f32 %v4611, 30.0
        %v4718 = vmul.f32 %v4698, 30.0
        %v4719 = vmul.f32 %v4700, 30.0
        %v4720 = vmul.f32 %v4615, 30.0
        %v4721 = vmul.f32 %v4617, 30.0
        %v4722 = vmul.f32 %v4704, 30.0
        %v4723 = vmul.f32 %v4706, 30.0
        %v4724 = vand.u32 2147483647, %v4708
        %vm4725 = vcmp.le.f32.partialorder %v4724, 0.7853982
        %vm4726 = vcmp.lt.s32.totalorder %v4708, 0
        %v4727 = vand.u32 %v4708, 2139095040
        %v4728 = vshrl.u32 %v4727, 23
        %v4729 = vsub.s32 %v4728, 127
        %v4730 = vand.u32 2147483647, %v4708
        %v4731 = vand.u32 %v4730, 8388607
        %v4732 = vor.u32 %v4731, 8388608
        %v4733 = vsub.s32 0, %v4732
        %v4734 = vadd.s32 %v4729, 1
        %vm4735 = vcmp.gt.s32.totalorder %v4734, 0
        %v4736 = vsel %vm4735, %v4734, 0
        %v4737 = vshrl.u32 %v4736, 5
        %v4738 = vand.u32 %v4736, 31
        %v4739 = vsub.s32 32, %v4738
        %v4740 = vshrl.u32 683565275, %v4739
        %v4741 = vshll.u32 683565275, %v4738
        %v4742 = vshrl.u32 2475754826, %v4739
        %v4743 = vor.u32 %v4741, %v4742
        %v4744 = vshll.u32 2475754826, %v4738
        %v4745 = vshrl.u32 2131351028, %v4739
        %v4746 = vor.u32 %v4744, %v4745
        %v4747 = vshll.u32 2131351028, %v4738
        %v4748 = vshrl.u32 2102212464, %v4739
        %v4749 = vor.u32 %v4747, %v4748
        %v4750 = vshll.u32 2102212464, %v4738
        %v4751 = vshrl.u32 920167782, %v4739
        %v4752 = vor.u32 %v4750, %v4751
        %v4753 = vshll.u32 920167782, %v4738
        %v4754 = vshrl.u32 1326507024, %v4739
        %v4755 = vor.u32 %v4753, %v4754
        %vm4756 = vcmp.lt.s32.totalorder %v4737, 1
        %vm4757 = vcmp.lt.s32.totalorder %v4737, 2
        %vm4758 = vcmp.lt.s32.totalorder %v4737, 3
        %vm4759 = vcmp.lt.s32.totalorder %v4737, 4
        %v4760 = vsel %vm4756, %v4740, %v4743
        %v4761 = vsel %vm4759, %v4749, 2102212464
        %v4762 = vsel %vm4758, %v4746, %v4761
        %v4763 = vsel %vm4757, %v4760, %v4762
        %v4764 = vsel %vm4756, %v4743, %v4746
        %v4765 = vsel %vm4759, %v4752, 920167782
        %v4766 = vsel %vm4758, %v4749, %v4765
        %v4767 = vsel %vm4757, %v4764, %v4766
        %v4768 = vsel %vm4756, %v4746, %v4749
        %v4769 = vsel %vm4759, %v4755, 1326507024
        %v4770 = vsel %vm4758, %v4752, %v4769
        %v4771 = vsel %vm4757, %v4768, %v4770
        %v4772 = vshll.u32 %v4732, 8
        %v4773 = vmul.u32.u64.compose %v4772, %v4771
        %v4774 = vextract.low.u32 %v4773
        %v4775 = vextract.high.u32 %v4773
        %v4776 = vmul.u32.u64.compose %v4772, %v4767
        %v4777 = vextract.low.u32 %v4776
        %v4778 = vextract.high.u32 %v4776
        %v4779 = vmul.u32 %v4772, %v4763
        %v4780 = vadd.s32 %v4775, %v4777
        %vm4781 = vc.u32 %v4775, %v4777
        %v4782 = vadd.s32 %v4778, 1
        %v4783 = vsel %vm4781, %v4782, %v4778
        %v4784 = vadd.s32 %v4779, %v4783
        %v4785 = vadd.s32 %v4784, 536870912
        %v4786 = vshrl.u32 %v4785, 30
        %v4787 = vshll.u32 %v4786, 30
        %v4788 = vsub.s32 %v4784, %v4787
        %vm4789 = vcmp.lt.s32.totalorder %v4788, 0
        %v4790 = vsub.s32 0, %v4788
        %v4791 = vsel %vm4789, %v4790, %v4788
        %v4792 = vclz %v4791
        %v4793 = vsub.s32 %v4792, 2
        %vm4794 = vcmp.gt.s32.totalorder 0, %v4793
        %v4795 = vsel %vm4794, 0, %v4793
        %v4796 = vsub.s32 32, %v4795
        %v4797 = vshll.u32 %v4788, %v4795
        %v4798 = vshrl.u32 %v4780, %v4796
        %v4799 = vor.u32 %v4797, %v4798
        %v4800 = vsub.s32 4294967266, %v4795
        %v4801 = vadd.s32 %v4800, 127
        %v4802 = vshll.u32 %v4801, 23
        %v4803 = vor.u32 4788187, %v4802
        %v4804 = vand.u32 2147483647, %v4803
        %v4806 = vcvt.s32.f32 %v4799
        %v4807 = vmul.f32 %v4806, %v4804
        %v4808 = vxor.u32 %v4807, 2147483648
        %v4809 = vsel %vm4726, %v4808, %v4807
        %v4810 = vsub.s32 4, %v4786
        %v4811 = vsel %vm4726, %v4810, %v4786
        %v4812 = vsel %vm4725, %v4708, %v4809
        %v4813 = vsel %vm4725, 0, %v4811
        %v4814 = vcosq.f32.pop %v4812
        %v4815 = vsinq.f32.pop %v4812
        %vm4816 = vweird.f32 %v4708
        %v4817 = vadd.s32 %v4813, 3
        %v4818 = vand.u32 %v4817, 3
        %vm4819 = vcmp.lt.s32.totalorder %v4818, 2
        %vm4820 = vcmp.eq.s32.totalorder %v4818, 0
        %v4821 = vxor.u32 %v4815, 2147483648
        %v4822 = vsel %vm4820, %v4814, %v4821
        %vm4823 = vcmp.eq.s32.totalorder %v4818, 2
        %v4824 = vxor.u32 %v4814, 2147483648
        %v4825 = vsel %vm4823, %v4824, %v4815
        %v4826 = vsel %vm4819, %v4822, %v4825
        %v4827 = vsel %vm4816, nan, %v4826
        %v4828 = vand.u32 2147483647, %v4709
        %vm4829 = vcmp.le.f32.partialorder %v4828, 0.7853982
        %vm4830 = vcmp.lt.s32.totalorder %v4709, 0
        %v4831 = vand.u32 %v4709, 2139095040
        %v4832 = vshrl.u32 %v4831, 23
        %v4833 = vsub.s32 %v4832, 127
        %v4834 = vand.u32 2147483647, %v4709
        %v4835 = vand.u32 %v4834, 8388607
        %v4836 = vor.u32 %v4835, 8388608
        %v4837 = vsub.s32 0, %v4836
        %v4838 = vadd.s32 %v4833, 1
        %vm4839 = vcmp.gt.s32.totalorder %v4838, 0
        %v4840 = vsel %vm4839, %v4838, 0
        %v4841 = vshrl.u32 %v4840, 5
        %v4842 = vand.u32 %v4840, 31
        %v4843 = vsub.s32 32, %v4842
        %v4844 = vshrl.u32 683565275, %v4843
        %v4845 = vshll.u32 683565275, %v4842
        %v4846 = vshrl.u32 2475754826, %v4843
        %v4847 = vor.u32 %v4845, %v4846
        %v4848 = vshll.u32 2475754826, %v4842
        %v4849 = vshrl.u32 2131351028, %v4843
        %v4850 = vor.u32 %v4848, %v4849
        %v4851 = vshll.u32 2131351028, %v4842
        %v4852 = vshrl.u32 2102212464, %v4843
        %v4853 = vor.u32 %v4851, %v4852
        %v4854 = vshll.u32 2102212464, %v4842
        %v4855 = vshrl.u32 920167782, %v4843
        %v4856 = vor.u32 %v4854, %v4855
        %v4857 = vshll.u32 920167782, %v4842
        %v4858 = vshrl.u32 1326507024, %v4843
        %v4859 = vor.u32 %v4857, %v4858
        %vm4860 = vcmp.lt.s32.totalorder %v4841, 1
        %vm4861 = vcmp.lt.s32.totalorder %v4841, 2
        %vm4862 = vcmp.lt.s32.totalorder %v4841, 3
        %vm4863 = vcmp.lt.s32.totalorder %v4841, 4
        %v4864 = vsel %vm4860, %v4844, %v4847
        %v4865 = vsel %vm4863, %v4853, 2102212464
        %v4866 = vsel %vm4862, %v4850, %v4865
        %v4867 = vsel %vm4861, %v4864, %v4866
        %v4868 = vsel %vm4860, %v4847, %v4850
        %v4869 = vsel %vm4863, %v4856, 920167782
        %v4870 = vsel %vm4862, %v4853, %v4869
        %v4871 = vsel %vm4861, %v4868, %v4870
        %v4872 = vsel %vm4860, %v4850, %v4853
        %v4873 = vsel %vm4863, %v4859, 1326507024
        %v4874 = vsel %vm4862, %v4856, %v4873
        %v4875 = vsel %vm4861, %v4872, %v4874
        %v4876 = vshll.u32 %v4836, 8
        %v4877 = vmul.u32.u64.compose %v4876, %v4875
        %v4878 = vextract.low.u32 %v4877
        %v4879 = vextract.high.u32 %v4877
        %v4880 = vmul.u32.u64.compose %v4876, %v4871
        %v4881 = vextract.low.u32 %v4880
        %v4882 = vextract.high.u32 %v4880
        %v4883 = vmul.u32 %v4876, %v4867
        %v4884 = vadd.s32 %v4879, %v4881
        %vm4885 = vc.u32 %v4879, %v4881
        %v4886 = vadd.s32 %v4882, 1
        %v4887 = vsel %vm4885, %v4886, %v4882
        %v4888 = vadd.s32 %v4883, %v4887
        %v4889 = vadd.s32 %v4888, 536870912
        %v4890 = vshrl.u32 %v4889, 30
        %v4891 = vshll.u32 %v4890, 30
        %v4892 = vsub.s32 %v4888, %v4891
        %vm4893 = vcmp.lt.s32.totalorder %v4892, 0
        %v4894 = vsub.s32 0, %v4892
        %v4895 = vsel %vm4893, %v4894, %v4892
        %v4896 = vclz %v4895
        %v4897 = vsub.s32 %v4896, 2
        %vm4898 = vcmp.gt.s32.totalorder 0, %v4897
        %v4899 = vsel %vm4898, 0, %v4897
        %v4900 = vsub.s32 32, %v4899
        %v4901 = vshll.u32 %v4892, %v4899
        %v4902 = vshrl.u32 %v4884, %v4900
        %v4903 = vor.u32 %v4901, %v4902
        %v4904 = vsub.s32 4294967266, %v4899
        %v4905 = vadd.s32 %v4904, 127
        %v4906 = vshll.u32 %v4905, 23
        %v4907 = vor.u32 4788187, %v4906
        %v4908 = vand.u32 2147483647, %v4907
        %v4910 = vcvt.s32.f32 %v4903
        %v4911 = vmul.f32 %v4910, %v4908
        %v4912 = vxor.u32 %v4911, 2147483648
        %v4913 = vsel %vm4830, %v4912, %v4911
        %v4914 = vsub.s32 4, %v4890
        %v4915 = vsel %vm4830, %v4914, %v4890
        %v4916 = vsel %vm4829, %v4709, %v4913
        %v4917 = vsel %vm4829, 0, %v4915
        %v4918 = vcosq.f32.pop %v4916
        %v4919 = vsinq.f32.pop %v4916
        %vm4920 = vweird.f32 %v4709
        %v4921 = vadd.s32 %v4917, 3
        %v4922 = vand.u32 %v4921, 3
        %vm4923 = vcmp.lt.s32.totalorder %v4922, 2
        %vm4924 = vcmp.eq.s32.totalorder %v4922, 0
        %v4925 = vxor.u32 %v4919, 2147483648
        %v4926 = vsel %vm4924, %v4918, %v4925
        %vm4927 = vcmp.eq.s32.totalorder %v4922, 2
        %v4928 = vxor.u32 %v4918, 2147483648
        %v4929 = vsel %vm4927, %v4928, %v4919
        %v4930 = vsel %vm4923, %v4926, %v4929
        %v4931 = vsel %vm4920, nan, %v4930
        %v4932 = vand.u32 2147483647, %v4710
        %vm4933 = vcmp.le.f32.partialorder %v4932, 0.7853982
        %vm4934 = vcmp.lt.s32.totalorder %v4710, 0
        %v4935 = vand.u32 %v4710, 2139095040
        %v4936 = vshrl.u32 %v4935, 23
        %v4937 = vsub.s32 %v4936, 127
        %v4938 = vand.u32 2147483647, %v4710
        %v4939 = vand.u32 %v4938, 8388607
        %v4940 = vor.u32 %v4939, 8388608
        %v4941 = vsub.s32 0, %v4940
        %v4942 = vadd.s32 %v4937, 1
        %vm4943 = vcmp.gt.s32.totalorder %v4942, 0
        %v4944 = vsel %vm4943, %v4942, 0
        %v4945 = vshrl.u32 %v4944, 5
        %v4946 = vand.u32 %v4944, 31
        %v4947 = vsub.s32 32, %v4946
        %v4948 = vshrl.u32 683565275, %v4947
        %v4949 = vshll.u32 683565275, %v4946
        %v4950 = vshrl.u32 2475754826, %v4947
        %v4951 = vor.u32 %v4949, %v4950
        %v4952 = vshll.u32 2475754826, %v4946
        %v4953 = vshrl.u32 2131351028, %v4947
        %v4954 = vor.u32 %v4952, %v4953
        %v4955 = vshll.u32 2131351028, %v4946
        %v4956 = vshrl.u32 2102212464, %v4947
        %v4957 = vor.u32 %v4955, %v4956
        %v4958 = vshll.u32 2102212464, %v4946
        %v4959 = vshrl.u32 920167782, %v4947
        %v4960 = vor.u32 %v4958, %v4959
        %v4961 = vshll.u32 920167782, %v4946
        %v4962 = vshrl.u32 1326507024, %v4947
        %v4963 = vor.u32 %v4961, %v4962
        %vm4964 = vcmp.lt.s32.totalorder %v4945, 1
        %vm4965 = vcmp.lt.s32.totalorder %v4945, 2
        %vm4966 = vcmp.lt.s32.totalorder %v4945, 3
        %vm4967 = vcmp.lt.s32.totalorder %v4945, 4
        %v4968 = vsel %vm4964, %v4948, %v4951
        %v4969 = vsel %vm4967, %v4957, 2102212464
        %v4970 = vsel %vm4966, %v4954, %v4969
        %v4971 = vsel %vm4965, %v4968, %v4970
        %v4972 = vsel %vm4964, %v4951, %v4954
        %v4973 = vsel %vm4967, %v4960, 920167782
        %v4974 = vsel %vm4966, %v4957, %v4973
        %v4975 = vsel %vm4965, %v4972, %v4974
        %v4976 = vsel %vm4964, %v4954, %v4957
        %v4977 = vsel %vm4967, %v4963, 1326507024
        %v4978 = vsel %vm4966, %v4960, %v4977
        %v4979 = vsel %vm4965, %v4976, %v4978
        %v4980 = vshll.u32 %v4940, 8
        %v4981 = vmul.u32.u64.compose %v4980, %v4979
        %v4982 = vextract.low.u32 %v4981
        %v4983 = vextract.high.u32 %v4981
        %v4984 = vmul.u32.u64.compose %v4980, %v4975
        %v4985 = vextract.low.u32 %v4984
        %v4986 = vextract.high.u32 %v4984
        %v4987 = vmul.u32 %v4980, %v4971
        %v4988 = vadd.s32 %v4983, %v4985
        %vm4989 = vc.u32 %v4983, %v4985
        %v4990 = vadd.s32 %v4986, 1
        %v4991 = vsel %vm4989, %v4990, %v4986
        %v4992 = vadd.s32 %v4987, %v4991
        %v4993 = vadd.s32 %v4992, 536870912
        %v4994 = vshrl.u32 %v4993, 30
        %v4995 = vshll.u32 %v4994, 30
        %v4996 = vsub.s32 %v4992, %v4995
        %vm4997 = vcmp.lt.s32.totalorder %v4996, 0
        %v4998 = vsub.s32 0, %v4996
        %v4999 = vsel %vm4997, %v4998, %v4996
        %v5000 = vclz %v4999
        %v5001 = vsub.s32 %v5000, 2
        %vm5002 = vcmp.gt.s32.totalorder 0, %v5001
        %v5003 = vsel %vm5002, 0, %v5001
        %v5004 = vsub.s32 32, %v5003
        %v5005 = vshll.u32 %v4996, %v5003
        %v5006 = vshrl.u32 %v4988, %v5004
        %v5007 = vor.u32 %v5005, %v5006
        %v5008 = vsub.s32 4294967266, %v5003
        %v5009 = vadd.s32 %v5008, 127
        %v5010 = vshll.u32 %v5009, 23
        %v5011 = vor.u32 4788187, %v5010
        %v5012 = vand.u32 2147483647, %v5011
        %v5014 = vcvt.s32.f32 %v5007
        %v5015 = vmul.f32 %v5014, %v5012
        %v5016 = vxor.u32 %v5015, 2147483648
        %v5017 = vsel %vm4934, %v5016, %v5015
        %v5018 = vsub.s32 4, %v4994
        %v5019 = vsel %vm4934, %v5018, %v4994
        %v5020 = vsel %vm4933, %v4710, %v5017
        %v5021 = vsel %vm4933, 0, %v5019
        %v5022 = vcosq.f32.pop %v5020
        %v5023 = vsinq.f32.pop %v5020
        %vm5024 = vweird.f32 %v4710
        %v5025 = vadd.s32 %v5021, 3
        %v5026 = vand.u32 %v5025, 3
        %vm5027 = vcmp.lt.s32.totalorder %v5026, 2
        %vm5028 = vcmp.eq.s32.totalorder %v5026, 0
        %v5029 = vxor.u32 %v5023, 2147483648
        %v5030 = vsel %vm5028, %v5022, %v5029
        %vm5031 = vcmp.eq.s32.totalorder %v5026, 2
        %v5032 = vxor.u32 %v5022, 2147483648
        %v5033 = vsel %vm5031, %v5032, %v5023
        %v5034 = vsel %vm5027, %v5030, %v5033
        %v5035 = vsel %vm5024, nan, %v5034
        %v5036 = vand.u32 2147483647, %v4711
        %vm5037 = vcmp.le.f32.partialorder %v5036, 0.7853982
        %vm5038 = vcmp.lt.s32.totalorder %v4711, 0
        %v5039 = vand.u32 %v4711, 2139095040
        %v5040 = vshrl.u32 %v5039, 23
        %v5041 = vsub.s32 %v5040, 127
        %v5042 = vand.u32 2147483647, %v4711
        %v5043 = vand.u32 %v5042, 8388607
        %v5044 = vor.u32 %v5043, 8388608
        %v5045 = vsub.s32 0, %v5044
        %v5046 = vadd.s32 %v5041, 1
        %vm5047 = vcmp.gt.s32.totalorder %v5046, 0
        %v5048 = vsel %vm5047, %v5046, 0
        %v5049 = vshrl.u32 %v5048, 5
        %v5050 = vand.u32 %v5048, 31
        %v5051 = vsub.s32 32, %v5050
        %v5052 = vshrl.u32 683565275, %v5051
        %v5053 = vshll.u32 683565275, %v5050
        %v5054 = vshrl.u32 2475754826, %v5051
        %v5055 = vor.u32 %v5053, %v5054
        %v5056 = vshll.u32 2475754826, %v5050
        %v5057 = vshrl.u32 2131351028, %v5051
        %v5058 = vor.u32 %v5056, %v5057
        %v5059 = vshll.u32 2131351028, %v5050
        %v5060 = vshrl.u32 2102212464, %v5051
        %v5061 = vor.u32 %v5059, %v5060
        %v5062 = vshll.u32 2102212464, %v5050
        %v5063 = vshrl.u32 920167782, %v5051
        %v5064 = vor.u32 %v5062, %v5063
        %v5065 = vshll.u32 920167782, %v5050
        %v5066 = vshrl.u32 1326507024, %v5051
        %v5067 = vor.u32 %v5065, %v5066
        %vm5068 = vcmp.lt.s32.totalorder %v5049, 1
        %vm5069 = vcmp.lt.s32.totalorder %v5049, 2
        %vm5070 = vcmp.lt.s32.totalorder %v5049, 3
        %vm5071 = vcmp.lt.s32.totalorder %v5049, 4
        %v5072 = vsel %vm5068, %v5052, %v5055
        %v5073 = vsel %vm5071, %v5061, 2102212464
        %v5074 = vsel %vm5070, %v5058, %v5073
        %v5075 = vsel %vm5069, %v5072, %v5074
        %v5076 = vsel %vm5068, %v5055, %v5058
        %v5077 = vsel %vm5071, %v5064, 920167782
        %v5078 = vsel %vm5070, %v5061, %v5077
        %v5079 = vsel %vm5069, %v5076, %v5078
        %v5080 = vsel %vm5068, %v5058, %v5061
        %v5081 = vsel %vm5071, %v5067, 1326507024
        %v5082 = vsel %vm5070, %v5064, %v5081
        %v5083 = vsel %vm5069, %v5080, %v5082
        %v5084 = vshll.u32 %v5044, 8
        %v5085 = vmul.u32.u64.compose %v5084, %v5083
        %v5086 = vextract.low.u32 %v5085
        %v5087 = vextract.high.u32 %v5085
        %v5088 = vmul.u32.u64.compose %v5084, %v5079
        %v5089 = vextract.low.u32 %v5088
        %v5090 = vextract.high.u32 %v5088
        %v5091 = vmul.u32 %v5084, %v5075
        %v5092 = vadd.s32 %v5087, %v5089
        %vm5093 = vc.u32 %v5087, %v5089
        %v5094 = vadd.s32 %v5090, 1
        %v5095 = vsel %vm5093, %v5094, %v5090
        %v5096 = vadd.s32 %v5091, %v5095
        %v5097 = vadd.s32 %v5096, 536870912
        %v5098 = vshrl.u32 %v5097, 30
        %v5099 = vshll.u32 %v5098, 30
        %v5100 = vsub.s32 %v5096, %v5099
        %vm5101 = vcmp.lt.s32.totalorder %v5100, 0
        %v5102 = vsub.s32 0, %v5100
        %v5103 = vsel %vm5101, %v5102, %v5100
        %v5104 = vclz %v5103
        %v5105 = vsub.s32 %v5104, 2
        %vm5106 = vcmp.gt.s32.totalorder 0, %v5105
        %v5107 = vsel %vm5106, 0, %v5105
        %v5108 = vsub.s32 32, %v5107
        %v5109 = vshll.u32 %v5100, %v5107
        %v5110 = vshrl.u32 %v5092, %v5108
        %v5111 = vor.u32 %v5109, %v5110
        %v5112 = vsub.s32 4294967266, %v5107
        %v5113 = vadd.s32 %v5112, 127
        %v5114 = vshll.u32 %v5113, 23
        %v5115 = vor.u32 4788187, %v5114
        %v5116 = vand.u32 2147483647, %v5115
        %v5118 = vcvt.s32.f32 %v5111
        %v5119 = vmul.f32 %v5118, %v5116
        %v5120 = vxor.u32 %v5119, 2147483648
        %v5121 = vsel %vm5038, %v5120, %v5119
        %v5122 = vsub.s32 4, %v5098
        %v5123 = vsel %vm5038, %v5122, %v5098
        %v5124 = vsel %vm5037, %v4711, %v5121
        %v5125 = vsel %vm5037, 0, %v5123
        %v5126 = vcosq.f32.pop %v5124
        %v5127 = vsinq.f32.pop %v5124
        %vm5128 = vweird.f32 %v4711
        %v5129 = vadd.s32 %v5125, 3
        %v5130 = vand.u32 %v5129, 3
        %vm5131 = vcmp.lt.s32.totalorder %v5130, 2
        %vm5132 = vcmp.eq.s32.totalorder %v5130, 0
        %v5133 = vxor.u32 %v5127, 2147483648
        %v5134 = vsel %vm5132, %v5126, %v5133
        %vm5135 = vcmp.eq.s32.totalorder %v5130, 2
        %v5136 = vxor.u32 %v5126, 2147483648
        %v5137 = vsel %vm5135, %v5136, %v5127
        %v5138 = vsel %vm5131, %v5134, %v5137
        %v5139 = vsel %vm5128, nan, %v5138
        %v5140 = vand.u32 2147483647, %v4712
        %vm5141 = vcmp.le.f32.partialorder %v5140, 0.7853982
        %vm5142 = vcmp.lt.s32.totalorder %v4712, 0
        %v5143 = vand.u32 %v4712, 2139095040
        %v5144 = vshrl.u32 %v5143, 23
        %v5145 = vsub.s32 %v5144, 127
        %v5146 = vand.u32 2147483647, %v4712
        %v5147 = vand.u32 %v5146, 8388607
        %v5148 = vor.u32 %v5147, 8388608
        %v5149 = vsub.s32 0, %v5148
        %v5150 = vadd.s32 %v5145, 1
        %vm5151 = vcmp.gt.s32.totalorder %v5150, 0
        %v5152 = vsel %vm5151, %v5150, 0
        %v5153 = vshrl.u32 %v5152, 5
        %v5154 = vand.u32 %v5152, 31
        %v5155 = vsub.s32 32, %v5154
        %v5156 = vshrl.u32 683565275, %v5155
        %v5157 = vshll.u32 683565275, %v5154
        %v5158 = vshrl.u32 2475754826, %v5155
        %v5159 = vor.u32 %v5157, %v5158
        %v5160 = vshll.u32 2475754826, %v5154
        %v5161 = vshrl.u32 2131351028, %v5155
        %v5162 = vor.u32 %v5160, %v5161
        %v5163 = vshll.u32 2131351028, %v5154
        %v5164 = vshrl.u32 2102212464, %v5155
        %v5165 = vor.u32 %v5163, %v5164
        %v5166 = vshll.u32 2102212464, %v5154
        %v5167 = vshrl.u32 920167782, %v5155
        %v5168 = vor.u32 %v5166, %v5167
        %v5169 = vshll.u32 920167782, %v5154
        %v5170 = vshrl.u32 1326507024, %v5155
        %v5171 = vor.u32 %v5169, %v5170
        %vm5172 = vcmp.lt.s32.totalorder %v5153, 1
        %vm5173 = vcmp.lt.s32.totalorder %v5153, 2
        %vm5174 = vcmp.lt.s32.totalorder %v5153, 3
        %vm5175 = vcmp.lt.s32.totalorder %v5153, 4
        %v5176 = vsel %vm5172, %v5156, %v5159
        %v5177 = vsel %vm5175, %v5165, 2102212464
        %v5178 = vsel %vm5174, %v5162, %v5177
        %v5179 = vsel %vm5173, %v5176, %v5178
        %v5180 = vsel %vm5172, %v5159, %v5162
        %v5181 = vsel %vm5175, %v5168, 920167782
        %v5182 = vsel %vm5174, %v5165, %v5181
        %v5183 = vsel %vm5173, %v5180, %v5182
        %v5184 = vsel %vm5172, %v5162, %v5165
        %v5185 = vsel %vm5175, %v5171, 1326507024
        %v5186 = vsel %vm5174, %v5168, %v5185
        %v5187 = vsel %vm5173, %v5184, %v5186
        %v5188 = vshll.u32 %v5148, 8
        %v5189 = vmul.u32.u64.compose %v5188, %v5187
        %v5190 = vextract.low.u32 %v5189
        %v5191 = vextract.high.u32 %v5189
        %v5192 = vmul.u32.u64.compose %v5188, %v5183
        %v5193 = vextract.low.u32 %v5192
        %v5194 = vextract.high.u32 %v5192
        %v5195 = vmul.u32 %v5188, %v5179
        %v5196 = vadd.s32 %v5191, %v5193
        %vm5197 = vc.u32 %v5191, %v5193
        %v5198 = vadd.s32 %v5194, 1
        %v5199 = vsel %vm5197, %v5198, %v5194
        %v5200 = vadd.s32 %v5195, %v5199
        %v5201 = vadd.s32 %v5200, 536870912
        %v5202 = vshrl.u32 %v5201, 30
        %v5203 = vshll.u32 %v5202, 30
        %v5204 = vsub.s32 %v5200, %v5203
        %vm5205 = vcmp.lt.s32.totalorder %v5204, 0
        %v5206 = vsub.s32 0, %v5204
        %v5207 = vsel %vm5205, %v5206, %v5204
        %v5208 = vclz %v5207
        %v5209 = vsub.s32 %v5208, 2
        %vm5210 = vcmp.gt.s32.totalorder 0, %v5209
        %v5211 = vsel %vm5210, 0, %v5209
        %v5212 = vsub.s32 32, %v5211
        %v5213 = vshll.u32 %v5204, %v5211
        %v5214 = vshrl.u32 %v5196, %v5212
        %v5215 = vor.u32 %v5213, %v5214
        %v5216 = vsub.s32 4294967266, %v5211
        %v5217 = vadd.s32 %v5216, 127
        %v5218 = vshll.u32 %v5217, 23
        %v5219 = vor.u32 4788187, %v5218
        %v5220 = vand.u32 2147483647, %v5219
        %v5222 = vcvt.s32.f32 %v5215
        %v5223 = vmul.f32 %v5222, %v5220
        %v5224 = vxor.u32 %v5223, 2147483648
        %v5225 = vsel %vm5142, %v5224, %v5223
        %v5226 = vsub.s32 4, %v5202
        %v5227 = vsel %vm5142, %v5226, %v5202
        %v5228 = vsel %vm5141, %v4712, %v5225
        %v5229 = vsel %vm5141, 0, %v5227
        %v5230 = vcosq.f32.pop %v5228
        %v5231 = vsinq.f32.pop %v5228
        %vm5232 = vweird.f32 %v4712
        %v5233 = vadd.s32 %v5229, 3
        %v5234 = vand.u32 %v5233, 3
        %vm5235 = vcmp.lt.s32.totalorder %v5234, 2
        %vm5236 = vcmp.eq.s32.totalorder %v5234, 0
        %v5237 = vxor.u32 %v5231, 2147483648
        %v5238 = vsel %vm5236, %v5230, %v5237
        %vm5239 = vcmp.eq.s32.totalorder %v5234, 2
        %v5240 = vxor.u32 %v5230, 2147483648
        %v5241 = vsel %vm5239, %v5240, %v5231
        %v5242 = vsel %vm5235, %v5238, %v5241
        %v5243 = vsel %vm5232, nan, %v5242
        %v5244 = vand.u32 2147483647, %v4713
        %vm5245 = vcmp.le.f32.partialorder %v5244, 0.7853982
        %vm5246 = vcmp.lt.s32.totalorder %v4713, 0
        %v5247 = vand.u32 %v4713, 2139095040
        %v5248 = vshrl.u32 %v5247, 23
        %v5249 = vsub.s32 %v5248, 127
        %v5250 = vand.u32 2147483647, %v4713
        %v5251 = vand.u32 %v5250, 8388607
        %v5252 = vor.u32 %v5251, 8388608
        %v5253 = vsub.s32 0, %v5252
        %v5254 = vadd.s32 %v5249, 1
        %vm5255 = vcmp.gt.s32.totalorder %v5254, 0
        %v5256 = vsel %vm5255, %v5254, 0
        %v5257 = vshrl.u32 %v5256, 5
        %v5258 = vand.u32 %v5256, 31
        %v5259 = vsub.s32 32, %v5258
        %v5260 = vshrl.u32 683565275, %v5259
        %v5261 = vshll.u32 683565275, %v5258
        %v5262 = vshrl.u32 2475754826, %v5259
        %v5263 = vor.u32 %v5261, %v5262
        %v5264 = vshll.u32 2475754826, %v5258
        %v5265 = vshrl.u32 2131351028, %v5259
        %v5266 = vor.u32 %v5264, %v5265
        %v5267 = vshll.u32 2131351028, %v5258
        %v5268 = vshrl.u32 2102212464, %v5259
        %v5269 = vor.u32 %v5267, %v5268
        %v5270 = vshll.u32 2102212464, %v5258
        %v5271 = vshrl.u32 920167782, %v5259
        %v5272 = vor.u32 %v5270, %v5271
        %v5273 = vshll.u32 920167782, %v5258
        %v5274 = vshrl.u32 1326507024, %v5259
        %v5275 = vor.u32 %v5273, %v5274
        %vm5276 = vcmp.lt.s32.totalorder %v5257, 1
        %vm5277 = vcmp.lt.s32.totalorder %v5257, 2
        %vm5278 = vcmp.lt.s32.totalorder %v5257, 3
        %vm5279 = vcmp.lt.s32.totalorder %v5257, 4
        %v5280 = vsel %vm5276, %v5260, %v5263
        %v5281 = vsel %vm5279, %v5269, 2102212464
        %v5282 = vsel %vm5278, %v5266, %v5281
        %v5283 = vsel %vm5277, %v5280, %v5282
        %v5284 = vsel %vm5276, %v5263, %v5266
        %v5285 = vsel %vm5279, %v5272, 920167782
        %v5286 = vsel %vm5278, %v5269, %v5285
        %v5287 = vsel %vm5277, %v5284, %v5286
        %v5288 = vsel %vm5276, %v5266, %v5269
        %v5289 = vsel %vm5279, %v5275, 1326507024
        %v5290 = vsel %vm5278, %v5272, %v5289
        %v5291 = vsel %vm5277, %v5288, %v5290
        %v5292 = vshll.u32 %v5252, 8
        %v5293 = vmul.u32.u64.compose %v5292, %v5291
        %v5294 = vextract.low.u32 %v5293
        %v5295 = vextract.high.u32 %v5293
        %v5296 = vmul.u32.u64.compose %v5292, %v5287
        %v5297 = vextract.low.u32 %v5296
        %v5298 = vextract.high.u32 %v5296
        %v5299 = vmul.u32 %v5292, %v5283
        %v5300 = vadd.s32 %v5295, %v5297
        %vm5301 = vc.u32 %v5295, %v5297
        %v5302 = vadd.s32 %v5298, 1
        %v5303 = vsel %vm5301, %v5302, %v5298
        %v5304 = vadd.s32 %v5299, %v5303
        %v5305 = vadd.s32 %v5304, 536870912
        %v5306 = vshrl.u32 %v5305, 30
        %v5307 = vshll.u32 %v5306, 30
        %v5308 = vsub.s32 %v5304, %v5307
        %vm5309 = vcmp.lt.s32.totalorder %v5308, 0
        %v5310 = vsub.s32 0, %v5308
        %v5311 = vsel %vm5309, %v5310, %v5308
        %v5312 = vclz %v5311
        %v5313 = vsub.s32 %v5312, 2
        %vm5314 = vcmp.gt.s32.totalorder 0, %v5313
        %v5315 = vsel %vm5314, 0, %v5313
        %v5316 = vsub.s32 32, %v5315
        %v5317 = vshll.u32 %v5308, %v5315
        %v5318 = vshrl.u32 %v5300, %v5316
        %v5319 = vor.u32 %v5317, %v5318
        %v5320 = vsub.s32 4294967266, %v5315
        %v5321 = vadd.s32 %v5320, 127
        %v5322 = vshll.u32 %v5321, 23
        %v5323 = vor.u32 4788187, %v5322
        %v5324 = vand.u32 2147483647, %v5323
        %v5326 = vcvt.s32.f32 %v5319
        %v5327 = vmul.f32 %v5326, %v5324
        %v5328 = vxor.u32 %v5327, 2147483648
        %v5329 = vsel %vm5246, %v5328, %v5327
        %v5330 = vsub.s32 4, %v5306
        %v5331 = vsel %vm5246, %v5330, %v5306
        %v5332 = vsel %vm5245, %v4713, %v5329
        %v5333 = vsel %vm5245, 0, %v5331
        %v5334 = vcosq.f32.pop %v5332
        %v5335 = vsinq.f32.pop %v5332
        %vm5336 = vweird.f32 %v4713
        %v5337 = vadd.s32 %v5333, 3
        %v5338 = vand.u32 %v5337, 3
        %vm5339 = vcmp.lt.s32.totalorder %v5338, 2
        %vm5340 = vcmp.eq.s32.totalorder %v5338, 0
        %v5341 = vxor.u32 %v5335, 2147483648
        %v5342 = vsel %vm5340, %v5334, %v5341
        %vm5343 = vcmp.eq.s32.totalorder %v5338, 2
        %v5344 = vxor.u32 %v5334, 2147483648
        %v5345 = vsel %vm5343, %v5344, %v5335
        %v5346 = vsel %vm5339, %v5342, %v5345
        %v5347 = vsel %vm5336, nan, %v5346
        %v5348 = vand.u32 2147483647, %v4714
        %vm5349 = vcmp.le.f32.partialorder %v5348, 0.7853982
        %vm5350 = vcmp.lt.s32.totalorder %v4714, 0
        %v5351 = vand.u32 %v4714, 2139095040
        %v5352 = vshrl.u32 %v5351, 23
        %v5353 = vsub.s32 %v5352, 127
        %v5354 = vand.u32 2147483647, %v4714
        %v5355 = vand.u32 %v5354, 8388607
        %v5356 = vor.u32 %v5355, 8388608
        %v5357 = vsub.s32 0, %v5356
        %v5358 = vadd.s32 %v5353, 1
        %vm5359 = vcmp.gt.s32.totalorder %v5358, 0
        %v5360 = vsel %vm5359, %v5358, 0
        %v5361 = vshrl.u32 %v5360, 5
        %v5362 = vand.u32 %v5360, 31
        %v5363 = vsub.s32 32, %v5362
        %v5364 = vshrl.u32 683565275, %v5363
        %v5365 = vshll.u32 683565275, %v5362
        %v5366 = vshrl.u32 2475754826, %v5363
        %v5367 = vor.u32 %v5365, %v5366
        %v5368 = vshll.u32 2475754826, %v5362
        %v5369 = vshrl.u32 2131351028, %v5363
        %v5370 = vor.u32 %v5368, %v5369
        %v5371 = vshll.u32 2131351028, %v5362
        %v5372 = vshrl.u32 2102212464, %v5363
        %v5373 = vor.u32 %v5371, %v5372
        %v5374 = vshll.u32 2102212464, %v5362
        %v5375 = vshrl.u32 920167782, %v5363
        %v5376 = vor.u32 %v5374, %v5375
        %v5377 = vshll.u32 920167782, %v5362
        %v5378 = vshrl.u32 1326507024, %v5363
        %v5379 = vor.u32 %v5377, %v5378
        %vm5380 = vcmp.lt.s32.totalorder %v5361, 1
        %vm5381 = vcmp.lt.s32.totalorder %v5361, 2
        %vm5382 = vcmp.lt.s32.totalorder %v5361, 3
        %vm5383 = vcmp.lt.s32.totalorder %v5361, 4
        %v5384 = vsel %vm5380, %v5364, %v5367
        %v5385 = vsel %vm5383, %v5373, 2102212464
        %v5386 = vsel %vm5382, %v5370, %v5385
        %v5387 = vsel %vm5381, %v5384, %v5386
        %v5388 = vsel %vm5380, %v5367, %v5370
        %v5389 = vsel %vm5383, %v5376, 920167782
        %v5390 = vsel %vm5382, %v5373, %v5389
        %v5391 = vsel %vm5381, %v5388, %v5390
        %v5392 = vsel %vm5380, %v5370, %v5373
        %v5393 = vsel %vm5383, %v5379, 1326507024
        %v5394 = vsel %vm5382, %v5376, %v5393
        %v5395 = vsel %vm5381, %v5392, %v5394
        %v5396 = vshll.u32 %v5356, 8
        %v5397 = vmul.u32.u64.compose %v5396, %v5395
        %v5398 = vextract.low.u32 %v5397
        %v5399 = vextract.high.u32 %v5397
        %v5400 = vmul.u32.u64.compose %v5396, %v5391
        %v5401 = vextract.low.u32 %v5400
        %v5402 = vextract.high.u32 %v5400
        %v5403 = vmul.u32 %v5396, %v5387
        %v5404 = vadd.s32 %v5399, %v5401
        %vm5405 = vc.u32 %v5399, %v5401
        %v5406 = vadd.s32 %v5402, 1
        %v5407 = vsel %vm5405, %v5406, %v5402
        %v5408 = vadd.s32 %v5403, %v5407
        %v5409 = vadd.s32 %v5408, 536870912
        %v5410 = vshrl.u32 %v5409, 30
        %v5411 = vshll.u32 %v5410, 30
        %v5412 = vsub.s32 %v5408, %v5411
        %vm5413 = vcmp.lt.s32.totalorder %v5412, 0
        %v5414 = vsub.s32 0, %v5412
        %v5415 = vsel %vm5413, %v5414, %v5412
        %v5416 = vclz %v5415
        %v5417 = vsub.s32 %v5416, 2
        %vm5418 = vcmp.gt.s32.totalorder 0, %v5417
        %v5419 = vsel %vm5418, 0, %v5417
        %v5420 = vsub.s32 32, %v5419
        %v5421 = vshll.u32 %v5412, %v5419
        %v5422 = vshrl.u32 %v5404, %v5420
        %v5423 = vor.u32 %v5421, %v5422
        %v5424 = vsub.s32 4294967266, %v5419
        %v5425 = vadd.s32 %v5424, 127
        %v5426 = vshll.u32 %v5425, 23
        %v5427 = vor.u32 4788187, %v5426
        %v5428 = vand.u32 2147483647, %v5427
        %v5430 = vcvt.s32.f32 %v5423
        %v5431 = vmul.f32 %v5430, %v5428
        %v5432 = vxor.u32 %v5431, 2147483648
        %v5433 = vsel %vm5350, %v5432, %v5431
        %v5434 = vsub.s32 4, %v5410
        %v5435 = vsel %vm5350, %v5434, %v5410
        %v5436 = vsel %vm5349, %v4714, %v5433
        %v5437 = vsel %vm5349, 0, %v5435
        %v5438 = vcosq.f32.pop %v5436
        %v5439 = vsinq.f32.pop %v5436
        %vm5440 = vweird.f32 %v4714
        %v5441 = vadd.s32 %v5437, 3
        %v5442 = vand.u32 %v5441, 3
        %vm5443 = vcmp.lt.s32.totalorder %v5442, 2
        %vm5444 = vcmp.eq.s32.totalorder %v5442, 0
        %v5445 = vxor.u32 %v5439, 2147483648
        %v5446 = vsel %vm5444, %v5438, %v5445
        %vm5447 = vcmp.eq.s32.totalorder %v5442, 2
        %v5448 = vxor.u32 %v5438, 2147483648
        %v5449 = vsel %vm5447, %v5448, %v5439
        %v5450 = vsel %vm5443, %v5446, %v5449
        %v5451 = vsel %vm5440, nan, %v5450
        %v5452 = vand.u32 2147483647, %v4715
        %vm5453 = vcmp.le.f32.partialorder %v5452, 0.7853982
        %vm5454 = vcmp.lt.s32.totalorder %v4715, 0
        %v5455 = vand.u32 %v4715, 2139095040
        %v5456 = vshrl.u32 %v5455, 23
        %v5457 = vsub.s32 %v5456, 127
        %v5458 = vand.u32 2147483647, %v4715
        %v5459 = vand.u32 %v5458, 8388607
        %v5460 = vor.u32 %v5459, 8388608
        %v5461 = vsub.s32 0, %v5460
        %v5462 = vadd.s32 %v5457, 1
        %vm5463 = vcmp.gt.s32.totalorder %v5462, 0
        %v5464 = vsel %vm5463, %v5462, 0
        %v5465 = vshrl.u32 %v5464, 5
        %v5466 = vand.u32 %v5464, 31
        %v5467 = vsub.s32 32, %v5466
        %v5468 = vshrl.u32 683565275, %v5467
        %v5469 = vshll.u32 683565275, %v5466
        %v5470 = vshrl.u32 2475754826, %v5467
        %v5471 = vor.u32 %v5469, %v5470
        %v5472 = vshll.u32 2475754826, %v5466
        %v5473 = vshrl.u32 2131351028, %v5467
        %v5474 = vor.u32 %v5472, %v5473
        %v5475 = vshll.u32 2131351028, %v5466
        %v5476 = vshrl.u32 2102212464, %v5467
        %v5477 = vor.u32 %v5475, %v5476
        %v5478 = vshll.u32 2102212464, %v5466
        %v5479 = vshrl.u32 920167782, %v5467
        %v5480 = vor.u32 %v5478, %v5479
        %v5481 = vshll.u32 920167782, %v5466
        %v5482 = vshrl.u32 1326507024, %v5467
        %v5483 = vor.u32 %v5481, %v5482
        %vm5484 = vcmp.lt.s32.totalorder %v5465, 1
        %vm5485 = vcmp.lt.s32.totalorder %v5465, 2
        %vm5486 = vcmp.lt.s32.totalorder %v5465, 3
        %vm5487 = vcmp.lt.s32.totalorder %v5465, 4
        %v5488 = vsel %vm5484, %v5468, %v5471
        %v5489 = vsel %vm5487, %v5477, 2102212464
        %v5490 = vsel %vm5486, %v5474, %v5489
        %v5491 = vsel %vm5485, %v5488, %v5490
        %v5492 = vsel %vm5484, %v5471, %v5474
        %v5493 = vsel %vm5487, %v5480, 920167782
        %v5494 = vsel %vm5486, %v5477, %v5493
        %v5495 = vsel %vm5485, %v5492, %v5494
        %v5496 = vsel %vm5484, %v5474, %v5477
        %v5497 = vsel %vm5487, %v5483, 1326507024
        %v5498 = vsel %vm5486, %v5480, %v5497
        %v5499 = vsel %vm5485, %v5496, %v5498
        %v5500 = vshll.u32 %v5460, 8
        %v5501 = vmul.u32.u64.compose %v5500, %v5499
        %v5502 = vextract.low.u32 %v5501
        %v5503 = vextract.high.u32 %v5501
        %v5504 = vmul.u32.u64.compose %v5500, %v5495
        %v5505 = vextract.low.u32 %v5504
        %v5506 = vextract.high.u32 %v5504
        %v5507 = vmul.u32 %v5500, %v5491
        %v5508 = vadd.s32 %v5503, %v5505
        %vm5509 = vc.u32 %v5503, %v5505
        %v5510 = vadd.s32 %v5506, 1
        %v5511 = vsel %vm5509, %v5510, %v5506
        %v5512 = vadd.s32 %v5507, %v5511
        %v5513 = vadd.s32 %v5512, 536870912
        %v5514 = vshrl.u32 %v5513, 30
        %v5515 = vshll.u32 %v5514, 30
        %v5516 = vsub.s32 %v5512, %v5515
        %vm5517 = vcmp.lt.s32.totalorder %v5516, 0
        %v5518 = vsub.s32 0, %v5516
        %v5519 = vsel %vm5517, %v5518, %v5516
        %v5520 = vclz %v5519
        %v5521 = vsub.s32 %v5520, 2
        %vm5522 = vcmp.gt.s32.totalorder 0, %v5521
        %v5523 = vsel %vm5522, 0, %v5521
        %v5524 = vsub.s32 32, %v5523
        %v5525 = vshll.u32 %v5516, %v5523
        %v5526 = vshrl.u32 %v5508, %v5524
        %v5527 = vor.u32 %v5525, %v5526
        %v5528 = vsub.s32 4294967266, %v5523
        %v5529 = vadd.s32 %v5528, 127
        %v5530 = vshll.u32 %v5529, 23
        %v5531 = vor.u32 4788187, %v5530
        %v5532 = vand.u32 2147483647, %v5531
        %v5534 = vcvt.s32.f32 %v5527
        %v5535 = vmul.f32 %v5534, %v5532
        %v5536 = vxor.u32 %v5535, 2147483648
        %v5537 = vsel %vm5454, %v5536, %v5535
        %v5538 = vsub.s32 4, %v5514
        %v5539 = vsel %vm5454, %v5538, %v5514
        %v5540 = vsel %vm5453, %v4715, %v5537
        %v5541 = vsel %vm5453, 0, %v5539
        %v5542 = vcosq.f32.pop %v5540
        %v5543 = vsinq.f32.pop %v5540
        %vm5544 = vweird.f32 %v4715
        %v5545 = vadd.s32 %v5541, 3
        %v5546 = vand.u32 %v5545, 3
        %vm5547 = vcmp.lt.s32.totalorder %v5546, 2
        %vm5548 = vcmp.eq.s32.totalorder %v5546, 0
        %v5549 = vxor.u32 %v5543, 2147483648
        %v5550 = vsel %vm5548, %v5542, %v5549
        %vm5551 = vcmp.eq.s32.totalorder %v5546, 2
        %v5552 = vxor.u32 %v5542, 2147483648
        %v5553 = vsel %vm5551, %v5552, %v5543
        %v5554 = vsel %vm5547, %v5550, %v5553
        %v5555 = vsel %vm5544, nan, %v5554
        %v5556 = vand.u32 2147483647, %v4716
        %vm5557 = vcmp.le.f32.partialorder %v5556, 0.7853982
        %vm5558 = vcmp.lt.s32.totalorder %v4716, 0
        %v5559 = vand.u32 %v4716, 2139095040
        %v5560 = vshrl.u32 %v5559, 23
        %v5561 = vsub.s32 %v5560, 127
        %v5562 = vand.u32 2147483647, %v4716
        %v5563 = vand.u32 %v5562, 8388607
        %v5564 = vor.u32 %v5563, 8388608
        %v5565 = vsub.s32 0, %v5564
        %v5566 = vadd.s32 %v5561, 1
        %vm5567 = vcmp.gt.s32.totalorder %v5566, 0
        %v5568 = vsel %vm5567, %v5566, 0
        %v5569 = vshrl.u32 %v5568, 5
        %v5570 = vand.u32 %v5568, 31
        %v5571 = vsub.s32 32, %v5570
        %v5572 = vshrl.u32 683565275, %v5571
        %v5573 = vshll.u32 683565275, %v5570
        %v5574 = vshrl.u32 2475754826, %v5571
        %v5575 = vor.u32 %v5573, %v5574
        %v5576 = vshll.u32 2475754826, %v5570
        %v5577 = vshrl.u32 2131351028, %v5571
        %v5578 = vor.u32 %v5576, %v5577
        %v5579 = vshll.u32 2131351028, %v5570
        %v5580 = vshrl.u32 2102212464, %v5571
        %v5581 = vor.u32 %v5579, %v5580
        %v5582 = vshll.u32 2102212464, %v5570
        %v5583 = vshrl.u32 920167782, %v5571
        %v5584 = vor.u32 %v5582, %v5583
        %v5585 = vshll.u32 920167782, %v5570
        %v5586 = vshrl.u32 1326507024, %v5571
        %v5587 = vor.u32 %v5585, %v5586
        %vm5588 = vcmp.lt.s32.totalorder %v5569, 1
        %vm5589 = vcmp.lt.s32.totalorder %v5569, 2
        %vm5590 = vcmp.lt.s32.totalorder %v5569, 3
        %vm5591 = vcmp.lt.s32.totalorder %v5569, 4
        %v5592 = vsel %vm5588, %v5572, %v5575
        %v5593 = vsel %vm5591, %v5581, 2102212464
        %v5594 = vsel %vm5590, %v5578, %v5593
        %v5595 = vsel %vm5589, %v5592, %v5594
        %v5596 = vsel %vm5588, %v5575, %v5578
        %v5597 = vsel %vm5591, %v5584, 920167782
        %v5598 = vsel %vm5590, %v5581, %v5597
        %v5599 = vsel %vm5589, %v5596, %v5598
        %v5600 = vsel %vm5588, %v5578, %v5581
        %v5601 = vsel %vm5591, %v5587, 1326507024
        %v5602 = vsel %vm5590, %v5584, %v5601
        %v5603 = vsel %vm5589, %v5600, %v5602
        %v5604 = vshll.u32 %v5564, 8
        %v5605 = vmul.u32.u64.compose %v5604, %v5603
        %v5606 = vextract.low.u32 %v5605
        %v5607 = vextract.high.u32 %v5605
        %v5608 = vmul.u32.u64.compose %v5604, %v5599
        %v5609 = vextract.low.u32 %v5608
        %v5610 = vextract.high.u32 %v5608
        %v5611 = vmul.u32 %v5604, %v5595
        %v5612 = vadd.s32 %v5607, %v5609
        %vm5613 = vc.u32 %v5607, %v5609
        %v5614 = vadd.s32 %v5610, 1
        %v5615 = vsel %vm5613, %v5614, %v5610
        %v5616 = vadd.s32 %v5611, %v5615
        %v5617 = vadd.s32 %v5616, 536870912
        %v5618 = vshrl.u32 %v5617, 30
        %v5619 = vshll.u32 %v5618, 30
        %v5620 = vsub.s32 %v5616, %v5619
        %vm5621 = vcmp.lt.s32.totalorder %v5620, 0
        %v5622 = vsub.s32 0, %v5620
        %v5623 = vsel %vm5621, %v5622, %v5620
        %v5624 = vclz %v5623
        %v5625 = vsub.s32 %v5624, 2
        %vm5626 = vcmp.gt.s32.totalorder 0, %v5625
        %v5627 = vsel %vm5626, 0, %v5625
        %v5628 = vsub.s32 32, %v5627
        %v5629 = vshll.u32 %v5620, %v5627
        %v5630 = vshrl.u32 %v5612, %v5628
        %v5631 = vor.u32 %v5629, %v5630
        %v5632 = vsub.s32 4294967266, %v5627
        %v5633 = vadd.s32 %v5632, 127
        %v5634 = vshll.u32 %v5633, 23
        %v5635 = vor.u32 4788187, %v5634
        %v5636 = vand.u32 2147483647, %v5635
        %v5638 = vcvt.s32.f32 %v5631
        %v5639 = vmul.f32 %v5638, %v5636
        %v5640 = vxor.u32 %v5639, 2147483648
        %v5641 = vsel %vm5558, %v5640, %v5639
        %v5642 = vsub.s32 4, %v5618
        %v5643 = vsel %vm5558, %v5642, %v5618
        %v5644 = vsel %vm5557, %v4716, %v5641
        %v5645 = vsel %vm5557, 0, %v5643
        %v5646 = vcosq.f32.pop %v5644
        %v5647 = vsinq.f32.pop %v5644
        %vm5648 = vweird.f32 %v4716
        %v5649 = vadd.s32 %v5645, 3
        %v5650 = vand.u32 %v5649, 3
        %vm5651 = vcmp.lt.s32.totalorder %v5650, 2
        %vm5652 = vcmp.eq.s32.totalorder %v5650, 0
        %v5653 = vxor.u32 %v5647, 2147483648
        %v5654 = vsel %vm5652, %v5646, %v5653
        %vm5655 = vcmp.eq.s32.totalorder %v5650, 2
        %v5656 = vxor.u32 %v5646, 2147483648
        %v5657 = vsel %vm5655, %v5656, %v5647
        %v5658 = vsel %vm5651, %v5654, %v5657
        %v5659 = vsel %vm5648, nan, %v5658
        %v5660 = vand.u32 2147483647, %v4717
        %vm5661 = vcmp.le.f32.partialorder %v5660, 0.7853982
        %vm5662 = vcmp.lt.s32.totalorder %v4717, 0
        %v5663 = vand.u32 %v4717, 2139095040
        %v5664 = vshrl.u32 %v5663, 23
        %v5665 = vsub.s32 %v5664, 127
        %v5666 = vand.u32 2147483647, %v4717
        %v5667 = vand.u32 %v5666, 8388607
        %v5668 = vor.u32 %v5667, 8388608
        %v5669 = vsub.s32 0, %v5668
        %v5670 = vadd.s32 %v5665, 1
        %vm5671 = vcmp.gt.s32.totalorder %v5670, 0
        %v5672 = vsel %vm5671, %v5670, 0
        %v5673 = vshrl.u32 %v5672, 5
        %v5674 = vand.u32 %v5672, 31
        %v5675 = vsub.s32 32, %v5674
        %v5676 = vshrl.u32 683565275, %v5675
        %v5677 = vshll.u32 683565275, %v5674
        %v5678 = vshrl.u32 2475754826, %v5675
        %v5679 = vor.u32 %v5677, %v5678
        %v5680 = vshll.u32 2475754826, %v5674
        %v5681 = vshrl.u32 2131351028, %v5675
        %v5682 = vor.u32 %v5680, %v5681
        %v5683 = vshll.u32 2131351028, %v5674
        %v5684 = vshrl.u32 2102212464, %v5675
        %v5685 = vor.u32 %v5683, %v5684
        %v5686 = vshll.u32 2102212464, %v5674
        %v5687 = vshrl.u32 920167782, %v5675
        %v5688 = vor.u32 %v5686, %v5687
        %v5689 = vshll.u32 920167782, %v5674
        %v5690 = vshrl.u32 1326507024, %v5675
        %v5691 = vor.u32 %v5689, %v5690
        %vm5692 = vcmp.lt.s32.totalorder %v5673, 1
        %vm5693 = vcmp.lt.s32.totalorder %v5673, 2
        %vm5694 = vcmp.lt.s32.totalorder %v5673, 3
        %vm5695 = vcmp.lt.s32.totalorder %v5673, 4
        %v5696 = vsel %vm5692, %v5676, %v5679
        %v5697 = vsel %vm5695, %v5685, 2102212464
        %v5698 = vsel %vm5694, %v5682, %v5697
        %v5699 = vsel %vm5693, %v5696, %v5698
        %v5700 = vsel %vm5692, %v5679, %v5682
        %v5701 = vsel %vm5695, %v5688, 920167782
        %v5702 = vsel %vm5694, %v5685, %v5701
        %v5703 = vsel %vm5693, %v5700, %v5702
        %v5704 = vsel %vm5692, %v5682, %v5685
        %v5705 = vsel %vm5695, %v5691, 1326507024
        %v5706 = vsel %vm5694, %v5688, %v5705
        %v5707 = vsel %vm5693, %v5704, %v5706
        %v5708 = vshll.u32 %v5668, 8
        %v5709 = vmul.u32.u64.compose %v5708, %v5707
        %v5710 = vextract.low.u32 %v5709
        %v5711 = vextract.high.u32 %v5709
        %v5712 = vmul.u32.u64.compose %v5708, %v5703
        %v5713 = vextract.low.u32 %v5712
        %v5714 = vextract.high.u32 %v5712
        %v5715 = vmul.u32 %v5708, %v5699
        %v5716 = vadd.s32 %v5711, %v5713
        %vm5717 = vc.u32 %v5711, %v5713
        %v5718 = vadd.s32 %v5714, 1
        %v5719 = vsel %vm5717, %v5718, %v5714
        %v5720 = vadd.s32 %v5715, %v5719
        %v5721 = vadd.s32 %v5720, 536870912
        %v5722 = vshrl.u32 %v5721, 30
        %v5723 = vshll.u32 %v5722, 30
        %v5724 = vsub.s32 %v5720, %v5723
        %vm5725 = vcmp.lt.s32.totalorder %v5724, 0
        %v5726 = vsub.s32 0, %v5724
        %v5727 = vsel %vm5725, %v5726, %v5724
        %v5728 = vclz %v5727
        %v5729 = vsub.s32 %v5728, 2
        %vm5730 = vcmp.gt.s32.totalorder 0, %v5729
        %v5731 = vsel %vm5730, 0, %v5729
        %v5732 = vsub.s32 32, %v5731
        %v5733 = vshll.u32 %v5724, %v5731
        %v5734 = vshrl.u32 %v5716, %v5732
        %v5735 = vor.u32 %v5733, %v5734
        %v5736 = vsub.s32 4294967266, %v5731
        %v5737 = vadd.s32 %v5736, 127
        %v5738 = vshll.u32 %v5737, 23
        %v5739 = vor.u32 4788187, %v5738
        %v5740 = vand.u32 2147483647, %v5739
        %v5742 = vcvt.s32.f32 %v5735
        %v5743 = vmul.f32 %v5742, %v5740
        %v5744 = vxor.u32 %v5743, 2147483648
        %v5745 = vsel %vm5662, %v5744, %v5743
        %v5746 = vsub.s32 4, %v5722
        %v5747 = vsel %vm5662, %v5746, %v5722
        %v5748 = vsel %vm5661, %v4717, %v5745
        %v5749 = vsel %vm5661, 0, %v5747
        %v5750 = vcosq.f32.pop %v5748
        %v5751 = vsinq.f32.pop %v5748
        %vm5752 = vweird.f32 %v4717
        %v5753 = vadd.s32 %v5749, 3
        %v5754 = vand.u32 %v5753, 3
        %vm5755 = vcmp.lt.s32.totalorder %v5754, 2
        %vm5756 = vcmp.eq.s32.totalorder %v5754, 0
        %v5757 = vxor.u32 %v5751, 2147483648
        %v5758 = vsel %vm5756, %v5750, %v5757
        %vm5759 = vcmp.eq.s32.totalorder %v5754, 2
        %v5760 = vxor.u32 %v5750, 2147483648
        %v5761 = vsel %vm5759, %v5760, %v5751
        %v5762 = vsel %vm5755, %v5758, %v5761
        %v5763 = vsel %vm5752, nan, %v5762
        %v5764 = vand.u32 2147483647, %v4718
        %vm5765 = vcmp.le.f32.partialorder %v5764, 0.7853982
        %vm5766 = vcmp.lt.s32.totalorder %v4718, 0
        %v5767 = vand.u32 %v4718, 2139095040
        %v5768 = vshrl.u32 %v5767, 23
        %v5769 = vsub.s32 %v5768, 127
        %v5770 = vand.u32 2147483647, %v4718
        %v5771 = vand.u32 %v5770, 8388607
        %v5772 = vor.u32 %v5771, 8388608
        %v5773 = vsub.s32 0, %v5772
        %v5774 = vadd.s32 %v5769, 1
        %vm5775 = vcmp.gt.s32.totalorder %v5774, 0
        %v5776 = vsel %vm5775, %v5774, 0
        %v5777 = vshrl.u32 %v5776, 5
        %v5778 = vand.u32 %v5776, 31
        %v5779 = vsub.s32 32, %v5778
        %v5780 = vshrl.u32 683565275, %v5779
        %v5781 = vshll.u32 683565275, %v5778
        %v5782 = vshrl.u32 2475754826, %v5779
        %v5783 = vor.u32 %v5781, %v5782
        %v5784 = vshll.u32 2475754826, %v5778
        %v5785 = vshrl.u32 2131351028, %v5779
        %v5786 = vor.u32 %v5784, %v5785
        %v5787 = vshll.u32 2131351028, %v5778
        %v5788 = vshrl.u32 2102212464, %v5779
        %v5789 = vor.u32 %v5787, %v5788
        %v5790 = vshll.u32 2102212464, %v5778
        %v5791 = vshrl.u32 920167782, %v5779
        %v5792 = vor.u32 %v5790, %v5791
        %v5793 = vshll.u32 920167782, %v5778
        %v5794 = vshrl.u32 1326507024, %v5779
        %v5795 = vor.u32 %v5793, %v5794
        %vm5796 = vcmp.lt.s32.totalorder %v5777, 1
        %vm5797 = vcmp.lt.s32.totalorder %v5777, 2
        %vm5798 = vcmp.lt.s32.totalorder %v5777, 3
        %vm5799 = vcmp.lt.s32.totalorder %v5777, 4
        %v5800 = vsel %vm5796, %v5780, %v5783
        %v5801 = vsel %vm5799, %v5789, 2102212464
        %v5802 = vsel %vm5798, %v5786, %v5801
        %v5803 = vsel %vm5797, %v5800, %v5802
        %v5804 = vsel %vm5796, %v5783, %v5786
        %v5805 = vsel %vm5799, %v5792, 920167782
        %v5806 = vsel %vm5798, %v5789, %v5805
        %v5807 = vsel %vm5797, %v5804, %v5806
        %v5808 = vsel %vm5796, %v5786, %v5789
        %v5809 = vsel %vm5799, %v5795, 1326507024
        %v5810 = vsel %vm5798, %v5792, %v5809
        %v5811 = vsel %vm5797, %v5808, %v5810
        %v5812 = vshll.u32 %v5772, 8
        %v5813 = vmul.u32.u64.compose %v5812, %v5811
        %v5814 = vextract.low.u32 %v5813
        %v5815 = vextract.high.u32 %v5813
        %v5816 = vmul.u32.u64.compose %v5812, %v5807
        %v5817 = vextract.low.u32 %v5816
        %v5818 = vextract.high.u32 %v5816
        %v5819 = vmul.u32 %v5812, %v5803
        %v5820 = vadd.s32 %v5815, %v5817
        %vm5821 = vc.u32 %v5815, %v5817
        %v5822 = vadd.s32 %v5818, 1
        %v5823 = vsel %vm5821, %v5822, %v5818
        %v5824 = vadd.s32 %v5819, %v5823
        %v5825 = vadd.s32 %v5824, 536870912
        %v5826 = vshrl.u32 %v5825, 30
        %v5827 = vshll.u32 %v5826, 30
        %v5828 = vsub.s32 %v5824, %v5827
        %vm5829 = vcmp.lt.s32.totalorder %v5828, 0
        %v5830 = vsub.s32 0, %v5828
        %v5831 = vsel %vm5829, %v5830, %v5828
        %v5832 = vclz %v5831
        %v5833 = vsub.s32 %v5832, 2
        %vm5834 = vcmp.gt.s32.totalorder 0, %v5833
        %v5835 = vsel %vm5834, 0, %v5833
        %v5836 = vsub.s32 32, %v5835
        %v5837 = vshll.u32 %v5828, %v5835
        %v5838 = vshrl.u32 %v5820, %v5836
        %v5839 = vor.u32 %v5837, %v5838
        %v5840 = vsub.s32 4294967266, %v5835
        %v5841 = vadd.s32 %v5840, 127
        %v5842 = vshll.u32 %v5841, 23
        %v5843 = vor.u32 4788187, %v5842
        %v5844 = vand.u32 2147483647, %v5843
        %v5846 = vcvt.s32.f32 %v5839
        %v5847 = vmul.f32 %v5846, %v5844
        %v5848 = vxor.u32 %v5847, 2147483648
        %v5849 = vsel %vm5766, %v5848, %v5847
        %v5850 = vsub.s32 4, %v5826
        %v5851 = vsel %vm5766, %v5850, %v5826
        %v5852 = vsel %vm5765, %v4718, %v5849
        %v5853 = vsel %vm5765, 0, %v5851
        %v5854 = vcosq.f32.pop %v5852
        %v5855 = vsinq.f32.pop %v5852
        %vm5856 = vweird.f32 %v4718
        %v5857 = vadd.s32 %v5853, 3
        %v5858 = vand.u32 %v5857, 3
        %vm5859 = vcmp.lt.s32.totalorder %v5858, 2
        %vm5860 = vcmp.eq.s32.totalorder %v5858, 0
        %v5861 = vxor.u32 %v5855, 2147483648
        %v5862 = vsel %vm5860, %v5854, %v5861
        %vm5863 = vcmp.eq.s32.totalorder %v5858, 2
        %v5864 = vxor.u32 %v5854, 2147483648
        %v5865 = vsel %vm5863, %v5864, %v5855
        %v5866 = vsel %vm5859, %v5862, %v5865
        %v5867 = vsel %vm5856, nan, %v5866
        %v5868 = vand.u32 2147483647, %v4719
        %vm5869 = vcmp.le.f32.partialorder %v5868, 0.7853982
        %vm5870 = vcmp.lt.s32.totalorder %v4719, 0
        %v5871 = vand.u32 %v4719, 2139095040
        %v5872 = vshrl.u32 %v5871, 23
        %v5873 = vsub.s32 %v5872, 127
        %v5874 = vand.u32 2147483647, %v4719
        %v5875 = vand.u32 %v5874, 8388607
        %v5876 = vor.u32 %v5875, 8388608
        %v5877 = vsub.s32 0, %v5876
        %v5878 = vadd.s32 %v5873, 1
        %vm5879 = vcmp.gt.s32.totalorder %v5878, 0
        %v5880 = vsel %vm5879, %v5878, 0
        %v5881 = vshrl.u32 %v5880, 5
        %v5882 = vand.u32 %v5880, 31
        %v5883 = vsub.s32 32, %v5882
        %v5884 = vshrl.u32 683565275, %v5883
        %v5885 = vshll.u32 683565275, %v5882
        %v5886 = vshrl.u32 2475754826, %v5883
        %v5887 = vor.u32 %v5885, %v5886
        %v5888 = vshll.u32 2475754826, %v5882
        %v5889 = vshrl.u32 2131351028, %v5883
        %v5890 = vor.u32 %v5888, %v5889
        %v5891 = vshll.u32 2131351028, %v5882
        %v5892 = vshrl.u32 2102212464, %v5883
        %v5893 = vor.u32 %v5891, %v5892
        %v5894 = vshll.u32 2102212464, %v5882
        %v5895 = vshrl.u32 920167782, %v5883
        %v5896 = vor.u32 %v5894, %v5895
        %v5897 = vshll.u32 920167782, %v5882
        %v5898 = vshrl.u32 1326507024, %v5883
        %v5899 = vor.u32 %v5897, %v5898
        %vm5900 = vcmp.lt.s32.totalorder %v5881, 1
        %vm5901 = vcmp.lt.s32.totalorder %v5881, 2
        %vm5902 = vcmp.lt.s32.totalorder %v5881, 3
        %vm5903 = vcmp.lt.s32.totalorder %v5881, 4
        %v5904 = vsel %vm5900, %v5884, %v5887
        %v5905 = vsel %vm5903, %v5893, 2102212464
        %v5906 = vsel %vm5902, %v5890, %v5905
        %v5907 = vsel %vm5901, %v5904, %v5906
        %v5908 = vsel %vm5900, %v5887, %v5890
        %v5909 = vsel %vm5903, %v5896, 920167782
        %v5910 = vsel %vm5902, %v5893, %v5909
        %v5911 = vsel %vm5901, %v5908, %v5910
        %v5912 = vsel %vm5900, %v5890, %v5893
        %v5913 = vsel %vm5903, %v5899, 1326507024
        %v5914 = vsel %vm5902, %v5896, %v5913
        %v5915 = vsel %vm5901, %v5912, %v5914
        %v5916 = vshll.u32 %v5876, 8
        %v5917 = vmul.u32.u64.compose %v5916, %v5915
        %v5918 = vextract.low.u32 %v5917
        %v5919 = vextract.high.u32 %v5917
        %v5920 = vmul.u32.u64.compose %v5916, %v5911
        %v5921 = vextract.low.u32 %v5920
        %v5922 = vextract.high.u32 %v5920
        %v5923 = vmul.u32 %v5916, %v5907
        %v5924 = vadd.s32 %v5919, %v5921
        %vm5925 = vc.u32 %v5919, %v5921
        %v5926 = vadd.s32 %v5922, 1
        %v5927 = vsel %vm5925, %v5926, %v5922
        %v5928 = vadd.s32 %v5923, %v5927
        %v5929 = vadd.s32 %v5928, 536870912
        %v5930 = vshrl.u32 %v5929, 30
        %v5931 = vshll.u32 %v5930, 30
        %v5932 = vsub.s32 %v5928, %v5931
        %vm5933 = vcmp.lt.s32.totalorder %v5932, 0
        %v5934 = vsub.s32 0, %v5932
        %v5935 = vsel %vm5933, %v5934, %v5932
        %v5936 = vclz %v5935
        %v5937 = vsub.s32 %v5936, 2
        %vm5938 = vcmp.gt.s32.totalorder 0, %v5937
        %v5939 = vsel %vm5938, 0, %v5937
        %v5940 = vsub.s32 32, %v5939
        %v5941 = vshll.u32 %v5932, %v5939
        %v5942 = vshrl.u32 %v5924, %v5940
        %v5943 = vor.u32 %v5941, %v5942
        %v5944 = vsub.s32 4294967266, %v5939
        %v5945 = vadd.s32 %v5944, 127
        %v5946 = vshll.u32 %v5945, 23
        %v5947 = vor.u32 4788187, %v5946
        %v5948 = vand.u32 2147483647, %v5947
        %v5950 = vcvt.s32.f32 %v5943
        %v5951 = vmul.f32 %v5950, %v5948
        %v5952 = vxor.u32 %v5951, 2147483648
        %v5953 = vsel %vm5870, %v5952, %v5951
        %v5954 = vsub.s32 4, %v5930
        %v5955 = vsel %vm5870, %v5954, %v5930
        %v5956 = vsel %vm5869, %v4719, %v5953
        %v5957 = vsel %vm5869, 0, %v5955
        %v5958 = vcosq.f32.pop %v5956
        %v5959 = vsinq.f32.pop %v5956
        %vm5960 = vweird.f32 %v4719
        %v5961 = vadd.s32 %v5957, 3
        %v5962 = vand.u32 %v5961, 3
        %vm5963 = vcmp.lt.s32.totalorder %v5962, 2
        %vm5964 = vcmp.eq.s32.totalorder %v5962, 0
        %v5965 = vxor.u32 %v5959, 2147483648
        %v5966 = vsel %vm5964, %v5958, %v5965
        %vm5967 = vcmp.eq.s32.totalorder %v5962, 2
        %v5968 = vxor.u32 %v5958, 2147483648
        %v5969 = vsel %vm5967, %v5968, %v5959
        %v5970 = vsel %vm5963, %v5966, %v5969
        %v5971 = vsel %vm5960, nan, %v5970
        %v5972 = vand.u32 2147483647, %v4720
        %vm5973 = vcmp.le.f32.partialorder %v5972, 0.7853982
        %vm5974 = vcmp.lt.s32.totalorder %v4720, 0
        %v5975 = vand.u32 %v4720, 2139095040
        %v5976 = vshrl.u32 %v5975, 23
        %v5977 = vsub.s32 %v5976, 127
        %v5978 = vand.u32 2147483647, %v4720
        %v5979 = vand.u32 %v5978, 8388607
        %v5980 = vor.u32 %v5979, 8388608
        %v5981 = vsub.s32 0, %v5980
        %v5982 = vadd.s32 %v5977, 1
        %vm5983 = vcmp.gt.s32.totalorder %v5982, 0
        %v5984 = vsel %vm5983, %v5982, 0
        %v5985 = vshrl.u32 %v5984, 5
        %v5986 = vand.u32 %v5984, 31
        %v5987 = vsub.s32 32, %v5986
        %v5988 = vshrl.u32 683565275, %v5987
        %v5989 = vshll.u32 683565275, %v5986
        %v5990 = vshrl.u32 2475754826, %v5987
        %v5991 = vor.u32 %v5989, %v5990
        %v5992 = vshll.u32 2475754826, %v5986
        %v5993 = vshrl.u32 2131351028, %v5987
        %v5994 = vor.u32 %v5992, %v5993
        %v5995 = vshll.u32 2131351028, %v5986
        %v5996 = vshrl.u32 2102212464, %v5987
        %v5997 = vor.u32 %v5995, %v5996
        %v5998 = vshll.u32 2102212464, %v5986
        %v5999 = vshrl.u32 920167782, %v5987
        %v6000 = vor.u32 %v5998, %v5999
        %v6001 = vshll.u32 920167782, %v5986
        %v6002 = vshrl.u32 1326507024, %v5987
        %v6003 = vor.u32 %v6001, %v6002
        %vm6004 = vcmp.lt.s32.totalorder %v5985, 1
        %vm6005 = vcmp.lt.s32.totalorder %v5985, 2
        %vm6006 = vcmp.lt.s32.totalorder %v5985, 3
        %vm6007 = vcmp.lt.s32.totalorder %v5985, 4
        %v6008 = vsel %vm6004, %v5988, %v5991
        %v6009 = vsel %vm6007, %v5997, 2102212464
        %v6010 = vsel %vm6006, %v5994, %v6009
        %v6011 = vsel %vm6005, %v6008, %v6010
        %v6012 = vsel %vm6004, %v5991, %v5994
        %v6013 = vsel %vm6007, %v6000, 920167782
        %v6014 = vsel %vm6006, %v5997, %v6013
        %v6015 = vsel %vm6005, %v6012, %v6014
        %v6016 = vsel %vm6004, %v5994, %v5997
        %v6017 = vsel %vm6007, %v6003, 1326507024
        %v6018 = vsel %vm6006, %v6000, %v6017
        %v6019 = vsel %vm6005, %v6016, %v6018
        %v6020 = vshll.u32 %v5980, 8
        %v6021 = vmul.u32.u64.compose %v6020, %v6019
        %v6022 = vextract.low.u32 %v6021
        %v6023 = vextract.high.u32 %v6021
        %v6024 = vmul.u32.u64.compose %v6020, %v6015
        %v6025 = vextract.low.u32 %v6024
        %v6026 = vextract.high.u32 %v6024
        %v6027 = vmul.u32 %v6020, %v6011
        %v6028 = vadd.s32 %v6023, %v6025
        %vm6029 = vc.u32 %v6023, %v6025
        %v6030 = vadd.s32 %v6026, 1
        %v6031 = vsel %vm6029, %v6030, %v6026
        %v6032 = vadd.s32 %v6027, %v6031
        %v6033 = vadd.s32 %v6032, 536870912
        %v6034 = vshrl.u32 %v6033, 30
        %v6035 = vshll.u32 %v6034, 30
        %v6036 = vsub.s32 %v6032, %v6035
        %vm6037 = vcmp.lt.s32.totalorder %v6036, 0
        %v6038 = vsub.s32 0, %v6036
        %v6039 = vsel %vm6037, %v6038, %v6036
        %v6040 = vclz %v6039
        %v6041 = vsub.s32 %v6040, 2
        %vm6042 = vcmp.gt.s32.totalorder 0, %v6041
        %v6043 = vsel %vm6042, 0, %v6041
        %v6044 = vsub.s32 32, %v6043
        %v6045 = vshll.u32 %v6036, %v6043
        %v6046 = vshrl.u32 %v6028, %v6044
        %v6047 = vor.u32 %v6045, %v6046
        %v6048 = vsub.s32 4294967266, %v6043
        %v6049 = vadd.s32 %v6048, 127
        %v6050 = vshll.u32 %v6049, 23
        %v6051 = vor.u32 4788187, %v6050
        %v6052 = vand.u32 2147483647, %v6051
        %v6054 = vcvt.s32.f32 %v6047
        %v6055 = vmul.f32 %v6054, %v6052
        %v6056 = vxor.u32 %v6055, 2147483648
        %v6057 = vsel %vm5974, %v6056, %v6055
        %v6058 = vsub.s32 4, %v6034
        %v6059 = vsel %vm5974, %v6058, %v6034
        %v6060 = vsel %vm5973, %v4720, %v6057
        %v6061 = vsel %vm5973, 0, %v6059
        %v6062 = vcosq.f32.pop %v6060
        %v6063 = vsinq.f32.pop %v6060
        %vm6064 = vweird.f32 %v4720
        %v6065 = vadd.s32 %v6061, 3
        %v6066 = vand.u32 %v6065, 3
        %vm6067 = vcmp.lt.s32.totalorder %v6066, 2
        %vm6068 = vcmp.eq.s32.totalorder %v6066, 0
        %v6069 = vxor.u32 %v6063, 2147483648
        %v6070 = vsel %vm6068, %v6062, %v6069
        %vm6071 = vcmp.eq.s32.totalorder %v6066, 2
        %v6072 = vxor.u32 %v6062, 2147483648
        %v6073 = vsel %vm6071, %v6072, %v6063
        %v6074 = vsel %vm6067, %v6070, %v6073
        %v6075 = vsel %vm6064, nan, %v6074
        %v6076 = vand.u32 2147483647, %v4721
        %vm6077 = vcmp.le.f32.partialorder %v6076, 0.7853982
        %vm6078 = vcmp.lt.s32.totalorder %v4721, 0
        %v6079 = vand.u32 %v4721, 2139095040
        %v6080 = vshrl.u32 %v6079, 23
        %v6081 = vsub.s32 %v6080, 127
        %v6082 = vand.u32 2147483647, %v4721
        %v6083 = vand.u32 %v6082, 8388607
        %v6084 = vor.u32 %v6083, 8388608
        %v6085 = vsub.s32 0, %v6084
        %v6086 = vadd.s32 %v6081, 1
        %vm6087 = vcmp.gt.s32.totalorder %v6086, 0
        %v6088 = vsel %vm6087, %v6086, 0
        %v6089 = vshrl.u32 %v6088, 5
        %v6090 = vand.u32 %v6088, 31
        %v6091 = vsub.s32 32, %v6090
        %v6092 = vshrl.u32 683565275, %v6091
        %v6093 = vshll.u32 683565275, %v6090
        %v6094 = vshrl.u32 2475754826, %v6091
        %v6095 = vor.u32 %v6093, %v6094
        %v6096 = vshll.u32 2475754826, %v6090
        %v6097 = vshrl.u32 2131351028, %v6091
        %v6098 = vor.u32 %v6096, %v6097
        %v6099 = vshll.u32 2131351028, %v6090
        %v6100 = vshrl.u32 2102212464, %v6091
        %v6101 = vor.u32 %v6099, %v6100
        %v6102 = vshll.u32 2102212464, %v6090
        %v6103 = vshrl.u32 920167782, %v6091
        %v6104 = vor.u32 %v6102, %v6103
        %v6105 = vshll.u32 920167782, %v6090
        %v6106 = vshrl.u32 1326507024, %v6091
        %v6107 = vor.u32 %v6105, %v6106
        %vm6108 = vcmp.lt.s32.totalorder %v6089, 1
        %vm6109 = vcmp.lt.s32.totalorder %v6089, 2
        %vm6110 = vcmp.lt.s32.totalorder %v6089, 3
        %vm6111 = vcmp.lt.s32.totalorder %v6089, 4
        %v6112 = vsel %vm6108, %v6092, %v6095
        %v6113 = vsel %vm6111, %v6101, 2102212464
        %v6114 = vsel %vm6110, %v6098, %v6113
        %v6115 = vsel %vm6109, %v6112, %v6114
        %v6116 = vsel %vm6108, %v6095, %v6098
        %v6117 = vsel %vm6111, %v6104, 920167782
        %v6118 = vsel %vm6110, %v6101, %v6117
        %v6119 = vsel %vm6109, %v6116, %v6118
        %v6120 = vsel %vm6108, %v6098, %v6101
        %v6121 = vsel %vm6111, %v6107, 1326507024
        %v6122 = vsel %vm6110, %v6104, %v6121
        %v6123 = vsel %vm6109, %v6120, %v6122
        %v6124 = vshll.u32 %v6084, 8
        %v6125 = vmul.u32.u64.compose %v6124, %v6123
        %v6126 = vextract.low.u32 %v6125
        %v6127 = vextract.high.u32 %v6125
        %v6128 = vmul.u32.u64.compose %v6124, %v6119
        %v6129 = vextract.low.u32 %v6128
        %v6130 = vextract.high.u32 %v6128
        %v6131 = vmul.u32 %v6124, %v6115
        %v6132 = vadd.s32 %v6127, %v6129
        %vm6133 = vc.u32 %v6127, %v6129
        %v6134 = vadd.s32 %v6130, 1
        %v6135 = vsel %vm6133, %v6134, %v6130
        %v6136 = vadd.s32 %v6131, %v6135
        %v6137 = vadd.s32 %v6136, 536870912
        %v6138 = vshrl.u32 %v6137, 30
        %v6139 = vshll.u32 %v6138, 30
        %v6140 = vsub.s32 %v6136, %v6139
        %vm6141 = vcmp.lt.s32.totalorder %v6140, 0
        %v6142 = vsub.s32 0, %v6140
        %v6143 = vsel %vm6141, %v6142, %v6140
        %v6144 = vclz %v6143
        %v6145 = vsub.s32 %v6144, 2
        %vm6146 = vcmp.gt.s32.totalorder 0, %v6145
        %v6147 = vsel %vm6146, 0, %v6145
        %v6148 = vsub.s32 32, %v6147
        %v6149 = vshll.u32 %v6140, %v6147
        %v6150 = vshrl.u32 %v6132, %v6148
        %v6151 = vor.u32 %v6149, %v6150
        %v6152 = vsub.s32 4294967266, %v6147
        %v6153 = vadd.s32 %v6152, 127
        %v6154 = vshll.u32 %v6153, 23
        %v6155 = vor.u32 4788187, %v6154
        %v6156 = vand.u32 2147483647, %v6155
        %v6158 = vcvt.s32.f32 %v6151
        %v6159 = vmul.f32 %v6158, %v6156
        %v6160 = vxor.u32 %v6159, 2147483648
        %v6161 = vsel %vm6078, %v6160, %v6159
        %v6162 = vsub.s32 4, %v6138
        %v6163 = vsel %vm6078, %v6162, %v6138
        %v6164 = vsel %vm6077, %v4721, %v6161
        %v6165 = vsel %vm6077, 0, %v6163
        %v6166 = vcosq.f32.pop %v6164
        %v6167 = vsinq.f32.pop %v6164
        %vm6168 = vweird.f32 %v4721
        %v6169 = vadd.s32 %v6165, 3
        %v6170 = vand.u32 %v6169, 3
        %vm6171 = vcmp.lt.s32.totalorder %v6170, 2
        %vm6172 = vcmp.eq.s32.totalorder %v6170, 0
        %v6173 = vxor.u32 %v6167, 2147483648
        %v6174 = vsel %vm6172, %v6166, %v6173
        %vm6175 = vcmp.eq.s32.totalorder %v6170, 2
        %v6176 = vxor.u32 %v6166, 2147483648
        %v6177 = vsel %vm6175, %v6176, %v6167
        %v6178 = vsel %vm6171, %v6174, %v6177
        %v6179 = vsel %vm6168, nan, %v6178
        %v6180 = vand.u32 2147483647, %v4722
        %vm6181 = vcmp.le.f32.partialorder %v6180, 0.7853982
        %vm6182 = vcmp.lt.s32.totalorder %v4722, 0
        %v6183 = vand.u32 %v4722, 2139095040
        %v6184 = vshrl.u32 %v6183, 23
        %v6185 = vsub.s32 %v6184, 127
        %v6186 = vand.u32 2147483647, %v4722
        %v6187 = vand.u32 %v6186, 8388607
        %v6188 = vor.u32 %v6187, 8388608
        %v6189 = vsub.s32 0, %v6188
        %v6190 = vadd.s32 %v6185, 1
        %vm6191 = vcmp.gt.s32.totalorder %v6190, 0
        %v6192 = vsel %vm6191, %v6190, 0
        %v6193 = vshrl.u32 %v6192, 5
        %v6194 = vand.u32 %v6192, 31
        %v6195 = vsub.s32 32, %v6194
        %v6196 = vshrl.u32 683565275, %v6195
        %v6197 = vshll.u32 683565275, %v6194
        %v6198 = vshrl.u32 2475754826, %v6195
        %v6199 = vor.u32 %v6197, %v6198
        %v6200 = vshll.u32 2475754826, %v6194
        %v6201 = vshrl.u32 2131351028, %v6195
        %v6202 = vor.u32 %v6200, %v6201
        %v6203 = vshll.u32 2131351028, %v6194
        %v6204 = vshrl.u32 2102212464, %v6195
        %v6205 = vor.u32 %v6203, %v6204
        %v6206 = vshll.u32 2102212464, %v6194
        %v6207 = vshrl.u32 920167782, %v6195
        %v6208 = vor.u32 %v6206, %v6207
        %v6209 = vshll.u32 920167782, %v6194
        %v6210 = vshrl.u32 1326507024, %v6195
        %v6211 = vor.u32 %v6209, %v6210
        %vm6212 = vcmp.lt.s32.totalorder %v6193, 1
        %vm6213 = vcmp.lt.s32.totalorder %v6193, 2
        %vm6214 = vcmp.lt.s32.totalorder %v6193, 3
        %vm6215 = vcmp.lt.s32.totalorder %v6193, 4
        %v6216 = vsel %vm6212, %v6196, %v6199
        %v6217 = vsel %vm6215, %v6205, 2102212464
        %v6218 = vsel %vm6214, %v6202, %v6217
        %v6219 = vsel %vm6213, %v6216, %v6218
        %v6220 = vsel %vm6212, %v6199, %v6202
        %v6221 = vsel %vm6215, %v6208, 920167782
        %v6222 = vsel %vm6214, %v6205, %v6221
        %v6223 = vsel %vm6213, %v6220, %v6222
        %v6224 = vsel %vm6212, %v6202, %v6205
        %v6225 = vsel %vm6215, %v6211, 1326507024
        %v6226 = vsel %vm6214, %v6208, %v6225
        %v6227 = vsel %vm6213, %v6224, %v6226
        %v6228 = vshll.u32 %v6188, 8
        %v6229 = vmul.u32.u64.compose %v6228, %v6227
        %v6230 = vextract.low.u32 %v6229
        %v6231 = vextract.high.u32 %v6229
        %v6232 = vmul.u32.u64.compose %v6228, %v6223
        %v6233 = vextract.low.u32 %v6232
        %v6234 = vextract.high.u32 %v6232
        %v6235 = vmul.u32 %v6228, %v6219
        %v6236 = vadd.s32 %v6231, %v6233
        %vm6237 = vc.u32 %v6231, %v6233
        %v6238 = vadd.s32 %v6234, 1
        %v6239 = vsel %vm6237, %v6238, %v6234
        %v6240 = vadd.s32 %v6235, %v6239
        %v6241 = vadd.s32 %v6240, 536870912
        %v6242 = vshrl.u32 %v6241, 30
        %v6243 = vshll.u32 %v6242, 30
        %v6244 = vsub.s32 %v6240, %v6243
        %vm6245 = vcmp.lt.s32.totalorder %v6244, 0
        %v6246 = vsub.s32 0, %v6244
        %v6247 = vsel %vm6245, %v6246, %v6244
        %v6248 = vclz %v6247
        %v6249 = vsub.s32 %v6248, 2
        %vm6250 = vcmp.gt.s32.totalorder 0, %v6249
        %v6251 = vsel %vm6250, 0, %v6249
        %v6252 = vsub.s32 32, %v6251
        %v6253 = vshll.u32 %v6244, %v6251
        %v6254 = vshrl.u32 %v6236, %v6252
        %v6255 = vor.u32 %v6253, %v6254
        %v6256 = vsub.s32 4294967266, %v6251
        %v6257 = vadd.s32 %v6256, 127
        %v6258 = vshll.u32 %v6257, 23
        %v6259 = vor.u32 4788187, %v6258
        %v6260 = vand.u32 2147483647, %v6259
        %v6262 = vcvt.s32.f32 %v6255
        %v6263 = vmul.f32 %v6262, %v6260
        %v6264 = vxor.u32 %v6263, 2147483648
        %v6265 = vsel %vm6182, %v6264, %v6263
        %v6266 = vsub.s32 4, %v6242
        %v6267 = vsel %vm6182, %v6266, %v6242
        %v6268 = vsel %vm6181, %v4722, %v6265
        %v6269 = vsel %vm6181, 0, %v6267
        %v6270 = vcosq.f32.pop %v6268
        %v6271 = vsinq.f32.pop %v6268
        %vm6272 = vweird.f32 %v4722
        %v6273 = vadd.s32 %v6269, 3
        %v6274 = vand.u32 %v6273, 3
        %vm6275 = vcmp.lt.s32.totalorder %v6274, 2
        %vm6276 = vcmp.eq.s32.totalorder %v6274, 0
        %v6277 = vxor.u32 %v6271, 2147483648
        %v6278 = vsel %vm6276, %v6270, %v6277
        %vm6279 = vcmp.eq.s32.totalorder %v6274, 2
        %v6280 = vxor.u32 %v6270, 2147483648
        %v6281 = vsel %vm6279, %v6280, %v6271
        %v6282 = vsel %vm6275, %v6278, %v6281
        %v6283 = vsel %vm6272, nan, %v6282
        %v6284 = vand.u32 2147483647, %v4723
        %vm6285 = vcmp.le.f32.partialorder %v6284, 0.7853982
        %vm6286 = vcmp.lt.s32.totalorder %v4723, 0
        %v6287 = vand.u32 %v4723, 2139095040
        %v6288 = vshrl.u32 %v6287, 23
        %v6289 = vsub.s32 %v6288, 127
        %v6290 = vand.u32 2147483647, %v4723
        %v6291 = vand.u32 %v6290, 8388607
        %v6292 = vor.u32 %v6291, 8388608
        %v6293 = vsub.s32 0, %v6292
        %v6294 = vadd.s32 %v6289, 1
        %vm6295 = vcmp.gt.s32.totalorder %v6294, 0
        %v6296 = vsel %vm6295, %v6294, 0
        %v6297 = vshrl.u32 %v6296, 5
        %v6298 = vand.u32 %v6296, 31
        %v6299 = vsub.s32 32, %v6298
        %v6300 = vshrl.u32 683565275, %v6299
        %v6301 = vshll.u32 683565275, %v6298
        %v6302 = vshrl.u32 2475754826, %v6299
        %v6303 = vor.u32 %v6301, %v6302
        %v6304 = vshll.u32 2475754826, %v6298
        %v6305 = vshrl.u32 2131351028, %v6299
        %v6306 = vor.u32 %v6304, %v6305
        %v6307 = vshll.u32 2131351028, %v6298
        %v6308 = vshrl.u32 2102212464, %v6299
        %v6309 = vor.u32 %v6307, %v6308
        %v6310 = vshll.u32 2102212464, %v6298
        %v6311 = vshrl.u32 920167782, %v6299
        %v6312 = vor.u32 %v6310, %v6311
        %v6313 = vshll.u32 920167782, %v6298
        %v6314 = vshrl.u32 1326507024, %v6299
        %v6315 = vor.u32 %v6313, %v6314
        %vm6316 = vcmp.lt.s32.totalorder %v6297, 1
        %vm6317 = vcmp.lt.s32.totalorder %v6297, 2
        %vm6318 = vcmp.lt.s32.totalorder %v6297, 3
        %vm6319 = vcmp.lt.s32.totalorder %v6297, 4
        %v6320 = vsel %vm6316, %v6300, %v6303
        %v6321 = vsel %vm6319, %v6309, 2102212464
        %v6322 = vsel %vm6318, %v6306, %v6321
        %v6323 = vsel %vm6317, %v6320, %v6322
        %v6324 = vsel %vm6316, %v6303, %v6306
        %v6325 = vsel %vm6319, %v6312, 920167782
        %v6326 = vsel %vm6318, %v6309, %v6325
        %v6327 = vsel %vm6317, %v6324, %v6326
        %v6328 = vsel %vm6316, %v6306, %v6309
        %v6329 = vsel %vm6319, %v6315, 1326507024
        %v6330 = vsel %vm6318, %v6312, %v6329
        %v6331 = vsel %vm6317, %v6328, %v6330
        %v6332 = vshll.u32 %v6292, 8
        %v6333 = vmul.u32.u64.compose %v6332, %v6331
        %v6334 = vextract.low.u32 %v6333
        %v6335 = vextract.high.u32 %v6333
        %v6336 = vmul.u32.u64.compose %v6332, %v6327
        %v6337 = vextract.low.u32 %v6336
        %v6338 = vextract.high.u32 %v6336
        %v6339 = vmul.u32 %v6332, %v6323
        %v6340 = vadd.s32 %v6335, %v6337
        %vm6341 = vc.u32 %v6335, %v6337
        %v6342 = vadd.s32 %v6338, 1
        %v6343 = vsel %vm6341, %v6342, %v6338
        %v6344 = vadd.s32 %v6339, %v6343
        %v6345 = vadd.s32 %v6344, 536870912
        %v6346 = vshrl.u32 %v6345, 30
        %v6347 = vshll.u32 %v6346, 30
        %v6348 = vsub.s32 %v6344, %v6347
        %vm6349 = vcmp.lt.s32.totalorder %v6348, 0
        %v6350 = vsub.s32 0, %v6348
        %v6351 = vsel %vm6349, %v6350, %v6348
        %v6352 = vclz %v6351
        %v6353 = vsub.s32 %v6352, 2
        %vm6354 = vcmp.gt.s32.totalorder 0, %v6353
        %v6355 = vsel %vm6354, 0, %v6353
        %v6356 = vsub.s32 32, %v6355
        %v6357 = vshll.u32 %v6348, %v6355
        %v6358 = vshrl.u32 %v6340, %v6356
        %v6359 = vor.u32 %v6357, %v6358
        %v6360 = vsub.s32 4294967266, %v6355
        %v6361 = vadd.s32 %v6360, 127
        %v6362 = vshll.u32 %v6361, 23
        %v6363 = vor.u32 4788187, %v6362
        %v6364 = vand.u32 2147483647, %v6363
        %v6366 = vcvt.s32.f32 %v6359
        %v6367 = vmul.f32 %v6366, %v6364
        %v6368 = vxor.u32 %v6367, 2147483648
        %v6369 = vsel %vm6286, %v6368, %v6367
        %v6370 = vsub.s32 4, %v6346
        %v6371 = vsel %vm6286, %v6370, %v6346
        %v6372 = vsel %vm6285, %v4723, %v6369
        %v6373 = vsel %vm6285, 0, %v6371
        %v6374 = vcosq.f32.pop %v6372
        %v6375 = vsinq.f32.pop %v6372
        %vm6376 = vweird.f32 %v4723
        %v6377 = vadd.s32 %v6373, 3
        %v6378 = vand.u32 %v6377, 3
        %vm6379 = vcmp.lt.s32.totalorder %v6378, 2
        %vm6380 = vcmp.eq.s32.totalorder %v6378, 0
        %v6381 = vxor.u32 %v6375, 2147483648
        %v6382 = vsel %vm6380, %v6374, %v6381
        %vm6383 = vcmp.eq.s32.totalorder %v6378, 2
        %v6384 = vxor.u32 %v6374, 2147483648
        %v6385 = vsel %vm6383, %v6384, %v6375
        %v6386 = vsel %vm6379, %v6382, %v6385
        %v6387 = vsel %vm6376, nan, %v6386
        %v6388 = vld [vmem:[%s7] sm:$0xff]
        %v6389 = vld [vmem:[%s7 + $0x8] sm:$0xff]
        %v6390 = vld [vmem:[%s7 + $0x10] sm:$0xff]
        %v6391 = vld [vmem:[%s7 + $0x18] sm:$0xff]
        %v6392 = vld [vmem:[%s8] sm:$0xff]
        %v6393 = vld [vmem:[%s8 + $0x8] sm:$0xff]
        %v6394 = vld [vmem:[%s8 + $0x10] sm:$0xff]
        %v6395 = vld [vmem:[%s8 + $0x18] sm:$0xff]
        %6397 = vset.pattern.permute.xlu0 0
        %6398 = vperm.xlu0 %6397, %v6392
        %v6399 = vpop.permute.xlu0 %6398
        %6402 = vset.pattern.permute.xlu0 0
        %6403 = vperm.xlu0 %6402, %v6393
        %v6404 = vpop.permute.xlu0 %6403
        %6407 = vset.pattern.permute.xlu0 0
        %6408 = vperm.xlu0 %6407, %v6394
        %v6409 = vpop.permute.xlu0 %6408
        %6412 = vset.pattern.permute.xlu0 0
        %6413 = vperm.xlu0 %6412, %v6395
        %v6414 = vpop.permute.xlu0 %6413
        %v6417 = vsel %vm2619, %v6388, 0
        %v6420 = vsel %vm2619, %v6389, 0
        %v6423 = vsel %vm2619, %v6390, 0
        %v6426 = vsel %vm2619, %v6391, 0
        %6428 = vmatprep.subr.mxu0 0.0
        %6429 = vmatpush1.msra.mxu0 0.0
        %6430 = vmatprep.subr.mxu0 0.0
        %6431 = vmatpush1.msra.mxu0 0.0
        %6432 = vmatprep.subr.mxu0 0.0
        %6433 = vmatpush1.msra.mxu0 0.0
        %6434 = vmatprep.subr.mxu0 0.0
        %6435 = vmatpush1.msra.mxu0 0.0
        %6436 = vmatprep.subr.mxu0 0.0
        %6437 = vmatpush1.msra.mxu0 0.0
        %6438 = vmatprep.subr.mxu0 0.0
        %6439 = vmatpush1.msra.mxu0 0.0
        %6440 = vmatprep.subr.mxu0 0.0
        %6441 = vmatpush1.msra.mxu0 0.0
        %6442 = vmatprep.subr.mxu0 0.0
        %6443 = vmatpush1.msra.mxu0 0.0
        %6444 = vmatprep.subr.mxu0 0.0
        %6445 = vmatpush1.msra.mxu0 0.0
        %6446 = vmatprep.subr.mxu0 0.0
        %6447 = vmatpush1.msra.mxu0 0.0
        %6448 = vmatprep.subr.mxu0 0.0
        %6449 = vmatpush1.msra.mxu0 0.0
        %6450 = vmatprep.subr.mxu0 0.0
        %6451 = vmatpush1.msra.mxu0 0.0
        %6452 = vmatprep.subr.mxu0 %v6179
        %6453 = vmatpush1.msra.mxu0 %v6075
        %6454 = vmatprep.subr.mxu0 %v5763
        %6455 = vmatpush1.msra.mxu0 %v5659
        %6456 = vmatprep.subr.mxu0 %v5347
        %6457 = vmatpush1.msra.mxu0 %v5243
        %6458 = vmatprep.subr.mxu0 %v4931
        %6459 = vmatpush1.msra.mxu0 %v4827
        %6460 = vmatprep.subr.mxu0 0.0
        %6461 = vmatpush2.msra.mxu0 0.0
        %6462 = vmatprep.subr.mxu0 0.0
        %6463 = vmatpush2.msra.mxu0 0.0
        %6464 = vmatprep.subr.mxu0 0.0
        %6465 = vmatpush2.msra.mxu0 0.0
        %6466 = vmatprep.subr.mxu0 0.0
        %6467 = vmatpush2.msra.mxu0 0.0
        %6468 = vmatprep.subr.mxu0 0.0
        %6469 = vmatpush2.msra.mxu0 0.0
        %6470 = vmatprep.subr.mxu0 0.0
        %6471 = vmatpush2.msra.mxu0 0.0
        %6472 = vmatprep.subr.mxu0 0.0
        %6473 = vmatpush2.msra.mxu0 0.0
        %6474 = vmatprep.subr.mxu0 0.0
        %6475 = vmatpush2.msra.mxu0 0.0
        %6476 = vmatprep.subr.mxu0 0.0
        %6477 = vmatpush2.msra.mxu0 0.0
        %6478 = vmatprep.subr.mxu0 0.0
        %6479 = vmatpush2.msra.mxu0 0.0
        %6480 = vmatprep.subr.mxu0 0.0
        %6481 = vmatpush2.msra.mxu0 0.0
        %6482 = vmatprep.subr.mxu0 0.0
        %6483 = vmatpush2.msra.mxu0 0.0
        %6484 = vmatprep.subr.mxu0 0.0
        %6485 = vmatpush2.msra.mxu0 0.0
        %6486 = vmatprep.subr.mxu0 0.0
        %6487 = vmatpush2.msra.mxu0 0.0
        %6488 = vmatprep.subr.mxu0 0.0
        %6489 = vmatpush2.msra.mxu0 0.0
        %6490 = vmatprep.subr.mxu0 0.0
        %6491 = vmatpush2.msra.mxu0 0.0
        %6492 = vmatprep.mubr.f32.mxu0 0.0
        %6493 = vmatmul.mubr.f32.gmra.mxu0 %v6417
        %v6494 = vpop.f32.mrf.mxu0
        %v6495 = vadd.f32 %v6399, %v6494
        %v6496 = vpop.f32.mrf.mxu0
        %v6497 = vadd.f32 %v6399, %v6496
        %6498 = vmatprep.mubr.f32.mxu0 0.0
        %6499 = vmatmul.mubr.f32.gmra.mxu0 %v6420
        %v6500 = vpop.f32.mrf.mxu0
        %v6501 = vadd.f32 %v6404, %v6500
        %v6502 = vpop.f32.mrf.mxu0
        %v6503 = vadd.f32 %v6404, %v6502
        %6504 = vmatprep.mubr.f32.mxu0 0.0
        %6505 = vmatmul.mubr.f32.gmra.mxu0 %v6423
        %v6506 = vpop.f32.mrf.mxu0
        %v6507 = vadd.f32 %v6409, %v6506
        %v6508 = vpop.f32.mrf.mxu0
        %v6509 = vadd.f32 %v6409, %v6508
        %6510 = vmatprep.mubr.f32.mxu0 0.0
        %6511 = vmatmul.mubr.f32.gmra.mxu0 %v6426
        %v6512 = vpop.f32.mrf.mxu0
        %v6513 = vadd.f32 %v6414, %v6512
        %v6514 = vpop.f32.mrf.mxu0
        %v6515 = vadd.f32 %v6414, %v6514
        %6516 = vdwg.mxu0
        %6517 = vmatprep.subr.mxu0 0.0
        %6518 = vmatpush1.msra.mxu0 0.0
        %6519 = vmatprep.subr.mxu0 0.0
        %6520 = vmatpush1.msra.mxu0 0.0
        %6521 = vmatprep.subr.mxu0 0.0
        %6522 = vmatpush1.msra.mxu0 0.0
        %6523 = vmatprep.subr.mxu0 0.0
        %6524 = vmatpush1.msra.mxu0 0.0
        %6525 = vmatprep.subr.mxu0 0.0
        %6526 = vmatpush1.msra.mxu0 0.0
        %6527 = vmatprep.subr.mxu0 0.0
        %6528 = vmatpush1.msra.mxu0 0.0
        %6529 = vmatprep.subr.mxu0 0.0
        %6530 = vmatpush1.msra.mxu0 0.0
        %6531 = vmatprep.subr.mxu0 0.0
        %6532 = vmatpush1.msra.mxu0 0.0
        %6533 = vmatprep.subr.mxu0 0.0
        %6534 = vmatpush1.msra.mxu0 0.0
        %6535 = vmatprep.subr.mxu0 0.0
        %6536 = vmatpush1.msra.mxu0 0.0
        %6537 = vmatprep.subr.mxu0 0.0
        %6538 = vmatpush1.msra.mxu0 0.0
        %6539 = vmatprep.subr.mxu0 0.0
        %6540 = vmatpush1.msra.mxu0 0.0
        %6541 = vmatprep.subr.mxu0 %v6387
        %6542 = vmatpush1.msra.mxu0 %v6283
        %6543 = vmatprep.subr.mxu0 %v5971
        %6544 = vmatpush1.msra.mxu0 %v5867
        %6545 = vmatprep.subr.mxu0 %v5555
        %6546 = vmatpush1.msra.mxu0 %v5451
        %6547 = vmatprep.subr.mxu0 %v5139
        %6548 = vmatpush1.msra.mxu0 %v5035
        %6549 = vmatprep.subr.mxu0 0.0
        %6550 = vmatpush2.msra.mxu0 0.0
        %6551 = vmatprep.subr.mxu0 0.0
        %6552 = vmatpush2.msra.mxu0 0.0
        %6553 = vmatprep.subr.mxu0 0.0
        %6554 = vmatpush2.msra.mxu0 0.0
        %6555 = vmatprep.subr.mxu0 0.0
        %6556 = vmatpush2.msra.mxu0 0.0
        %6557 = vmatprep.subr.mxu0 0.0
        %6558 = vmatpush2.msra.mxu0 0.0
        %6559 = vmatprep.subr.mxu0 0.0
        %6560 = vmatpush2.msra.mxu0 0.0
        %6561 = vmatprep.subr.mxu0 0.0
        %6562 = vmatpush2.msra.mxu0 0.0
        %6563 = vmatprep.subr.mxu0 0.0
        %6564 = vmatpush2.msra.mxu0 0.0
        %6565 = vmatprep.subr.mxu0 0.0
        %6566 = vmatpush2.msra.mxu0 0.0
        %6567 = vmatprep.subr.mxu0 0.0
        %6568 = vmatpush2.msra.mxu0 0.0
        %6569 = vmatprep.subr.mxu0 0.0
        %6570 = vmatpush2.msra.mxu0 0.0
        %6571 = vmatprep.subr.mxu0 0.0
        %6572 = vmatpush2.msra.mxu0 0.0
        %6573 = vmatprep.subr.mxu0 0.0
        %6574 = vmatpush2.msra.mxu0 0.0
        %6575 = vmatprep.subr.mxu0 0.0
        %6576 = vmatpush2.msra.mxu0 0.0
        %6577 = vmatprep.subr.mxu0 0.0
        %6578 = vmatpush2.msra.mxu0 0.0
        %6579 = vmatprep.subr.mxu0 0.0
        %6580 = vmatpush2.msra.mxu0 0.0
        %6581 = vmatprep.mubr.f32.mxu0 0.0
        %6582 = vmatmul.mubr.f32.gmra.mxu0 %v6417
        %v6583 = vpop.f32.mrf.mxu0
        %v6584 = vadd.f32 %v6399, %v6583
        %v6585 = vpop.f32.mrf.mxu0
        %v6586 = vadd.f32 %v6399, %v6585
        %6587 = vmatprep.mubr.f32.mxu0 0.0
        %6588 = vmatmul.mubr.f32.gmra.mxu0 %v6420
        %v6589 = vpop.f32.mrf.mxu0
        %v6590 = vadd.f32 %v6404, %v6589
        %v6591 = vpop.f32.mrf.mxu0
        %v6592 = vadd.f32 %v6404, %v6591
        %6593 = vmatprep.mubr.f32.mxu0 0.0
        %6594 = vmatmul.mubr.f32.gmra.mxu0 %v6423
        %v6595 = vpop.f32.mrf.mxu0
        %v6596 = vadd.f32 %v6409, %v6595
        %v6597 = vpop.f32.mrf.mxu0
        %v6598 = vadd.f32 %v6409, %v6597
        %6599 = vmatprep.mubr.f32.mxu0 0.0
        %6600 = vmatmul.mubr.f32.gmra.mxu0 %v6426
        %v6601 = vpop.f32.mrf.mxu0
        %v6602 = vadd.f32 %v6414, %v6601
        %v6603 = vpop.f32.mrf.mxu0
        %v6604 = vadd.f32 %v6414, %v6603
        %6605 = vdwg.mxu0
        %v6606 = vmul.f32 %v6495, 30.0
        %v6607 = vmul.f32 %v6497, 30.0
        %v6608 = vmul.f32 %v6584, 30.0
        %v6609 = vmul.f32 %v6586, 30.0
        %v6610 = vmul.f32 %v6501, 30.0
        %v6611 = vmul.f32 %v6503, 30.0
        %v6612 = vmul.f32 %v6590, 30.0
        %v6613 = vmul.f32 %v6592, 30.0
        %v6614 = vmul.f32 %v6507, 30.0
        %v6615 = vmul.f32 %v6509, 30.0
        %v6616 = vmul.f32 %v6596, 30.0
        %v6617 = vmul.f32 %v6598, 30.0
        %v6618 = vmul.f32 %v6513, 30.0
        %v6619 = vmul.f32 %v6515, 30.0
        %v6620 = vmul.f32 %v6602, 30.0
        %v6621 = vmul.f32 %v6604, 30.0
        %v6622 = vand.u32 2147483647, %v6606
        %vm6623 = vcmp.le.f32.partialorder %v6622, 0.7853982
        %vm6624 = vcmp.lt.s32.totalorder %v6606, 0
        %v6625 = vand.u32 %v6606, 2139095040
        %v6626 = vshrl.u32 %v6625, 23
        %v6627 = vsub.s32 %v6626, 127
        %v6628 = vand.u32 2147483647, %v6606
        %v6629 = vand.u32 %v6628, 8388607
        %v6630 = vor.u32 %v6629, 8388608
        %v6631 = vsub.s32 0, %v6630
        %v6632 = vadd.s32 %v6627, 1
        %vm6633 = vcmp.gt.s32.totalorder %v6632, 0
        %v6634 = vsel %vm6633, %v6632, 0
        %v6635 = vshrl.u32 %v6634, 5
        %v6636 = vand.u32 %v6634, 31
        %v6637 = vsub.s32 32, %v6636
        %v6638 = vshrl.u32 683565275, %v6637
        %v6639 = vshll.u32 683565275, %v6636
        %v6640 = vshrl.u32 2475754826, %v6637
        %v6641 = vor.u32 %v6639, %v6640
        %v6642 = vshll.u32 2475754826, %v6636
        %v6643 = vshrl.u32 2131351028, %v6637
        %v6644 = vor.u32 %v6642, %v6643
        %v6645 = vshll.u32 2131351028, %v6636
        %v6646 = vshrl.u32 2102212464, %v6637
        %v6647 = vor.u32 %v6645, %v6646
        %v6648 = vshll.u32 2102212464, %v6636
        %v6649 = vshrl.u32 920167782, %v6637
        %v6650 = vor.u32 %v6648, %v6649
        %v6651 = vshll.u32 920167782, %v6636
        %v6652 = vshrl.u32 1326507024, %v6637
        %v6653 = vor.u32 %v6651, %v6652
        %vm6654 = vcmp.lt.s32.totalorder %v6635, 1
        %vm6655 = vcmp.lt.s32.totalorder %v6635, 2
        %vm6656 = vcmp.lt.s32.totalorder %v6635, 3
        %vm6657 = vcmp.lt.s32.totalorder %v6635, 4
        %v6658 = vsel %vm6654, %v6638, %v6641
        %v6659 = vsel %vm6657, %v6647, 2102212464
        %v6660 = vsel %vm6656, %v6644, %v6659
        %v6661 = vsel %vm6655, %v6658, %v6660
        %v6662 = vsel %vm6654, %v6641, %v6644
        %v6663 = vsel %vm6657, %v6650, 920167782
        %v6664 = vsel %vm6656, %v6647, %v6663
        %v6665 = vsel %vm6655, %v6662, %v6664
        %v6666 = vsel %vm6654, %v6644, %v6647
        %v6667 = vsel %vm6657, %v6653, 1326507024
        %v6668 = vsel %vm6656, %v6650, %v6667
        %v6669 = vsel %vm6655, %v6666, %v6668
        %v6670 = vshll.u32 %v6630, 8
        %v6671 = vmul.u32.u64.compose %v6670, %v6669
        %v6672 = vextract.low.u32 %v6671
        %v6673 = vextract.high.u32 %v6671
        %v6674 = vmul.u32.u64.compose %v6670, %v6665
        %v6675 = vextract.low.u32 %v6674
        %v6676 = vextract.high.u32 %v6674
        %v6677 = vmul.u32 %v6670, %v6661
        %v6678 = vadd.s32 %v6673, %v6675
        %vm6679 = vc.u32 %v6673, %v6675
        %v6680 = vadd.s32 %v6676, 1
        %v6681 = vsel %vm6679, %v6680, %v6676
        %v6682 = vadd.s32 %v6677, %v6681
        %v6683 = vadd.s32 %v6682, 536870912
        %v6684 = vshrl.u32 %v6683, 30
        %v6685 = vshll.u32 %v6684, 30
        %v6686 = vsub.s32 %v6682, %v6685
        %vm6687 = vcmp.lt.s32.totalorder %v6686, 0
        %v6688 = vsub.s32 0, %v6686
        %v6689 = vsel %vm6687, %v6688, %v6686
        %v6690 = vclz %v6689
        %v6691 = vsub.s32 %v6690, 2
        %vm6692 = vcmp.gt.s32.totalorder 0, %v6691
        %v6693 = vsel %vm6692, 0, %v6691
        %v6694 = vsub.s32 32, %v6693
        %v6695 = vshll.u32 %v6686, %v6693
        %v6696 = vshrl.u32 %v6678, %v6694
        %v6697 = vor.u32 %v6695, %v6696
        %v6698 = vsub.s32 4294967266, %v6693
        %v6699 = vadd.s32 %v6698, 127
        %v6700 = vshll.u32 %v6699, 23
        %v6701 = vor.u32 4788187, %v6700
        %v6702 = vand.u32 2147483647, %v6701
        %v6704 = vcvt.s32.f32 %v6697
        %v6705 = vmul.f32 %v6704, %v6702
        %v6706 = vxor.u32 %v6705, 2147483648
        %v6707 = vsel %vm6624, %v6706, %v6705
        %v6708 = vsub.s32 4, %v6684
        %v6709 = vsel %vm6624, %v6708, %v6684
        %v6710 = vsel %vm6623, %v6606, %v6707
        %v6711 = vsel %vm6623, 0, %v6709
        %v6712 = vcosq.f32.pop %v6710
        %v6713 = vsinq.f32.pop %v6710
        %vm6714 = vweird.f32 %v6606
        %v6715 = vadd.s32 %v6711, 3
        %v6716 = vand.u32 %v6715, 3
        %vm6717 = vcmp.lt.s32.totalorder %v6716, 2
        %vm6718 = vcmp.eq.s32.totalorder %v6716, 0
        %v6719 = vxor.u32 %v6713, 2147483648
        %v6720 = vsel %vm6718, %v6712, %v6719
        %vm6721 = vcmp.eq.s32.totalorder %v6716, 2
        %v6722 = vxor.u32 %v6712, 2147483648
        %v6723 = vsel %vm6721, %v6722, %v6713
        %v6724 = vsel %vm6717, %v6720, %v6723
        %v6725 = vsel %vm6714, nan, %v6724
        %v6726 = vand.u32 2147483647, %v6607
        %vm6727 = vcmp.le.f32.partialorder %v6726, 0.7853982
        %vm6728 = vcmp.lt.s32.totalorder %v6607, 0
        %v6729 = vand.u32 %v6607, 2139095040
        %v6730 = vshrl.u32 %v6729, 23
        %v6731 = vsub.s32 %v6730, 127
        %v6732 = vand.u32 2147483647, %v6607
        %v6733 = vand.u32 %v6732, 8388607
        %v6734 = vor.u32 %v6733, 8388608
        %v6735 = vsub.s32 0, %v6734
        %v6736 = vadd.s32 %v6731, 1
        %vm6737 = vcmp.gt.s32.totalorder %v6736, 0
        %v6738 = vsel %vm6737, %v6736, 0
        %v6739 = vshrl.u32 %v6738, 5
        %v6740 = vand.u32 %v6738, 31
        %v6741 = vsub.s32 32, %v6740
        %v6742 = vshrl.u32 683565275, %v6741
        %v6743 = vshll.u32 683565275, %v6740
        %v6744 = vshrl.u32 2475754826, %v6741
        %v6745 = vor.u32 %v6743, %v6744
        %v6746 = vshll.u32 2475754826, %v6740
        %v6747 = vshrl.u32 2131351028, %v6741
        %v6748 = vor.u32 %v6746, %v6747
        %v6749 = vshll.u32 2131351028, %v6740
        %v6750 = vshrl.u32 2102212464, %v6741
        %v6751 = vor.u32 %v6749, %v6750
        %v6752 = vshll.u32 2102212464, %v6740
        %v6753 = vshrl.u32 920167782, %v6741
        %v6754 = vor.u32 %v6752, %v6753
        %v6755 = vshll.u32 920167782, %v6740
        %v6756 = vshrl.u32 1326507024, %v6741
        %v6757 = vor.u32 %v6755, %v6756
        %vm6758 = vcmp.lt.s32.totalorder %v6739, 1
        %vm6759 = vcmp.lt.s32.totalorder %v6739, 2
        %vm6760 = vcmp.lt.s32.totalorder %v6739, 3
        %vm6761 = vcmp.lt.s32.totalorder %v6739, 4
        %v6762 = vsel %vm6758, %v6742, %v6745
        %v6763 = vsel %vm6761, %v6751, 2102212464
        %v6764 = vsel %vm6760, %v6748, %v6763
        %v6765 = vsel %vm6759, %v6762, %v6764
        %v6766 = vsel %vm6758, %v6745, %v6748
        %v6767 = vsel %vm6761, %v6754, 920167782
        %v6768 = vsel %vm6760, %v6751, %v6767
        %v6769 = vsel %vm6759, %v6766, %v6768
        %v6770 = vsel %vm6758, %v6748, %v6751
        %v6771 = vsel %vm6761, %v6757, 1326507024
        %v6772 = vsel %vm6760, %v6754, %v6771
        %v6773 = vsel %vm6759, %v6770, %v6772
        %v6774 = vshll.u32 %v6734, 8
        %v6775 = vmul.u32.u64.compose %v6774, %v6773
        %v6776 = vextract.low.u32 %v6775
        %v6777 = vextract.high.u32 %v6775
        %v6778 = vmul.u32.u64.compose %v6774, %v6769
        %v6779 = vextract.low.u32 %v6778
        %v6780 = vextract.high.u32 %v6778
        %v6781 = vmul.u32 %v6774, %v6765
        %v6782 = vadd.s32 %v6777, %v6779
        %vm6783 = vc.u32 %v6777, %v6779
        %v6784 = vadd.s32 %v6780, 1
        %v6785 = vsel %vm6783, %v6784, %v6780
        %v6786 = vadd.s32 %v6781, %v6785
        %v6787 = vadd.s32 %v6786, 536870912
        %v6788 = vshrl.u32 %v6787, 30
        %v6789 = vshll.u32 %v6788, 30
        %v6790 = vsub.s32 %v6786, %v6789
        %vm6791 = vcmp.lt.s32.totalorder %v6790, 0
        %v6792 = vsub.s32 0, %v6790
        %v6793 = vsel %vm6791, %v6792, %v6790
        %v6794 = vclz %v6793
        %v6795 = vsub.s32 %v6794, 2
        %vm6796 = vcmp.gt.s32.totalorder 0, %v6795
        %v6797 = vsel %vm6796, 0, %v6795
        %v6798 = vsub.s32 32, %v6797
        %v6799 = vshll.u32 %v6790, %v6797
        %v6800 = vshrl.u32 %v6782, %v6798
        %v6801 = vor.u32 %v6799, %v6800
        %v6802 = vsub.s32 4294967266, %v6797
        %v6803 = vadd.s32 %v6802, 127
        %v6804 = vshll.u32 %v6803, 23
        %v6805 = vor.u32 4788187, %v6804
        %v6806 = vand.u32 2147483647, %v6805
        %v6808 = vcvt.s32.f32 %v6801
        %v6809 = vmul.f32 %v6808, %v6806
        %v6810 = vxor.u32 %v6809, 2147483648
        %v6811 = vsel %vm6728, %v6810, %v6809
        %v6812 = vsub.s32 4, %v6788
        %v6813 = vsel %vm6728, %v6812, %v6788
        %v6814 = vsel %vm6727, %v6607, %v6811
        %v6815 = vsel %vm6727, 0, %v6813
        %v6816 = vcosq.f32.pop %v6814
        %v6817 = vsinq.f32.pop %v6814
        %vm6818 = vweird.f32 %v6607
        %v6819 = vadd.s32 %v6815, 3
        %v6820 = vand.u32 %v6819, 3
        %vm6821 = vcmp.lt.s32.totalorder %v6820, 2
        %vm6822 = vcmp.eq.s32.totalorder %v6820, 0
        %v6823 = vxor.u32 %v6817, 2147483648
        %v6824 = vsel %vm6822, %v6816, %v6823
        %vm6825 = vcmp.eq.s32.totalorder %v6820, 2
        %v6826 = vxor.u32 %v6816, 2147483648
        %v6827 = vsel %vm6825, %v6826, %v6817
        %v6828 = vsel %vm6821, %v6824, %v6827
        %v6829 = vsel %vm6818, nan, %v6828
        %v6830 = vand.u32 2147483647, %v6608
        %vm6831 = vcmp.le.f32.partialorder %v6830, 0.7853982
        %vm6832 = vcmp.lt.s32.totalorder %v6608, 0
        %v6833 = vand.u32 %v6608, 2139095040
        %v6834 = vshrl.u32 %v6833, 23
        %v6835 = vsub.s32 %v6834, 127
        %v6836 = vand.u32 2147483647, %v6608
        %v6837 = vand.u32 %v6836, 8388607
        %v6838 = vor.u32 %v6837, 8388608
        %v6839 = vsub.s32 0, %v6838
        %v6840 = vadd.s32 %v6835, 1
        %vm6841 = vcmp.gt.s32.totalorder %v6840, 0
        %v6842 = vsel %vm6841, %v6840, 0
        %v6843 = vshrl.u32 %v6842, 5
        %v6844 = vand.u32 %v6842, 31
        %v6845 = vsub.s32 32, %v6844
        %v6846 = vshrl.u32 683565275, %v6845
        %v6847 = vshll.u32 683565275, %v6844
        %v6848 = vshrl.u32 2475754826, %v6845
        %v6849 = vor.u32 %v6847, %v6848
        %v6850 = vshll.u32 2475754826, %v6844
        %v6851 = vshrl.u32 2131351028, %v6845
        %v6852 = vor.u32 %v6850, %v6851
        %v6853 = vshll.u32 2131351028, %v6844
        %v6854 = vshrl.u32 2102212464, %v6845
        %v6855 = vor.u32 %v6853, %v6854
        %v6856 = vshll.u32 2102212464, %v6844
        %v6857 = vshrl.u32 920167782, %v6845
        %v6858 = vor.u32 %v6856, %v6857
        %v6859 = vshll.u32 920167782, %v6844
        %v6860 = vshrl.u32 1326507024, %v6845
        %v6861 = vor.u32 %v6859, %v6860
        %vm6862 = vcmp.lt.s32.totalorder %v6843, 1
        %vm6863 = vcmp.lt.s32.totalorder %v6843, 2
        %vm6864 = vcmp.lt.s32.totalorder %v6843, 3
        %vm6865 = vcmp.lt.s32.totalorder %v6843, 4
        %v6866 = vsel %vm6862, %v6846, %v6849
        %v6867 = vsel %vm6865, %v6855, 2102212464
        %v6868 = vsel %vm6864, %v6852, %v6867
        %v6869 = vsel %vm6863, %v6866, %v6868
        %v6870 = vsel %vm6862, %v6849, %v6852
        %v6871 = vsel %vm6865, %v6858, 920167782
        %v6872 = vsel %vm6864, %v6855, %v6871
        %v6873 = vsel %vm6863, %v6870, %v6872
        %v6874 = vsel %vm6862, %v6852, %v6855
        %v6875 = vsel %vm6865, %v6861, 1326507024
        %v6876 = vsel %vm6864, %v6858, %v6875
        %v6877 = vsel %vm6863, %v6874, %v6876
        %v6878 = vshll.u32 %v6838, 8
        %v6879 = vmul.u32.u64.compose %v6878, %v6877
        %v6880 = vextract.low.u32 %v6879
        %v6881 = vextract.high.u32 %v6879
        %v6882 = vmul.u32.u64.compose %v6878, %v6873
        %v6883 = vextract.low.u32 %v6882
        %v6884 = vextract.high.u32 %v6882
        %v6885 = vmul.u32 %v6878, %v6869
        %v6886 = vadd.s32 %v6881, %v6883
        %vm6887 = vc.u32 %v6881, %v6883
        %v6888 = vadd.s32 %v6884, 1
        %v6889 = vsel %vm6887, %v6888, %v6884
        %v6890 = vadd.s32 %v6885, %v6889
        %v6891 = vadd.s32 %v6890, 536870912
        %v6892 = vshrl.u32 %v6891, 30
        %v6893 = vshll.u32 %v6892, 30
        %v6894 = vsub.s32 %v6890, %v6893
        %vm6895 = vcmp.lt.s32.totalorder %v6894, 0
        %v6896 = vsub.s32 0, %v6894
        %v6897 = vsel %vm6895, %v6896, %v6894
        %v6898 = vclz %v6897
        %v6899 = vsub.s32 %v6898, 2
        %vm6900 = vcmp.gt.s32.totalorder 0, %v6899
        %v6901 = vsel %vm6900, 0, %v6899
        %v6902 = vsub.s32 32, %v6901
        %v6903 = vshll.u32 %v6894, %v6901
        %v6904 = vshrl.u32 %v6886, %v6902
        %v6905 = vor.u32 %v6903, %v6904
        %v6906 = vsub.s32 4294967266, %v6901
        %v6907 = vadd.s32 %v6906, 127
        %v6908 = vshll.u32 %v6907, 23
        %v6909 = vor.u32 4788187, %v6908
        %v6910 = vand.u32 2147483647, %v6909
        %v6912 = vcvt.s32.f32 %v6905
        %v6913 = vmul.f32 %v6912, %v6910
        %v6914 = vxor.u32 %v6913, 2147483648
        %v6915 = vsel %vm6832, %v6914, %v6913
        %v6916 = vsub.s32 4, %v6892
        %v6917 = vsel %vm6832, %v6916, %v6892
        %v6918 = vsel %vm6831, %v6608, %v6915
        %v6919 = vsel %vm6831, 0, %v6917
        %v6920 = vcosq.f32.pop %v6918
        %v6921 = vsinq.f32.pop %v6918
        %vm6922 = vweird.f32 %v6608
        %v6923 = vadd.s32 %v6919, 3
        %v6924 = vand.u32 %v6923, 3
        %vm6925 = vcmp.lt.s32.totalorder %v6924, 2
        %vm6926 = vcmp.eq.s32.totalorder %v6924, 0
        %v6927 = vxor.u32 %v6921, 2147483648
        %v6928 = vsel %vm6926, %v6920, %v6927
        %vm6929 = vcmp.eq.s32.totalorder %v6924, 2
        %v6930 = vxor.u32 %v6920, 2147483648
        %v6931 = vsel %vm6929, %v6930, %v6921
        %v6932 = vsel %vm6925, %v6928, %v6931
        %v6933 = vsel %vm6922, nan, %v6932
        %v6934 = vand.u32 2147483647, %v6609
        %vm6935 = vcmp.le.f32.partialorder %v6934, 0.7853982
        %vm6936 = vcmp.lt.s32.totalorder %v6609, 0
        %v6937 = vand.u32 %v6609, 2139095040
        %v6938 = vshrl.u32 %v6937, 23
        %v6939 = vsub.s32 %v6938, 127
        %v6940 = vand.u32 2147483647, %v6609
        %v6941 = vand.u32 %v6940, 8388607
        %v6942 = vor.u32 %v6941, 8388608
        %v6943 = vsub.s32 0, %v6942
        %v6944 = vadd.s32 %v6939, 1
        %vm6945 = vcmp.gt.s32.totalorder %v6944, 0
        %v6946 = vsel %vm6945, %v6944, 0
        %v6947 = vshrl.u32 %v6946, 5
        %v6948 = vand.u32 %v6946, 31
        %v6949 = vsub.s32 32, %v6948
        %v6950 = vshrl.u32 683565275, %v6949
        %v6951 = vshll.u32 683565275, %v6948
        %v6952 = vshrl.u32 2475754826, %v6949
        %v6953 = vor.u32 %v6951, %v6952
        %v6954 = vshll.u32 2475754826, %v6948
        %v6955 = vshrl.u32 2131351028, %v6949
        %v6956 = vor.u32 %v6954, %v6955
        %v6957 = vshll.u32 2131351028, %v6948
        %v6958 = vshrl.u32 2102212464, %v6949
        %v6959 = vor.u32 %v6957, %v6958
        %v6960 = vshll.u32 2102212464, %v6948
        %v6961 = vshrl.u32 920167782, %v6949
        %v6962 = vor.u32 %v6960, %v6961
        %v6963 = vshll.u32 920167782, %v6948
        %v6964 = vshrl.u32 1326507024, %v6949
        %v6965 = vor.u32 %v6963, %v6964
        %vm6966 = vcmp.lt.s32.totalorder %v6947, 1
        %vm6967 = vcmp.lt.s32.totalorder %v6947, 2
        %vm6968 = vcmp.lt.s32.totalorder %v6947, 3
        %vm6969 = vcmp.lt.s32.totalorder %v6947, 4
        %v6970 = vsel %vm6966, %v6950, %v6953
        %v6971 = vsel %vm6969, %v6959, 2102212464
        %v6972 = vsel %vm6968, %v6956, %v6971
        %v6973 = vsel %vm6967, %v6970, %v6972
        %v6974 = vsel %vm6966, %v6953, %v6956
        %v6975 = vsel %vm6969, %v6962, 920167782
        %v6976 = vsel %vm6968, %v6959, %v6975
        %v6977 = vsel %vm6967, %v6974, %v6976
        %v6978 = vsel %vm6966, %v6956, %v6959
        %v6979 = vsel %vm6969, %v6965, 1326507024
        %v6980 = vsel %vm6968, %v6962, %v6979
        %v6981 = vsel %vm6967, %v6978, %v6980
        %v6982 = vshll.u32 %v6942, 8
        %v6983 = vmul.u32.u64.compose %v6982, %v6981
        %v6984 = vextract.low.u32 %v6983
        %v6985 = vextract.high.u32 %v6983
        %v6986 = vmul.u32.u64.compose %v6982, %v6977
        %v6987 = vextract.low.u32 %v6986
        %v6988 = vextract.high.u32 %v6986
        %v6989 = vmul.u32 %v6982, %v6973
        %v6990 = vadd.s32 %v6985, %v6987
        %vm6991 = vc.u32 %v6985, %v6987
        %v6992 = vadd.s32 %v6988, 1
        %v6993 = vsel %vm6991, %v6992, %v6988
        %v6994 = vadd.s32 %v6989, %v6993
        %v6995 = vadd.s32 %v6994, 536870912
        %v6996 = vshrl.u32 %v6995, 30
        %v6997 = vshll.u32 %v6996, 30
        %v6998 = vsub.s32 %v6994, %v6997
        %vm6999 = vcmp.lt.s32.totalorder %v6998, 0
        %v7000 = vsub.s32 0, %v6998
        %v7001 = vsel %vm6999, %v7000, %v6998
        %v7002 = vclz %v7001
        %v7003 = vsub.s32 %v7002, 2
        %vm7004 = vcmp.gt.s32.totalorder 0, %v7003
        %v7005 = vsel %vm7004, 0, %v7003
        %v7006 = vsub.s32 32, %v7005
        %v7007 = vshll.u32 %v6998, %v7005
        %v7008 = vshrl.u32 %v6990, %v7006
        %v7009 = vor.u32 %v7007, %v7008
        %v7010 = vsub.s32 4294967266, %v7005
        %v7011 = vadd.s32 %v7010, 127
        %v7012 = vshll.u32 %v7011, 23
        %v7013 = vor.u32 4788187, %v7012
        %v7014 = vand.u32 2147483647, %v7013
        %v7016 = vcvt.s32.f32 %v7009
        %v7017 = vmul.f32 %v7016, %v7014
        %v7018 = vxor.u32 %v7017, 2147483648
        %v7019 = vsel %vm6936, %v7018, %v7017
        %v7020 = vsub.s32 4, %v6996
        %v7021 = vsel %vm6936, %v7020, %v6996
        %v7022 = vsel %vm6935, %v6609, %v7019
        %v7023 = vsel %vm6935, 0, %v7021
        %v7024 = vcosq.f32.pop %v7022
        %v7025 = vsinq.f32.pop %v7022
        %vm7026 = vweird.f32 %v6609
        %v7027 = vadd.s32 %v7023, 3
        %v7028 = vand.u32 %v7027, 3
        %vm7029 = vcmp.lt.s32.totalorder %v7028, 2
        %vm7030 = vcmp.eq.s32.totalorder %v7028, 0
        %v7031 = vxor.u32 %v7025, 2147483648
        %v7032 = vsel %vm7030, %v7024, %v7031
        %vm7033 = vcmp.eq.s32.totalorder %v7028, 2
        %v7034 = vxor.u32 %v7024, 2147483648
        %v7035 = vsel %vm7033, %v7034, %v7025
        %v7036 = vsel %vm7029, %v7032, %v7035
        %v7037 = vsel %vm7026, nan, %v7036
        %v7038 = vand.u32 2147483647, %v6610
        %vm7039 = vcmp.le.f32.partialorder %v7038, 0.7853982
        %vm7040 = vcmp.lt.s32.totalorder %v6610, 0
        %v7041 = vand.u32 %v6610, 2139095040
        %v7042 = vshrl.u32 %v7041, 23
        %v7043 = vsub.s32 %v7042, 127
        %v7044 = vand.u32 2147483647, %v6610
        %v7045 = vand.u32 %v7044, 8388607
        %v7046 = vor.u32 %v7045, 8388608
        %v7047 = vsub.s32 0, %v7046
        %v7048 = vadd.s32 %v7043, 1
        %vm7049 = vcmp.gt.s32.totalorder %v7048, 0
        %v7050 = vsel %vm7049, %v7048, 0
        %v7051 = vshrl.u32 %v7050, 5
        %v7052 = vand.u32 %v7050, 31
        %v7053 = vsub.s32 32, %v7052
        %v7054 = vshrl.u32 683565275, %v7053
        %v7055 = vshll.u32 683565275, %v7052
        %v7056 = vshrl.u32 2475754826, %v7053
        %v7057 = vor.u32 %v7055, %v7056
        %v7058 = vshll.u32 2475754826, %v7052
        %v7059 = vshrl.u32 2131351028, %v7053
        %v7060 = vor.u32 %v7058, %v7059
        %v7061 = vshll.u32 2131351028, %v7052
        %v7062 = vshrl.u32 2102212464, %v7053
        %v7063 = vor.u32 %v7061, %v7062
        %v7064 = vshll.u32 2102212464, %v7052
        %v7065 = vshrl.u32 920167782, %v7053
        %v7066 = vor.u32 %v7064, %v7065
        %v7067 = vshll.u32 920167782, %v7052
        %v7068 = vshrl.u32 1326507024, %v7053
        %v7069 = vor.u32 %v7067, %v7068
        %vm7070 = vcmp.lt.s32.totalorder %v7051, 1
        %vm7071 = vcmp.lt.s32.totalorder %v7051, 2
        %vm7072 = vcmp.lt.s32.totalorder %v7051, 3
        %vm7073 = vcmp.lt.s32.totalorder %v7051, 4
        %v7074 = vsel %vm7070, %v7054, %v7057
        %v7075 = vsel %vm7073, %v7063, 2102212464
        %v7076 = vsel %vm7072, %v7060, %v7075
        %v7077 = vsel %vm7071, %v7074, %v7076
        %v7078 = vsel %vm7070, %v7057, %v7060
        %v7079 = vsel %vm7073, %v7066, 920167782
        %v7080 = vsel %vm7072, %v7063, %v7079
        %v7081 = vsel %vm7071, %v7078, %v7080
        %v7082 = vsel %vm7070, %v7060, %v7063
        %v7083 = vsel %vm7073, %v7069, 1326507024
        %v7084 = vsel %vm7072, %v7066, %v7083
        %v7085 = vsel %vm7071, %v7082, %v7084
        %v7086 = vshll.u32 %v7046, 8
        %v7087 = vmul.u32.u64.compose %v7086, %v7085
        %v7088 = vextract.low.u32 %v7087
        %v7089 = vextract.high.u32 %v7087
        %v7090 = vmul.u32.u64.compose %v7086, %v7081
        %v7091 = vextract.low.u32 %v7090
        %v7092 = vextract.high.u32 %v7090
        %v7093 = vmul.u32 %v7086, %v7077
        %v7094 = vadd.s32 %v7089, %v7091
        %vm7095 = vc.u32 %v7089, %v7091
        %v7096 = vadd.s32 %v7092, 1
        %v7097 = vsel %vm7095, %v7096, %v7092
        %v7098 = vadd.s32 %v7093, %v7097
        %v7099 = vadd.s32 %v7098, 536870912
        %v7100 = vshrl.u32 %v7099, 30
        %v7101 = vshll.u32 %v7100, 30
        %v7102 = vsub.s32 %v7098, %v7101
        %vm7103 = vcmp.lt.s32.totalorder %v7102, 0
        %v7104 = vsub.s32 0, %v7102
        %v7105 = vsel %vm7103, %v7104, %v7102
        %v7106 = vclz %v7105
        %v7107 = vsub.s32 %v7106, 2
        %vm7108 = vcmp.gt.s32.totalorder 0, %v7107
        %v7109 = vsel %vm7108, 0, %v7107
        %v7110 = vsub.s32 32, %v7109
        %v7111 = vshll.u32 %v7102, %v7109
        %v7112 = vshrl.u32 %v7094, %v7110
        %v7113 = vor.u32 %v7111, %v7112
        %v7114 = vsub.s32 4294967266, %v7109
        %v7115 = vadd.s32 %v7114, 127
        %v7116 = vshll.u32 %v7115, 23
        %v7117 = vor.u32 4788187, %v7116
        %v7118 = vand.u32 2147483647, %v7117
        %v7120 = vcvt.s32.f32 %v7113
        %v7121 = vmul.f32 %v7120, %v7118
        %v7122 = vxor.u32 %v7121, 2147483648
        %v7123 = vsel %vm7040, %v7122, %v7121
        %v7124 = vsub.s32 4, %v7100
        %v7125 = vsel %vm7040, %v7124, %v7100
        %v7126 = vsel %vm7039, %v6610, %v7123
        %v7127 = vsel %vm7039, 0, %v7125
        %v7128 = vcosq.f32.pop %v7126
        %v7129 = vsinq.f32.pop %v7126
        %vm7130 = vweird.f32 %v6610
        %v7131 = vadd.s32 %v7127, 3
        %v7132 = vand.u32 %v7131, 3
        %vm7133 = vcmp.lt.s32.totalorder %v7132, 2
        %vm7134 = vcmp.eq.s32.totalorder %v7132, 0
        %v7135 = vxor.u32 %v7129, 2147483648
        %v7136 = vsel %vm7134, %v7128, %v7135
        %vm7137 = vcmp.eq.s32.totalorder %v7132, 2
        %v7138 = vxor.u32 %v7128, 2147483648
        %v7139 = vsel %vm7137, %v7138, %v7129
        %v7140 = vsel %vm7133, %v7136, %v7139
        %v7141 = vsel %vm7130, nan, %v7140
        %v7142 = vand.u32 2147483647, %v6611
        %vm7143 = vcmp.le.f32.partialorder %v7142, 0.7853982
        %vm7144 = vcmp.lt.s32.totalorder %v6611, 0
        %v7145 = vand.u32 %v6611, 2139095040
        %v7146 = vshrl.u32 %v7145, 23
        %v7147 = vsub.s32 %v7146, 127
        %v7148 = vand.u32 2147483647, %v6611
        %v7149 = vand.u32 %v7148, 8388607
        %v7150 = vor.u32 %v7149, 8388608
        %v7151 = vsub.s32 0, %v7150
        %v7152 = vadd.s32 %v7147, 1
        %vm7153 = vcmp.gt.s32.totalorder %v7152, 0
        %v7154 = vsel %vm7153, %v7152, 0
        %v7155 = vshrl.u32 %v7154, 5
        %v7156 = vand.u32 %v7154, 31
        %v7157 = vsub.s32 32, %v7156
        %v7158 = vshrl.u32 683565275, %v7157
        %v7159 = vshll.u32 683565275, %v7156
        %v7160 = vshrl.u32 2475754826, %v7157
        %v7161 = vor.u32 %v7159, %v7160
        %v7162 = vshll.u32 2475754826, %v7156
        %v7163 = vshrl.u32 2131351028, %v7157
        %v7164 = vor.u32 %v7162, %v7163
        %v7165 = vshll.u32 2131351028, %v7156
        %v7166 = vshrl.u32 2102212464, %v7157
        %v7167 = vor.u32 %v7165, %v7166
        %v7168 = vshll.u32 2102212464, %v7156
        %v7169 = vshrl.u32 920167782, %v7157
        %v7170 = vor.u32 %v7168, %v7169
        %v7171 = vshll.u32 920167782, %v7156
        %v7172 = vshrl.u32 1326507024, %v7157
        %v7173 = vor.u32 %v7171, %v7172
        %vm7174 = vcmp.lt.s32.totalorder %v7155, 1
        %vm7175 = vcmp.lt.s32.totalorder %v7155, 2
        %vm7176 = vcmp.lt.s32.totalorder %v7155, 3
        %vm7177 = vcmp.lt.s32.totalorder %v7155, 4
        %v7178 = vsel %vm7174, %v7158, %v7161
        %v7179 = vsel %vm7177, %v7167, 2102212464
        %v7180 = vsel %vm7176, %v7164, %v7179
        %v7181 = vsel %vm7175, %v7178, %v7180
        %v7182 = vsel %vm7174, %v7161, %v7164
        %v7183 = vsel %vm7177, %v7170, 920167782
        %v7184 = vsel %vm7176, %v7167, %v7183
        %v7185 = vsel %vm7175, %v7182, %v7184
        %v7186 = vsel %vm7174, %v7164, %v7167
        %v7187 = vsel %vm7177, %v7173, 1326507024
        %v7188 = vsel %vm7176, %v7170, %v7187
        %v7189 = vsel %vm7175, %v7186, %v7188
        %v7190 = vshll.u32 %v7150, 8
        %v7191 = vmul.u32.u64.compose %v7190, %v7189
        %v7192 = vextract.low.u32 %v7191
        %v7193 = vextract.high.u32 %v7191
        %v7194 = vmul.u32.u64.compose %v7190, %v7185
        %v7195 = vextract.low.u32 %v7194
        %v7196 = vextract.high.u32 %v7194
        %v7197 = vmul.u32 %v7190, %v7181
        %v7198 = vadd.s32 %v7193, %v7195
        %vm7199 = vc.u32 %v7193, %v7195
        %v7200 = vadd.s32 %v7196, 1
        %v7201 = vsel %vm7199, %v7200, %v7196
        %v7202 = vadd.s32 %v7197, %v7201
        %v7203 = vadd.s32 %v7202, 536870912
        %v7204 = vshrl.u32 %v7203, 30
        %v7205 = vshll.u32 %v7204, 30
        %v7206 = vsub.s32 %v7202, %v7205
        %vm7207 = vcmp.lt.s32.totalorder %v7206, 0
        %v7208 = vsub.s32 0, %v7206
        %v7209 = vsel %vm7207, %v7208, %v7206
        %v7210 = vclz %v7209
        %v7211 = vsub.s32 %v7210, 2
        %vm7212 = vcmp.gt.s32.totalorder 0, %v7211
        %v7213 = vsel %vm7212, 0, %v7211
        %v7214 = vsub.s32 32, %v7213
        %v7215 = vshll.u32 %v7206, %v7213
        %v7216 = vshrl.u32 %v7198, %v7214
        %v7217 = vor.u32 %v7215, %v7216
        %v7218 = vsub.s32 4294967266, %v7213
        %v7219 = vadd.s32 %v7218, 127
        %v7220 = vshll.u32 %v7219, 23
        %v7221 = vor.u32 4788187, %v7220
        %v7222 = vand.u32 2147483647, %v7221
        %v7224 = vcvt.s32.f32 %v7217
        %v7225 = vmul.f32 %v7224, %v7222
        %v7226 = vxor.u32 %v7225, 2147483648
        %v7227 = vsel %vm7144, %v7226, %v7225
        %v7228 = vsub.s32 4, %v7204
        %v7229 = vsel %vm7144, %v7228, %v7204
        %v7230 = vsel %vm7143, %v6611, %v7227
        %v7231 = vsel %vm7143, 0, %v7229
        %v7232 = vcosq.f32.pop %v7230
        %v7233 = vsinq.f32.pop %v7230
        %vm7234 = vweird.f32 %v6611
        %v7235 = vadd.s32 %v7231, 3
        %v7236 = vand.u32 %v7235, 3
        %vm7237 = vcmp.lt.s32.totalorder %v7236, 2
        %vm7238 = vcmp.eq.s32.totalorder %v7236, 0
        %v7239 = vxor.u32 %v7233, 2147483648
        %v7240 = vsel %vm7238, %v7232, %v7239
        %vm7241 = vcmp.eq.s32.totalorder %v7236, 2
        %v7242 = vxor.u32 %v7232, 2147483648
        %v7243 = vsel %vm7241, %v7242, %v7233
        %v7244 = vsel %vm7237, %v7240, %v7243
        %v7245 = vsel %vm7234, nan, %v7244
        %v7246 = vand.u32 2147483647, %v6612
        %vm7247 = vcmp.le.f32.partialorder %v7246, 0.7853982
        %vm7248 = vcmp.lt.s32.totalorder %v6612, 0
        %v7249 = vand.u32 %v6612, 2139095040
        %v7250 = vshrl.u32 %v7249, 23
        %v7251 = vsub.s32 %v7250, 127
        %v7252 = vand.u32 2147483647, %v6612
        %v7253 = vand.u32 %v7252, 8388607
        %v7254 = vor.u32 %v7253, 8388608
        %v7255 = vsub.s32 0, %v7254
        %v7256 = vadd.s32 %v7251, 1
        %vm7257 = vcmp.gt.s32.totalorder %v7256, 0
        %v7258 = vsel %vm7257, %v7256, 0
        %v7259 = vshrl.u32 %v7258, 5
        %v7260 = vand.u32 %v7258, 31
        %v7261 = vsub.s32 32, %v7260
        %v7262 = vshrl.u32 683565275, %v7261
        %v7263 = vshll.u32 683565275, %v7260
        %v7264 = vshrl.u32 2475754826, %v7261
        %v7265 = vor.u32 %v7263, %v7264
        %v7266 = vshll.u32 2475754826, %v7260
        %v7267 = vshrl.u32 2131351028, %v7261
        %v7268 = vor.u32 %v7266, %v7267
        %v7269 = vshll.u32 2131351028, %v7260
        %v7270 = vshrl.u32 2102212464, %v7261
        %v7271 = vor.u32 %v7269, %v7270
        %v7272 = vshll.u32 2102212464, %v7260
        %v7273 = vshrl.u32 920167782, %v7261
        %v7274 = vor.u32 %v7272, %v7273
        %v7275 = vshll.u32 920167782, %v7260
        %v7276 = vshrl.u32 1326507024, %v7261
        %v7277 = vor.u32 %v7275, %v7276
        %vm7278 = vcmp.lt.s32.totalorder %v7259, 1
        %vm7279 = vcmp.lt.s32.totalorder %v7259, 2
        %vm7280 = vcmp.lt.s32.totalorder %v7259, 3
        %vm7281 = vcmp.lt.s32.totalorder %v7259, 4
        %v7282 = vsel %vm7278, %v7262, %v7265
        %v7283 = vsel %vm7281, %v7271, 2102212464
        %v7284 = vsel %vm7280, %v7268, %v7283
        %v7285 = vsel %vm7279, %v7282, %v7284
        %v7286 = vsel %vm7278, %v7265, %v7268
        %v7287 = vsel %vm7281, %v7274, 920167782
        %v7288 = vsel %vm7280, %v7271, %v7287
        %v7289 = vsel %vm7279, %v7286, %v7288
        %v7290 = vsel %vm7278, %v7268, %v7271
        %v7291 = vsel %vm7281, %v7277, 1326507024
        %v7292 = vsel %vm7280, %v7274, %v7291
        %v7293 = vsel %vm7279, %v7290, %v7292
        %v7294 = vshll.u32 %v7254, 8
        %v7295 = vmul.u32.u64.compose %v7294, %v7293
        %v7296 = vextract.low.u32 %v7295
        %v7297 = vextract.high.u32 %v7295
        %v7298 = vmul.u32.u64.compose %v7294, %v7289
        %v7299 = vextract.low.u32 %v7298
        %v7300 = vextract.high.u32 %v7298
        %v7301 = vmul.u32 %v7294, %v7285
        %v7302 = vadd.s32 %v7297, %v7299
        %vm7303 = vc.u32 %v7297, %v7299
        %v7304 = vadd.s32 %v7300, 1
        %v7305 = vsel %vm7303, %v7304, %v7300
        %v7306 = vadd.s32 %v7301, %v7305
        %v7307 = vadd.s32 %v7306, 536870912
        %v7308 = vshrl.u32 %v7307, 30
        %v7309 = vshll.u32 %v7308, 30
        %v7310 = vsub.s32 %v7306, %v7309
        %vm7311 = vcmp.lt.s32.totalorder %v7310, 0
        %v7312 = vsub.s32 0, %v7310
        %v7313 = vsel %vm7311, %v7312, %v7310
        %v7314 = vclz %v7313
        %v7315 = vsub.s32 %v7314, 2
        %vm7316 = vcmp.gt.s32.totalorder 0, %v7315
        %v7317 = vsel %vm7316, 0, %v7315
        %v7318 = vsub.s32 32, %v7317
        %v7319 = vshll.u32 %v7310, %v7317
        %v7320 = vshrl.u32 %v7302, %v7318
        %v7321 = vor.u32 %v7319, %v7320
        %v7322 = vsub.s32 4294967266, %v7317
        %v7323 = vadd.s32 %v7322, 127
        %v7324 = vshll.u32 %v7323, 23
        %v7325 = vor.u32 4788187, %v7324
        %v7326 = vand.u32 2147483647, %v7325
        %v7328 = vcvt.s32.f32 %v7321
        %v7329 = vmul.f32 %v7328, %v7326
        %v7330 = vxor.u32 %v7329, 2147483648
        %v7331 = vsel %vm7248, %v7330, %v7329
        %v7332 = vsub.s32 4, %v7308
        %v7333 = vsel %vm7248, %v7332, %v7308
        %v7334 = vsel %vm7247, %v6612, %v7331
        %v7335 = vsel %vm7247, 0, %v7333
        %v7336 = vcosq.f32.pop %v7334
        %v7337 = vsinq.f32.pop %v7334
        %vm7338 = vweird.f32 %v6612
        %v7339 = vadd.s32 %v7335, 3
        %v7340 = vand.u32 %v7339, 3
        %vm7341 = vcmp.lt.s32.totalorder %v7340, 2
        %vm7342 = vcmp.eq.s32.totalorder %v7340, 0
        %v7343 = vxor.u32 %v7337, 2147483648
        %v7344 = vsel %vm7342, %v7336, %v7343
        %vm7345 = vcmp.eq.s32.totalorder %v7340, 2
        %v7346 = vxor.u32 %v7336, 2147483648
        %v7347 = vsel %vm7345, %v7346, %v7337
        %v7348 = vsel %vm7341, %v7344, %v7347
        %v7349 = vsel %vm7338, nan, %v7348
        %v7350 = vand.u32 2147483647, %v6613
        %vm7351 = vcmp.le.f32.partialorder %v7350, 0.7853982
        %vm7352 = vcmp.lt.s32.totalorder %v6613, 0
        %v7353 = vand.u32 %v6613, 2139095040
        %v7354 = vshrl.u32 %v7353, 23
        %v7355 = vsub.s32 %v7354, 127
        %v7356 = vand.u32 2147483647, %v6613
        %v7357 = vand.u32 %v7356, 8388607
        %v7358 = vor.u32 %v7357, 8388608
        %v7359 = vsub.s32 0, %v7358
        %v7360 = vadd.s32 %v7355, 1
        %vm7361 = vcmp.gt.s32.totalorder %v7360, 0
        %v7362 = vsel %vm7361, %v7360, 0
        %v7363 = vshrl.u32 %v7362, 5
        %v7364 = vand.u32 %v7362, 31
        %v7365 = vsub.s32 32, %v7364
        %v7366 = vshrl.u32 683565275, %v7365
        %v7367 = vshll.u32 683565275, %v7364
        %v7368 = vshrl.u32 2475754826, %v7365
        %v7369 = vor.u32 %v7367, %v7368
        %v7370 = vshll.u32 2475754826, %v7364
        %v7371 = vshrl.u32 2131351028, %v7365
        %v7372 = vor.u32 %v7370, %v7371
        %v7373 = vshll.u32 2131351028, %v7364
        %v7374 = vshrl.u32 2102212464, %v7365
        %v7375 = vor.u32 %v7373, %v7374
        %v7376 = vshll.u32 2102212464, %v7364
        %v7377 = vshrl.u32 920167782, %v7365
        %v7378 = vor.u32 %v7376, %v7377
        %v7379 = vshll.u32 920167782, %v7364
        %v7380 = vshrl.u32 1326507024, %v7365
        %v7381 = vor.u32 %v7379, %v7380
        %vm7382 = vcmp.lt.s32.totalorder %v7363, 1
        %vm7383 = vcmp.lt.s32.totalorder %v7363, 2
        %vm7384 = vcmp.lt.s32.totalorder %v7363, 3
        %vm7385 = vcmp.lt.s32.totalorder %v7363, 4
        %v7386 = vsel %vm7382, %v7366, %v7369
        %v7387 = vsel %vm7385, %v7375, 2102212464
        %v7388 = vsel %vm7384, %v7372, %v7387
        %v7389 = vsel %vm7383, %v7386, %v7388
        %v7390 = vsel %vm7382, %v7369, %v7372
        %v7391 = vsel %vm7385, %v7378, 920167782
        %v7392 = vsel %vm7384, %v7375, %v7391
        %v7393 = vsel %vm7383, %v7390, %v7392
        %v7394 = vsel %vm7382, %v7372, %v7375
        %v7395 = vsel %vm7385, %v7381, 1326507024
        %v7396 = vsel %vm7384, %v7378, %v7395
        %v7397 = vsel %vm7383, %v7394, %v7396
        %v7398 = vshll.u32 %v7358, 8
        %v7399 = vmul.u32.u64.compose %v7398, %v7397
        %v7400 = vextract.low.u32 %v7399
        %v7401 = vextract.high.u32 %v7399
        %v7402 = vmul.u32.u64.compose %v7398, %v7393
        %v7403 = vextract.low.u32 %v7402
        %v7404 = vextract.high.u32 %v7402
        %v7405 = vmul.u32 %v7398, %v7389
        %v7406 = vadd.s32 %v7401, %v7403
        %vm7407 = vc.u32 %v7401, %v7403
        %v7408 = vadd.s32 %v7404, 1
        %v7409 = vsel %vm7407, %v7408, %v7404
        %v7410 = vadd.s32 %v7405, %v7409
        %v7411 = vadd.s32 %v7410, 536870912
        %v7412 = vshrl.u32 %v7411, 30
        %v7413 = vshll.u32 %v7412, 30
        %v7414 = vsub.s32 %v7410, %v7413
        %vm7415 = vcmp.lt.s32.totalorder %v7414, 0
        %v7416 = vsub.s32 0, %v7414
        %v7417 = vsel %vm7415, %v7416, %v7414
        %v7418 = vclz %v7417
        %v7419 = vsub.s32 %v7418, 2
        %vm7420 = vcmp.gt.s32.totalorder 0, %v7419
        %v7421 = vsel %vm7420, 0, %v7419
        %v7422 = vsub.s32 32, %v7421
        %v7423 = vshll.u32 %v7414, %v7421
        %v7424 = vshrl.u32 %v7406, %v7422
        %v7425 = vor.u32 %v7423, %v7424
        %v7426 = vsub.s32 4294967266, %v7421
        %v7427 = vadd.s32 %v7426, 127
        %v7428 = vshll.u32 %v7427, 23
        %v7429 = vor.u32 4788187, %v7428
        %v7430 = vand.u32 2147483647, %v7429
        %v7432 = vcvt.s32.f32 %v7425
        %v7433 = vmul.f32 %v7432, %v7430
        %v7434 = vxor.u32 %v7433, 2147483648
        %v7435 = vsel %vm7352, %v7434, %v7433
        %v7436 = vsub.s32 4, %v7412
        %v7437 = vsel %vm7352, %v7436, %v7412
        %v7438 = vsel %vm7351, %v6613, %v7435
        %v7439 = vsel %vm7351, 0, %v7437
        %v7440 = vcosq.f32.pop %v7438
        %v7441 = vsinq.f32.pop %v7438
        %vm7442 = vweird.f32 %v6613
        %v7443 = vadd.s32 %v7439, 3
        %v7444 = vand.u32 %v7443, 3
        %vm7445 = vcmp.lt.s32.totalorder %v7444, 2
        %vm7446 = vcmp.eq.s32.totalorder %v7444, 0
        %v7447 = vxor.u32 %v7441, 2147483648
        %v7448 = vsel %vm7446, %v7440, %v7447
        %vm7449 = vcmp.eq.s32.totalorder %v7444, 2
        %v7450 = vxor.u32 %v7440, 2147483648
        %v7451 = vsel %vm7449, %v7450, %v7441
        %v7452 = vsel %vm7445, %v7448, %v7451
        %v7453 = vsel %vm7442, nan, %v7452
        %v7454 = vand.u32 2147483647, %v6614
        %vm7455 = vcmp.le.f32.partialorder %v7454, 0.7853982
        %vm7456 = vcmp.lt.s32.totalorder %v6614, 0
        %v7457 = vand.u32 %v6614, 2139095040
        %v7458 = vshrl.u32 %v7457, 23
        %v7459 = vsub.s32 %v7458, 127
        %v7460 = vand.u32 2147483647, %v6614
        %v7461 = vand.u32 %v7460, 8388607
        %v7462 = vor.u32 %v7461, 8388608
        %v7463 = vsub.s32 0, %v7462
        %v7464 = vadd.s32 %v7459, 1
        %vm7465 = vcmp.gt.s32.totalorder %v7464, 0
        %v7466 = vsel %vm7465, %v7464, 0
        %v7467 = vshrl.u32 %v7466, 5
        %v7468 = vand.u32 %v7466, 31
        %v7469 = vsub.s32 32, %v7468
        %v7470 = vshrl.u32 683565275, %v7469
        %v7471 = vshll.u32 683565275, %v7468
        %v7472 = vshrl.u32 2475754826, %v7469
        %v7473 = vor.u32 %v7471, %v7472
        %v7474 = vshll.u32 2475754826, %v7468
        %v7475 = vshrl.u32 2131351028, %v7469
        %v7476 = vor.u32 %v7474, %v7475
        %v7477 = vshll.u32 2131351028, %v7468
        %v7478 = vshrl.u32 2102212464, %v7469
        %v7479 = vor.u32 %v7477, %v7478
        %v7480 = vshll.u32 2102212464, %v7468
        %v7481 = vshrl.u32 920167782, %v7469
        %v7482 = vor.u32 %v7480, %v7481
        %v7483 = vshll.u32 920167782, %v7468
        %v7484 = vshrl.u32 1326507024, %v7469
        %v7485 = vor.u32 %v7483, %v7484
        %vm7486 = vcmp.lt.s32.totalorder %v7467, 1
        %vm7487 = vcmp.lt.s32.totalorder %v7467, 2
        %vm7488 = vcmp.lt.s32.totalorder %v7467, 3
        %vm7489 = vcmp.lt.s32.totalorder %v7467, 4
        %v7490 = vsel %vm7486, %v7470, %v7473
        %v7491 = vsel %vm7489, %v7479, 2102212464
        %v7492 = vsel %vm7488, %v7476, %v7491
        %v7493 = vsel %vm7487, %v7490, %v7492
        %v7494 = vsel %vm7486, %v7473, %v7476
        %v7495 = vsel %vm7489, %v7482, 920167782
        %v7496 = vsel %vm7488, %v7479, %v7495
        %v7497 = vsel %vm7487, %v7494, %v7496
        %v7498 = vsel %vm7486, %v7476, %v7479
        %v7499 = vsel %vm7489, %v7485, 1326507024
        %v7500 = vsel %vm7488, %v7482, %v7499
        %v7501 = vsel %vm7487, %v7498, %v7500
        %v7502 = vshll.u32 %v7462, 8
        %v7503 = vmul.u32.u64.compose %v7502, %v7501
        %v7504 = vextract.low.u32 %v7503
        %v7505 = vextract.high.u32 %v7503
        %v7506 = vmul.u32.u64.compose %v7502, %v7497
        %v7507 = vextract.low.u32 %v7506
        %v7508 = vextract.high.u32 %v7506
        %v7509 = vmul.u32 %v7502, %v7493
        %v7510 = vadd.s32 %v7505, %v7507
        %vm7511 = vc.u32 %v7505, %v7507
        %v7512 = vadd.s32 %v7508, 1
        %v7513 = vsel %vm7511, %v7512, %v7508
        %v7514 = vadd.s32 %v7509, %v7513
        %v7515 = vadd.s32 %v7514, 536870912
        %v7516 = vshrl.u32 %v7515, 30
        %v7517 = vshll.u32 %v7516, 30
        %v7518 = vsub.s32 %v7514, %v7517
        %vm7519 = vcmp.lt.s32.totalorder %v7518, 0
        %v7520 = vsub.s32 0, %v7518
        %v7521 = vsel %vm7519, %v7520, %v7518
        %v7522 = vclz %v7521
        %v7523 = vsub.s32 %v7522, 2
        %vm7524 = vcmp.gt.s32.totalorder 0, %v7523
        %v7525 = vsel %vm7524, 0, %v7523
        %v7526 = vsub.s32 32, %v7525
        %v7527 = vshll.u32 %v7518, %v7525
        %v7528 = vshrl.u32 %v7510, %v7526
        %v7529 = vor.u32 %v7527, %v7528
        %v7530 = vsub.s32 4294967266, %v7525
        %v7531 = vadd.s32 %v7530, 127
        %v7532 = vshll.u32 %v7531, 23
        %v7533 = vor.u32 4788187, %v7532
        %v7534 = vand.u32 2147483647, %v7533
        %v7536 = vcvt.s32.f32 %v7529
        %v7537 = vmul.f32 %v7536, %v7534
        %v7538 = vxor.u32 %v7537, 2147483648
        %v7539 = vsel %vm7456, %v7538, %v7537
        %v7540 = vsub.s32 4, %v7516
        %v7541 = vsel %vm7456, %v7540, %v7516
        %v7542 = vsel %vm7455, %v6614, %v7539
        %v7543 = vsel %vm7455, 0, %v7541
        %v7544 = vcosq.f32.pop %v7542
        %v7545 = vsinq.f32.pop %v7542
        %vm7546 = vweird.f32 %v6614
        %v7547 = vadd.s32 %v7543, 3
        %v7548 = vand.u32 %v7547, 3
        %vm7549 = vcmp.lt.s32.totalorder %v7548, 2
        %vm7550 = vcmp.eq.s32.totalorder %v7548, 0
        %v7551 = vxor.u32 %v7545, 2147483648
        %v7552 = vsel %vm7550, %v7544, %v7551
        %vm7553 = vcmp.eq.s32.totalorder %v7548, 2
        %v7554 = vxor.u32 %v7544, 2147483648
        %v7555 = vsel %vm7553, %v7554, %v7545
        %v7556 = vsel %vm7549, %v7552, %v7555
        %v7557 = vsel %vm7546, nan, %v7556
        %v7558 = vand.u32 2147483647, %v6615
        %vm7559 = vcmp.le.f32.partialorder %v7558, 0.7853982
        %vm7560 = vcmp.lt.s32.totalorder %v6615, 0
        %v7561 = vand.u32 %v6615, 2139095040
        %v7562 = vshrl.u32 %v7561, 23
        %v7563 = vsub.s32 %v7562, 127
        %v7564 = vand.u32 2147483647, %v6615
        %v7565 = vand.u32 %v7564, 8388607
        %v7566 = vor.u32 %v7565, 8388608
        %v7567 = vsub.s32 0, %v7566
        %v7568 = vadd.s32 %v7563, 1
        %vm7569 = vcmp.gt.s32.totalorder %v7568, 0
        %v7570 = vsel %vm7569, %v7568, 0
        %v7571 = vshrl.u32 %v7570, 5
        %v7572 = vand.u32 %v7570, 31
        %v7573 = vsub.s32 32, %v7572
        %v7574 = vshrl.u32 683565275, %v7573
        %v7575 = vshll.u32 683565275, %v7572
        %v7576 = vshrl.u32 2475754826, %v7573
        %v7577 = vor.u32 %v7575, %v7576
        %v7578 = vshll.u32 2475754826, %v7572
        %v7579 = vshrl.u32 2131351028, %v7573
        %v7580 = vor.u32 %v7578, %v7579
        %v7581 = vshll.u32 2131351028, %v7572
        %v7582 = vshrl.u32 2102212464, %v7573
        %v7583 = vor.u32 %v7581, %v7582
        %v7584 = vshll.u32 2102212464, %v7572
        %v7585 = vshrl.u32 920167782, %v7573
        %v7586 = vor.u32 %v7584, %v7585
        %v7587 = vshll.u32 920167782, %v7572
        %v7588 = vshrl.u32 1326507024, %v7573
        %v7589 = vor.u32 %v7587, %v7588
        %vm7590 = vcmp.lt.s32.totalorder %v7571, 1
        %vm7591 = vcmp.lt.s32.totalorder %v7571, 2
        %vm7592 = vcmp.lt.s32.totalorder %v7571, 3
        %vm7593 = vcmp.lt.s32.totalorder %v7571, 4
        %v7594 = vsel %vm7590, %v7574, %v7577
        %v7595 = vsel %vm7593, %v7583, 2102212464
        %v7596 = vsel %vm7592, %v7580, %v7595
        %v7597 = vsel %vm7591, %v7594, %v7596
        %v7598 = vsel %vm7590, %v7577, %v7580
        %v7599 = vsel %vm7593, %v7586, 920167782
        %v7600 = vsel %vm7592, %v7583, %v7599
        %v7601 = vsel %vm7591, %v7598, %v7600
        %v7602 = vsel %vm7590, %v7580, %v7583
        %v7603 = vsel %vm7593, %v7589, 1326507024
        %v7604 = vsel %vm7592, %v7586, %v7603
        %v7605 = vsel %vm7591, %v7602, %v7604
        %v7606 = vshll.u32 %v7566, 8
        %v7607 = vmul.u32.u64.compose %v7606, %v7605
        %v7608 = vextract.low.u32 %v7607
        %v7609 = vextract.high.u32 %v7607
        %v7610 = vmul.u32.u64.compose %v7606, %v7601
        %v7611 = vextract.low.u32 %v7610
        %v7612 = vextract.high.u32 %v7610
        %v7613 = vmul.u32 %v7606, %v7597
        %v7614 = vadd.s32 %v7609, %v7611
        %vm7615 = vc.u32 %v7609, %v7611
        %v7616 = vadd.s32 %v7612, 1
        %v7617 = vsel %vm7615, %v7616, %v7612
        %v7618 = vadd.s32 %v7613, %v7617
        %v7619 = vadd.s32 %v7618, 536870912
        %v7620 = vshrl.u32 %v7619, 30
        %v7621 = vshll.u32 %v7620, 30
        %v7622 = vsub.s32 %v7618, %v7621
        %vm7623 = vcmp.lt.s32.totalorder %v7622, 0
        %v7624 = vsub.s32 0, %v7622
        %v7625 = vsel %vm7623, %v7624, %v7622
        %v7626 = vclz %v7625
        %v7627 = vsub.s32 %v7626, 2
        %vm7628 = vcmp.gt.s32.totalorder 0, %v7627
        %v7629 = vsel %vm7628, 0, %v7627
        %v7630 = vsub.s32 32, %v7629
        %v7631 = vshll.u32 %v7622, %v7629
        %v7632 = vshrl.u32 %v7614, %v7630
        %v7633 = vor.u32 %v7631, %v7632
        %v7634 = vsub.s32 4294967266, %v7629
        %v7635 = vadd.s32 %v7634, 127
        %v7636 = vshll.u32 %v7635, 23
        %v7637 = vor.u32 4788187, %v7636
        %v7638 = vand.u32 2147483647, %v7637
        %v7640 = vcvt.s32.f32 %v7633
        %v7641 = vmul.f32 %v7640, %v7638
        %v7642 = vxor.u32 %v7641, 2147483648
        %v7643 = vsel %vm7560, %v7642, %v7641
        %v7644 = vsub.s32 4, %v7620
        %v7645 = vsel %vm7560, %v7644, %v7620
        %v7646 = vsel %vm7559, %v6615, %v7643
        %v7647 = vsel %vm7559, 0, %v7645
        %v7648 = vcosq.f32.pop %v7646
        %v7649 = vsinq.f32.pop %v7646
        %vm7650 = vweird.f32 %v6615
        %v7651 = vadd.s32 %v7647, 3
        %v7652 = vand.u32 %v7651, 3
        %vm7653 = vcmp.lt.s32.totalorder %v7652, 2
        %vm7654 = vcmp.eq.s32.totalorder %v7652, 0
        %v7655 = vxor.u32 %v7649, 2147483648
        %v7656 = vsel %vm7654, %v7648, %v7655
        %vm7657 = vcmp.eq.s32.totalorder %v7652, 2
        %v7658 = vxor.u32 %v7648, 2147483648
        %v7659 = vsel %vm7657, %v7658, %v7649
        %v7660 = vsel %vm7653, %v7656, %v7659
        %v7661 = vsel %vm7650, nan, %v7660
        %v7662 = vand.u32 2147483647, %v6616
        %vm7663 = vcmp.le.f32.partialorder %v7662, 0.7853982
        %vm7664 = vcmp.lt.s32.totalorder %v6616, 0
        %v7665 = vand.u32 %v6616, 2139095040
        %v7666 = vshrl.u32 %v7665, 23
        %v7667 = vsub.s32 %v7666, 127
        %v7668 = vand.u32 2147483647, %v6616
        %v7669 = vand.u32 %v7668, 8388607
        %v7670 = vor.u32 %v7669, 8388608
        %v7671 = vsub.s32 0, %v7670
        %v7672 = vadd.s32 %v7667, 1
        %vm7673 = vcmp.gt.s32.totalorder %v7672, 0
        %v7674 = vsel %vm7673, %v7672, 0
        %v7675 = vshrl.u32 %v7674, 5
        %v7676 = vand.u32 %v7674, 31
        %v7677 = vsub.s32 32, %v7676
        %v7678 = vshrl.u32 683565275, %v7677
        %v7679 = vshll.u32 683565275, %v7676
        %v7680 = vshrl.u32 2475754826, %v7677
        %v7681 = vor.u32 %v7679, %v7680
        %v7682 = vshll.u32 2475754826, %v7676
        %v7683 = vshrl.u32 2131351028, %v7677
        %v7684 = vor.u32 %v7682, %v7683
        %v7685 = vshll.u32 2131351028, %v7676
        %v7686 = vshrl.u32 2102212464, %v7677
        %v7687 = vor.u32 %v7685, %v7686
        %v7688 = vshll.u32 2102212464, %v7676
        %v7689 = vshrl.u32 920167782, %v7677
        %v7690 = vor.u32 %v7688, %v7689
        %v7691 = vshll.u32 920167782, %v7676
        %v7692 = vshrl.u32 1326507024, %v7677
        %v7693 = vor.u32 %v7691, %v7692
        %vm7694 = vcmp.lt.s32.totalorder %v7675, 1
        %vm7695 = vcmp.lt.s32.totalorder %v7675, 2
        %vm7696 = vcmp.lt.s32.totalorder %v7675, 3
        %vm7697 = vcmp.lt.s32.totalorder %v7675, 4
        %v7698 = vsel %vm7694, %v7678, %v7681
        %v7699 = vsel %vm7697, %v7687, 2102212464
        %v7700 = vsel %vm7696, %v7684, %v7699
        %v7701 = vsel %vm7695, %v7698, %v7700
        %v7702 = vsel %vm7694, %v7681, %v7684
        %v7703 = vsel %vm7697, %v7690, 920167782
        %v7704 = vsel %vm7696, %v7687, %v7703
        %v7705 = vsel %vm7695, %v7702, %v7704
        %v7706 = vsel %vm7694, %v7684, %v7687
        %v7707 = vsel %vm7697, %v7693, 1326507024
        %v7708 = vsel %vm7696, %v7690, %v7707
        %v7709 = vsel %vm7695, %v7706, %v7708
        %v7710 = vshll.u32 %v7670, 8
        %v7711 = vmul.u32.u64.compose %v7710, %v7709
        %v7712 = vextract.low.u32 %v7711
        %v7713 = vextract.high.u32 %v7711
        %v7714 = vmul.u32.u64.compose %v7710, %v7705
        %v7715 = vextract.low.u32 %v7714
        %v7716 = vextract.high.u32 %v7714
        %v7717 = vmul.u32 %v7710, %v7701
        %v7718 = vadd.s32 %v7713, %v7715
        %vm7719 = vc.u32 %v7713, %v7715
        %v7720 = vadd.s32 %v7716, 1
        %v7721 = vsel %vm7719, %v7720, %v7716
        %v7722 = vadd.s32 %v7717, %v7721
        %v7723 = vadd.s32 %v7722, 536870912
        %v7724 = vshrl.u32 %v7723, 30
        %v7725 = vshll.u32 %v7724, 30
        %v7726 = vsub.s32 %v7722, %v7725
        %vm7727 = vcmp.lt.s32.totalorder %v7726, 0
        %v7728 = vsub.s32 0, %v7726
        %v7729 = vsel %vm7727, %v7728, %v7726
        %v7730 = vclz %v7729
        %v7731 = vsub.s32 %v7730, 2
        %vm7732 = vcmp.gt.s32.totalorder 0, %v7731
        %v7733 = vsel %vm7732, 0, %v7731
        %v7734 = vsub.s32 32, %v7733
        %v7735 = vshll.u32 %v7726, %v7733
        %v7736 = vshrl.u32 %v7718, %v7734
        %v7737 = vor.u32 %v7735, %v7736
        %v7738 = vsub.s32 4294967266, %v7733
        %v7739 = vadd.s32 %v7738, 127
        %v7740 = vshll.u32 %v7739, 23
        %v7741 = vor.u32 4788187, %v7740
        %v7742 = vand.u32 2147483647, %v7741
        %v7744 = vcvt.s32.f32 %v7737
        %v7745 = vmul.f32 %v7744, %v7742
        %v7746 = vxor.u32 %v7745, 2147483648
        %v7747 = vsel %vm7664, %v7746, %v7745
        %v7748 = vsub.s32 4, %v7724
        %v7749 = vsel %vm7664, %v7748, %v7724
        %v7750 = vsel %vm7663, %v6616, %v7747
        %v7751 = vsel %vm7663, 0, %v7749
        %v7752 = vcosq.f32.pop %v7750
        %v7753 = vsinq.f32.pop %v7750
        %vm7754 = vweird.f32 %v6616
        %v7755 = vadd.s32 %v7751, 3
        %v7756 = vand.u32 %v7755, 3
        %vm7757 = vcmp.lt.s32.totalorder %v7756, 2
        %vm7758 = vcmp.eq.s32.totalorder %v7756, 0
        %v7759 = vxor.u32 %v7753, 2147483648
        %v7760 = vsel %vm7758, %v7752, %v7759
        %vm7761 = vcmp.eq.s32.totalorder %v7756, 2
        %v7762 = vxor.u32 %v7752, 2147483648
        %v7763 = vsel %vm7761, %v7762, %v7753
        %v7764 = vsel %vm7757, %v7760, %v7763
        %v7765 = vsel %vm7754, nan, %v7764
        %v7766 = vand.u32 2147483647, %v6617
        %vm7767 = vcmp.le.f32.partialorder %v7766, 0.7853982
        %vm7768 = vcmp.lt.s32.totalorder %v6617, 0
        %v7769 = vand.u32 %v6617, 2139095040
        %v7770 = vshrl.u32 %v7769, 23
        %v7771 = vsub.s32 %v7770, 127
        %v7772 = vand.u32 2147483647, %v6617
        %v7773 = vand.u32 %v7772, 8388607
        %v7774 = vor.u32 %v7773, 8388608
        %v7775 = vsub.s32 0, %v7774
        %v7776 = vadd.s32 %v7771, 1
        %vm7777 = vcmp.gt.s32.totalorder %v7776, 0
        %v7778 = vsel %vm7777, %v7776, 0
        %v7779 = vshrl.u32 %v7778, 5
        %v7780 = vand.u32 %v7778, 31
        %v7781 = vsub.s32 32, %v7780
        %v7782 = vshrl.u32 683565275, %v7781
        %v7783 = vshll.u32 683565275, %v7780
        %v7784 = vshrl.u32 2475754826, %v7781
        %v7785 = vor.u32 %v7783, %v7784
        %v7786 = vshll.u32 2475754826, %v7780
        %v7787 = vshrl.u32 2131351028, %v7781
        %v7788 = vor.u32 %v7786, %v7787
        %v7789 = vshll.u32 2131351028, %v7780
        %v7790 = vshrl.u32 2102212464, %v7781
        %v7791 = vor.u32 %v7789, %v7790
        %v7792 = vshll.u32 2102212464, %v7780
        %v7793 = vshrl.u32 920167782, %v7781
        %v7794 = vor.u32 %v7792, %v7793
        %v7795 = vshll.u32 920167782, %v7780
        %v7796 = vshrl.u32 1326507024, %v7781
        %v7797 = vor.u32 %v7795, %v7796
        %vm7798 = vcmp.lt.s32.totalorder %v7779, 1
        %vm7799 = vcmp.lt.s32.totalorder %v7779, 2
        %vm7800 = vcmp.lt.s32.totalorder %v7779, 3
        %vm7801 = vcmp.lt.s32.totalorder %v7779, 4
        %v7802 = vsel %vm7798, %v7782, %v7785
        %v7803 = vsel %vm7801, %v7791, 2102212464
        %v7804 = vsel %vm7800, %v7788, %v7803
        %v7805 = vsel %vm7799, %v7802, %v7804
        %v7806 = vsel %vm7798, %v7785, %v7788
        %v7807 = vsel %vm7801, %v7794, 920167782
        %v7808 = vsel %vm7800, %v7791, %v7807
        %v7809 = vsel %vm7799, %v7806, %v7808
        %v7810 = vsel %vm7798, %v7788, %v7791
        %v7811 = vsel %vm7801, %v7797, 1326507024
        %v7812 = vsel %vm7800, %v7794, %v7811
        %v7813 = vsel %vm7799, %v7810, %v7812
        %v7814 = vshll.u32 %v7774, 8
        %v7815 = vmul.u32.u64.compose %v7814, %v7813
        %v7816 = vextract.low.u32 %v7815
        %v7817 = vextract.high.u32 %v7815
        %v7818 = vmul.u32.u64.compose %v7814, %v7809
        %v7819 = vextract.low.u32 %v7818
        %v7820 = vextract.high.u32 %v7818
        %v7821 = vmul.u32 %v7814, %v7805
        %v7822 = vadd.s32 %v7817, %v7819
        %vm7823 = vc.u32 %v7817, %v7819
        %v7824 = vadd.s32 %v7820, 1
        %v7825 = vsel %vm7823, %v7824, %v7820
        %v7826 = vadd.s32 %v7821, %v7825
        %v7827 = vadd.s32 %v7826, 536870912
        %v7828 = vshrl.u32 %v7827, 30
        %v7829 = vshll.u32 %v7828, 30
        %v7830 = vsub.s32 %v7826, %v7829
        %vm7831 = vcmp.lt.s32.totalorder %v7830, 0
        %v7832 = vsub.s32 0, %v7830
        %v7833 = vsel %vm7831, %v7832, %v7830
        %v7834 = vclz %v7833
        %v7835 = vsub.s32 %v7834, 2
        %vm7836 = vcmp.gt.s32.totalorder 0, %v7835
        %v7837 = vsel %vm7836, 0, %v7835
        %v7838 = vsub.s32 32, %v7837
        %v7839 = vshll.u32 %v7830, %v7837
        %v7840 = vshrl.u32 %v7822, %v7838
        %v7841 = vor.u32 %v7839, %v7840
        %v7842 = vsub.s32 4294967266, %v7837
        %v7843 = vadd.s32 %v7842, 127
        %v7844 = vshll.u32 %v7843, 23
        %v7845 = vor.u32 4788187, %v7844
        %v7846 = vand.u32 2147483647, %v7845
        %v7848 = vcvt.s32.f32 %v7841
        %v7849 = vmul.f32 %v7848, %v7846
        %v7850 = vxor.u32 %v7849, 2147483648
        %v7851 = vsel %vm7768, %v7850, %v7849
        %v7852 = vsub.s32 4, %v7828
        %v7853 = vsel %vm7768, %v7852, %v7828
        %v7854 = vsel %vm7767, %v6617, %v7851
        %v7855 = vsel %vm7767, 0, %v7853
        %v7856 = vcosq.f32.pop %v7854
        %v7857 = vsinq.f32.pop %v7854
        %vm7858 = vweird.f32 %v6617
        %v7859 = vadd.s32 %v7855, 3
        %v7860 = vand.u32 %v7859, 3
        %vm7861 = vcmp.lt.s32.totalorder %v7860, 2
        %vm7862 = vcmp.eq.s32.totalorder %v7860, 0
        %v7863 = vxor.u32 %v7857, 2147483648
        %v7864 = vsel %vm7862, %v7856, %v7863
        %vm7865 = vcmp.eq.s32.totalorder %v7860, 2
        %v7866 = vxor.u32 %v7856, 2147483648
        %v7867 = vsel %vm7865, %v7866, %v7857
        %v7868 = vsel %vm7861, %v7864, %v7867
        %v7869 = vsel %vm7858, nan, %v7868
        %v7870 = vand.u32 2147483647, %v6618
        %vm7871 = vcmp.le.f32.partialorder %v7870, 0.7853982
        %vm7872 = vcmp.lt.s32.totalorder %v6618, 0
        %v7873 = vand.u32 %v6618, 2139095040
        %v7874 = vshrl.u32 %v7873, 23
        %v7875 = vsub.s32 %v7874, 127
        %v7876 = vand.u32 2147483647, %v6618
        %v7877 = vand.u32 %v7876, 8388607
        %v7878 = vor.u32 %v7877, 8388608
        %v7879 = vsub.s32 0, %v7878
        %v7880 = vadd.s32 %v7875, 1
        %vm7881 = vcmp.gt.s32.totalorder %v7880, 0
        %v7882 = vsel %vm7881, %v7880, 0
        %v7883 = vshrl.u32 %v7882, 5
        %v7884 = vand.u32 %v7882, 31
        %v7885 = vsub.s32 32, %v7884
        %v7886 = vshrl.u32 683565275, %v7885
        %v7887 = vshll.u32 683565275, %v7884
        %v7888 = vshrl.u32 2475754826, %v7885
        %v7889 = vor.u32 %v7887, %v7888
        %v7890 = vshll.u32 2475754826, %v7884
        %v7891 = vshrl.u32 2131351028, %v7885
        %v7892 = vor.u32 %v7890, %v7891
        %v7893 = vshll.u32 2131351028, %v7884
        %v7894 = vshrl.u32 2102212464, %v7885
        %v7895 = vor.u32 %v7893, %v7894
        %v7896 = vshll.u32 2102212464, %v7884
        %v7897 = vshrl.u32 920167782, %v7885
        %v7898 = vor.u32 %v7896, %v7897
        %v7899 = vshll.u32 920167782, %v7884
        %v7900 = vshrl.u32 1326507024, %v7885
        %v7901 = vor.u32 %v7899, %v7900
        %vm7902 = vcmp.lt.s32.totalorder %v7883, 1
        %vm7903 = vcmp.lt.s32.totalorder %v7883, 2
        %vm7904 = vcmp.lt.s32.totalorder %v7883, 3
        %vm7905 = vcmp.lt.s32.totalorder %v7883, 4
        %v7906 = vsel %vm7902, %v7886, %v7889
        %v7907 = vsel %vm7905, %v7895, 2102212464
        %v7908 = vsel %vm7904, %v7892, %v7907
        %v7909 = vsel %vm7903, %v7906, %v7908
        %v7910 = vsel %vm7902, %v7889, %v7892
        %v7911 = vsel %vm7905, %v7898, 920167782
        %v7912 = vsel %vm7904, %v7895, %v7911
        %v7913 = vsel %vm7903, %v7910, %v7912
        %v7914 = vsel %vm7902, %v7892, %v7895
        %v7915 = vsel %vm7905, %v7901, 1326507024
        %v7916 = vsel %vm7904, %v7898, %v7915
        %v7917 = vsel %vm7903, %v7914, %v7916
        %v7918 = vshll.u32 %v7878, 8
        %v7919 = vmul.u32.u64.compose %v7918, %v7917
        %v7920 = vextract.low.u32 %v7919
        %v7921 = vextract.high.u32 %v7919
        %v7922 = vmul.u32.u64.compose %v7918, %v7913
        %v7923 = vextract.low.u32 %v7922
        %v7924 = vextract.high.u32 %v7922
        %v7925 = vmul.u32 %v7918, %v7909
        %v7926 = vadd.s32 %v7921, %v7923
        %vm7927 = vc.u32 %v7921, %v7923
        %v7928 = vadd.s32 %v7924, 1
        %v7929 = vsel %vm7927, %v7928, %v7924
        %v7930 = vadd.s32 %v7925, %v7929
        %v7931 = vadd.s32 %v7930, 536870912
        %v7932 = vshrl.u32 %v7931, 30
        %v7933 = vshll.u32 %v7932, 30
        %v7934 = vsub.s32 %v7930, %v7933
        %vm7935 = vcmp.lt.s32.totalorder %v7934, 0
        %v7936 = vsub.s32 0, %v7934
        %v7937 = vsel %vm7935, %v7936, %v7934
        %v7938 = vclz %v7937
        %v7939 = vsub.s32 %v7938, 2
        %vm7940 = vcmp.gt.s32.totalorder 0, %v7939
        %v7941 = vsel %vm7940, 0, %v7939
        %v7942 = vsub.s32 32, %v7941
        %v7943 = vshll.u32 %v7934, %v7941
        %v7944 = vshrl.u32 %v7926, %v7942
        %v7945 = vor.u32 %v7943, %v7944
        %v7946 = vsub.s32 4294967266, %v7941
        %v7947 = vadd.s32 %v7946, 127
        %v7948 = vshll.u32 %v7947, 23
        %v7949 = vor.u32 4788187, %v7948
        %v7950 = vand.u32 2147483647, %v7949
        %v7952 = vcvt.s32.f32 %v7945
        %v7953 = vmul.f32 %v7952, %v7950
        %v7954 = vxor.u32 %v7953, 2147483648
        %v7955 = vsel %vm7872, %v7954, %v7953
        %v7956 = vsub.s32 4, %v7932
        %v7957 = vsel %vm7872, %v7956, %v7932
        %v7958 = vsel %vm7871, %v6618, %v7955
        %v7959 = vsel %vm7871, 0, %v7957
        %v7960 = vcosq.f32.pop %v7958
        %v7961 = vsinq.f32.pop %v7958
        %vm7962 = vweird.f32 %v6618
        %v7963 = vadd.s32 %v7959, 3
        %v7964 = vand.u32 %v7963, 3
        %vm7965 = vcmp.lt.s32.totalorder %v7964, 2
        %vm7966 = vcmp.eq.s32.totalorder %v7964, 0
        %v7967 = vxor.u32 %v7961, 2147483648
        %v7968 = vsel %vm7966, %v7960, %v7967
        %vm7969 = vcmp.eq.s32.totalorder %v7964, 2
        %v7970 = vxor.u32 %v7960, 2147483648
        %v7971 = vsel %vm7969, %v7970, %v7961
        %v7972 = vsel %vm7965, %v7968, %v7971
        %v7973 = vsel %vm7962, nan, %v7972
        %v7974 = vand.u32 2147483647, %v6619
        %vm7975 = vcmp.le.f32.partialorder %v7974, 0.7853982
        %vm7976 = vcmp.lt.s32.totalorder %v6619, 0
        %v7977 = vand.u32 %v6619, 2139095040
        %v7978 = vshrl.u32 %v7977, 23
        %v7979 = vsub.s32 %v7978, 127
        %v7980 = vand.u32 2147483647, %v6619
        %v7981 = vand.u32 %v7980, 8388607
        %v7982 = vor.u32 %v7981, 8388608
        %v7983 = vsub.s32 0, %v7982
        %v7984 = vadd.s32 %v7979, 1
        %vm7985 = vcmp.gt.s32.totalorder %v7984, 0
        %v7986 = vsel %vm7985, %v7984, 0
        %v7987 = vshrl.u32 %v7986, 5
        %v7988 = vand.u32 %v7986, 31
        %v7989 = vsub.s32 32, %v7988
        %v7990 = vshrl.u32 683565275, %v7989
        %v7991 = vshll.u32 683565275, %v7988
        %v7992 = vshrl.u32 2475754826, %v7989
        %v7993 = vor.u32 %v7991, %v7992
        %v7994 = vshll.u32 2475754826, %v7988
        %v7995 = vshrl.u32 2131351028, %v7989
        %v7996 = vor.u32 %v7994, %v7995
        %v7997 = vshll.u32 2131351028, %v7988
        %v7998 = vshrl.u32 2102212464, %v7989
        %v7999 = vor.u32 %v7997, %v7998
        %v8000 = vshll.u32 2102212464, %v7988
        %v8001 = vshrl.u32 920167782, %v7989
        %v8002 = vor.u32 %v8000, %v8001
        %v8003 = vshll.u32 920167782, %v7988
        %v8004 = vshrl.u32 1326507024, %v7989
        %v8005 = vor.u32 %v8003, %v8004
        %vm8006 = vcmp.lt.s32.totalorder %v7987, 1
        %vm8007 = vcmp.lt.s32.totalorder %v7987, 2
        %vm8008 = vcmp.lt.s32.totalorder %v7987, 3
        %vm8009 = vcmp.lt.s32.totalorder %v7987, 4
        %v8010 = vsel %vm8006, %v7990, %v7993
        %v8011 = vsel %vm8009, %v7999, 2102212464
        %v8012 = vsel %vm8008, %v7996, %v8011
        %v8013 = vsel %vm8007, %v8010, %v8012
        %v8014 = vsel %vm8006, %v7993, %v7996
        %v8015 = vsel %vm8009, %v8002, 920167782
        %v8016 = vsel %vm8008, %v7999, %v8015
        %v8017 = vsel %vm8007, %v8014, %v8016
        %v8018 = vsel %vm8006, %v7996, %v7999
        %v8019 = vsel %vm8009, %v8005, 1326507024
        %v8020 = vsel %vm8008, %v8002, %v8019
        %v8021 = vsel %vm8007, %v8018, %v8020
        %v8022 = vshll.u32 %v7982, 8
        %v8023 = vmul.u32.u64.compose %v8022, %v8021
        %v8024 = vextract.low.u32 %v8023
        %v8025 = vextract.high.u32 %v8023
        %v8026 = vmul.u32.u64.compose %v8022, %v8017
        %v8027 = vextract.low.u32 %v8026
        %v8028 = vextract.high.u32 %v8026
        %v8029 = vmul.u32 %v8022, %v8013
        %v8030 = vadd.s32 %v8025, %v8027
        %vm8031 = vc.u32 %v8025, %v8027
        %v8032 = vadd.s32 %v8028, 1
        %v8033 = vsel %vm8031, %v8032, %v8028
        %v8034 = vadd.s32 %v8029, %v8033
        %v8035 = vadd.s32 %v8034, 536870912
        %v8036 = vshrl.u32 %v8035, 30
        %v8037 = vshll.u32 %v8036, 30
        %v8038 = vsub.s32 %v8034, %v8037
        %vm8039 = vcmp.lt.s32.totalorder %v8038, 0
        %v8040 = vsub.s32 0, %v8038
        %v8041 = vsel %vm8039, %v8040, %v8038
        %v8042 = vclz %v8041
        %v8043 = vsub.s32 %v8042, 2
        %vm8044 = vcmp.gt.s32.totalorder 0, %v8043
        %v8045 = vsel %vm8044, 0, %v8043
        %v8046 = vsub.s32 32, %v8045
        %v8047 = vshll.u32 %v8038, %v8045
        %v8048 = vshrl.u32 %v8030, %v8046
        %v8049 = vor.u32 %v8047, %v8048
        %v8050 = vsub.s32 4294967266, %v8045
        %v8051 = vadd.s32 %v8050, 127
        %v8052 = vshll.u32 %v8051, 23
        %v8053 = vor.u32 4788187, %v8052
        %v8054 = vand.u32 2147483647, %v8053
        %v8056 = vcvt.s32.f32 %v8049
        %v8057 = vmul.f32 %v8056, %v8054
        %v8058 = vxor.u32 %v8057, 2147483648
        %v8059 = vsel %vm7976, %v8058, %v8057
        %v8060 = vsub.s32 4, %v8036
        %v8061 = vsel %vm7976, %v8060, %v8036
        %v8062 = vsel %vm7975, %v6619, %v8059
        %v8063 = vsel %vm7975, 0, %v8061
        %v8064 = vcosq.f32.pop %v8062
        %v8065 = vsinq.f32.pop %v8062
        %vm8066 = vweird.f32 %v6619
        %v8067 = vadd.s32 %v8063, 3
        %v8068 = vand.u32 %v8067, 3
        %vm8069 = vcmp.lt.s32.totalorder %v8068, 2
        %vm8070 = vcmp.eq.s32.totalorder %v8068, 0
        %v8071 = vxor.u32 %v8065, 2147483648
        %v8072 = vsel %vm8070, %v8064, %v8071
        %vm8073 = vcmp.eq.s32.totalorder %v8068, 2
        %v8074 = vxor.u32 %v8064, 2147483648
        %v8075 = vsel %vm8073, %v8074, %v8065
        %v8076 = vsel %vm8069, %v8072, %v8075
        %v8077 = vsel %vm8066, nan, %v8076
        %v8078 = vand.u32 2147483647, %v6620
        %vm8079 = vcmp.le.f32.partialorder %v8078, 0.7853982
        %vm8080 = vcmp.lt.s32.totalorder %v6620, 0
        %v8081 = vand.u32 %v6620, 2139095040
        %v8082 = vshrl.u32 %v8081, 23
        %v8083 = vsub.s32 %v8082, 127
        %v8084 = vand.u32 2147483647, %v6620
        %v8085 = vand.u32 %v8084, 8388607
        %v8086 = vor.u32 %v8085, 8388608
        %v8087 = vsub.s32 0, %v8086
        %v8088 = vadd.s32 %v8083, 1
        %vm8089 = vcmp.gt.s32.totalorder %v8088, 0
        %v8090 = vsel %vm8089, %v8088, 0
        %v8091 = vshrl.u32 %v8090, 5
        %v8092 = vand.u32 %v8090, 31
        %v8093 = vsub.s32 32, %v8092
        %v8094 = vshrl.u32 683565275, %v8093
        %v8095 = vshll.u32 683565275, %v8092
        %v8096 = vshrl.u32 2475754826, %v8093
        %v8097 = vor.u32 %v8095, %v8096
        %v8098 = vshll.u32 2475754826, %v8092
        %v8099 = vshrl.u32 2131351028, %v8093
        %v8100 = vor.u32 %v8098, %v8099
        %v8101 = vshll.u32 2131351028, %v8092
        %v8102 = vshrl.u32 2102212464, %v8093
        %v8103 = vor.u32 %v8101, %v8102
        %v8104 = vshll.u32 2102212464, %v8092
        %v8105 = vshrl.u32 920167782, %v8093
        %v8106 = vor.u32 %v8104, %v8105
        %v8107 = vshll.u32 920167782, %v8092
        %v8108 = vshrl.u32 1326507024, %v8093
        %v8109 = vor.u32 %v8107, %v8108
        %vm8110 = vcmp.lt.s32.totalorder %v8091, 1
        %vm8111 = vcmp.lt.s32.totalorder %v8091, 2
        %vm8112 = vcmp.lt.s32.totalorder %v8091, 3
        %vm8113 = vcmp.lt.s32.totalorder %v8091, 4
        %v8114 = vsel %vm8110, %v8094, %v8097
        %v8115 = vsel %vm8113, %v8103, 2102212464
        %v8116 = vsel %vm8112, %v8100, %v8115
        %v8117 = vsel %vm8111, %v8114, %v8116
        %v8118 = vsel %vm8110, %v8097, %v8100
        %v8119 = vsel %vm8113, %v8106, 920167782
        %v8120 = vsel %vm8112, %v8103, %v8119
        %v8121 = vsel %vm8111, %v8118, %v8120
        %v8122 = vsel %vm8110, %v8100, %v8103
        %v8123 = vsel %vm8113, %v8109, 1326507024
        %v8124 = vsel %vm8112, %v8106, %v8123
        %v8125 = vsel %vm8111, %v8122, %v8124
        %v8126 = vshll.u32 %v8086, 8
        %v8127 = vmul.u32.u64.compose %v8126, %v8125
        %v8128 = vextract.low.u32 %v8127
        %v8129 = vextract.high.u32 %v8127
        %v8130 = vmul.u32.u64.compose %v8126, %v8121
        %v8131 = vextract.low.u32 %v8130
        %v8132 = vextract.high.u32 %v8130
        %v8133 = vmul.u32 %v8126, %v8117
        %v8134 = vadd.s32 %v8129, %v8131
        %vm8135 = vc.u32 %v8129, %v8131
        %v8136 = vadd.s32 %v8132, 1
        %v8137 = vsel %vm8135, %v8136, %v8132
        %v8138 = vadd.s32 %v8133, %v8137
        %v8139 = vadd.s32 %v8138, 536870912
        %v8140 = vshrl.u32 %v8139, 30
        %v8141 = vshll.u32 %v8140, 30
        %v8142 = vsub.s32 %v8138, %v8141
        %vm8143 = vcmp.lt.s32.totalorder %v8142, 0
        %v8144 = vsub.s32 0, %v8142
        %v8145 = vsel %vm8143, %v8144, %v8142
        %v8146 = vclz %v8145
        %v8147 = vsub.s32 %v8146, 2
        %vm8148 = vcmp.gt.s32.totalorder 0, %v8147
        %v8149 = vsel %vm8148, 0, %v8147
        %v8150 = vsub.s32 32, %v8149
        %v8151 = vshll.u32 %v8142, %v8149
        %v8152 = vshrl.u32 %v8134, %v8150
        %v8153 = vor.u32 %v8151, %v8152
        %v8154 = vsub.s32 4294967266, %v8149
        %v8155 = vadd.s32 %v8154, 127
        %v8156 = vshll.u32 %v8155, 23
        %v8157 = vor.u32 4788187, %v8156
        %v8158 = vand.u32 2147483647, %v8157
        %v8160 = vcvt.s32.f32 %v8153
        %v8161 = vmul.f32 %v8160, %v8158
        %v8162 = vxor.u32 %v8161, 2147483648
        %v8163 = vsel %vm8080, %v8162, %v8161
        %v8164 = vsub.s32 4, %v8140
        %v8165 = vsel %vm8080, %v8164, %v8140
        %v8166 = vsel %vm8079, %v6620, %v8163
        %v8167 = vsel %vm8079, 0, %v8165
        %v8168 = vcosq.f32.pop %v8166
        %v8169 = vsinq.f32.pop %v8166
        %vm8170 = vweird.f32 %v6620
        %v8171 = vadd.s32 %v8167, 3
        %v8172 = vand.u32 %v8171, 3
        %vm8173 = vcmp.lt.s32.totalorder %v8172, 2
        %vm8174 = vcmp.eq.s32.totalorder %v8172, 0
        %v8175 = vxor.u32 %v8169, 2147483648
        %v8176 = vsel %vm8174, %v8168, %v8175
        %vm8177 = vcmp.eq.s32.totalorder %v8172, 2
        %v8178 = vxor.u32 %v8168, 2147483648
        %v8179 = vsel %vm8177, %v8178, %v8169
        %v8180 = vsel %vm8173, %v8176, %v8179
        %v8181 = vsel %vm8170, nan, %v8180
        %v8182 = vand.u32 2147483647, %v6621
        %vm8183 = vcmp.le.f32.partialorder %v8182, 0.7853982
        %vm8184 = vcmp.lt.s32.totalorder %v6621, 0
        %v8185 = vand.u32 %v6621, 2139095040
        %v8186 = vshrl.u32 %v8185, 23
        %v8187 = vsub.s32 %v8186, 127
        %v8188 = vand.u32 2147483647, %v6621
        %v8189 = vand.u32 %v8188, 8388607
        %v8190 = vor.u32 %v8189, 8388608
        %v8191 = vsub.s32 0, %v8190
        %v8192 = vadd.s32 %v8187, 1
        %vm8193 = vcmp.gt.s32.totalorder %v8192, 0
        %v8194 = vsel %vm8193, %v8192, 0
        %v8195 = vshrl.u32 %v8194, 5
        %v8196 = vand.u32 %v8194, 31
        %v8197 = vsub.s32 32, %v8196
        %v8198 = vshrl.u32 683565275, %v8197
        %v8199 = vshll.u32 683565275, %v8196
        %v8200 = vshrl.u32 2475754826, %v8197
        %v8201 = vor.u32 %v8199, %v8200
        %v8202 = vshll.u32 2475754826, %v8196
        %v8203 = vshrl.u32 2131351028, %v8197
        %v8204 = vor.u32 %v8202, %v8203
        %v8205 = vshll.u32 2131351028, %v8196
        %v8206 = vshrl.u32 2102212464, %v8197
        %v8207 = vor.u32 %v8205, %v8206
        %v8208 = vshll.u32 2102212464, %v8196
        %v8209 = vshrl.u32 920167782, %v8197
        %v8210 = vor.u32 %v8208, %v8209
        %v8211 = vshll.u32 920167782, %v8196
        %v8212 = vshrl.u32 1326507024, %v8197
        %v8213 = vor.u32 %v8211, %v8212
        %vm8214 = vcmp.lt.s32.totalorder %v8195, 1
        %vm8215 = vcmp.lt.s32.totalorder %v8195, 2
        %vm8216 = vcmp.lt.s32.totalorder %v8195, 3
        %vm8217 = vcmp.lt.s32.totalorder %v8195, 4
        %v8218 = vsel %vm8214, %v8198, %v8201
        %v8219 = vsel %vm8217, %v8207, 2102212464
        %v8220 = vsel %vm8216, %v8204, %v8219
        %v8221 = vsel %vm8215, %v8218, %v8220
        %v8222 = vsel %vm8214, %v8201, %v8204
        %v8223 = vsel %vm8217, %v8210, 920167782
        %v8224 = vsel %vm8216, %v8207, %v8223
        %v8225 = vsel %vm8215, %v8222, %v8224
        %v8226 = vsel %vm8214, %v8204, %v8207
        %v8227 = vsel %vm8217, %v8213, 1326507024
        %v8228 = vsel %vm8216, %v8210, %v8227
        %v8229 = vsel %vm8215, %v8226, %v8228
        %v8230 = vshll.u32 %v8190, 8
        %v8231 = vmul.u32.u64.compose %v8230, %v8229
        %v8232 = vextract.low.u32 %v8231
        %v8233 = vextract.high.u32 %v8231
        %v8234 = vmul.u32.u64.compose %v8230, %v8225
        %v8235 = vextract.low.u32 %v8234
        %v8236 = vextract.high.u32 %v8234
        %v8237 = vmul.u32 %v8230, %v8221
        %v8238 = vadd.s32 %v8233, %v8235
        %vm8239 = vc.u32 %v8233, %v8235
        %v8240 = vadd.s32 %v8236, 1
        %v8241 = vsel %vm8239, %v8240, %v8236
        %v8242 = vadd.s32 %v8237, %v8241
        %v8243 = vadd.s32 %v8242, 536870912
        %v8244 = vshrl.u32 %v8243, 30
        %v8245 = vshll.u32 %v8244, 30
        %v8246 = vsub.s32 %v8242, %v8245
        %vm8247 = vcmp.lt.s32.totalorder %v8246, 0
        %v8248 = vsub.s32 0, %v8246
        %v8249 = vsel %vm8247, %v8248, %v8246
        %v8250 = vclz %v8249
        %v8251 = vsub.s32 %v8250, 2
        %vm8252 = vcmp.gt.s32.totalorder 0, %v8251
        %v8253 = vsel %vm8252, 0, %v8251
        %v8254 = vsub.s32 32, %v8253
        %v8255 = vshll.u32 %v8246, %v8253
        %v8256 = vshrl.u32 %v8238, %v8254
        %v8257 = vor.u32 %v8255, %v8256
        %v8258 = vsub.s32 4294967266, %v8253
        %v8259 = vadd.s32 %v8258, 127
        %v8260 = vshll.u32 %v8259, 23
        %v8261 = vor.u32 4788187, %v8260
        %v8262 = vand.u32 2147483647, %v8261
        %v8264 = vcvt.s32.f32 %v8257
        %v8265 = vmul.f32 %v8264, %v8262
        %v8266 = vxor.u32 %v8265, 2147483648
        %v8267 = vsel %vm8184, %v8266, %v8265
        %v8268 = vsub.s32 4, %v8244
        %v8269 = vsel %vm8184, %v8268, %v8244
        %v8270 = vsel %vm8183, %v6621, %v8267
        %v8271 = vsel %vm8183, 0, %v8269
        %v8272 = vcosq.f32.pop %v8270
        %v8273 = vsinq.f32.pop %v8270
        %vm8274 = vweird.f32 %v6621
        %v8275 = vadd.s32 %v8271, 3
        %v8276 = vand.u32 %v8275, 3
        %vm8277 = vcmp.lt.s32.totalorder %v8276, 2
        %vm8278 = vcmp.eq.s32.totalorder %v8276, 0
        %v8279 = vxor.u32 %v8273, 2147483648
        %v8280 = vsel %vm8278, %v8272, %v8279
        %vm8281 = vcmp.eq.s32.totalorder %v8276, 2
        %v8282 = vxor.u32 %v8272, 2147483648
        %v8283 = vsel %vm8281, %v8282, %v8273
        %v8284 = vsel %vm8277, %v8280, %v8283
        %v8285 = vsel %vm8274, nan, %v8284
        %v8286 = vld [vmem:[%s9] sm:$0xf]
        %v8287 = vld [vmem:[%s10] sm:$0xf]
        %8289 = vset.pattern.permute.xlu0 0
        %8290 = vperm.xlu0 %8289, %v8287
        %v8291 = vpop.permute.xlu0 %8290
        %v8294 = vsel %vm2619, %v8286, 0
        %8296 = vmatprep.subr.mxu0 0.0
        %8297 = vmatpush1.msra.mxu0 0.0
        %8298 = vmatprep.subr.mxu0 0.0
        %8299 = vmatpush1.msra.mxu0 0.0
        %8300 = vmatprep.subr.mxu0 0.0
        %8301 = vmatpush1.msra.mxu0 0.0
        %8302 = vmatprep.subr.mxu0 0.0
        %8303 = vmatpush1.msra.mxu0 0.0
        %8304 = vmatprep.subr.mxu0 0.0
        %8305 = vmatpush1.msra.mxu0 0.0
        %8306 = vmatprep.subr.mxu0 0.0
        %8307 = vmatpush1.msra.mxu0 0.0
        %8308 = vmatprep.subr.mxu0 0.0
        %8309 = vmatpush1.msra.mxu0 0.0
        %8310 = vmatprep.subr.mxu0 0.0
        %8311 = vmatpush1.msra.mxu0 0.0
        %8312 = vmatprep.subr.mxu0 0.0
        %8313 = vmatpush1.msra.mxu0 0.0
        %8314 = vmatprep.subr.mxu0 0.0
        %8315 = vmatpush1.msra.mxu0 0.0
        %8316 = vmatprep.subr.mxu0 0.0
        %8317 = vmatpush1.msra.mxu0 0.0
        %8318 = vmatprep.subr.mxu0 0.0
        %8319 = vmatpush1.msra.mxu0 0.0
        %8320 = vmatprep.subr.mxu0 %v8077
        %8321 = vmatpush1.msra.mxu0 %v7973
        %8322 = vmatprep.subr.mxu0 %v7661
        %8323 = vmatpush1.msra.mxu0 %v7557
        %8324 = vmatprep.subr.mxu0 %v7245
        %8325 = vmatpush1.msra.mxu0 %v7141
        %8326 = vmatprep.subr.mxu0 %v6829
        %8327 = vmatpush1.msra.mxu0 %v6725
        %8328 = vmatprep.subr.mxu0 0.0
        %8329 = vmatpush2.msra.mxu0 0.0
        %8330 = vmatprep.subr.mxu0 0.0
        %8331 = vmatpush2.msra.mxu0 0.0
        %8332 = vmatprep.subr.mxu0 0.0
        %8333 = vmatpush2.msra.mxu0 0.0
        %8334 = vmatprep.subr.mxu0 0.0
        %8335 = vmatpush2.msra.mxu0 0.0
        %8336 = vmatprep.subr.mxu0 0.0
        %8337 = vmatpush2.msra.mxu0 0.0
        %8338 = vmatprep.subr.mxu0 0.0
        %8339 = vmatpush2.msra.mxu0 0.0
        %8340 = vmatprep.subr.mxu0 0.0
        %8341 = vmatpush2.msra.mxu0 0.0
        %8342 = vmatprep.subr.mxu0 0.0
        %8343 = vmatpush2.msra.mxu0 0.0
        %8344 = vmatprep.subr.mxu0 0.0
        %8345 = vmatpush2.msra.mxu0 0.0
        %8346 = vmatprep.subr.mxu0 0.0
        %8347 = vmatpush2.msra.mxu0 0.0
        %8348 = vmatprep.subr.mxu0 0.0
        %8349 = vmatpush2.msra.mxu0 0.0
        %8350 = vmatprep.subr.mxu0 0.0
        %8351 = vmatpush2.msra.mxu0 0.0
        %8352 = vmatprep.subr.mxu0 0.0
        %8353 = vmatpush2.msra.mxu0 0.0
        %8354 = vmatprep.subr.mxu0 0.0
        %8355 = vmatpush2.msra.mxu0 0.0
        %8356 = vmatprep.subr.mxu0 0.0
        %8357 = vmatpush2.msra.mxu0 0.0
        %8358 = vmatprep.subr.mxu0 0.0
        %8359 = vmatpush2.msra.mxu0 0.0
        %8360 = vmatprep.mubr.f32.mxu0 0.0
        %8361 = vmatmul.mubr.f32.gmra.mxu0 %v8294
        %v8362 = vpop.f32.mrf.mxu0
        %v8363 = vadd.f32 %v8291, %v8362
        %v8364 = vpop.f32.mrf.mxu0
        %v8365 = vadd.f32 %v8291, %v8364
        %8366 = vdwg.mxu0
        %8367 = vmatprep.subr.mxu0 0.0
        %8368 = vmatpush1.msra.mxu0 0.0
        %8369 = vmatprep.subr.mxu0 0.0
        %8370 = vmatpush1.msra.mxu0 0.0
        %8371 = vmatprep.subr.mxu0 0.0
        %8372 = vmatpush1.msra.mxu0 0.0
        %8373 = vmatprep.subr.mxu0 0.0
        %8374 = vmatpush1.msra.mxu0 0.0
        %8375 = vmatprep.subr.mxu0 0.0
        %8376 = vmatpush1.msra.mxu0 0.0
        %8377 = vmatprep.subr.mxu0 0.0
        %8378 = vmatpush1.msra.mxu0 0.0
        %8379 = vmatprep.subr.mxu0 0.0
        %8380 = vmatpush1.msra.mxu0 0.0
        %8381 = vmatprep.subr.mxu0 0.0
        %8382 = vmatpush1.msra.mxu0 0.0
        %8383 = vmatprep.subr.mxu0 0.0
        %8384 = vmatpush1.msra.mxu0 0.0
        %8385 = vmatprep.subr.mxu0 0.0
        %8386 = vmatpush1.msra.mxu0 0.0
        %8387 = vmatprep.subr.mxu0 0.0
        %8388 = vmatpush1.msra.mxu0 0.0
        %8389 = vmatprep.subr.mxu0 0.0
        %8390 = vmatpush1.msra.mxu0 0.0
        %8391 = vmatprep.subr.mxu0 %v8285
        %8392 = vmatpush1.msra.mxu0 %v8181
        %8393 = vmatprep.subr.mxu0 %v7869
        %8394 = vmatpush1.msra.mxu0 %v7765
        %8395 = vmatprep.subr.mxu0 %v7453
        %8396 = vmatpush1.msra.mxu0 %v7349
        %8397 = vmatprep.subr.mxu0 %v7037
        %8398 = vmatpush1.msra.mxu0 %v6933
        %8399 = vmatprep.subr.mxu0 0.0
        %8400 = vmatpush2.msra.mxu0 0.0
        %8401 = vmatprep.subr.mxu0 0.0
        %8402 = vmatpush2.msra.mxu0 0.0
        %8403 = vmatprep.subr.mxu0 0.0
        %8404 = vmatpush2.msra.mxu0 0.0
        %8405 = vmatprep.subr.mxu0 0.0
        %8406 = vmatpush2.msra.mxu0 0.0
        %8407 = vmatprep.subr.mxu0 0.0
        %8408 = vmatpush2.msra.mxu0 0.0
        %8409 = vmatprep.subr.mxu0 0.0
        %8410 = vmatpush2.msra.mxu0 0.0
        %8411 = vmatprep.subr.mxu0 0.0
        %8412 = vmatpush2.msra.mxu0 0.0
        %8413 = vmatprep.subr.mxu0 0.0
        %8414 = vmatpush2.msra.mxu0 0.0
        %8415 = vmatprep.subr.mxu0 0.0
        %8416 = vmatpush2.msra.mxu0 0.0
        %8417 = vmatprep.subr.mxu0 0.0
        %8418 = vmatpush2.msra.mxu0 0.0
        %8419 = vmatprep.subr.mxu0 0.0
        %8420 = vmatpush2.msra.mxu0 0.0
        %8421 = vmatprep.subr.mxu0 0.0
        %8422 = vmatpush2.msra.mxu0 0.0
        %8423 = vmatprep.subr.mxu0 0.0
        %8424 = vmatpush2.msra.mxu0 0.0
        %8425 = vmatprep.subr.mxu0 0.0
        %8426 = vmatpush2.msra.mxu0 0.0
        %8427 = vmatprep.subr.mxu0 0.0
        %8428 = vmatpush2.msra.mxu0 0.0
        %8429 = vmatprep.subr.mxu0 0.0
        %8430 = vmatpush2.msra.mxu0 0.0
        %8431 = vmatprep.mubr.f32.mxu0 0.0
        %8432 = vmatmul.mubr.f32.gmra.mxu0 %v8294
        %v8433 = vpop.f32.mrf.mxu0
        %v8434 = vadd.f32 %v8291, %v8433
        %v8435 = vpop.f32.mrf.mxu0
        %v8436 = vadd.f32 %v8291, %v8435
        %8437 = vdwg.mxu0
        %v8442 = vcombine.low %v8363, %v8365
        %v8443 = vcombine.low %v8434, %v8436
        %8446 = vst [vmem:[%s419] sm:$0xff] %v8442
        %8447 = vst [vmem:[%s419 + $0x8] sm:$0xff] %v8443
        %s8448 = sand.u32 %s290, 1
        %s8449 = scalar_lea.sflag [#allocation3], %s8448
        %s8450 = sand.u32 %s290, 1
        %s8451 = smul.addr %s8450, 16
        %s8452 = scalar_lea.vmem [#allocation2], %s8451
        // Predicated region
        $region65: #{tpu_custom_call.1} parent=63 // pred_check
          %p8453 = pneg %p300
        $region66: #{tpu_custom_call.1} parent=63 // pred_check_branch
          %8455 = sbr.rel (%p8453) target = $region68
        $region67: #{tpu_custom_call.1} parent=63 // pred_region
          %s8456 = smul.u32 4, %s30
          %s8458 = ssub.s32 256, 256
          %8459 = vsyncadd %s8449, %s8458
          %s8460 = smul.addr %s29, 8
          %s8461 = sadd.s32 %s8456, %s8460
          %s8462 = smul.addr %s8461, 64
          %s8463 = scalar_lea.hbm %s11, %s8462
          %s8465 = sshll.u32 %s8452, 4
          %s8466 = int_to_ptr.vmem [resolvable:$true] %s8465
          %8468 = dma.vmem_to_hbm [thread:$0]  %s8466, 256, %s8463, %s8449
        $region68: #{tpu_custom_call.1} parent=63 // pred_fallthru
          _
      $region64: #{tpu_custom_call.1} parent=5 // pred_fallthru
        _
      %p8469 = scmp.le.s32.totalorder 2, %s20
      // Predicated region
      $region69: #{tpu_custom_call.1} parent=5 // pred_check
        %p8470 = pneg %p8469
      $region70: #{tpu_custom_call.1} parent=5 // pred_check_branch
        %8472 = sbr.rel (%p8470) target = $region72
      $region71: #{tpu_custom_call.1} parent=5 // pred_region
        %s8473 = ssub.s32 %s20, 2
        // Predicated region
        $region73: #{tpu_custom_call.1} parent=71 // pred_check
          %p8474 = pneg %p306
        $region74: #{tpu_custom_call.1} parent=71 // pred_check_branch
          %8476 = sbr.rel (%p8474) target = $region76
        $region75: #{tpu_custom_call.1} parent=71 // pred_region
          %s8477 = sand.u32 %s291, 1
          %s8478 = scalar_lea.sflag [#allocation3], %s8477
          %s8479 = sand.u32 %s291, 1
          %s8480 = smul.addr %s8479, 16
          %s8481 = scalar_lea.vmem [#allocation2], %s8480
          %8482 = dma.done %s8478, 256
        $region76: #{tpu_custom_call.1} parent=71 // pred_fallthru
          _
      $region72: #{tpu_custom_call.1} parent=5 // pred_fallthru
        _
    $region6: #{tpu_custom_call.1} parent=1 // loop_footer
      %s24 = sadd.s32 1, %s20
    $region7: #{tpu_custom_call.1} parent=1 // loop_footer_branch
      %19 = sbr.rel target = $region3
    $region8: #{tpu_custom_call.1} parent=1 // loop_exit
      _
    %8483 = vsyncpa [#allocation3], 1
    %s8484 = scalar_lea.sflag [#allocation3], 1
    %8485 = vsyncpa %s8484, 1

</llo_original>
